<compile_context>
chip_gen: v5e
topology: v5e:2x2
jax: 0.10.0
libtpu: 0.0.40
codegen_flags: <defaults>
</compile_context>

<pallas_src>
import functools

import jax
import jax.numpy as jnp
from jax.experimental import pallas as pl
from jax.experimental.pallas import tpu as pltpu

MXU_INPUT_DTYPE = jnp.float32   # set to jnp.bfloat16 on v6e/v7x for the fast MXU path
_EPS = 1e-5


# ---------------------------------------------------------------------------
# Pallas kernels
# ---------------------------------------------------------------------------
def _mm_epilogue_kernel(a_ref, b_ref, bias_ref, o_ref, *, act):
    """(tm, K) @ (K, OC) with fused bias + activation epilogue (full K per block)."""
    out = jnp.dot(a_ref[...], b_ref[...], preferred_element_type=jnp.float32)
    out = out + bias_ref[...]
    if act == "relu":
        out = jnp.maximum(out, 0.0)
    elif act == "tanh":
        out = jnp.tanh(out)
    o_ref[...] = out.astype(o_ref.dtype)


def _mm_instnorm_kernel(a_ref, b_ref, o_ref, *, eps, relu):
    """One image per grid step: conv matmul + InstanceNorm(+ReLU), fully fused."""
    out = jnp.dot(a_ref[...], b_ref[...], preferred_element_type=jnp.float32)  # (HW, OC)
    mean = jnp.mean(out, axis=0, keepdims=True)
    xc = out - mean
    var = jnp.mean(xc * xc, axis=0, keepdims=True)        # biased var, matches PyTorch
    y = xc * jax.lax.rsqrt(var + eps)
    if relu:
        y = jnp.maximum(y, 0.0)
    o_ref[...] = y


def _instnorm_kernel(x_ref, o_ref, *, eps, relu):
    """Lane-dense InstanceNorm(+ReLU): block = one image, layout (1, HW, C)."""
    x = x_ref[...]
    mean = jnp.mean(x, axis=1, keepdims=True)
    xc = x - mean
    var = jnp.mean(xc * xc, axis=1, keepdims=True)
    y = xc * jax.lax.rsqrt(var + eps)
    if relu:
        y = jnp.maximum(y, 0.0)
    o_ref[...] = y


# ---------------------------------------------------------------------------
# Pallas wrappers
# ---------------------------------------------------------------------------
def _pick_tm(M):
    if M % 256 == 0 and M > 256:
        return 256
    if M % 128 == 0 and M > 128:
        return 128
    return M        # full-M block (block dim == array dim is always legal)


def matmul_bias_act(a, b, bias=None, act=None):
    """(M, K) @ (K, OC) + bias (+act). Full-K blocks, 1-D parallel grid over M."""
    M, K = a.shape
    OC = b.shape[1]
    tm = _pick_tm(M)
    if bias is None:
        bias = jnp.zeros((OC,), jnp.float32)
    bias2 = bias.reshape(1, OC).astype(jnp.float32)
    return pl.pallas_call(
        functools.partial(_mm_epilogue_kernel, act=act),
        out_shape=jax.ShapeDtypeStruct((M, OC), jnp.float32),
        grid_spec=pltpu.PrefetchScalarGridSpec(
            num_scalar_prefetch=0,
            grid=(M // tm,),
            in_specs=[pl.BlockSpec((tm, K), lambda i: (i, 0)),
                      pl.BlockSpec((K, OC), lambda i: (0, 0)),
                      pl.BlockSpec((1, OC), lambda i: (0, 0))],
            out_specs=pl.BlockSpec((tm, OC), lambda i: (i, 0))),
        compiler_params=pltpu.CompilerParams(dimension_semantics=("parallel",)),
    )(a.astype(MXU_INPUT_DTYPE), b.astype(MXU_INPUT_DTYPE), bias2)


def matmul_instnorm(patches, wmat, n_imgs, hw, relu=True, eps=_EPS):
    """Fused conv-matmul + InstanceNorm(+ReLU); one image per grid step."""
    M, K = patches.shape
    OC = wmat.shape[1]
    return pl.pallas_call(
        functools.partial(_mm_instnorm_kernel, eps=eps, relu=relu),
        out_shape=jax.ShapeDtypeStruct((M, OC), jnp.float32),
        grid_spec=pltpu.PrefetchScalarGridSpec(
            num_scalar_prefetch=0,
            grid=(n_imgs,),
            in_specs=[pl.BlockSpec((hw, K), lambda n: (n, 0)),
                      pl.BlockSpec((K, OC), lambda n: (0, 0))],
            out_specs=pl.BlockSpec((hw, OC), lambda n: (n, 0))),
        compiler_params=pltpu.CompilerParams(dimension_semantics=("parallel",)),
    )(patches.astype(MXU_INPUT_DTYPE), wmat.astype(MXU_INPUT_DTYPE))


def instance_norm_rows(x2d, n_imgs, hw, relu=True, eps=_EPS):
    """InstanceNorm(+ReLU) on (N*HW, C) rows; C on the lane axis (lane-dense)."""
    C = x2d.shape[1]
    xr = x2d.reshape(n_imgs, hw, C).astype(jnp.float32)
    y = pl.pallas_call(
        functools.partial(_instnorm_kernel, eps=eps, relu=relu),
        out_shape=jax.ShapeDtypeStruct(xr.shape, jnp.float32),
        grid_spec=pltpu.PrefetchScalarGridSpec(
            num_scalar_prefetch=0,
            grid=(n_imgs,),
            in_specs=[pl.BlockSpec((1, hw, C), lambda n: (n, 0, 0))],
            out_specs=pl.BlockSpec((1, hw, C), lambda n: (n, 0, 0))),
        compiler_params=pltpu.CompilerParams(dimension_semantics=("parallel",)),
    )(xr)
    return y.reshape(n_imgs * hw, C)


# ---------------------------------------------------------------------------
# Conv lowering (im2col glue in JAX, matmul + epilogue in Pallas)
# ---------------------------------------------------------------------------
def _im2col_nhwc(x, kh, kw, stride):
    N, H, W, C = x.shape
    OH = (H - kh) // stride + 1
    OW = (W - kw) // stride + 1
    cols = []
    for i in range(kh):
        for j in range(kw):
            cols.append(x[:, i:i + (OH - 1) * stride + 1:stride,
                          j:j + (OW - 1) * stride + 1:stride, :])
    patches = jnp.concatenate(cols, axis=-1)          # K ordering = (ki, kj, c)
    return patches.reshape(N * OH * OW, kh * kw * C), OH, OW


def _conv_operands(x, w, stride, padding, pad_mode):
    if padding > 0:
        mode = 'reflect' if pad_mode == 'reflect' else 'constant'
        x = jnp.pad(x, ((0, 0), (padding, padding), (padding, padding), (0, 0)),
                    mode=mode)
    OC, IC, kh, kw = w.shape
    patches, OH, OW = _im2col_nhwc(x, kh, kw, stride)
    wmat = w.transpose(2, 3, 1, 0).reshape(kh * kw * IC, OC)   # matches patch K order
    return patches, wmat, OH, OW


def conv2d(x, w, bias=None, stride=1, padding=0, pad_mode='zeros', act=None):
    """Plain conv (NHWC activations, PyTorch OIHW weights); bias/act fused."""
    N = x.shape[0]
    patches, wmat, OH, OW = _conv_operands(x, w, stride, padding, pad_mode)
    out = matmul_bias_act(patches, wmat, bias=bias, act=act)
    return out.reshape(N, OH, OW, wmat.shape[1])


def conv_in_block(x, w, stride, padding, relu=True):
    """Reflect-padded conv + InstanceNorm(+ReLU). Conv bias dropped (IN removes it)."""
    N = x.shape[0]
    patches, wmat, OH, OW = _conv_operands(x, w, stride, padding, 'reflect')
    hw, OC = OH * OW, wmat.shape[1]
    if hw % 8 == 0:          # per-image block is sublane-aligned -> fully fused kernel
        out = matmul_instnorm(patches, wmat, N, hw, relu=relu)
    else:                    # tiny deep layers (e.g. 2x2): matmul + lane-dense IN kernel
        out = matmul_bias_act(patches, wmat)
        out = instance_norm_rows(out, N, hw, relu=relu)
    return out.reshape(N, OH, OW, OC)


def conv_transpose_in_block(x, w):
    """ConvTranspose2d(k=3, s=2, p=1, op=1) + InstanceNorm + ReLU (bias dropped).

    Decomposed into 4 stride-phase sub-convolutions expressed as ONE matmul over
    2x2 patches of the bottom/right zero-padded input (K = 4*C instead of the
    zero-dilated 9*C with 75% zeros)."""
    N, H, W, C = x.shape
    IC, OC, kh, kw = w.shape
    assert (kh, kw) == (3, 3) and IC == C
    xp = jnp.pad(x, ((0, 0), (0, 1), (0, 1), (0, 0)))
    patches, _, _ = _im2col_nhwc(xp, 2, 2, 1)                   # (N*H*W, 4*C)
    # Output pixel (2i+a, 2j+b) uses input tap (i+dy, j+dx) with kernel element (ky, kx).
    wb = jnp.zeros((2, 2, C, 2, 2, OC), jnp.float32)
    for a in range(2):
        for dy in range(2):
            if a == 0 and dy == 1:
                continue
            ky = 1 if a == 0 else (0 if dy == 1 else 2)
            for b in range(2):
                for dx in range(2):
                    if b == 0 and dx == 1:
                        continue
                    kx = 1 if b == 0 else (0 if dx == 1 else 2)
                    wb = wb.at[dy, dx, :, a, b, :].set(w[:, :, ky, kx])
    wb = wb.reshape(4 * C, 4 * OC)
    out = matmul_bias_act(patches, wb)                          # (N*H*W, 4*OC)
    out = out.reshape(N, H, W, 2, 2, OC).transpose(0, 1, 3, 2, 4, 5)
    out = out.reshape(N, 2 * H, 2 * W, OC)
    out = instance_norm_rows(out.reshape(N * 4 * H * W, OC), N, 4 * H * W, relu=True)
    return out.reshape(N, 2 * H, 2 * W, OC)


# ---------------------------------------------------------------------------
# CBAM (kept as cheap JAX/XLA glue per perf review — too small for the MXU path)
# ---------------------------------------------------------------------------
# TODO(synk): adaptive pools, the (N, C) FC MLP and the OC=1 7x7 spatial conv stay
# in plain JAX / lax.conv deliberately (routing them through 128x128 MXU tiles is waste).
def channel_attention(x, w1, w2):
    N, H, W, C = x.shape
    cr = w1.shape[0]
    w1m = w1.reshape(cr, C).T
    w2m = w2.reshape(C, cr).T
    avg = jnp.mean(x, axis=(1, 2))
    mx = jnp.max(x, axis=(1, 2))

    def fc(v):
        return jnp.maximum(v @ w1m, 0.0) @ w2m

    att = jax.nn.sigmoid(fc(avg) + fc(mx))
    return x * att[:, None, None, :]


def spatial_attention(x, w):
    """w: (1, 2, 7, 7); zero 'SAME' padding matches PyTorch padding=3."""
    avg = jnp.mean(x, axis=-1, keepdims=True)
    mx = jnp.max(x, axis=-1, keepdims=True)
    s = jnp.concatenate([avg, mx], axis=-1)                   # (N, H, W, 2)
    att = jax.lax.conv_general_dilated(
        s, w.transpose(2, 3, 1, 0), window_strides=(1, 1), padding='SAME',
        dimension_numbers=('NHWC', 'HWIO', 'NHWC'))
    return x * jax.nn.sigmoid(att)


def cbam(x, ca_w1, ca_w2, sa_w):
    return spatial_attention(channel_attention(x, ca_w1, ca_w2), sa_w)


# ---------------------------------------------------------------------------
# Generator forward (NHWC internally; NCHW at the boundaries, matching PyTorch)
# ---------------------------------------------------------------------------
def generator_forward(p, x_nchw):
    x = x_nchw.transpose(0, 2, 3, 1)                          # NCHW -> NHWC once
    x1 = conv_in_block(x, p['initial_w'], stride=1, padding=3)
    x2 = conv_in_block(x1, p['down1_w'], stride=2, padding=1)
    x3 = conv_in_block(x2, p['down2_w'], stride=2, padding=1)
    x4 = conv_in_block(x3, p['down3_w'], stride=2, padding=1)

    x1_att = cbam(x1, p['ca1_w1'], p['ca1_w2'], p['sa1_w'])
    x2_att = cbam(x2, p['ca2_w1'], p['ca2_w2'], p['sa2_w'])
    x3_att = cbam(x3, p['ca3_w1'], p['ca3_w2'], p['sa3_w'])

    h = x4
    for rp in p['res']:
        r = conv_in_block(h, rp['w1'], stride=1, padding=1, relu=True)
        r = conv_in_block(r, rp['w2'], stride=1, padding=1, relu=False)
        h = h + r

    u = conv_transpose_in_block(h, p['up1_w'])
    u = jnp.concatenate([u, x3_att], axis=-1)
    u = conv_transpose_in_block(u, p['up2_w'])
    u = jnp.concatenate([u, x2_att], axis=-1)
    u = conv_transpose_in_block(u, p['up3_w'])
    u = jnp.concatenate([u, x1_att], axis=-1)

    out = conv2d(u, p['final_w'], bias=p['final_b'], stride=1, padding=3,
                 pad_mode='reflect', act='tanh')              # bias + tanh fused
    return out.transpose(0, 3, 1, 2)                          # back to NCHW


# ---------------------------------------------------------------------------
# Deterministic parameter init (PyTorch weight layouts)
# ---------------------------------------------------------------------------
def init_params(key, img_channels=3, nf=16, num_residuals=2, reduction=16):
    keys = iter(jax.random.split(key, 64))

    def conv_w(oc, ic, k):
        scale = 1.0 / float(ic * k * k) ** 0.5
        return jax.random.normal(next(keys), (oc, ic, k, k), jnp.float32) * scale

    def convt_w(ic, oc, k):
        scale = 1.0 / float(oc * k * k) ** 0.5
        return jax.random.normal(next(keys), (ic, oc, k, k), jnp.float32) * scale

    def bias(oc):
        return jax.random.normal(next(keys), (oc,), jnp.float32) * 0.01

    p = {}
    # Note: biases of convs followed by InstanceNorm(affine=False) are created for
    # parity with the PyTorch module but intentionally unused (IN removes them exactly).
    p['initial_w'], p['initial_b'] = conv_w(nf, img_channels, 7), bias(nf)
    p['down1_w'], p['down1_b'] = conv_w(2 * nf, nf, 3), bias(2 * nf)
    p['down2_w'], p['down2_b'] = conv_w(4 * nf, 2 * nf, 3), bias(4 * nf)
    p['down3_w'], p['down3_b'] = conv_w(8 * nf, 4 * nf, 3), bias(8 * nf)

    for i, c in enumerate([nf, 2 * nf, 4 * nf], start=1):
        cr = max(c // reduction, 1)
        p[f'ca{i}_w1'] = conv_w(cr, c, 1)      # bias=False
        p[f'ca{i}_w2'] = conv_w(c, cr, 1)      # bias=False
        p[f'sa{i}_w'] = conv_w(1, 2, 7)        # bias=False

    p['res'] = []
    for _ in range(num_residuals):
        p['res'].append({'w1': conv_w(8 * nf, 8 * nf, 3), 'b1': bias(8 * nf),
                         'w2': conv_w(8 * nf, 8 * nf, 3), 'b2': bias(8 * nf)})

    p['up1_w'], p['up1_b'] = convt_w(8 * nf, 4 * nf, 3), bias(4 * nf)
    p['up2_w'], p['up2_b'] = convt_w(8 * nf, 2 * nf, 3), bias(2 * nf)
    p['up3_w'], p['up3_b'] = convt_w(4 * nf, nf, 3), bias(nf)
    p['final_w'], p['final_b'] = conv_w(img_channels, 2 * nf, 7), bias(img_channels)
    return p


if __name__ == "__main__":
    key = jax.random.PRNGKey(0)
    k_param, k_x = jax.random.split(key)

    IMG_C, NF, NRES = 3, 16, 2
    B, H, W = 2, 16, 16

    params = init_params(k_param, img_channels=IMG_C, nf=NF, num_residuals=NRES)
    x = jax.random.normal(k_x, (B, IMG_C, H, W), jnp.float32)

    fwd = jax.jit(generator_forward)
    out = jax.block_until_ready(fwd(params, x))

    assert out.shape == (B, IMG_C, H, W), out.shape
    assert bool(jnp.all(jnp.isfinite(out)))
    assert bool(jnp.all(jnp.abs(out) <= 1.0))
    print("KERNEL_OK")
</pallas_src>

<mosaic_0001>
module attributes {stable_mosaic.version = 11 : i64} {
  func.func @_mm_instnorm_kernel(%arg0: i32, %arg1: memref<256x147xf32, #tpu.memory_space<vmem>>, %arg2: memref<147x16xf32, #tpu.memory_space<vmem>>, %arg3: memref<256x16xf32, #tpu.memory_space<vmem>>) attributes {dimension_semantics = [#tpu.dimension_semantics<parallel>], iteration_bounds = array<i64: 2>, scalar_prefetch = 0 : i64, scratch_operands = 0 : i64, tpu.core_type = #tpu.core_type<tc>, window_params = [{transform_indices = @transform_0, window_bounds = array<i64: 256, 147>}, {pipeline_mode = #tpu.pipeline_mode<synchronous>, transform_indices = @transform_1, window_bounds = array<i64: 147, 16>}, {transform_indices = @transform_2, window_bounds = array<i64: 256, 16>}]} {
    %c0 = arith.constant 0 : index
    %c0_0 = arith.constant 0 : index
    %0 = vector.load %arg1[%c0, %c0_0] : memref<256x147xf32, #tpu.memory_space<vmem>>, vector<256x147xf32>
    %c0_1 = arith.constant 0 : index
    %c0_2 = arith.constant 0 : index
    %1 = vector.load %arg2[%c0_1, %c0_2] : memref<147x16xf32, #tpu.memory_space<vmem>>, vector<147x16xf32>
    %cst = arith.constant dense<0.000000e+00> : vector<256x16xf32>
    %2 = tpu.matmul %0, %1, %cst {dimension_numbers = #tpu.dot_dimension_numbers<[1], [0], [0], [1], [0, 0, 1, 1], [], []>} : vector<256x147xf32>, vector<147x16xf32>, vector<256x16xf32> -> vector<256x16xf32>
    %cst_3 = arith.constant dense<0.000000e+00> : vector<16xf32>
    %3 = vector.multi_reduction <add>, %2, %cst_3 [0] : vector<256x16xf32> to vector<16xf32>
    %4 = vector.shape_cast %3 : vector<16xf32> to vector<1x16xf32>
    %cst_4 = arith.constant 2.560000e+02 : f32
    %5 = vector.broadcast %cst_4 : f32 to vector<1x16xf32>
    %6 = arith.divf %4, %5 : vector<1x16xf32>
    %7 = vector.broadcast %6 : vector<1x16xf32> to vector<256x16xf32>
    %8 = arith.subf %2, %7 : vector<256x16xf32>
    %9 = arith.mulf %8, %8 : vector<256x16xf32>
    %cst_5 = arith.constant dense<0.000000e+00> : vector<16xf32>
    %10 = vector.multi_reduction <add>, %9, %cst_5 [0] : vector<256x16xf32> to vector<16xf32>
    %11 = vector.shape_cast %10 : vector<16xf32> to vector<1x16xf32>
    %cst_6 = arith.constant 2.560000e+02 : f32
    %12 = vector.broadcast %cst_6 : f32 to vector<1x16xf32>
    %13 = arith.divf %11, %12 : vector<1x16xf32>
    %cst_7 = arith.constant 9.99999974E-6 : f32
    %14 = vector.broadcast %cst_7 : f32 to vector<1x16xf32>
    %15 = arith.addf %13, %14 : vector<1x16xf32>
    %16 = math.rsqrt %15 : vector<1x16xf32>
    %17 = vector.broadcast %16 : vector<1x16xf32> to vector<256x16xf32>
    %18 = arith.mulf %8, %17 : vector<256x16xf32>
    %cst_8 = arith.constant 0.000000e+00 : f32
    %19 = vector.broadcast %cst_8 : f32 to vector<256x16xf32>
    %20 = arith.maximumf %18, %19 : vector<256x16xf32>
    %c0_9 = arith.constant 0 : index
    %c0_10 = arith.constant 0 : index
    %21 = vector.load %arg3[%c0_9, %c0_10] : memref<256x16xf32, #tpu.memory_space<vmem>>, vector<256x16xf32>
    tpu.vector_store %arg3[%c0_9, %c0_10], %20 {strides = array<i32>} : memref<256x16xf32, #tpu.memory_space<vmem>>, vector<256x16xf32>,
    return
  }
  func.func @transform_0(%arg0: i32) -> (i32, i32) {
    %c0_i32 = arith.constant 0 : i32
    %c0_i32_0 = arith.constant 0 : i32
    return %arg0, %c0_i32 : i32, i32
  }
  func.func @transform_1(%arg0: i32) -> (i32, i32) {
    %c0_i32 = arith.constant 0 : i32
    %c0_i32_0 = arith.constant 0 : i32
    %c0_i32_1 = arith.constant 0 : i32
    return %c0_i32, %c0_i32_0 : i32, i32
  }
  func.func @transform_2(%arg0: i32) -> (i32, i32) {
    %c0_i32 = arith.constant 0 : i32
    %c0_i32_0 = arith.constant 0 : i32
    return %arg0, %c0_i32 : i32, i32
  }
}

module attributes {stable_mosaic.version = 11 : i64} {
  func.func @_mm_instnorm_kernel(%arg0: i32, %arg1: memref<64x144xf32, #tpu.memory_space<vmem>>, %arg2: memref<144x32xf32, #tpu.memory_space<vmem>>, %arg3: memref<64x32xf32, #tpu.memory_space<vmem>>) attributes {dimension_semantics = [#tpu.dimension_semantics<parallel>], iteration_bounds = array<i64: 2>, scalar_prefetch = 0 : i64, scratch_operands = 0 : i64, tpu.core_type = #tpu.core_type<tc>, window_params = [{transform_indices = @transform_0, window_bounds = array<i64: 64, 144>}, {pipeline_mode = #tpu.pipeline_mode<synchronous>, transform_indices = @transform_1, window_bounds = array<i64: 144, 32>}, {transform_indices = @transform_2, window_bounds = array<i64: 64, 32>}]} {
    %c0 = arith.constant 0 : index
    %c0_0 = arith.constant 0 : index
    %0 = vector.load %arg1[%c0, %c0_0] : memref<64x144xf32, #tpu.memory_space<vmem>>, vector<64x144xf32>
    %c0_1 = arith.constant 0 : index
    %c0_2 = arith.constant 0 : index
    %1 = vector.load %arg2[%c0_1, %c0_2] : memref<144x32xf32, #tpu.memory_space<vmem>>, vector<144x32xf32>
    %cst = arith.constant dense<0.000000e+00> : vector<64x32xf32>
    %2 = tpu.matmul %0, %1, %cst {dimension_numbers = #tpu.dot_dimension_numbers<[1], [0], [0], [1], [0, 0, 1, 1], [], []>} : vector<64x144xf32>, vector<144x32xf32>, vector<64x32xf32> -> vector<64x32xf32>
    %cst_3 = arith.constant dense<0.000000e+00> : vector<32xf32>
    %3 = vector.multi_reduction <add>, %2, %cst_3 [0] : vector<64x32xf32> to vector<32xf32>
    %4 = vector.shape_cast %3 : vector<32xf32> to vector<1x32xf32>
    %cst_4 = arith.constant 6.400000e+01 : f32
    %5 = vector.broadcast %cst_4 : f32 to vector<1x32xf32>
    %6 = arith.divf %4, %5 : vector<1x32xf32>
    %7 = vector.broadcast %6 : vector<1x32xf32> to vector<64x32xf32>
    %8 = arith.subf %2, %7 : vector<64x32xf32>
    %9 = arith.mulf %8, %8 : vector<64x32xf32>
    %cst_5 = arith.constant dense<0.000000e+00> : vector<32xf32>
    %10 = vector.multi_reduction <add>, %9, %cst_5 [0] : vector<64x32xf32> to vector<32xf32>
    %11 = vector.shape_cast %10 : vector<32xf32> to vector<1x32xf32>
    %cst_6 = arith.constant 6.400000e+01 : f32
    %12 = vector.broadcast %cst_6 : f32 to vector<1x32xf32>
    %13 = arith.divf %11, %12 : vector<1x32xf32>
    %cst_7 = arith.constant 9.99999974E-6 : f32
    %14 = vector.broadcast %cst_7 : f32 to vector<1x32xf32>
    %15 = arith.addf %13, %14 : vector<1x32xf32>
    %16 = math.rsqrt %15 : vector<1x32xf32>
    %17 = vector.broadcast %16 : vector<1x32xf32> to vector<64x32xf32>
    %18 = arith.mulf %8, %17 : vector<64x32xf32>
    %cst_8 = arith.constant 0.000000e+00 : f32
    %19 = vector.broadcast %cst_8 : f32 to vector<64x32xf32>
    %20 = arith.maximumf %18, %19 : vector<64x32xf32>
    %c0_9 = arith.constant 0 : index
    %c0_10 = arith.constant 0 : index
    %21 = vector.load %arg3[%c0_9, %c0_10] : memref<64x32xf32, #tpu.memory_space<vmem>>, vector<64x32xf32>
    tpu.vector_store %arg3[%c0_9, %c0_10], %20 {strides = array<i32>} : memref<64x32xf32, #tpu.memory_space<vmem>>, vector<64x32xf32>,
    return
  }
  func.func @transform_0(%arg0: i32) -> (i32, i32) {
    %c0_i32 = arith.constant 0 : i32
    %c0_i32_0 = arith.constant 0 : i32
    return %arg0, %c0_i32 : i32, i32
  }
  func.func @transform_1(%arg0: i32) -> (i32, i32) {
    %c0_i32 = arith.constant 0 : i32
    %c0_i32_0 = arith.constant 0 : i32
    %c0_i32_1 = arith.constant 0 : i32
    return %c0_i32, %c0_i32_0 : i32, i32
  }
  func.func @transform_2(%arg0: i32) -> (i32, i32) {
    %c0_i32 = arith.constant 0 : i32
    %c0_i32_0 = arith.constant 0 : i32
    return %arg0, %c0_i32 : i32, i32
  }
}

module attributes {stable_mosaic.version = 11 : i64} {
  func.func @_mm_instnorm_kernel(%arg0: i32, %arg1: memref<16x288xf32, #tpu.memory_space<vmem>>, %arg2: memref<288x64xf32, #tpu.memory_space<vmem>>, %arg3: memref<16x64xf32, #tpu.memory_space<vmem>>) attributes {dimension_semantics = [#tpu.dimension_semantics<parallel>], iteration_bounds = array<i64: 2>, scalar_prefetch = 0 : i64, scratch_operands = 0 : i64, tpu.core_type = #tpu.core_type<tc>, window_params = [{transform_indices = @transform_0, window_bounds = array<i64: 16, 288>}, {pipeline_mode = #tpu.pipeline_mode<synchronous>, transform_indices = @transform_1, window_bounds = array<i64: 288, 64>}, {transform_indices = @transform_2, window_bounds = array<i64: 16, 64>}]} {
    %c0 = arith.constant 0 : index
    %c0_0 = arith.constant 0 : index
    %0 = vector.load %arg1[%c0, %c0_0] : memref<16x288xf32, #tpu.memory_space<vmem>>, vector<16x288xf32>
    %c0_1 = arith.constant 0 : index
    %c0_2 = arith.constant 0 : index
    %1 = vector.load %arg2[%c0_1, %c0_2] : memref<288x64xf32, #tpu.memory_space<vmem>>, vector<288x64xf32>
    %cst = arith.constant dense<0.000000e+00> : vector<16x64xf32>
    %2 = tpu.matmul %0, %1, %cst {dimension_numbers = #tpu.dot_dimension_numbers<[1], [0], [0], [1], [0, 0, 1, 1], [], []>} : vector<16x288xf32>, vector<288x64xf32>, vector<16x64xf32> -> vector<16x64xf32>
    %cst_3 = arith.constant dense<0.000000e+00> : vector<64xf32>
    %3 = vector.multi_reduction <add>, %2, %cst_3 [0] : vector<16x64xf32> to vector<64xf32>
    %4 = vector.shape_cast %3 : vector<64xf32> to vector<1x64xf32>
    %cst_4 = arith.constant 1.600000e+01 : f32
    %5 = vector.broadcast %cst_4 : f32 to vector<1x64xf32>
    %6 = arith.divf %4, %5 : vector<1x64xf32>
    %7 = vector.broadcast %6 : vector<1x64xf32> to vector<16x64xf32>
    %8 = arith.subf %2, %7 : vector<16x64xf32>
    %9 = arith.mulf %8, %8 : vector<16x64xf32>
    %cst_5 = arith.constant dense<0.000000e+00> : vector<64xf32>
    %10 = vector.multi_reduction <add>, %9, %cst_5 [0] : vector<16x64xf32> to vector<64xf32>
    %11 = vector.shape_cast %10 : vector<64xf32> to vector<1x64xf32>
    %cst_6 = arith.constant 1.600000e+01 : f32
    %12 = vector.broadcast %cst_6 : f32 to vector<1x64xf32>
    %13 = arith.divf %11, %12 : vector<1x64xf32>
    %cst_7 = arith.constant 9.99999974E-6 : f32
    %14 = vector.broadcast %cst_7 : f32 to vector<1x64xf32>
    %15 = arith.addf %13, %14 : vector<1x64xf32>
    %16 = math.rsqrt %15 : vector<1x64xf32>
    %17 = vector.broadcast %16 : vector<1x64xf32> to vector<16x64xf32>
    %18 = arith.mulf %8, %17 : vector<16x64xf32>
    %cst_8 = arith.constant 0.000000e+00 : f32
    %19 = vector.broadcast %cst_8 : f32 to vector<16x64xf32>
    %20 = arith.maximumf %18, %19 : vector<16x64xf32>
    %c0_9 = arith.constant 0 : index
    %c0_10 = arith.constant 0 : index
    %21 = vector.load %arg3[%c0_9, %c0_10] : memref<16x64xf32, #tpu.memory_space<vmem>>, vector<16x64xf32>
    tpu.vector_store %arg3[%c0_9, %c0_10], %20 {strides = array<i32>} : memref<16x64xf32, #tpu.memory_space<vmem>>, vector<16x64xf32>,
    return
  }
  func.func @transform_0(%arg0: i32) -> (i32, i32) {
    %c0_i32 = arith.constant 0 : i32
    %c0_i32_0 = arith.constant 0 : i32
    return %arg0, %c0_i32 : i32, i32
  }
  func.func @transform_1(%arg0: i32) -> (i32, i32) {
    %c0_i32 = arith.constant 0 : i32
    %c0_i32_0 = arith.constant 0 : i32
    %c0_i32_1 = arith.constant 0 : i32
    return %c0_i32, %c0_i32_0 : i32, i32
  }
  func.func @transform_2(%arg0: i32) -> (i32, i32) {
    %c0_i32 = arith.constant 0 : i32
    %c0_i32_0 = arith.constant 0 : i32
    return %arg0, %c0_i32 : i32, i32
  }
}

module attributes {stable_mosaic.version = 11 : i64} {
  func.func @_mm_epilogue_kernel(%arg0: i32, %arg1: memref<8x576xf32, #tpu.memory_space<vmem>>, %arg2: memref<576x128xf32, #tpu.memory_space<vmem>>, %arg3: memref<1x128xf32, #tpu.memory_space<vmem>>, %arg4: memref<8x128xf32, #tpu.memory_space<vmem>>) attributes {dimension_semantics = [#tpu.dimension_semantics<parallel>], iteration_bounds = array<i64: 1>, scalar_prefetch = 0 : i64, scratch_operands = 0 : i64, tpu.core_type = #tpu.core_type<tc>, window_params = [{transform_indices = @transform_0, window_bounds = array<i64: 8, 576>}, {pipeline_mode = #tpu.pipeline_mode<synchronous>, transform_indices = @transform_1, window_bounds = array<i64: 576, 128>}, {pipeline_mode = #tpu.pipeline_mode<synchronous>, transform_indices = @transform_2, window_bounds = array<i64: 1, 128>}, {transform_indices = @transform_3, window_bounds = array<i64: 8, 128>}]} {
    %c0 = arith.constant 0 : index
    %c0_0 = arith.constant 0 : index
    %0 = vector.load %arg1[%c0, %c0_0] : memref<8x576xf32, #tpu.memory_space<vmem>>, vector<8x576xf32>
    %c0_1 = arith.constant 0 : index
    %c0_2 = arith.constant 0 : index
    %1 = vector.load %arg2[%c0_1, %c0_2] : memref<576x128xf32, #tpu.memory_space<vmem>>, vector<576x128xf32>
    %cst = arith.constant dense<0.000000e+00> : vector<8x128xf32>
    %2 = tpu.matmul %0, %1, %cst {dimension_numbers = #tpu.dot_dimension_numbers<[1], [0], [0], [1], [0, 0, 1, 1], [], []>} : vector<8x576xf32>, vector<576x128xf32>, vector<8x128xf32> -> vector<8x128xf32>
    %c0_3 = arith.constant 0 : index
    %c0_4 = arith.constant 0 : index
    %3 = vector.load %arg3[%c0_3, %c0_4] : memref<1x128xf32, #tpu.memory_space<vmem>>, vector<1x128xf32>
    %4 = vector.broadcast %3 : vector<1x128xf32> to vector<8x128xf32>
    %5 = arith.addf %2, %4 : vector<8x128xf32>
    %c0_5 = arith.constant 0 : index
    %c0_6 = arith.constant 0 : index
    %6 = vector.load %arg4[%c0_5, %c0_6] : memref<8x128xf32, #tpu.memory_space<vmem>>, vector<8x128xf32>
    tpu.vector_store %arg4[%c0_5, %c0_6], %5 {strides = array<i32>} : memref<8x128xf32, #tpu.memory_space<vmem>>, vector<8x128xf32>,
    return
  }
  func.func @transform_0(%arg0: i32) -> (i32, i32) {
    %c0_i32 = arith.constant 0 : i32
    %c0_i32_0 = arith.constant 0 : i32
    return %arg0, %c0_i32 : i32, i32
  }
  func.func @transform_1(%arg0: i32) -> (i32, i32) {
    %c0_i32 = arith.constant 0 : i32
    %c0_i32_0 = arith.constant 0 : i32
    %c0_i32_1 = arith.constant 0 : i32
    return %c0_i32, %c0_i32_0 : i32, i32
  }
  func.func @transform_2(%arg0: i32) -> (i32, i32) {
    %c0_i32 = arith.constant 0 : i32
    %c0_i32_0 = arith.constant 0 : i32
    %c0_i32_1 = arith.constant 0 : i32
    return %c0_i32, %c0_i32_0 : i32, i32
  }
  func.func @transform_3(%arg0: i32) -> (i32, i32) {
    %c0_i32 = arith.constant 0 : i32
    %c0_i32_0 = arith.constant 0 : i32
    return %arg0, %c0_i32 : i32, i32
  }
}

module attributes {stable_mosaic.version = 11 : i64} {
  func.func @_instnorm_kernel(%arg0: i32, %arg1: memref<1x4x128xf32, #tpu.memory_space<vmem>>, %arg2: memref<1x4x128xf32, #tpu.memory_space<vmem>>) attributes {dimension_semantics = [#tpu.dimension_semantics<parallel>], iteration_bounds = array<i64: 2>, scalar_prefetch = 0 : i64, scratch_operands = 0 : i64, tpu.core_type = #tpu.core_type<tc>, window_params = [{transform_indices = @transform_0, window_bounds = array<i64: 1, 4, 128>}, {transform_indices = @transform_1, window_bounds = array<i64: 1, 4, 128>}]} {
    %c0 = arith.constant 0 : index
    %c0_0 = arith.constant 0 : index
    %c0_1 = arith.constant 0 : index
    %0 = vector.load %arg1[%c0, %c0_0, %c0_1] : memref<1x4x128xf32, #tpu.memory_space<vmem>>, vector<1x4x128xf32>
    %cst = arith.constant dense<0.000000e+00> : vector<1x128xf32>
    %1 = vector.multi_reduction <add>, %0, %cst [1] : vector<1x4x128xf32> to vector<1x128xf32>
    %2 = vector.shape_cast %1 : vector<1x128xf32> to vector<1x1x128xf32>
    %cst_2 = arith.constant 4.000000e+00 : f32
    %3 = vector.broadcast %cst_2 : f32 to vector<1x1x128xf32>
    %4 = arith.divf %2, %3 : vector<1x1x128xf32>
    %5 = vector.broadcast %4 : vector<1x1x128xf32> to vector<1x4x128xf32>
    %6 = arith.subf %0, %5 : vector<1x4x128xf32>
    %7 = arith.mulf %6, %6 : vector<1x4x128xf32>
    %cst_3 = arith.constant dense<0.000000e+00> : vector<1x128xf32>
    %8 = vector.multi_reduction <add>, %7, %cst_3 [1] : vector<1x4x128xf32> to vector<1x128xf32>
    %9 = vector.shape_cast %8 : vector<1x128xf32> to vector<1x1x128xf32>
    %cst_4 = arith.constant 4.000000e+00 : f32
    %10 = vector.broadcast %cst_4 : f32 to vector<1x1x128xf32>
    %11 = arith.divf %9, %10 : vector<1x1x128xf32>
    %cst_5 = arith.constant 9.99999974E-6 : f32
    %12 = vector.broadcast %cst_5 : f32 to vector<1x1x128xf32>
    %13 = arith.addf %11, %12 : vector<1x1x128xf32>
    %14 = math.rsqrt %13 : vector<1x1x128xf32>
    %15 = vector.broadcast %14 : vector<1x1x128xf32> to vector<1x4x128xf32>
    %16 = arith.mulf %6, %15 : vector<1x4x128xf32>
    %cst_6 = arith.constant 0.000000e+00 : f32
    %17 = vector.broadcast %cst_6 : f32 to vector<1x4x128xf32>
    %18 = arith.maximumf %16, %17 : vector<1x4x128xf32>
    %c0_7 = arith.constant 0 : index
    %c0_8 = arith.constant 0 : index
    %c0_9 = arith.constant 0 : index
    %19 = vector.load %arg2[%c0_7, %c0_8, %c0_9] : memref<1x4x128xf32, #tpu.memory_space<vmem>>, vector<1x4x128xf32>
    tpu.vector_store %arg2[%c0_7, %c0_8, %c0_9], %18 {strides = array<i32>} : memref<1x4x128xf32, #tpu.memory_space<vmem>>, vector<1x4x128xf32>,
    return
  }
  func.func @transform_0(%arg0: i32) -> (i32, i32, i32) {
    %c0_i32 = arith.constant 0 : i32
    %c0_i32_0 = arith.constant 0 : i32
    %c0_i32_1 = arith.constant 0 : i32
    return %arg0, %c0_i32, %c0_i32_0 : i32, i32, i32
  }
  func.func @transform_1(%arg0: i32) -> (i32, i32, i32) {
    %c0_i32 = arith.constant 0 : i32
    %c0_i32_0 = arith.constant 0 : i32
    %c0_i32_1 = arith.constant 0 : i32
    return %arg0, %c0_i32, %c0_i32_0 : i32, i32, i32
  }
}

module attributes {stable_mosaic.version = 11 : i64} {
  func.func @_instnorm_kernel(%arg0: i32, %arg1: memref<1x4x128xf32, #tpu.memory_space<vmem>>, %arg2: memref<1x4x128xf32, #tpu.memory_space<vmem>>) attributes {dimension_semantics = [#tpu.dimension_semantics<parallel>], iteration_bounds = array<i64: 2>, scalar_prefetch = 0 : i64, scratch_operands = 0 : i64, tpu.core_type = #tpu.core_type<tc>, window_params = [{transform_indices = @transform_0, window_bounds = array<i64: 1, 4, 128>}, {transform_indices = @transform_1, window_bounds = array<i64: 1, 4, 128>}]} {
    %c0 = arith.constant 0 : index
    %c0_0 = arith.constant 0 : index
    %c0_1 = arith.constant 0 : index
    %0 = vector.load %arg1[%c0, %c0_0, %c0_1] : memref<1x4x128xf32, #tpu.memory_space<vmem>>, vector<1x4x128xf32>
    %cst = arith.constant dense<0.000000e+00> : vector<1x128xf32>
    %1 = vector.multi_reduction <add>, %0, %cst [1] : vector<1x4x128xf32> to vector<1x128xf32>
    %2 = vector.shape_cast %1 : vector<1x128xf32> to vector<1x1x128xf32>
    %cst_2 = arith.constant 4.000000e+00 : f32
    %3 = vector.broadcast %cst_2 : f32 to vector<1x1x128xf32>
    %4 = arith.divf %2, %3 : vector<1x1x128xf32>
    %5 = vector.broadcast %4 : vector<1x1x128xf32> to vector<1x4x128xf32>
    %6 = arith.subf %0, %5 : vector<1x4x128xf32>
    %7 = arith.mulf %6, %6 : vector<1x4x128xf32>
    %cst_3 = arith.constant dense<0.000000e+00> : vector<1x128xf32>
    %8 = vector.multi_reduction <add>, %7, %cst_3 [1] : vector<1x4x128xf32> to vector<1x128xf32>
    %9 = vector.shape_cast %8 : vector<1x128xf32> to vector<1x1x128xf32>
    %cst_4 = arith.constant 4.000000e+00 : f32
    %10 = vector.broadcast %cst_4 : f32 to vector<1x1x128xf32>
    %11 = arith.divf %9, %10 : vector<1x1x128xf32>
    %cst_5 = arith.constant 9.99999974E-6 : f32
    %12 = vector.broadcast %cst_5 : f32 to vector<1x1x128xf32>
    %13 = arith.addf %11, %12 : vector<1x1x128xf32>
    %14 = math.rsqrt %13 : vector<1x1x128xf32>
    %15 = vector.broadcast %14 : vector<1x1x128xf32> to vector<1x4x128xf32>
    %16 = arith.mulf %6, %15 : vector<1x4x128xf32>
    %c0_6 = arith.constant 0 : index
    %c0_7 = arith.constant 0 : index
    %c0_8 = arith.constant 0 : index
    %17 = vector.load %arg2[%c0_6, %c0_7, %c0_8] : memref<1x4x128xf32, #tpu.memory_space<vmem>>, vector<1x4x128xf32>
    tpu.vector_store %arg2[%c0_6, %c0_7, %c0_8], %16 {strides = array<i32>} : memref<1x4x128xf32, #tpu.memory_space<vmem>>, vector<1x4x128xf32>,
    return
  }
  func.func @transform_0(%arg0: i32) -> (i32, i32, i32) {
    %c0_i32 = arith.constant 0 : i32
    %c0_i32_0 = arith.constant 0 : i32
    %c0_i32_1 = arith.constant 0 : i32
    return %arg0, %c0_i32, %c0_i32_0 : i32, i32, i32
  }
  func.func @transform_1(%arg0: i32) -> (i32, i32, i32) {
    %c0_i32 = arith.constant 0 : i32
    %c0_i32_0 = arith.constant 0 : i32
    %c0_i32_1 = arith.constant 0 : i32
    return %arg0, %c0_i32, %c0_i32_0 : i32, i32, i32
  }
}

module attributes {stable_mosaic.version = 11 : i64} {
  func.func @_mm_epilogue_kernel(%arg0: i32, %arg1: memref<8x1152xf32, #tpu.memory_space<vmem>>, %arg2: memref<1152x128xf32, #tpu.memory_space<vmem>>, %arg3: memref<1x128xf32, #tpu.memory_space<vmem>>, %arg4: memref<8x128xf32, #tpu.memory_space<vmem>>) attributes {dimension_semantics = [#tpu.dimension_semantics<parallel>], iteration_bounds = array<i64: 1>, scalar_prefetch = 0 : i64, scratch_operands = 0 : i64, tpu.core_type = #tpu.core_type<tc>, window_params = [{transform_indices = @transform_0, window_bounds = array<i64: 8, 1152>}, {pipeline_mode = #tpu.pipeline_mode<synchronous>, transform_indices = @transform_1, window_bounds = array<i64: 1152, 128>}, {pipeline_mode = #tpu.pipeline_mode<synchronous>, transform_indices = @transform_2, window_bounds = array<i64: 1, 128>}, {transform_indices = @transform_3, window_bounds = array<i64: 8, 128>}]} {
    %c0 = arith.constant 0 : index
    %c0_0 = arith.constant 0 : index
    %0 = vector.load %arg1[%c0, %c0_0] : memref<8x1152xf32, #tpu.memory_space<vmem>>, vector<8x1152xf32>
    %c0_1 = arith.constant 0 : index
    %c0_2 = arith.constant 0 : index
    %1 = vector.load %arg2[%c0_1, %c0_2] : memref<1152x128xf32, #tpu.memory_space<vmem>>, vector<1152x128xf32>
    %cst = arith.constant dense<0.000000e+00> : vector<8x128xf32>
    %2 = tpu.matmul %0, %1, %cst {dimension_numbers = #tpu.dot_dimension_numbers<[1], [0], [0], [1], [0, 0, 1, 1], [], []>} : vector<8x1152xf32>, vector<1152x128xf32>, vector<8x128xf32> -> vector<8x128xf32>
    %c0_3 = arith.constant 0 : index
    %c0_4 = arith.constant 0 : index
    %3 = vector.load %arg3[%c0_3, %c0_4] : memref<1x128xf32, #tpu.memory_space<vmem>>, vector<1x128xf32>
    %4 = vector.broadcast %3 : vector<1x128xf32> to vector<8x128xf32>
    %5 = arith.addf %2, %4 : vector<8x128xf32>
    %c0_5 = arith.constant 0 : index
    %c0_6 = arith.constant 0 : index
    %6 = vector.load %arg4[%c0_5, %c0_6] : memref<8x128xf32, #tpu.memory_space<vmem>>, vector<8x128xf32>
    tpu.vector_store %arg4[%c0_5, %c0_6], %5 {strides = array<i32>} : memref<8x128xf32, #tpu.memory_space<vmem>>, vector<8x128xf32>,
    return
  }
  func.func @transform_0(%arg0: i32) -> (i32, i32) {
    %c0_i32 = arith.constant 0 : i32
    %c0_i32_0 = arith.constant 0 : i32
    return %arg0, %c0_i32 : i32, i32
  }
  func.func @transform_1(%arg0: i32) -> (i32, i32) {
    %c0_i32 = arith.constant 0 : i32
    %c0_i32_0 = arith.constant 0 : i32
    %c0_i32_1 = arith.constant 0 : i32
    return %c0_i32, %c0_i32_0 : i32, i32
  }
  func.func @transform_2(%arg0: i32) -> (i32, i32) {
    %c0_i32 = arith.constant 0 : i32
    %c0_i32_0 = arith.constant 0 : i32
    %c0_i32_1 = arith.constant 0 : i32
    return %c0_i32, %c0_i32_0 : i32, i32
  }
  func.func @transform_3(%arg0: i32) -> (i32, i32) {
    %c0_i32 = arith.constant 0 : i32
    %c0_i32_0 = arith.constant 0 : i32
    return %arg0, %c0_i32 : i32, i32
  }
}

module attributes {stable_mosaic.version = 11 : i64} {
  func.func @_mm_epilogue_kernel(%arg0: i32, %arg1: memref<8x512xf32, #tpu.memory_space<vmem>>, %arg2: memref<512x256xf32, #tpu.memory_space<vmem>>, %arg3: memref<1x256xf32, #tpu.memory_space<vmem>>, %arg4: memref<8x256xf32, #tpu.memory_space<vmem>>) attributes {dimension_semantics = [#tpu.dimension_semantics<parallel>], iteration_bounds = array<i64: 1>, scalar_prefetch = 0 : i64, scratch_operands = 0 : i64, tpu.core_type = #tpu.core_type<tc>, window_params = [{transform_indices = @transform_0, window_bounds = array<i64: 8, 512>}, {pipeline_mode = #tpu.pipeline_mode<synchronous>, transform_indices = @transform_1, window_bounds = array<i64: 512, 256>}, {pipeline_mode = #tpu.pipeline_mode<synchronous>, transform_indices = @transform_2, window_bounds = array<i64: 1, 256>}, {transform_indices = @transform_3, window_bounds = array<i64: 8, 256>}]} {
    %c0 = arith.constant 0 : index
    %c0_0 = arith.constant 0 : index
    %0 = vector.load %arg1[%c0, %c0_0] : memref<8x512xf32, #tpu.memory_space<vmem>>, vector<8x512xf32>
    %c0_1 = arith.constant 0 : index
    %c0_2 = arith.constant 0 : index
    %1 = vector.load %arg2[%c0_1, %c0_2] : memref<512x256xf32, #tpu.memory_space<vmem>>, vector<512x256xf32>
    %cst = arith.constant dense<0.000000e+00> : vector<8x256xf32>
    %2 = tpu.matmul %0, %1, %cst {dimension_numbers = #tpu.dot_dimension_numbers<[1], [0], [0], [1], [0, 0, 1, 1], [], []>} : vector<8x512xf32>, vector<512x256xf32>, vector<8x256xf32> -> vector<8x256xf32>
    %c0_3 = arith.constant 0 : index
    %c0_4 = arith.constant 0 : index
    %3 = vector.load %arg3[%c0_3, %c0_4] : memref<1x256xf32, #tpu.memory_space<vmem>>, vector<1x256xf32>
    %4 = vector.broadcast %3 : vector<1x256xf32> to vector<8x256xf32>
    %5 = arith.addf %2, %4 : vector<8x256xf32>
    %c0_5 = arith.constant 0 : index
    %c0_6 = arith.constant 0 : index
    %6 = vector.load %arg4[%c0_5, %c0_6] : memref<8x256xf32, #tpu.memory_space<vmem>>, vector<8x256xf32>
    tpu.vector_store %arg4[%c0_5, %c0_6], %5 {strides = array<i32>} : memref<8x256xf32, #tpu.memory_space<vmem>>, vector<8x256xf32>,
    return
  }
  func.func @transform_0(%arg0: i32) -> (i32, i32) {
    %c0_i32 = arith.constant 0 : i32
    %c0_i32_0 = arith.constant 0 : i32
    return %arg0, %c0_i32 : i32, i32
  }
  func.func @transform_1(%arg0: i32) -> (i32, i32) {
    %c0_i32 = arith.constant 0 : i32
    %c0_i32_0 = arith.constant 0 : i32
    %c0_i32_1 = arith.constant 0 : i32
    return %c0_i32, %c0_i32_0 : i32, i32
  }
  func.func @transform_2(%arg0: i32) -> (i32, i32) {
    %c0_i32 = arith.constant 0 : i32
    %c0_i32_0 = arith.constant 0 : i32
    %c0_i32_1 = arith.constant 0 : i32
    return %c0_i32, %c0_i32_0 : i32, i32
  }
  func.func @transform_3(%arg0: i32) -> (i32, i32) {
    %c0_i32 = arith.constant 0 : i32
    %c0_i32_0 = arith.constant 0 : i32
    return %arg0, %c0_i32 : i32, i32
  }
}

module attributes {stable_mosaic.version = 11 : i64} {
  func.func @_instnorm_kernel(%arg0: i32, %arg1: memref<1x16x64xf32, #tpu.memory_space<vmem>>, %arg2: memref<1x16x64xf32, #tpu.memory_space<vmem>>) attributes {dimension_semantics = [#tpu.dimension_semantics<parallel>], iteration_bounds = array<i64: 2>, scalar_prefetch = 0 : i64, scratch_operands = 0 : i64, tpu.core_type = #tpu.core_type<tc>, window_params = [{transform_indices = @transform_0, window_bounds = array<i64: 1, 16, 64>}, {transform_indices = @transform_1, window_bounds = array<i64: 1, 16, 64>}]} {
    %c0 = arith.constant 0 : index
    %c0_0 = arith.constant 0 : index
    %c0_1 = arith.constant 0 : index
    %0 = vector.load %arg1[%c0, %c0_0, %c0_1] : memref<1x16x64xf32, #tpu.memory_space<vmem>>, vector<1x16x64xf32>
    %cst = arith.constant dense<0.000000e+00> : vector<1x64xf32>
    %1 = vector.multi_reduction <add>, %0, %cst [1] : vector<1x16x64xf32> to vector<1x64xf32>
    %2 = vector.shape_cast %1 : vector<1x64xf32> to vector<1x1x64xf32>
    %cst_2 = arith.constant 1.600000e+01 : f32
    %3 = vector.broadcast %cst_2 : f32 to vector<1x1x64xf32>
    %4 = arith.divf %2, %3 : vector<1x1x64xf32>
    %5 = vector.broadcast %4 : vector<1x1x64xf32> to vector<1x16x64xf32>
    %6 = arith.subf %0, %5 : vector<1x16x64xf32>
    %7 = arith.mulf %6, %6 : vector<1x16x64xf32>
    %cst_3 = arith.constant dense<0.000000e+00> : vector<1x64xf32>
    %8 = vector.multi_reduction <add>, %7, %cst_3 [1] : vector<1x16x64xf32> to vector<1x64xf32>
    %9 = vector.shape_cast %8 : vector<1x64xf32> to vector<1x1x64xf32>
    %cst_4 = arith.constant 1.600000e+01 : f32
    %10 = vector.broadcast %cst_4 : f32 to vector<1x1x64xf32>
    %11 = arith.divf %9, %10 : vector<1x1x64xf32>
    %cst_5 = arith.constant 9.99999974E-6 : f32
    %12 = vector.broadcast %cst_5 : f32 to vector<1x1x64xf32>
    %13 = arith.addf %11, %12 : vector<1x1x64xf32>
    %14 = math.rsqrt %13 : vector<1x1x64xf32>
    %15 = vector.broadcast %14 : vector<1x1x64xf32> to vector<1x16x64xf32>
    %16 = arith.mulf %6, %15 : vector<1x16x64xf32>
    %cst_6 = arith.constant 0.000000e+00 : f32
    %17 = vector.broadcast %cst_6 : f32 to vector<1x16x64xf32>
    %18 = arith.maximumf %16, %17 : vector<1x16x64xf32>
    %c0_7 = arith.constant 0 : index
    %c0_8 = arith.constant 0 : index
    %c0_9 = arith.constant 0 : index
    %19 = vector.load %arg2[%c0_7, %c0_8, %c0_9] : memref<1x16x64xf32, #tpu.memory_space<vmem>>, vector<1x16x64xf32>
    tpu.vector_store %arg2[%c0_7, %c0_8, %c0_9], %18 {strides = array<i32>} : memref<1x16x64xf32, #tpu.memory_space<vmem>>, vector<1x16x64xf32>,
    return
  }
  func.func @transform_0(%arg0: i32) -> (i32, i32, i32) {
    %c0_i32 = arith.constant 0 : i32
    %c0_i32_0 = arith.constant 0 : i32
    %c0_i32_1 = arith.constant 0 : i32
    return %arg0, %c0_i32, %c0_i32_0 : i32, i32, i32
  }
  func.func @transform_1(%arg0: i32) -> (i32, i32, i32) {
    %c0_i32 = arith.constant 0 : i32
    %c0_i32_0 = arith.constant 0 : i32
    %c0_i32_1 = arith.constant 0 : i32
    return %arg0, %c0_i32, %c0_i32_0 : i32, i32, i32
  }
}

module attributes {stable_mosaic.version = 11 : i64} {
  func.func @_mm_epilogue_kernel(%arg0: i32, %arg1: memref<32x512xf32, #tpu.memory_space<vmem>>, %arg2: memref<512x128xf32, #tpu.memory_space<vmem>>, %arg3: memref<1x128xf32, #tpu.memory_space<vmem>>, %arg4: memref<32x128xf32, #tpu.memory_space<vmem>>) attributes {dimension_semantics = [#tpu.dimension_semantics<parallel>], iteration_bounds = array<i64: 1>, scalar_prefetch = 0 : i64, scratch_operands = 0 : i64, tpu.core_type = #tpu.core_type<tc>, window_params = [{transform_indices = @transform_0, window_bounds = array<i64: 32, 512>}, {pipeline_mode = #tpu.pipeline_mode<synchronous>, transform_indices = @transform_1, window_bounds = array<i64: 512, 128>}, {pipeline_mode = #tpu.pipeline_mode<synchronous>, transform_indices = @transform_2, window_bounds = array<i64: 1, 128>}, {transform_indices = @transform_3, window_bounds = array<i64: 32, 128>}]} {
    %c0 = arith.constant 0 : index
    %c0_0 = arith.constant 0 : index
    %0 = vector.load %arg1[%c0, %c0_0] : memref<32x512xf32, #tpu.memory_space<vmem>>, vector<32x512xf32>
    %c0_1 = arith.constant 0 : index
    %c0_2 = arith.constant 0 : index
    %1 = vector.load %arg2[%c0_1, %c0_2] : memref<512x128xf32, #tpu.memory_space<vmem>>, vector<512x128xf32>
    %cst = arith.constant dense<0.000000e+00> : vector<32x128xf32>
    %2 = tpu.matmul %0, %1, %cst {dimension_numbers = #tpu.dot_dimension_numbers<[1], [0], [0], [1], [0, 0, 1, 1], [], []>} : vector<32x512xf32>, vector<512x128xf32>, vector<32x128xf32> -> vector<32x128xf32>
    %c0_3 = arith.constant 0 : index
    %c0_4 = arith.constant 0 : index
    %3 = vector.load %arg3[%c0_3, %c0_4] : memref<1x128xf32, #tpu.memory_space<vmem>>, vector<1x128xf32>
    %4 = vector.broadcast %3 : vector<1x128xf32> to vector<32x128xf32>
    %5 = arith.addf %2, %4 : vector<32x128xf32>
    %c0_5 = arith.constant 0 : index
    %c0_6 = arith.constant 0 : index
    %6 = vector.load %arg4[%c0_5, %c0_6] : memref<32x128xf32, #tpu.memory_space<vmem>>, vector<32x128xf32>
    tpu.vector_store %arg4[%c0_5, %c0_6], %5 {strides = array<i32>} : memref<32x128xf32, #tpu.memory_space<vmem>>, vector<32x128xf32>,
    return
  }
  func.func @transform_0(%arg0: i32) -> (i32, i32) {
    %c0_i32 = arith.constant 0 : i32
    %c0_i32_0 = arith.constant 0 : i32
    return %arg0, %c0_i32 : i32, i32
  }
  func.func @transform_1(%arg0: i32) -> (i32, i32) {
    %c0_i32 = arith.constant 0 : i32
    %c0_i32_0 = arith.constant 0 : i32
    %c0_i32_1 = arith.constant 0 : i32
    return %c0_i32, %c0_i32_0 : i32, i32
  }
  func.func @transform_2(%arg0: i32) -> (i32, i32) {
    %c0_i32 = arith.constant 0 : i32
    %c0_i32_0 = arith.constant 0 : i32
    %c0_i32_1 = arith.constant 0 : i32
    return %c0_i32, %c0_i32_0 : i32, i32
  }
  func.func @transform_3(%arg0: i32) -> (i32, i32) {
    %c0_i32 = arith.constant 0 : i32
    %c0_i32_0 = arith.constant 0 : i32
    return %arg0, %c0_i32 : i32, i32
  }
}

module attributes {stable_mosaic.version = 11 : i64} {
  func.func @_instnorm_kernel(%arg0: i32, %arg1: memref<1x64x32xf32, #tpu.memory_space<vmem>>, %arg2: memref<1x64x32xf32, #tpu.memory_space<vmem>>) attributes {dimension_semantics = [#tpu.dimension_semantics<parallel>], iteration_bounds = array<i64: 2>, scalar_prefetch = 0 : i64, scratch_operands = 0 : i64, tpu.core_type = #tpu.core_type<tc>, window_params = [{transform_indices = @transform_0, window_bounds = array<i64: 1, 64, 32>}, {transform_indices = @transform_1, window_bounds = array<i64: 1, 64, 32>}]} {
    %c0 = arith.constant 0 : index
    %c0_0 = arith.constant 0 : index
    %c0_1 = arith.constant 0 : index
    %0 = vector.load %arg1[%c0, %c0_0, %c0_1] : memref<1x64x32xf32, #tpu.memory_space<vmem>>, vector<1x64x32xf32>
    %cst = arith.constant dense<0.000000e+00> : vector<1x32xf32>
    %1 = vector.multi_reduction <add>, %0, %cst [1] : vector<1x64x32xf32> to vector<1x32xf32>
    %2 = vector.shape_cast %1 : vector<1x32xf32> to vector<1x1x32xf32>
    %cst_2 = arith.constant 6.400000e+01 : f32
    %3 = vector.broadcast %cst_2 : f32 to vector<1x1x32xf32>
    %4 = arith.divf %2, %3 : vector<1x1x32xf32>
    %5 = vector.broadcast %4 : vector<1x1x32xf32> to vector<1x64x32xf32>
    %6 = arith.subf %0, %5 : vector<1x64x32xf32>
    %7 = arith.mulf %6, %6 : vector<1x64x32xf32>
    %cst_3 = arith.constant dense<0.000000e+00> : vector<1x32xf32>
    %8 = vector.multi_reduction <add>, %7, %cst_3 [1] : vector<1x64x32xf32> to vector<1x32xf32>
    %9 = vector.shape_cast %8 : vector<1x32xf32> to vector<1x1x32xf32>
    %cst_4 = arith.constant 6.400000e+01 : f32
    %10 = vector.broadcast %cst_4 : f32 to vector<1x1x32xf32>
    %11 = arith.divf %9, %10 : vector<1x1x32xf32>
    %cst_5 = arith.constant 9.99999974E-6 : f32
    %12 = vector.broadcast %cst_5 : f32 to vector<1x1x32xf32>
    %13 = arith.addf %11, %12 : vector<1x1x32xf32>
    %14 = math.rsqrt %13 : vector<1x1x32xf32>
    %15 = vector.broadcast %14 : vector<1x1x32xf32> to vector<1x64x32xf32>
    %16 = arith.mulf %6, %15 : vector<1x64x32xf32>
    %cst_6 = arith.constant 0.000000e+00 : f32
    %17 = vector.broadcast %cst_6 : f32 to vector<1x64x32xf32>
    %18 = arith.maximumf %16, %17 : vector<1x64x32xf32>
    %c0_7 = arith.constant 0 : index
    %c0_8 = arith.constant 0 : index
    %c0_9 = arith.constant 0 : index
    %19 = vector.load %arg2[%c0_7, %c0_8, %c0_9] : memref<1x64x32xf32, #tpu.memory_space<vmem>>, vector<1x64x32xf32>
    tpu.vector_store %arg2[%c0_7, %c0_8, %c0_9], %18 {strides = array<i32>} : memref<1x64x32xf32, #tpu.memory_space<vmem>>, vector<1x64x32xf32>,
    return
  }
  func.func @transform_0(%arg0: i32) -> (i32, i32, i32) {
    %c0_i32 = arith.constant 0 : i32
    %c0_i32_0 = arith.constant 0 : i32
    %c0_i32_1 = arith.constant 0 : i32
    return %arg0, %c0_i32, %c0_i32_0 : i32, i32, i32
  }
  func.func @transform_1(%arg0: i32) -> (i32, i32, i32) {
    %c0_i32 = arith.constant 0 : i32
    %c0_i32_0 = arith.constant 0 : i32
    %c0_i32_1 = arith.constant 0 : i32
    return %arg0, %c0_i32, %c0_i32_0 : i32, i32, i32
  }
}

module attributes {stable_mosaic.version = 11 : i64} {
  func.func @_mm_epilogue_kernel(%arg0: i32, %arg1: memref<128x256xf32, #tpu.memory_space<vmem>>, %arg2: memref<256x64xf32, #tpu.memory_space<vmem>>, %arg3: memref<1x64xf32, #tpu.memory_space<vmem>>, %arg4: memref<128x64xf32, #tpu.memory_space<vmem>>) attributes {dimension_semantics = [#tpu.dimension_semantics<parallel>], iteration_bounds = array<i64: 1>, scalar_prefetch = 0 : i64, scratch_operands = 0 : i64, tpu.core_type = #tpu.core_type<tc>, window_params = [{transform_indices = @transform_0, window_bounds = array<i64: 128, 256>}, {pipeline_mode = #tpu.pipeline_mode<synchronous>, transform_indices = @transform_1, window_bounds = array<i64: 256, 64>}, {pipeline_mode = #tpu.pipeline_mode<synchronous>, transform_indices = @transform_2, window_bounds = array<i64: 1, 64>}, {transform_indices = @transform_3, window_bounds = array<i64: 128, 64>}]} {
    %c0 = arith.constant 0 : index
    %c0_0 = arith.constant 0 : index
    %0 = vector.load %arg1[%c0, %c0_0] : memref<128x256xf32, #tpu.memory_space<vmem>>, vector<128x256xf32>
    %c0_1 = arith.constant 0 : index
    %c0_2 = arith.constant 0 : index
    %1 = vector.load %arg2[%c0_1, %c0_2] : memref<256x64xf32, #tpu.memory_space<vmem>>, vector<256x64xf32>
    %cst = arith.constant dense<0.000000e+00> : vector<128x64xf32>
    %2 = tpu.matmul %0, %1, %cst {dimension_numbers = #tpu.dot_dimension_numbers<[1], [0], [0], [1], [0, 0, 1, 1], [], []>} : vector<128x256xf32>, vector<256x64xf32>, vector<128x64xf32> -> vector<128x64xf32>
    %c0_3 = arith.constant 0 : index
    %c0_4 = arith.constant 0 : index
    %3 = vector.load %arg3[%c0_3, %c0_4] : memref<1x64xf32, #tpu.memory_space<vmem>>, vector<1x64xf32>
    %4 = vector.broadcast %3 : vector<1x64xf32> to vector<128x64xf32>
    %5 = arith.addf %2, %4 : vector<128x64xf32>
    %c0_5 = arith.constant 0 : index
    %c0_6 = arith.constant 0 : index
    %6 = vector.load %arg4[%c0_5, %c0_6] : memref<128x64xf32, #tpu.memory_space<vmem>>, vector<128x64xf32>
    tpu.vector_store %arg4[%c0_5, %c0_6], %5 {strides = array<i32>} : memref<128x64xf32, #tpu.memory_space<vmem>>, vector<128x64xf32>,
    return
  }
  func.func @transform_0(%arg0: i32) -> (i32, i32) {
    %c0_i32 = arith.constant 0 : i32
    %c0_i32_0 = arith.constant 0 : i32
    return %arg0, %c0_i32 : i32, i32
  }
  func.func @transform_1(%arg0: i32) -> (i32, i32) {
    %c0_i32 = arith.constant 0 : i32
    %c0_i32_0 = arith.constant 0 : i32
    %c0_i32_1 = arith.constant 0 : i32
    return %c0_i32, %c0_i32_0 : i32, i32
  }
  func.func @transform_2(%arg0: i32) -> (i32, i32) {
    %c0_i32 = arith.constant 0 : i32
    %c0_i32_0 = arith.constant 0 : i32
    %c0_i32_1 = arith.constant 0 : i32
    return %c0_i32, %c0_i32_0 : i32, i32
  }
  func.func @transform_3(%arg0: i32) -> (i32, i32) {
    %c0_i32 = arith.constant 0 : i32
    %c0_i32_0 = arith.constant 0 : i32
    return %arg0, %c0_i32 : i32, i32
  }
}

module attributes {stable_mosaic.version = 11 : i64} {
  func.func @_instnorm_kernel(%arg0: i32, %arg1: memref<1x256x16xf32, #tpu.memory_space<vmem>>, %arg2: memref<1x256x16xf32, #tpu.memory_space<vmem>>) attributes {dimension_semantics = [#tpu.dimension_semantics<parallel>], iteration_bounds = array<i64: 2>, scalar_prefetch = 0 : i64, scratch_operands = 0 : i64, tpu.core_type = #tpu.core_type<tc>, window_params = [{transform_indices = @transform_0, window_bounds = array<i64: 1, 256, 16>}, {transform_indices = @transform_1, window_bounds = array<i64: 1, 256, 16>}]} {
    %c0 = arith.constant 0 : index
    %c0_0 = arith.constant 0 : index
    %c0_1 = arith.constant 0 : index
    %0 = vector.load %arg1[%c0, %c0_0, %c0_1] : memref<1x256x16xf32, #tpu.memory_space<vmem>>, vector<1x256x16xf32>
    %cst = arith.constant dense<0.000000e+00> : vector<1x16xf32>
    %1 = vector.multi_reduction <add>, %0, %cst [1] : vector<1x256x16xf32> to vector<1x16xf32>
    %2 = vector.shape_cast %1 : vector<1x16xf32> to vector<1x1x16xf32>
    %cst_2 = arith.constant 2.560000e+02 : f32
    %3 = vector.broadcast %cst_2 : f32 to vector<1x1x16xf32>
    %4 = arith.divf %2, %3 : vector<1x1x16xf32>
    %5 = vector.broadcast %4 : vector<1x1x16xf32> to vector<1x256x16xf32>
    %6 = arith.subf %0, %5 : vector<1x256x16xf32>
    %7 = arith.mulf %6, %6 : vector<1x256x16xf32>
    %cst_3 = arith.constant dense<0.000000e+00> : vector<1x16xf32>
    %8 = vector.multi_reduction <add>, %7, %cst_3 [1] : vector<1x256x16xf32> to vector<1x16xf32>
    %9 = vector.shape_cast %8 : vector<1x16xf32> to vector<1x1x16xf32>
    %cst_4 = arith.constant 2.560000e+02 : f32
    %10 = vector.broadcast %cst_4 : f32 to vector<1x1x16xf32>
    %11 = arith.divf %9, %10 : vector<1x1x16xf32>
    %cst_5 = arith.constant 9.99999974E-6 : f32
    %12 = vector.broadcast %cst_5 : f32 to vector<1x1x16xf32>
    %13 = arith.addf %11, %12 : vector<1x1x16xf32>
    %14 = math.rsqrt %13 : vector<1x1x16xf32>
    %15 = vector.broadcast %14 : vector<1x1x16xf32> to vector<1x256x16xf32>
    %16 = arith.mulf %6, %15 : vector<1x256x16xf32>
    %cst_6 = arith.constant 0.000000e+00 : f32
    %17 = vector.broadcast %cst_6 : f32 to vector<1x256x16xf32>
    %18 = arith.maximumf %16, %17 : vector<1x256x16xf32>
    %c0_7 = arith.constant 0 : index
    %c0_8 = arith.constant 0 : index
    %c0_9 = arith.constant 0 : index
    %19 = vector.load %arg2[%c0_7, %c0_8, %c0_9] : memref<1x256x16xf32, #tpu.memory_space<vmem>>, vector<1x256x16xf32>
    tpu.vector_store %arg2[%c0_7, %c0_8, %c0_9], %18 {strides = array<i32>} : memref<1x256x16xf32, #tpu.memory_space<vmem>>, vector<1x256x16xf32>,
    return
  }
  func.func @transform_0(%arg0: i32) -> (i32, i32, i32) {
    %c0_i32 = arith.constant 0 : i32
    %c0_i32_0 = arith.constant 0 : i32
    %c0_i32_1 = arith.constant 0 : i32
    return %arg0, %c0_i32, %c0_i32_0 : i32, i32, i32
  }
  func.func @transform_1(%arg0: i32) -> (i32, i32, i32) {
    %c0_i32 = arith.constant 0 : i32
    %c0_i32_0 = arith.constant 0 : i32
    %c0_i32_1 = arith.constant 0 : i32
    return %arg0, %c0_i32, %c0_i32_0 : i32, i32, i32
  }
}

module attributes {stable_mosaic.version = 11 : i64} {
  func.func @_mm_epilogue_kernel(%arg0: i32, %arg1: memref<256x1568xf32, #tpu.memory_space<vmem>>, %arg2: memref<1568x3xf32, #tpu.memory_space<vmem>>, %arg3: memref<1x3xf32, #tpu.memory_space<vmem>>, %arg4: memref<256x3xf32, #tpu.memory_space<vmem>>) attributes {dimension_semantics = [#tpu.dimension_semantics<parallel>], iteration_bounds = array<i64: 2>, scalar_prefetch = 0 : i64, scratch_operands = 0 : i64, tpu.core_type = #tpu.core_type<tc>, window_params = [{transform_indices = @transform_0, window_bounds = array<i64: 256, 1568>}, {pipeline_mode = #tpu.pipeline_mode<synchronous>, transform_indices = @transform_1, window_bounds = array<i64: 1568, 3>}, {pipeline_mode = #tpu.pipeline_mode<synchronous>, transform_indices = @transform_2, window_bounds = array<i64: 1, 3>}, {transform_indices = @transform_3, window_bounds = array<i64: 256, 3>}]} {
    %c0 = arith.constant 0 : index
    %c0_0 = arith.constant 0 : index
    %0 = vector.load %arg1[%c0, %c0_0] : memref<256x1568xf32, #tpu.memory_space<vmem>>, vector<256x1568xf32>
    %c0_1 = arith.constant 0 : index
    %c0_2 = arith.constant 0 : index
    %1 = vector.load %arg2[%c0_1, %c0_2] : memref<1568x3xf32, #tpu.memory_space<vmem>>, vector<1568x3xf32>
    %cst = arith.constant dense<0.000000e+00> : vector<256x3xf32>
    %2 = tpu.matmul %0, %1, %cst {dimension_numbers = #tpu.dot_dimension_numbers<[1], [0], [0], [1], [0, 0, 1, 1], [], []>} : vector<256x1568xf32>, vector<1568x3xf32>, vector<256x3xf32> -> vector<256x3xf32>
    %c0_3 = arith.constant 0 : index
    %c0_4 = arith.constant 0 : index
    %3 = vector.load %arg3[%c0_3, %c0_4] : memref<1x3xf32, #tpu.memory_space<vmem>>, vector<1x3xf32>
    %4 = vector.broadcast %3 : vector<1x3xf32> to vector<256x3xf32>
    %5 = arith.addf %2, %4 : vector<256x3xf32>
    %6 = math.tanh %5 : vector<256x3xf32>
    %c0_5 = arith.constant 0 : index
    %c0_6 = arith.constant 0 : index
    %7 = vector.load %arg4[%c0_5, %c0_6] : memref<256x3xf32, #tpu.memory_space<vmem>>, vector<256x3xf32>
    tpu.vector_store %arg4[%c0_5, %c0_6], %6 {strides = array<i32>} : memref<256x3xf32, #tpu.memory_space<vmem>>, vector<256x3xf32>,
    return
  }
  func.func @transform_0(%arg0: i32) -> (i32, i32) {
    %c0_i32 = arith.constant 0 : i32
    %c0_i32_0 = arith.constant 0 : i32
    return %arg0, %c0_i32 : i32, i32
  }
  func.func @transform_1(%arg0: i32) -> (i32, i32) {
    %c0_i32 = arith.constant 0 : i32
    %c0_i32_0 = arith.constant 0 : i32
    %c0_i32_1 = arith.constant 0 : i32
    return %c0_i32, %c0_i32_0 : i32, i32
  }
  func.func @transform_2(%arg0: i32) -> (i32, i32) {
    %c0_i32 = arith.constant 0 : i32
    %c0_i32_0 = arith.constant 0 : i32
    %c0_i32_1 = arith.constant 0 : i32
    return %c0_i32, %c0_i32_0 : i32, i32
  }
  func.func @transform_3(%arg0: i32) -> (i32, i32) {
    %c0_i32 = arith.constant 0 : i32
    %c0_i32_0 = arith.constant 0 : i32
    return %arg0, %c0_i32 : i32, i32
  }
}

</mosaic_0001>

<llo_original>
// kernel: generator_forward.20
$region0: #{generator_forward.20}
  #allocation0 [shape = 'u32[]', space=smem, size = 0x4, offset = 0x4, fixed_abs, tag = 'smem constant byte address 0x4 - core index']
  #allocation1 [shape = 'u32[72,128]{1,0:T(1,128)}', space=vmem, size = 0x9000, scoped, tag = 'internal scratch']
  %s0 = inlined_call_operand.vmem [shape: f32[512,147], index: 0, kind: input, shape index: {}]
  %s1 = inlined_call_operand.vmem [shape: f32[147,16], index: 1, kind: input, shape index: {}]
  %s2 = inlined_call_operand.vmem [shape: f32[512,16], index: 2, kind: output, shape index: {}]
  %s3 = sld [smem:[#allocation0]]
  $region41: #{generator_forward.20} parent=0
    _
  %s5 = ssub.s32 1, %s3
  %s6 = scalar_select 0, %s5, %s3
  loop: start=0, step=1, limit=4
  $region2: #{generator_forward.20} parent=0 // loop_pre_header
    _
  $region3: #{generator_forward.20} parent=0 // loop_header
    %s8 = sphi 0, %s12
    %p9 = scmp.ge.s32.totalorder %s8, 4
    %s18 = sphi 0, %s20
    %s21 = sphi 0, %s18
    %s22 = sphi 0, %s21
    %s38 = sphi 0, %s22
    %s42 = sphi 0, %s42
    %s44 = sphi 0, %s42
    %s45 = sphi 0, %s44
    %s59 = sphi 0, %s45
    %s65 = sphi 0, %s67
    %s68 = sphi 0, %s65
    %s69 = sphi 0, %s68
    %s85 = sphi 0, %s69
  $region4: #{generator_forward.20} parent=0 // loop_header_branch
    %11 = sbr.rel (%p9) target = $region8
  $region5: #{generator_forward.20} parent=0 // loop_body
    %s13 = ssub.s32 %s8, 1
    %s14 = ssub.s32 %s8, 2
    %s15 = sadd.s32 %s8, 1
    %s16 = ssub.s32 %s8, %s15
    %p17 = scmp.eq.s32.totalorder %s16, 0
    %s19 = sadd.s32 %s18, 1
    %s20 = scalar_select %p17, %s18, %s19
    %p23 = pneg %p17
    %p24 = scmp.eq.s32.totalorder %s8, 1
    %p25 = por %p23, %p24
    %p26 = scmp.ne.s32.totalorder %s18, %s21
    %p27 = scmp.eq.s32.totalorder %s8, 0
    %p28 = por %p26, %p27
    %p29 = scmp.ne.s32.totalorder %s18, %s21
    %p30 = scmp.eq.s32.totalorder %s13, 1
    %p31 = por %p29, %p30
    %p32 = scmp.ne.s32.totalorder %s21, %s22
    %p33 = scmp.eq.s32.totalorder %s13, 0
    %p34 = por %p32, %p33
    %p35 = scmp.ne.s32.totalorder %s21, %s22
    %p36 = scmp.eq.s32.totalorder %s14, 1
    %p37 = por %p35, %p36
    %p39 = scmp.ne.s32.totalorder %s22, %s38
    %p40 = scmp.eq.s32.totalorder %s14, 0
    %p41 = por %p39, %p40
    %s43 = sadd.s32 %s42, 1
    %p46 = scmp.eq.s32.totalorder %s8, 1
    %p47 = scmp.ne.s32.totalorder %s42, %s44
    %p48 = scmp.eq.s32.totalorder %s8, 0
    %p49 = por %p47, %p48
    %p50 = scmp.ne.s32.totalorder %s42, %s44
    %p51 = scmp.eq.s32.totalorder %s13, 1
    %p52 = por %p50, %p51
    %p53 = scmp.ne.s32.totalorder %s44, %s45
    %p54 = scmp.eq.s32.totalorder %s13, 0
    %p55 = por %p53, %p54
    %p56 = scmp.ne.s32.totalorder %s44, %s45
    %p57 = scmp.eq.s32.totalorder %s14, 1
    %p58 = por %p56, %p57
    %p60 = scmp.ne.s32.totalorder %s45, %s59
    %p61 = scmp.eq.s32.totalorder %s14, 0
    %p62 = por %p60, %p61
    %s63 = ssub.s32 %s8, %s15
    %p64 = scmp.eq.s32.totalorder %s63, 0
    %s66 = sadd.s32 %s65, 1
    %s67 = scalar_select %p64, %s65, %s66
    %p70 = pneg %p64
    %p71 = scmp.eq.s32.totalorder %s8, 1
    %p72 = por %p70, %p71
    %p73 = scmp.ne.s32.totalorder %s65, %s68
    %p74 = scmp.eq.s32.totalorder %s8, 0
    %p75 = por %p73, %p74
    %p76 = scmp.ne.s32.totalorder %s65, %s68
    %p77 = scmp.eq.s32.totalorder %s13, 1
    %p78 = por %p76, %p77
    %p79 = scmp.ne.s32.totalorder %s68, %s69
    %p80 = scmp.eq.s32.totalorder %s13, 0
    %p81 = por %p79, %p80
    %p82 = scmp.ne.s32.totalorder %s68, %s69
    %p83 = scmp.eq.s32.totalorder %s14, 1
    %p84 = por %p82, %p83
    %p86 = scmp.ne.s32.totalorder %s69, %s85
    %p87 = scmp.eq.s32.totalorder %s14, 0
    %p88 = por %p86, %p87
    %p89 = scmp.le.s32.totalorder 1, %s8
    %p90 = scmp.lt.s32.totalorder %s8, 3
    %p91 = pnand %p89, %p90
    %p92 = pneg %p91
    // Predicated region
    $region9: #{generator_forward.20} parent=5 // pred_check
      _
    $region10: #{generator_forward.20} parent=5 // pred_check_branch
      %94 = sbr.rel (%p91) target = $region12
    $region11: #{generator_forward.20} parent=5 // pred_region
      %s95 = ssub.s32 %s8, 1
      // Predicated region
      $region13: #{generator_forward.20} parent=11 // pred_check
        %p96 = pneg %p55
      $region14: #{generator_forward.20} parent=11 // pred_check_branch
        %98 = sbr.rel (%p96) target = $region16
      $region15: #{generator_forward.20} parent=11 // pred_region
        _
      $region16: #{generator_forward.20} parent=11 // pred_fallthru
        _
    $region12: #{generator_forward.20} parent=5 // pred_fallthru
      _
    %p99 = scmp.lt.s32.totalorder %s8, 2
    // Predicated region
    $region17: #{generator_forward.20} parent=5 // pred_check
      %p100 = pneg %p99
    $region18: #{generator_forward.20} parent=5 // pred_check_branch
      %102 = sbr.rel (%p100) target = $region20
    $region19: #{generator_forward.20} parent=5 // pred_region
      // Predicated region
      $region21: #{generator_forward.20} parent=19 // pred_check
        %p103 = pneg %p28
      $region22: #{generator_forward.20} parent=19 // pred_check_branch
        %105 = sbr.rel (%p103) target = $region24
      $region23: #{generator_forward.20} parent=19 // pred_region
        %s106 = smul.u32 32, %s8
        %p107 = scmp.lt.s32.totalorder %s106, 63
        %s108 = scalar_select %p107, %s106, 63
        %s109 = smul.addr %s108, 2
        %s110 = smul.addr %s109, 8
        %s111 = scalar_lea.vmem %s0, %s110
        %s112 = smul.u32 32, %s8
      $region24: #{generator_forward.20} parent=19 // pred_fallthru
        _
    $region20: #{generator_forward.20} parent=5 // pred_fallthru
      _
    %p113 = scmp.le.s32.totalorder 1, %s8
    %p114 = scmp.lt.s32.totalorder %s8, 3
    %p115 = pnand %p113, %p114
    %p116 = pneg %p115
    // Predicated region
    $region25: #{generator_forward.20} parent=5 // pred_check
      _
    $region26: #{generator_forward.20} parent=5 // pred_check_branch
      %118 = sbr.rel (%p115) target = $region28
    $region27: #{generator_forward.20} parent=5 // pred_region
      %s119 = ssub.s32 %s8, 1
      %s120 = smul.u32 32, %s13
      %p121 = scmp.lt.s32.totalorder %s120, 63
      %s122 = scalar_select %p121, %s120, 63
      %s123 = smul.addr %s122, 2
      %s124 = smul.addr %s123, 8
      %s125 = scalar_lea.vmem %s0, %s124
      %p126 = pneg %p34
      %p127 = pneg %p31
      %p128 = pneg %p55
      %p129 = pneg %p52
      %p130 = pneg %p81
      %p131 = pneg %p78
      %s132 = smul.u32 32, %s13
      %p133 = scmp.lt.s32.totalorder %s132, 63
      %s134 = scalar_select %p133, %s132, 63
      %s135 = smul.addr %s134, 8
      %s136 = scalar_lea.vmem %s2, %s135
      %s137 = smul.u32 32, %s13
      %p138 = scmp.lt.s32.totalorder %s137, 63
      %s139 = scalar_select %p138, %s137, 63
      %s140 = smul.addr %s139, 2
      %s141 = smul.addr %s140, 8
      %s142 = scalar_lea.vmem %s0, %s141
      %s143 = smul.u32 32, %s13
      %s144 = smul.u32 32, %s13
      %p145 = scmp.lt.s32.totalorder %s144, 63
      %s146 = scalar_select %p145, %s144, 63
      %s147 = smul.addr %s146, 8
      %s148 = scalar_lea.vmem %s2, %s147
      %s149 = smul.u32 32, %s13
      %v150 = vld [vmem:[%s142] sm:$0xff]
      %v151 = vld [vmem:[%s142 + $0x8] sm:$0xff]
      %v152 = vld [vmem:[%s142 + $0x10] sm:$0xff]
      %v153 = vld [vmem:[%s142 + $0x18] sm:$0xff]
      %v154 = vld [vmem:[%s142 + $0x20] sm:$0xff]
      %v155 = vld [vmem:[%s142 + $0x28] sm:$0xff]
      %v156 = vld [vmem:[%s142 + $0x30] sm:$0xff]
      %v157 = vld [vmem:[%s142 + $0x38] sm:$0xff]
      %v158 = vld [vmem:[%s142 + $0x40] sm:$0xff]
      %v159 = vld [vmem:[%s142 + $0x48] sm:$0xff]
      %v160 = vld [vmem:[%s142 + $0x50] sm:$0xff]
      %v161 = vld [vmem:[%s142 + $0x58] sm:$0xff]
      %v162 = vld [vmem:[%s142 + $0x60] sm:$0xff]
      %v163 = vld [vmem:[%s142 + $0x68] sm:$0xff]
      %v164 = vld [vmem:[%s142 + $0x70] sm:$0xff]
      %v165 = vld [vmem:[%s142 + $0x78] sm:$0xff]
      %v166 = vld [vmem:[%s142 + $0x80] sm:$0xff]
      %v167 = vld [vmem:[%s142 + $0x88] sm:$0xff]
      %v168 = vld [vmem:[%s142 + $0x90] sm:$0xff]
      %v169 = vld [vmem:[%s142 + $0x98] sm:$0xff]
      %v170 = vld [vmem:[%s142 + $0xa0] sm:$0xff]
      %v171 = vld [vmem:[%s142 + $0xa8] sm:$0xff]
      %v172 = vld [vmem:[%s142 + $0xb0] sm:$0xff]
      %v173 = vld [vmem:[%s142 + $0xb8] sm:$0xff]
      %v174 = vld [vmem:[%s142 + $0xc0] sm:$0xff]
      %v175 = vld [vmem:[%s142 + $0xc8] sm:$0xff]
      %v176 = vld [vmem:[%s142 + $0xd0] sm:$0xff]
      %v177 = vld [vmem:[%s142 + $0xd8] sm:$0xff]
      %v178 = vld [vmem:[%s142 + $0xe0] sm:$0xff]
      %v179 = vld [vmem:[%s142 + $0xe8] sm:$0xff]
      %v180 = vld [vmem:[%s142 + $0xf0] sm:$0xff]
      %v181 = vld [vmem:[%s142 + $0xf8] sm:$0xff]
      %v182 = vld [vmem:[%s142 + $0x100] sm:$0xff]
      %v183 = vld [vmem:[%s142 + $0x108] sm:$0xff]
      %v184 = vld [vmem:[%s142 + $0x110] sm:$0xff]
      %v185 = vld [vmem:[%s142 + $0x118] sm:$0xff]
      %v186 = vld [vmem:[%s142 + $0x120] sm:$0xff]
      %v187 = vld [vmem:[%s142 + $0x128] sm:$0xff]
      %v188 = vld [vmem:[%s142 + $0x130] sm:$0xff]
      %v189 = vld [vmem:[%s142 + $0x138] sm:$0xff]
      %v190 = vld [vmem:[%s142 + $0x140] sm:$0xff]
      %v191 = vld [vmem:[%s142 + $0x148] sm:$0xff]
      %v192 = vld [vmem:[%s142 + $0x150] sm:$0xff]
      %v193 = vld [vmem:[%s142 + $0x158] sm:$0xff]
      %v194 = vld [vmem:[%s142 + $0x160] sm:$0xff]
      %v195 = vld [vmem:[%s142 + $0x168] sm:$0xff]
      %v196 = vld [vmem:[%s142 + $0x170] sm:$0xff]
      %v197 = vld [vmem:[%s142 + $0x178] sm:$0xff]
      %v198 = vld [vmem:[%s142 + $0x180] sm:$0xff]
      %v199 = vld [vmem:[%s142 + $0x188] sm:$0xff]
      %v200 = vld [vmem:[%s142 + $0x190] sm:$0xff]
      %v201 = vld [vmem:[%s142 + $0x198] sm:$0xff]
      %v202 = vld [vmem:[%s142 + $0x1a0] sm:$0xff]
      %v203 = vld [vmem:[%s142 + $0x1a8] sm:$0xff]
      %v204 = vld [vmem:[%s142 + $0x1b0] sm:$0xff]
      %v205 = vld [vmem:[%s142 + $0x1b8] sm:$0xff]
      %v206 = vld [vmem:[%s142 + $0x1c0] sm:$0xff]
      %v207 = vld [vmem:[%s142 + $0x1c8] sm:$0xff]
      %v208 = vld [vmem:[%s142 + $0x1d0] sm:$0xff]
      %v209 = vld [vmem:[%s142 + $0x1d8] sm:$0xff]
      %v210 = vld [vmem:[%s142 + $0x1e0] sm:$0xff]
      %v211 = vld [vmem:[%s142 + $0x1e8] sm:$0xff]
      %v212 = vld [vmem:[%s142 + $0x1f0] sm:$0xff]
      %v213 = vld [vmem:[%s142 + $0x1f8] sm:$0xff]
      %v214 = vld [vmem:[%s1] sm:$0xff]
      %v215 = vld [vmem:[%s1 + $0x8] sm:$0xff]
      %v216 = vld [vmem:[%s1 + $0x10] sm:$0xff]
      %v217 = vld [vmem:[%s1 + $0x18] sm:$0xff]
      %v218 = vld [vmem:[%s1 + $0x20] sm:$0xff]
      %v219 = vld [vmem:[%s1 + $0x28] sm:$0xff]
      %v220 = vld [vmem:[%s1 + $0x30] sm:$0xff]
      %v221 = vld [vmem:[%s1 + $0x38] sm:$0xff]
      %v222 = vld [vmem:[%s1 + $0x40] sm:$0xff]
      %v223 = vld [vmem:[%s1 + $0x48] sm:$0xff]
      %v224 = vld [vmem:[%s1 + $0x50] sm:$0xff]
      %v225 = vld [vmem:[%s1 + $0x58] sm:$0xff]
      %v226 = vld [vmem:[%s1 + $0x60] sm:$0xff]
      %v227 = vld [vmem:[%s1 + $0x68] sm:$0xff]
      %v228 = vld [vmem:[%s1 + $0x70] sm:$0xff]
      %v229 = vld [vmem:[%s1 + $0x78] sm:$0xff]
      %v230 = vld [vmem:[%s1 + $0x80] sm:$0xff]
      %v231 = vld [vmem:[%s1 + $0x88] sm:$0xff]
      %v232 = vld [vmem:[%s1 + $0x90] sm:$0x7]
      %vm233 = vcmask 154624
      %v235 = vsel %vm233, %v151, 0
      %v238 = vsel %vm233, %v153, 0
      %v241 = vsel %vm233, %v155, 0
      %v244 = vsel %vm233, %v157, 0
      %v247 = vsel %vm233, %v159, 0
      %v250 = vsel %vm233, %v161, 0
      %v253 = vsel %vm233, %v163, 0
      %v256 = vsel %vm233, %v165, 0
      %v259 = vsel %vm233, %v167, 0
      %v262 = vsel %vm233, %v169, 0
      %v265 = vsel %vm233, %v171, 0
      %v268 = vsel %vm233, %v173, 0
      %v271 = vsel %vm233, %v175, 0
      %v274 = vsel %vm233, %v177, 0
      %v277 = vsel %vm233, %v179, 0
      %v280 = vsel %vm233, %v181, 0
      %v283 = vsel %vm233, %v183, 0
      %v286 = vsel %vm233, %v185, 0
      %v289 = vsel %vm233, %v187, 0
      %v292 = vsel %vm233, %v189, 0
      %v295 = vsel %vm233, %v191, 0
      %v298 = vsel %vm233, %v193, 0
      %v301 = vsel %vm233, %v195, 0
      %v304 = vsel %vm233, %v197, 0
      %v307 = vsel %vm233, %v199, 0
      %v310 = vsel %vm233, %v201, 0
      %v313 = vsel %vm233, %v203, 0
      %v316 = vsel %vm233, %v205, 0
      %v319 = vsel %vm233, %v207, 0
      %v322 = vsel %vm233, %v209, 0
      %v325 = vsel %vm233, %v211, 0
      %v328 = vsel %vm233, %v213, 0
      %vm330 = vcmask 1042432
      %v332 = vsel %vm330, %v232, 0
      %334 = vmatpush.msra.mxu0 %v229
      %335 = vmatpush.msra.mxu0 %v228
      %336 = vmatpush.msra.mxu0 %v227
      %337 = vmatpush.msra.mxu0 %v226
      %338 = vmatpush.msra.mxu0 %v225
      %339 = vmatpush.msra.mxu0 %v224
      %340 = vmatpush.msra.mxu0 %v223
      %341 = vmatpush.msra.mxu0 %v222
      %342 = vmatpush.msra.mxu0 %v221
      %343 = vmatpush.msra.mxu0 %v220
      %344 = vmatpush.msra.mxu0 %v219
      %345 = vmatpush.msra.mxu0 %v218
      %346 = vmatpush.msra.mxu0 %v217
      %347 = vmatpush.msra.mxu0 %v216
      %348 = vmatpush.msra.mxu0 %v215
      %349 = vmatpush.msra.mxu0 %v214
      %350 = vmatmul.f32.gmra.mxu0 %v150
      %v351 = vpop.f32.mrf.mxu0
      %v352 = vadd.f32 0.0, %v351
      %353 = vmatmul.f32.gmra.mxu0 %v152
      %v354 = vpop.f32.mrf.mxu0
      %v355 = vadd.f32 0.0, %v354
      %356 = vmatmul.f32.gmra.mxu0 %v154
      %v357 = vpop.f32.mrf.mxu0
      %v358 = vadd.f32 0.0, %v357
      %359 = vmatmul.f32.gmra.mxu0 %v156
      %v360 = vpop.f32.mrf.mxu0
      %v361 = vadd.f32 0.0, %v360
      %362 = vmatmul.f32.gmra.mxu0 %v158
      %v363 = vpop.f32.mrf.mxu0
      %v364 = vadd.f32 0.0, %v363
      %365 = vmatmul.f32.gmra.mxu0 %v160
      %v366 = vpop.f32.mrf.mxu0
      %v367 = vadd.f32 0.0, %v366
      %368 = vmatmul.f32.gmra.mxu0 %v162
      %v369 = vpop.f32.mrf.mxu0
      %v370 = vadd.f32 0.0, %v369
      %371 = vmatmul.f32.gmra.mxu0 %v164
      %v372 = vpop.f32.mrf.mxu0
      %v373 = vadd.f32 0.0, %v372
      %374 = vmatmul.f32.gmra.mxu0 %v166
      %v375 = vpop.f32.mrf.mxu0
      %v376 = vadd.f32 0.0, %v375
      %377 = vmatmul.f32.gmra.mxu0 %v168
      %v378 = vpop.f32.mrf.mxu0
      %v379 = vadd.f32 0.0, %v378
      %380 = vmatmul.f32.gmra.mxu0 %v170
      %v381 = vpop.f32.mrf.mxu0
      %v382 = vadd.f32 0.0, %v381
      %383 = vmatmul.f32.gmra.mxu0 %v172
      %v384 = vpop.f32.mrf.mxu0
      %v385 = vadd.f32 0.0, %v384
      %386 = vmatmul.f32.gmra.mxu0 %v174
      %v387 = vpop.f32.mrf.mxu0
      %v388 = vadd.f32 0.0, %v387
      %389 = vmatmul.f32.gmra.mxu0 %v176
      %v390 = vpop.f32.mrf.mxu0
      %v391 = vadd.f32 0.0, %v390
      %392 = vmatmul.f32.gmra.mxu0 %v178
      %v393 = vpop.f32.mrf.mxu0
      %v394 = vadd.f32 0.0, %v393
      %395 = vmatmul.f32.gmra.mxu0 %v180
      %v396 = vpop.f32.mrf.mxu0
      %v397 = vadd.f32 0.0, %v396
      %398 = vmatmul.f32.gmra.mxu0 %v182
      %v399 = vpop.f32.mrf.mxu0
      %v400 = vadd.f32 0.0, %v399
      %401 = vmatmul.f32.gmra.mxu0 %v184
      %v402 = vpop.f32.mrf.mxu0
      %v403 = vadd.f32 0.0, %v402
      %404 = vmatmul.f32.gmra.mxu0 %v186
      %v405 = vpop.f32.mrf.mxu0
      %v406 = vadd.f32 0.0, %v405
      %407 = vmatmul.f32.gmra.mxu0 %v188
      %v408 = vpop.f32.mrf.mxu0
      %v409 = vadd.f32 0.0, %v408
      %410 = vmatmul.f32.gmra.mxu0 %v190
      %v411 = vpop.f32.mrf.mxu0
      %v412 = vadd.f32 0.0, %v411
      %413 = vmatmul.f32.gmra.mxu0 %v192
      %v414 = vpop.f32.mrf.mxu0
      %v415 = vadd.f32 0.0, %v414
      %416 = vmatmul.f32.gmra.mxu0 %v194
      %v417 = vpop.f32.mrf.mxu0
      %v418 = vadd.f32 0.0, %v417
      %419 = vmatmul.f32.gmra.mxu0 %v196
      %v420 = vpop.f32.mrf.mxu0
      %v421 = vadd.f32 0.0, %v420
      %422 = vmatmul.f32.gmra.mxu0 %v198
      %v423 = vpop.f32.mrf.mxu0
      %v424 = vadd.f32 0.0, %v423
      %425 = vmatmul.f32.gmra.mxu0 %v200
      %v426 = vpop.f32.mrf.mxu0
      %v427 = vadd.f32 0.0, %v426
      %428 = vmatmul.f32.gmra.mxu0 %v202
      %v429 = vpop.f32.mrf.mxu0
      %v430 = vadd.f32 0.0, %v429
      %431 = vmatmul.f32.gmra.mxu0 %v204
      %v432 = vpop.f32.mrf.mxu0
      %v433 = vadd.f32 0.0, %v432
      %434 = vmatmul.f32.gmra.mxu0 %v206
      %v435 = vpop.f32.mrf.mxu0
      %v436 = vadd.f32 0.0, %v435
      %437 = vmatmul.f32.gmra.mxu0 %v208
      %v438 = vpop.f32.mrf.mxu0
      %v439 = vadd.f32 0.0, %v438
      %440 = vmatmul.f32.gmra.mxu0 %v210
      %v441 = vpop.f32.mrf.mxu0
      %v442 = vadd.f32 0.0, %v441
      %443 = vmatmul.f32.gmra.mxu0 %v212
      %v444 = vpop.f32.mrf.mxu0
      %v445 = vadd.f32 0.0, %v444
      %446 = vdwg.mxu0
      %447 = vmatpush.msra.mxu0 0.0
      %448 = vmatpush.msra.mxu0 0.0
      %449 = vmatpush.msra.mxu0 0.0
      %450 = vmatpush.msra.mxu0 0.0
      %451 = vmatpush.msra.mxu0 0.0
      %452 = vmatpush.msra.mxu0 0.0
      %453 = vmatpush.msra.mxu0 0.0
      %454 = vmatpush.msra.mxu0 0.0
      %455 = vmatpush.msra.mxu0 0.0
      %456 = vmatpush.msra.mxu0 0.0
      %457 = vmatpush.msra.mxu0 0.0
      %458 = vmatpush.msra.mxu0 0.0
      %459 = vmatpush.msra.mxu0 0.0
      %460 = vmatpush.msra.mxu0 %v332
      %461 = vmatpush.msra.mxu0 %v231
      %462 = vmatpush.msra.mxu0 %v230
      %463 = vmatmul.f32.gmra.mxu0 %v235
      %v464 = vpop.f32.mrf.mxu0
      %v465 = vadd.f32 %v352, %v464
      %466 = vmatmul.f32.gmra.mxu0 %v238
      %v467 = vpop.f32.mrf.mxu0
      %v468 = vadd.f32 %v355, %v467
      %469 = vmatmul.f32.gmra.mxu0 %v241
      %v470 = vpop.f32.mrf.mxu0
      %v471 = vadd.f32 %v358, %v470
      %472 = vmatmul.f32.gmra.mxu0 %v244
      %v473 = vpop.f32.mrf.mxu0
      %v474 = vadd.f32 %v361, %v473
      %475 = vmatmul.f32.gmra.mxu0 %v247
      %v476 = vpop.f32.mrf.mxu0
      %v477 = vadd.f32 %v364, %v476
      %478 = vmatmul.f32.gmra.mxu0 %v250
      %v479 = vpop.f32.mrf.mxu0
      %v480 = vadd.f32 %v367, %v479
      %481 = vmatmul.f32.gmra.mxu0 %v253
      %v482 = vpop.f32.mrf.mxu0
      %v483 = vadd.f32 %v370, %v482
      %484 = vmatmul.f32.gmra.mxu0 %v256
      %v485 = vpop.f32.mrf.mxu0
      %v486 = vadd.f32 %v373, %v485
      %487 = vmatmul.f32.gmra.mxu0 %v259
      %v488 = vpop.f32.mrf.mxu0
      %v489 = vadd.f32 %v376, %v488
      %490 = vmatmul.f32.gmra.mxu0 %v262
      %v491 = vpop.f32.mrf.mxu0
      %v492 = vadd.f32 %v379, %v491
      %493 = vmatmul.f32.gmra.mxu0 %v265
      %v494 = vpop.f32.mrf.mxu0
      %v495 = vadd.f32 %v382, %v494
      %496 = vmatmul.f32.gmra.mxu0 %v268
      %v497 = vpop.f32.mrf.mxu0
      %v498 = vadd.f32 %v385, %v497
      %499 = vmatmul.f32.gmra.mxu0 %v271
      %v500 = vpop.f32.mrf.mxu0
      %v501 = vadd.f32 %v388, %v500
      %502 = vmatmul.f32.gmra.mxu0 %v274
      %v503 = vpop.f32.mrf.mxu0
      %v504 = vadd.f32 %v391, %v503
      %505 = vmatmul.f32.gmra.mxu0 %v277
      %v506 = vpop.f32.mrf.mxu0
      %v507 = vadd.f32 %v394, %v506
      %508 = vmatmul.f32.gmra.mxu0 %v280
      %v509 = vpop.f32.mrf.mxu0
      %v510 = vadd.f32 %v397, %v509
      %511 = vmatmul.f32.gmra.mxu0 %v283
      %v512 = vpop.f32.mrf.mxu0
      %v513 = vadd.f32 %v400, %v512
      %514 = vmatmul.f32.gmra.mxu0 %v286
      %v515 = vpop.f32.mrf.mxu0
      %v516 = vadd.f32 %v403, %v515
      %517 = vmatmul.f32.gmra.mxu0 %v289
      %v518 = vpop.f32.mrf.mxu0
      %v519 = vadd.f32 %v406, %v518
      %520 = vmatmul.f32.gmra.mxu0 %v292
      %v521 = vpop.f32.mrf.mxu0
      %v522 = vadd.f32 %v409, %v521
      %523 = vmatmul.f32.gmra.mxu0 %v295
      %v524 = vpop.f32.mrf.mxu0
      %v525 = vadd.f32 %v412, %v524
      %526 = vmatmul.f32.gmra.mxu0 %v298
      %v527 = vpop.f32.mrf.mxu0
      %v528 = vadd.f32 %v415, %v527
      %529 = vmatmul.f32.gmra.mxu0 %v301
      %v530 = vpop.f32.mrf.mxu0
      %v531 = vadd.f32 %v418, %v530
      %532 = vmatmul.f32.gmra.mxu0 %v304
      %v533 = vpop.f32.mrf.mxu0
      %v534 = vadd.f32 %v421, %v533
      %535 = vmatmul.f32.gmra.mxu0 %v307
      %v536 = vpop.f32.mrf.mxu0
      %v537 = vadd.f32 %v424, %v536
      %538 = vmatmul.f32.gmra.mxu0 %v310
      %v539 = vpop.f32.mrf.mxu0
      %v540 = vadd.f32 %v427, %v539
      %541 = vmatmul.f32.gmra.mxu0 %v313
      %v542 = vpop.f32.mrf.mxu0
      %v543 = vadd.f32 %v430, %v542
      %544 = vmatmul.f32.gmra.mxu0 %v316
      %v545 = vpop.f32.mrf.mxu0
      %v546 = vadd.f32 %v433, %v545
      %547 = vmatmul.f32.gmra.mxu0 %v319
      %v548 = vpop.f32.mrf.mxu0
      %v549 = vadd.f32 %v436, %v548
      %550 = vmatmul.f32.gmra.mxu0 %v322
      %v551 = vpop.f32.mrf.mxu0
      %v552 = vadd.f32 %v439, %v551
      %553 = vmatmul.f32.gmra.mxu0 %v325
      %v554 = vpop.f32.mrf.mxu0
      %v555 = vadd.f32 %v442, %v554
      %556 = vmatmul.f32.gmra.mxu0 %v328
      %v557 = vpop.f32.mrf.mxu0
      %v558 = vadd.f32 %v445, %v557
      %559 = vdwg.mxu0
      %vm560 = vcmask 130048
      %v561 = vsel %vm560, %v465, 0.0
      %v562 = vsel %vm560, %v468, 0.0
      %v563 = vadd.f32 %v561, %v562
      %v564 = vsel %vm560, %v471, 0.0
      %v565 = vadd.f32 %v563, %v564
      %v566 = vsel %vm560, %v474, 0.0
      %v567 = vadd.f32 %v565, %v566
      %v568 = vsel %vm560, %v477, 0.0
      %v569 = vadd.f32 %v567, %v568
      %v570 = vsel %vm560, %v480, 0.0
      %v571 = vadd.f32 %v569, %v570
      %v572 = vsel %vm560, %v483, 0.0
      %v573 = vadd.f32 %v571, %v572
      %v574 = vsel %vm560, %v486, 0.0
      %v575 = vadd.f32 %v573, %v574
      %v576 = vsel %vm560, %v489, 0.0
      %v577 = vadd.f32 %v575, %v576
      %v578 = vsel %vm560, %v492, 0.0
      %v579 = vadd.f32 %v577, %v578
      %v580 = vsel %vm560, %v495, 0.0
      %v581 = vadd.f32 %v579, %v580
      %v582 = vsel %vm560, %v498, 0.0
      %v583 = vadd.f32 %v581, %v582
      %v584 = vsel %vm560, %v501, 0.0
      %v585 = vadd.f32 %v583, %v584
      %v586 = vsel %vm560, %v504, 0.0
      %v587 = vadd.f32 %v585, %v586
      %v588 = vsel %vm560, %v507, 0.0
      %v589 = vadd.f32 %v587, %v588
      %v590 = vsel %vm560, %v510, 0.0
      %v591 = vadd.f32 %v589, %v590
      %v592 = vsel %vm560, %v513, 0.0
      %v593 = vadd.f32 %v591, %v592
      %v594 = vsel %vm560, %v516, 0.0
      %v595 = vadd.f32 %v593, %v594
      %v596 = vsel %vm560, %v519, 0.0
      %v597 = vadd.f32 %v595, %v596
      %v598 = vsel %vm560, %v522, 0.0
      %v599 = vadd.f32 %v597, %v598
      %v600 = vsel %vm560, %v525, 0.0
      %v601 = vadd.f32 %v599, %v600
      %v602 = vsel %vm560, %v528, 0.0
      %v603 = vadd.f32 %v601, %v602
      %v604 = vsel %vm560, %v531, 0.0
      %v605 = vadd.f32 %v603, %v604
      %v606 = vsel %vm560, %v534, 0.0
      %v607 = vadd.f32 %v605, %v606
      %v608 = vsel %vm560, %v537, 0.0
      %v609 = vadd.f32 %v607, %v608
      %v610 = vsel %vm560, %v540, 0.0
      %v611 = vadd.f32 %v609, %v610
      %v612 = vsel %vm560, %v543, 0.0
      %v613 = vadd.f32 %v611, %v612
      %v614 = vsel %vm560, %v546, 0.0
      %v615 = vadd.f32 %v613, %v614
      %v616 = vsel %vm560, %v549, 0.0
      %v617 = vadd.f32 %v615, %v616
      %v618 = vsel %vm560, %v552, 0.0
      %v619 = vadd.f32 %v617, %v618
      %v620 = vsel %vm560, %v555, 0.0
      %v621 = vadd.f32 %v619, %v620
      %v622 = vsel %vm560, %v558, 0.0
      %v623 = vadd.f32 %v621, %v622
      %v624 = vrot.slane %v623, 4
      %v625 = vadd.f32 %v623, %v624
      %v626 = vrot.slane %v625, 2
      %v627 = vadd.f32 %v625, %v626
      %v628 = vrot.slane %v627, 1
      %v629 = vadd.f32 %v627, %v628
      %v630 = vrcp.pop 256.0
      %v631 = vmul.f32 256.0, %v630
      %v632 = vsub.f32 1.0, %v631
      %v633 = vmul.f32 %v630, %v632
      %v634 = vadd.f32 %v630, %v633
      %vm635 = vweird.f32 %v630
      %v636 = vsel %vm635, %v630, %v634
      %v637 = vmul.f32 %v629, %v636
      %v638 = vsub.f32 %v465, %v637
      %v639 = vsub.f32 %v468, %v637
      %v640 = vsub.f32 %v471, %v637
      %v641 = vsub.f32 %v474, %v637
      %v642 = vsub.f32 %v477, %v637
      %v643 = vsub.f32 %v480, %v637
      %v644 = vsub.f32 %v483, %v637
      %v645 = vsub.f32 %v486, %v637
      %v646 = vsub.f32 %v489, %v637
      %v647 = vsub.f32 %v492, %v637
      %v648 = vsub.f32 %v495, %v637
      %v649 = vsub.f32 %v498, %v637
      %v650 = vsub.f32 %v501, %v637
      %v651 = vsub.f32 %v504, %v637
      %v652 = vsub.f32 %v507, %v637
      %v653 = vsub.f32 %v510, %v637
      %v654 = vsub.f32 %v513, %v637
      %v655 = vsub.f32 %v516, %v637
      %v656 = vsub.f32 %v519, %v637
      %v657 = vsub.f32 %v522, %v637
      %v658 = vsub.f32 %v525, %v637
      %v659 = vsub.f32 %v528, %v637
      %v660 = vsub.f32 %v531, %v637
      %v661 = vsub.f32 %v534, %v637
      %v662 = vsub.f32 %v537, %v637
      %v663 = vsub.f32 %v540, %v637
      %v664 = vsub.f32 %v543, %v637
      %v665 = vsub.f32 %v546, %v637
      %v666 = vsub.f32 %v549, %v637
      %v667 = vsub.f32 %v552, %v637
      %v668 = vsub.f32 %v555, %v637
      %v669 = vsub.f32 %v558, %v637
      %v670 = vmul.f32 %v638, %v638
      %v671 = vmul.f32 %v639, %v639
      %v672 = vmul.f32 %v640, %v640
      %v673 = vmul.f32 %v641, %v641
      %v674 = vmul.f32 %v642, %v642
      %v675 = vmul.f32 %v643, %v643
      %v676 = vmul.f32 %v644, %v644
      %v677 = vmul.f32 %v645, %v645
      %v678 = vmul.f32 %v646, %v646
      %v679 = vmul.f32 %v647, %v647
      %v680 = vmul.f32 %v648, %v648
      %v681 = vmul.f32 %v649, %v649
      %v682 = vmul.f32 %v650, %v650
      %v683 = vmul.f32 %v651, %v651
      %v684 = vmul.f32 %v652, %v652
      %v685 = vmul.f32 %v653, %v653
      %v686 = vmul.f32 %v654, %v654
      %v687 = vmul.f32 %v655, %v655
      %v688 = vmul.f32 %v656, %v656
      %v689 = vmul.f32 %v657, %v657
      %v690 = vmul.f32 %v658, %v658
      %v691 = vmul.f32 %v659, %v659
      %v692 = vmul.f32 %v660, %v660
      %v693 = vmul.f32 %v661, %v661
      %v694 = vmul.f32 %v662, %v662
      %v695 = vmul.f32 %v663, %v663
      %v696 = vmul.f32 %v664, %v664
      %v697 = vmul.f32 %v665, %v665
      %v698 = vmul.f32 %v666, %v666
      %v699 = vmul.f32 %v667, %v667
      %v700 = vmul.f32 %v668, %v668
      %v701 = vmul.f32 %v669, %v669
      %v702 = vsel %vm560, %v670, 0.0
      %v703 = vsel %vm560, %v671, 0.0
      %v704 = vadd.f32 %v702, %v703
      %v705 = vsel %vm560, %v672, 0.0
      %v706 = vadd.f32 %v704, %v705
      %v707 = vsel %vm560, %v673, 0.0
      %v708 = vadd.f32 %v706, %v707
      %v709 = vsel %vm560, %v674, 0.0
      %v710 = vadd.f32 %v708, %v709
      %v711 = vsel %vm560, %v675, 0.0
      %v712 = vadd.f32 %v710, %v711
      %v713 = vsel %vm560, %v676, 0.0
      %v714 = vadd.f32 %v712, %v713
      %v715 = vsel %vm560, %v677, 0.0
      %v716 = vadd.f32 %v714, %v715
      %v717 = vsel %vm560, %v678, 0.0
      %v718 = vadd.f32 %v716, %v717
      %v719 = vsel %vm560, %v679, 0.0
      %v720 = vadd.f32 %v718, %v719
      %v721 = vsel %vm560, %v680, 0.0
      %v722 = vadd.f32 %v720, %v721
      %v723 = vsel %vm560, %v681, 0.0
      %v724 = vadd.f32 %v722, %v723
      %v725 = vsel %vm560, %v682, 0.0
      %v726 = vadd.f32 %v724, %v725
      %v727 = vsel %vm560, %v683, 0.0
      %v728 = vadd.f32 %v726, %v727
      %v729 = vsel %vm560, %v684, 0.0
      %v730 = vadd.f32 %v728, %v729
      %v731 = vsel %vm560, %v685, 0.0
      %v732 = vadd.f32 %v730, %v731
      %v733 = vsel %vm560, %v686, 0.0
      %v734 = vadd.f32 %v732, %v733
      %v735 = vsel %vm560, %v687, 0.0
      %v736 = vadd.f32 %v734, %v735
      %v737 = vsel %vm560, %v688, 0.0
      %v738 = vadd.f32 %v736, %v737
      %v739 = vsel %vm560, %v689, 0.0
      %v740 = vadd.f32 %v738, %v739
      %v741 = vsel %vm560, %v690, 0.0
      %v742 = vadd.f32 %v740, %v741
      %v743 = vsel %vm560, %v691, 0.0
      %v744 = vadd.f32 %v742, %v743
      %v745 = vsel %vm560, %v692, 0.0
      %v746 = vadd.f32 %v744, %v745
      %v747 = vsel %vm560, %v693, 0.0
      %v748 = vadd.f32 %v746, %v747
      %v749 = vsel %vm560, %v694, 0.0
      %v750 = vadd.f32 %v748, %v749
      %v751 = vsel %vm560, %v695, 0.0
      %v752 = vadd.f32 %v750, %v751
      %v753 = vsel %vm560, %v696, 0.0
      %v754 = vadd.f32 %v752, %v753
      %v755 = vsel %vm560, %v697, 0.0
      %v756 = vadd.f32 %v754, %v755
      %v757 = vsel %vm560, %v698, 0.0
      %v758 = vadd.f32 %v756, %v757
      %v759 = vsel %vm560, %v699, 0.0
      %v760 = vadd.f32 %v758, %v759
      %v761 = vsel %vm560, %v700, 0.0
      %v762 = vadd.f32 %v760, %v761
      %v763 = vsel %vm560, %v701, 0.0
      %v764 = vadd.f32 %v762, %v763
      %v765 = vrot.slane %v764, 4
      %v766 = vadd.f32 %v764, %v765
      %v767 = vrot.slane %v766, 2
      %v768 = vadd.f32 %v766, %v767
      %v769 = vrot.slane %v768, 1
      %v770 = vadd.f32 %v768, %v769
      %v771 = vmul.f32 %v770, %v636
      %v772 = vadd.f32 %v771, 1e-05
      %v773 = vrsqrt.pop %v772
      %v774 = vmul.f32 %v773, %v772
      %v775 = vmul.f32 %v774, %v773
      %v776 = vmul.f32 0.5, %v775
      %v777 = vsub.f32 1.5, %v776
      %v778 = vmul.f32 %v773, %v777
      %vm779 = vweird.f32 %v772
      %vm780 = vweird.f32 %v773
      %vm781 = vmor %vm779, %vm780
      %v782 = vsel %vm781, %v773, %v778
      %v783 = vmul.f32 %v638, %v782
      %v784 = vmul.f32 %v639, %v782
      %v785 = vmul.f32 %v640, %v782
      %v786 = vmul.f32 %v641, %v782
      %v787 = vmul.f32 %v642, %v782
      %v788 = vmul.f32 %v643, %v782
      %v789 = vmul.f32 %v644, %v782
      %v790 = vmul.f32 %v645, %v782
      %v791 = vmul.f32 %v646, %v782
      %v792 = vmul.f32 %v647, %v782
      %v793 = vmul.f32 %v648, %v782
      %v794 = vmul.f32 %v649, %v782
      %v795 = vmul.f32 %v650, %v782
      %v796 = vmul.f32 %v651, %v782
      %v797 = vmul.f32 %v652, %v782
      %v798 = vmul.f32 %v653, %v782
      %v799 = vmul.f32 %v654, %v782
      %v800 = vmul.f32 %v655, %v782
      %v801 = vmul.f32 %v656, %v782
      %v802 = vmul.f32 %v657, %v782
      %v803 = vmul.f32 %v658, %v782
      %v804 = vmul.f32 %v659, %v782
      %v805 = vmul.f32 %v660, %v782
      %v806 = vmul.f32 %v661, %v782
      %v807 = vmul.f32 %v662, %v782
      %v808 = vmul.f32 %v663, %v782
      %v809 = vmul.f32 %v664, %v782
      %v810 = vmul.f32 %v665, %v782
      %v811 = vmul.f32 %v666, %v782
      %v812 = vmul.f32 %v667, %v782
      %v813 = vmul.f32 %v668, %v782
      %v814 = vmul.f32 %v669, %v782
      %v815 = vmax.f32 %v783, 0.0
      %v816 = vmax.f32 %v784, 0.0
      %v817 = vmax.f32 %v785, 0.0
      %v818 = vmax.f32 %v786, 0.0
      %v819 = vmax.f32 %v787, 0.0
      %v820 = vmax.f32 %v788, 0.0
      %v821 = vmax.f32 %v789, 0.0
      %v822 = vmax.f32 %v790, 0.0
      %v823 = vmax.f32 %v791, 0.0
      %v824 = vmax.f32 %v792, 0.0
      %v825 = vmax.f32 %v793, 0.0
      %v826 = vmax.f32 %v794, 0.0
      %v827 = vmax.f32 %v795, 0.0
      %v828 = vmax.f32 %v796, 0.0
      %v829 = vmax.f32 %v797, 0.0
      %v830 = vmax.f32 %v798, 0.0
      %v831 = vmax.f32 %v799, 0.0
      %v832 = vmax.f32 %v800, 0.0
      %v833 = vmax.f32 %v801, 0.0
      %v834 = vmax.f32 %v802, 0.0
      %v835 = vmax.f32 %v803, 0.0
      %v836 = vmax.f32 %v804, 0.0
      %v837 = vmax.f32 %v805, 0.0
      %v838 = vmax.f32 %v806, 0.0
      %v839 = vmax.f32 %v807, 0.0
      %v840 = vmax.f32 %v808, 0.0
      %v841 = vmax.f32 %v809, 0.0
      %v842 = vmax.f32 %v810, 0.0
      %v843 = vmax.f32 %v811, 0.0
      %v844 = vmax.f32 %v812, 0.0
      %v845 = vmax.f32 %v813, 0.0
      %v846 = vmax.f32 %v814, 0.0
      %847 = vst.msk [vmem:[%s148] sm:$0xff] %vm560, %v815
      %848 = vst.msk [vmem:[%s148 + $0x8] sm:$0xff] %vm560, %v816
      %849 = vst.msk [vmem:[%s148 + $0x10] sm:$0xff] %vm560, %v817
      %850 = vst.msk [vmem:[%s148 + $0x18] sm:$0xff] %vm560, %v818
      %851 = vst.msk [vmem:[%s148 + $0x20] sm:$0xff] %vm560, %v819
      %852 = vst.msk [vmem:[%s148 + $0x28] sm:$0xff] %vm560, %v820
      %853 = vst.msk [vmem:[%s148 + $0x30] sm:$0xff] %vm560, %v821
      %854 = vst.msk [vmem:[%s148 + $0x38] sm:$0xff] %vm560, %v822
      %855 = vst.msk [vmem:[%s148 + $0x40] sm:$0xff] %vm560, %v823
      %856 = vst.msk [vmem:[%s148 + $0x48] sm:$0xff] %vm560, %v824
      %857 = vst.msk [vmem:[%s148 + $0x50] sm:$0xff] %vm560, %v825
      %858 = vst.msk [vmem:[%s148 + $0x58] sm:$0xff] %vm560, %v826
      %859 = vst.msk [vmem:[%s148 + $0x60] sm:$0xff] %vm560, %v827
      %860 = vst.msk [vmem:[%s148 + $0x68] sm:$0xff] %vm560, %v828
      %861 = vst.msk [vmem:[%s148 + $0x70] sm:$0xff] %vm560, %v829
      %862 = vst.msk [vmem:[%s148 + $0x78] sm:$0xff] %vm560, %v830
      %863 = vst.msk [vmem:[%s148 + $0x80] sm:$0xff] %vm560, %v831
      %864 = vst.msk [vmem:[%s148 + $0x88] sm:$0xff] %vm560, %v832
      %865 = vst.msk [vmem:[%s148 + $0x90] sm:$0xff] %vm560, %v833
      %866 = vst.msk [vmem:[%s148 + $0x98] sm:$0xff] %vm560, %v834
      %867 = vst.msk [vmem:[%s148 + $0xa0] sm:$0xff] %vm560, %v835
      %868 = vst.msk [vmem:[%s148 + $0xa8] sm:$0xff] %vm560, %v836
      %869 = vst.msk [vmem:[%s148 + $0xb0] sm:$0xff] %vm560, %v837
      %870 = vst.msk [vmem:[%s148 + $0xb8] sm:$0xff] %vm560, %v838
      %871 = vst.msk [vmem:[%s148 + $0xc0] sm:$0xff] %vm560, %v839
      %872 = vst.msk [vmem:[%s148 + $0xc8] sm:$0xff] %vm560, %v840
      %873 = vst.msk [vmem:[%s148 + $0xd0] sm:$0xff] %vm560, %v841
      %874 = vst.msk [vmem:[%s148 + $0xd8] sm:$0xff] %vm560, %v842
      %875 = vst.msk [vmem:[%s148 + $0xe0] sm:$0xff] %vm560, %v843
      %876 = vst.msk [vmem:[%s148 + $0xe8] sm:$0xff] %vm560, %v844
      %877 = vst.msk [vmem:[%s148 + $0xf0] sm:$0xff] %vm560, %v845
      %878 = vst.msk [vmem:[%s148 + $0xf8] sm:$0xff] %vm560, %v846
      %s879 = smul.u32 32, %s13
      %p880 = scmp.lt.s32.totalorder %s879, 63
      %s881 = scalar_select %p880, %s879, 63
      %s882 = smul.addr %s881, 8
      %s883 = scalar_lea.vmem %s2, %s882
      // Predicated region
      $region29: #{generator_forward.20} parent=27 // pred_check
        %p884 = pneg %p78
      $region30: #{generator_forward.20} parent=27 // pred_check_branch
        %886 = sbr.rel (%p884) target = $region32
      $region31: #{generator_forward.20} parent=27 // pred_region
        %s887 = smul.u32 32, %s13
      $region32: #{generator_forward.20} parent=27 // pred_fallthru
        _
    $region28: #{generator_forward.20} parent=5 // pred_fallthru
      _
    %p888 = scmp.le.s32.totalorder 2, %s8
    // Predicated region
    $region33: #{generator_forward.20} parent=5 // pred_check
      %p889 = pneg %p888
    $region34: #{generator_forward.20} parent=5 // pred_check_branch
      %891 = sbr.rel (%p889) target = $region36
    $region35: #{generator_forward.20} parent=5 // pred_region
      %s892 = ssub.s32 %s8, 2
      // Predicated region
      $region37: #{generator_forward.20} parent=35 // pred_check
        %p893 = pneg %p84
      $region38: #{generator_forward.20} parent=35 // pred_check_branch
        %895 = sbr.rel (%p893) target = $region40
      $region39: #{generator_forward.20} parent=35 // pred_region
        %s896 = smul.u32 32, %s14
        %p897 = scmp.lt.s32.totalorder %s896, 63
        %s898 = scalar_select %p897, %s896, 63
        %s899 = smul.addr %s898, 8
        %s900 = scalar_lea.vmem %s2, %s899
      $region40: #{generator_forward.20} parent=35 // pred_fallthru
        _
    $region36: #{generator_forward.20} parent=5 // pred_fallthru
      _
  $region6: #{generator_forward.20} parent=0 // loop_footer
    %s12 = sadd.s32 1, %s8
  $region7: #{generator_forward.20} parent=0 // loop_footer_branch
    %7 = sbr.rel target = $region3
  $region8: #{generator_forward.20} parent=0 // loop_exit
    _

// kernel: generator_forward.21
$region0: #{generator_forward.21}
  #allocation0 [shape = 'u32[]', space=smem, size = 0x4, offset = 0x4, fixed_abs, tag = 'smem constant byte address 0x4 - core index']
  #allocation1 [shape = 'u32[72,128]{1,0:T(1,128)}', space=vmem, size = 0x9000, scoped, tag = 'internal scratch']
  %s0 = inlined_call_operand.vmem [shape: f32[128,144], index: 0, kind: input, shape index: {}]
  %s1 = inlined_call_operand.vmem [shape: f32[144,32], index: 1, kind: input, shape index: {}]
  %s2 = inlined_call_operand.vmem [shape: f32[128,32], index: 2, kind: output, shape index: {}]
  %s3 = sld [smem:[#allocation0]]
  $region41: #{generator_forward.21} parent=0
    _
  %s5 = ssub.s32 1, %s3
  %s6 = scalar_select 0, %s5, %s3
  loop: start=0, step=1, limit=4
  $region2: #{generator_forward.21} parent=0 // loop_pre_header
    _
  $region3: #{generator_forward.21} parent=0 // loop_header
    %s8 = sphi 0, %s12
    %p9 = scmp.ge.s32.totalorder %s8, 4
    %s18 = sphi 0, %s20
    %s21 = sphi 0, %s18
    %s22 = sphi 0, %s21
    %s38 = sphi 0, %s22
    %s42 = sphi 0, %s42
    %s44 = sphi 0, %s42
    %s45 = sphi 0, %s44
    %s59 = sphi 0, %s45
    %s65 = sphi 0, %s67
    %s68 = sphi 0, %s65
    %s69 = sphi 0, %s68
    %s85 = sphi 0, %s69
  $region4: #{generator_forward.21} parent=0 // loop_header_branch
    %11 = sbr.rel (%p9) target = $region8
  $region5: #{generator_forward.21} parent=0 // loop_body
    %s13 = ssub.s32 %s8, 1
    %s14 = ssub.s32 %s8, 2
    %s15 = sadd.s32 %s8, 1
    %s16 = ssub.s32 %s8, %s15
    %p17 = scmp.eq.s32.totalorder %s16, 0
    %s19 = sadd.s32 %s18, 1
    %s20 = scalar_select %p17, %s18, %s19
    %p23 = pneg %p17
    %p24 = scmp.eq.s32.totalorder %s8, 1
    %p25 = por %p23, %p24
    %p26 = scmp.ne.s32.totalorder %s18, %s21
    %p27 = scmp.eq.s32.totalorder %s8, 0
    %p28 = por %p26, %p27
    %p29 = scmp.ne.s32.totalorder %s18, %s21
    %p30 = scmp.eq.s32.totalorder %s13, 1
    %p31 = por %p29, %p30
    %p32 = scmp.ne.s32.totalorder %s21, %s22
    %p33 = scmp.eq.s32.totalorder %s13, 0
    %p34 = por %p32, %p33
    %p35 = scmp.ne.s32.totalorder %s21, %s22
    %p36 = scmp.eq.s32.totalorder %s14, 1
    %p37 = por %p35, %p36
    %p39 = scmp.ne.s32.totalorder %s22, %s38
    %p40 = scmp.eq.s32.totalorder %s14, 0
    %p41 = por %p39, %p40
    %s43 = sadd.s32 %s42, 1
    %p46 = scmp.eq.s32.totalorder %s8, 1
    %p47 = scmp.ne.s32.totalorder %s42, %s44
    %p48 = scmp.eq.s32.totalorder %s8, 0
    %p49 = por %p47, %p48
    %p50 = scmp.ne.s32.totalorder %s42, %s44
    %p51 = scmp.eq.s32.totalorder %s13, 1
    %p52 = por %p50, %p51
    %p53 = scmp.ne.s32.totalorder %s44, %s45
    %p54 = scmp.eq.s32.totalorder %s13, 0
    %p55 = por %p53, %p54
    %p56 = scmp.ne.s32.totalorder %s44, %s45
    %p57 = scmp.eq.s32.totalorder %s14, 1
    %p58 = por %p56, %p57
    %p60 = scmp.ne.s32.totalorder %s45, %s59
    %p61 = scmp.eq.s32.totalorder %s14, 0
    %p62 = por %p60, %p61
    %s63 = ssub.s32 %s8, %s15
    %p64 = scmp.eq.s32.totalorder %s63, 0
    %s66 = sadd.s32 %s65, 1
    %s67 = scalar_select %p64, %s65, %s66
    %p70 = pneg %p64
    %p71 = scmp.eq.s32.totalorder %s8, 1
    %p72 = por %p70, %p71
    %p73 = scmp.ne.s32.totalorder %s65, %s68
    %p74 = scmp.eq.s32.totalorder %s8, 0
    %p75 = por %p73, %p74
    %p76 = scmp.ne.s32.totalorder %s65, %s68
    %p77 = scmp.eq.s32.totalorder %s13, 1
    %p78 = por %p76, %p77
    %p79 = scmp.ne.s32.totalorder %s68, %s69
    %p80 = scmp.eq.s32.totalorder %s13, 0
    %p81 = por %p79, %p80
    %p82 = scmp.ne.s32.totalorder %s68, %s69
    %p83 = scmp.eq.s32.totalorder %s14, 1
    %p84 = por %p82, %p83
    %p86 = scmp.ne.s32.totalorder %s69, %s85
    %p87 = scmp.eq.s32.totalorder %s14, 0
    %p88 = por %p86, %p87
    %p89 = scmp.le.s32.totalorder 1, %s8
    %p90 = scmp.lt.s32.totalorder %s8, 3
    %p91 = pnand %p89, %p90
    %p92 = pneg %p91
    // Predicated region
    $region9: #{generator_forward.21} parent=5 // pred_check
      _
    $region10: #{generator_forward.21} parent=5 // pred_check_branch
      %94 = sbr.rel (%p91) target = $region12
    $region11: #{generator_forward.21} parent=5 // pred_region
      %s95 = ssub.s32 %s8, 1
      // Predicated region
      $region13: #{generator_forward.21} parent=11 // pred_check
        %p96 = pneg %p55
      $region14: #{generator_forward.21} parent=11 // pred_check_branch
        %98 = sbr.rel (%p96) target = $region16
      $region15: #{generator_forward.21} parent=11 // pred_region
        _
      $region16: #{generator_forward.21} parent=11 // pred_fallthru
        _
    $region12: #{generator_forward.21} parent=5 // pred_fallthru
      _
    %p99 = scmp.lt.s32.totalorder %s8, 2
    // Predicated region
    $region17: #{generator_forward.21} parent=5 // pred_check
      %p100 = pneg %p99
    $region18: #{generator_forward.21} parent=5 // pred_check_branch
      %102 = sbr.rel (%p100) target = $region20
    $region19: #{generator_forward.21} parent=5 // pred_region
      // Predicated region
      $region21: #{generator_forward.21} parent=19 // pred_check
        %p103 = pneg %p28
      $region22: #{generator_forward.21} parent=19 // pred_check_branch
        %105 = sbr.rel (%p103) target = $region24
      $region23: #{generator_forward.21} parent=19 // pred_region
        %s106 = smul.u32 8, %s8
        %p107 = scmp.lt.s32.totalorder %s106, 15
        %s108 = scalar_select %p107, %s106, 15
        %s109 = smul.addr %s108, 2
        %s110 = smul.addr %s109, 8
        %s111 = scalar_lea.vmem %s0, %s110
        %s112 = smul.u32 8, %s8
      $region24: #{generator_forward.21} parent=19 // pred_fallthru
        _
    $region20: #{generator_forward.21} parent=5 // pred_fallthru
      _
    %p113 = scmp.le.s32.totalorder 1, %s8
    %p114 = scmp.lt.s32.totalorder %s8, 3
    %p115 = pnand %p113, %p114
    %p116 = pneg %p115
    // Predicated region
    $region25: #{generator_forward.21} parent=5 // pred_check
      _
    $region26: #{generator_forward.21} parent=5 // pred_check_branch
      %118 = sbr.rel (%p115) target = $region28
    $region27: #{generator_forward.21} parent=5 // pred_region
      %s119 = ssub.s32 %s8, 1
      %s120 = smul.u32 8, %s13
      %p121 = scmp.lt.s32.totalorder %s120, 15
      %s122 = scalar_select %p121, %s120, 15
      %s123 = smul.addr %s122, 2
      %s124 = smul.addr %s123, 8
      %s125 = scalar_lea.vmem %s0, %s124
      %p126 = pneg %p34
      %p127 = pneg %p31
      %p128 = pneg %p55
      %p129 = pneg %p52
      %p130 = pneg %p81
      %p131 = pneg %p78
      %s132 = smul.u32 8, %s13
      %p133 = scmp.lt.s32.totalorder %s132, 15
      %s134 = scalar_select %p133, %s132, 15
      %s135 = smul.addr %s134, 8
      %s136 = scalar_lea.vmem %s2, %s135
      %s137 = smul.u32 8, %s13
      %p138 = scmp.lt.s32.totalorder %s137, 15
      %s139 = scalar_select %p138, %s137, 15
      %s140 = smul.addr %s139, 2
      %s141 = smul.addr %s140, 8
      %s142 = scalar_lea.vmem %s0, %s141
      %s143 = smul.u32 8, %s13
      %s144 = smul.u32 8, %s13
      %p145 = scmp.lt.s32.totalorder %s144, 15
      %s146 = scalar_select %p145, %s144, 15
      %s147 = smul.addr %s146, 8
      %s148 = scalar_lea.vmem %s2, %s147
      %s149 = smul.u32 8, %s13
      %v150 = vld [vmem:[%s142] sm:$0xff]
      %v151 = vld [vmem:[%s142 + $0x8] sm:$0xff]
      %v152 = vld [vmem:[%s142 + $0x10] sm:$0xff]
      %v153 = vld [vmem:[%s142 + $0x18] sm:$0xff]
      %v154 = vld [vmem:[%s142 + $0x20] sm:$0xff]
      %v155 = vld [vmem:[%s142 + $0x28] sm:$0xff]
      %v156 = vld [vmem:[%s142 + $0x30] sm:$0xff]
      %v157 = vld [vmem:[%s142 + $0x38] sm:$0xff]
      %v158 = vld [vmem:[%s142 + $0x40] sm:$0xff]
      %v159 = vld [vmem:[%s142 + $0x48] sm:$0xff]
      %v160 = vld [vmem:[%s142 + $0x50] sm:$0xff]
      %v161 = vld [vmem:[%s142 + $0x58] sm:$0xff]
      %v162 = vld [vmem:[%s142 + $0x60] sm:$0xff]
      %v163 = vld [vmem:[%s142 + $0x68] sm:$0xff]
      %v164 = vld [vmem:[%s142 + $0x70] sm:$0xff]
      %v165 = vld [vmem:[%s142 + $0x78] sm:$0xff]
      %v166 = vld [vmem:[%s1] sm:$0xff]
      %v167 = vld [vmem:[%s1 + $0x8] sm:$0xff]
      %v168 = vld [vmem:[%s1 + $0x10] sm:$0xff]
      %v169 = vld [vmem:[%s1 + $0x18] sm:$0xff]
      %v170 = vld [vmem:[%s1 + $0x20] sm:$0xff]
      %v171 = vld [vmem:[%s1 + $0x28] sm:$0xff]
      %v172 = vld [vmem:[%s1 + $0x30] sm:$0xff]
      %v173 = vld [vmem:[%s1 + $0x38] sm:$0xff]
      %v174 = vld [vmem:[%s1 + $0x40] sm:$0xff]
      %v175 = vld [vmem:[%s1 + $0x48] sm:$0xff]
      %v176 = vld [vmem:[%s1 + $0x50] sm:$0xff]
      %v177 = vld [vmem:[%s1 + $0x58] sm:$0xff]
      %v178 = vld [vmem:[%s1 + $0x60] sm:$0xff]
      %v179 = vld [vmem:[%s1 + $0x68] sm:$0xff]
      %v180 = vld [vmem:[%s1 + $0x70] sm:$0xff]
      %v181 = vld [vmem:[%s1 + $0x78] sm:$0xff]
      %v182 = vld [vmem:[%s1 + $0x80] sm:$0xff]
      %v183 = vld [vmem:[%s1 + $0x88] sm:$0xff]
      %vm184 = vcmask 130048
      %v186 = vsel %vm184, %v151, 0
      %v189 = vsel %vm184, %v153, 0
      %v192 = vsel %vm184, %v155, 0
      %v195 = vsel %vm184, %v157, 0
      %v198 = vsel %vm184, %v159, 0
      %v201 = vsel %vm184, %v161, 0
      %v204 = vsel %vm184, %v163, 0
      %v207 = vsel %vm184, %v165, 0
      %209 = vmatpush.msra.mxu0 %v181
      %210 = vmatpush.msra.mxu0 %v180
      %211 = vmatpush.msra.mxu0 %v179
      %212 = vmatpush.msra.mxu0 %v178
      %213 = vmatpush.msra.mxu0 %v177
      %214 = vmatpush.msra.mxu0 %v176
      %215 = vmatpush.msra.mxu0 %v175
      %216 = vmatpush.msra.mxu0 %v174
      %217 = vmatpush.msra.mxu0 %v173
      %218 = vmatpush.msra.mxu0 %v172
      %219 = vmatpush.msra.mxu0 %v171
      %220 = vmatpush.msra.mxu0 %v170
      %221 = vmatpush.msra.mxu0 %v169
      %222 = vmatpush.msra.mxu0 %v168
      %223 = vmatpush.msra.mxu0 %v167
      %224 = vmatpush.msra.mxu0 %v166
      %225 = vmatmul.f32.gmra.mxu0 %v150
      %v226 = vpop.f32.mrf.mxu0
      %v227 = vadd.f32 0.0, %v226
      %228 = vmatmul.f32.gmra.mxu0 %v152
      %v229 = vpop.f32.mrf.mxu0
      %v230 = vadd.f32 0.0, %v229
      %231 = vmatmul.f32.gmra.mxu0 %v154
      %v232 = vpop.f32.mrf.mxu0
      %v233 = vadd.f32 0.0, %v232
      %234 = vmatmul.f32.gmra.mxu0 %v156
      %v235 = vpop.f32.mrf.mxu0
      %v236 = vadd.f32 0.0, %v235
      %237 = vmatmul.f32.gmra.mxu0 %v158
      %v238 = vpop.f32.mrf.mxu0
      %v239 = vadd.f32 0.0, %v238
      %240 = vmatmul.f32.gmra.mxu0 %v160
      %v241 = vpop.f32.mrf.mxu0
      %v242 = vadd.f32 0.0, %v241
      %243 = vmatmul.f32.gmra.mxu0 %v162
      %v244 = vpop.f32.mrf.mxu0
      %v245 = vadd.f32 0.0, %v244
      %246 = vmatmul.f32.gmra.mxu0 %v164
      %v247 = vpop.f32.mrf.mxu0
      %v248 = vadd.f32 0.0, %v247
      %249 = vdwg.mxu0
      %250 = vmatpush.msra.mxu0 0.0
      %251 = vmatpush.msra.mxu0 0.0
      %252 = vmatpush.msra.mxu0 0.0
      %253 = vmatpush.msra.mxu0 0.0
      %254 = vmatpush.msra.mxu0 0.0
      %255 = vmatpush.msra.mxu0 0.0
      %256 = vmatpush.msra.mxu0 0.0
      %257 = vmatpush.msra.mxu0 0.0
      %258 = vmatpush.msra.mxu0 0.0
      %259 = vmatpush.msra.mxu0 0.0
      %260 = vmatpush.msra.mxu0 0.0
      %261 = vmatpush.msra.mxu0 0.0
      %262 = vmatpush.msra.mxu0 0.0
      %263 = vmatpush.msra.mxu0 0.0
      %264 = vmatpush.msra.mxu0 %v183
      %265 = vmatpush.msra.mxu0 %v182
      %266 = vmatmul.f32.gmra.mxu0 %v186
      %v267 = vpop.f32.mrf.mxu0
      %v268 = vadd.f32 %v227, %v267
      %269 = vmatmul.f32.gmra.mxu0 %v189
      %v270 = vpop.f32.mrf.mxu0
      %v271 = vadd.f32 %v230, %v270
      %272 = vmatmul.f32.gmra.mxu0 %v192
      %v273 = vpop.f32.mrf.mxu0
      %v274 = vadd.f32 %v233, %v273
      %275 = vmatmul.f32.gmra.mxu0 %v195
      %v276 = vpop.f32.mrf.mxu0
      %v277 = vadd.f32 %v236, %v276
      %278 = vmatmul.f32.gmra.mxu0 %v198
      %v279 = vpop.f32.mrf.mxu0
      %v280 = vadd.f32 %v239, %v279
      %281 = vmatmul.f32.gmra.mxu0 %v201
      %v282 = vpop.f32.mrf.mxu0
      %v283 = vadd.f32 %v242, %v282
      %284 = vmatmul.f32.gmra.mxu0 %v204
      %v285 = vpop.f32.mrf.mxu0
      %v286 = vadd.f32 %v245, %v285
      %287 = vmatmul.f32.gmra.mxu0 %v207
      %v288 = vpop.f32.mrf.mxu0
      %v289 = vadd.f32 %v248, %v288
      %290 = vdwg.mxu0
      %vm291 = vcmask 261120
      %v292 = vsel %vm291, %v268, 0.0
      %v293 = vsel %vm291, %v271, 0.0
      %v294 = vadd.f32 %v292, %v293
      %v295 = vsel %vm291, %v274, 0.0
      %v296 = vadd.f32 %v294, %v295
      %v297 = vsel %vm291, %v277, 0.0
      %v298 = vadd.f32 %v296, %v297
      %v299 = vsel %vm291, %v280, 0.0
      %v300 = vadd.f32 %v298, %v299
      %v301 = vsel %vm291, %v283, 0.0
      %v302 = vadd.f32 %v300, %v301
      %v303 = vsel %vm291, %v286, 0.0
      %v304 = vadd.f32 %v302, %v303
      %v305 = vsel %vm291, %v289, 0.0
      %v306 = vadd.f32 %v304, %v305
      %v307 = vrot.slane %v306, 4
      %v308 = vadd.f32 %v306, %v307
      %v309 = vrot.slane %v308, 2
      %v310 = vadd.f32 %v308, %v309
      %v311 = vrot.slane %v310, 1
      %v312 = vadd.f32 %v310, %v311
      %v313 = vrcp.pop 64.0
      %v314 = vmul.f32 64.0, %v313
      %v315 = vsub.f32 1.0, %v314
      %v316 = vmul.f32 %v313, %v315
      %v317 = vadd.f32 %v313, %v316
      %vm318 = vweird.f32 %v313
      %v319 = vsel %vm318, %v313, %v317
      %v320 = vmul.f32 %v312, %v319
      %v321 = vsub.f32 %v268, %v320
      %v322 = vsub.f32 %v271, %v320
      %v323 = vsub.f32 %v274, %v320
      %v324 = vsub.f32 %v277, %v320
      %v325 = vsub.f32 %v280, %v320
      %v326 = vsub.f32 %v283, %v320
      %v327 = vsub.f32 %v286, %v320
      %v328 = vsub.f32 %v289, %v320
      %v329 = vmul.f32 %v321, %v321
      %v330 = vmul.f32 %v322, %v322
      %v331 = vmul.f32 %v323, %v323
      %v332 = vmul.f32 %v324, %v324
      %v333 = vmul.f32 %v325, %v325
      %v334 = vmul.f32 %v326, %v326
      %v335 = vmul.f32 %v327, %v327
      %v336 = vmul.f32 %v328, %v328
      %v337 = vsel %vm291, %v329, 0.0
      %v338 = vsel %vm291, %v330, 0.0
      %v339 = vadd.f32 %v337, %v338
      %v340 = vsel %vm291, %v331, 0.0
      %v341 = vadd.f32 %v339, %v340
      %v342 = vsel %vm291, %v332, 0.0
      %v343 = vadd.f32 %v341, %v342
      %v344 = vsel %vm291, %v333, 0.0
      %v345 = vadd.f32 %v343, %v344
      %v346 = vsel %vm291, %v334, 0.0
      %v347 = vadd.f32 %v345, %v346
      %v348 = vsel %vm291, %v335, 0.0
      %v349 = vadd.f32 %v347, %v348
      %v350 = vsel %vm291, %v336, 0.0
      %v351 = vadd.f32 %v349, %v350
      %v352 = vrot.slane %v351, 4
      %v353 = vadd.f32 %v351, %v352
      %v354 = vrot.slane %v353, 2
      %v355 = vadd.f32 %v353, %v354
      %v356 = vrot.slane %v355, 1
      %v357 = vadd.f32 %v355, %v356
      %v358 = vmul.f32 %v357, %v319
      %v359 = vadd.f32 %v358, 1e-05
      %v360 = vrsqrt.pop %v359
      %v361 = vmul.f32 %v360, %v359
      %v362 = vmul.f32 %v361, %v360
      %v363 = vmul.f32 0.5, %v362
      %v364 = vsub.f32 1.5, %v363
      %v365 = vmul.f32 %v360, %v364
      %vm366 = vweird.f32 %v359
      %vm367 = vweird.f32 %v360
      %vm368 = vmor %vm366, %vm367
      %v369 = vsel %vm368, %v360, %v365
      %v370 = vmul.f32 %v321, %v369
      %v371 = vmul.f32 %v322, %v369
      %v372 = vmul.f32 %v323, %v369
      %v373 = vmul.f32 %v324, %v369
      %v374 = vmul.f32 %v325, %v369
      %v375 = vmul.f32 %v326, %v369
      %v376 = vmul.f32 %v327, %v369
      %v377 = vmul.f32 %v328, %v369
      %v378 = vmax.f32 %v370, 0.0
      %v379 = vmax.f32 %v371, 0.0
      %v380 = vmax.f32 %v372, 0.0
      %v381 = vmax.f32 %v373, 0.0
      %v382 = vmax.f32 %v374, 0.0
      %v383 = vmax.f32 %v375, 0.0
      %v384 = vmax.f32 %v376, 0.0
      %v385 = vmax.f32 %v377, 0.0
      %386 = vst.msk [vmem:[%s148] sm:$0xff] %vm291, %v378
      %387 = vst.msk [vmem:[%s148 + $0x8] sm:$0xff] %vm291, %v379
      %388 = vst.msk [vmem:[%s148 + $0x10] sm:$0xff] %vm291, %v380
      %389 = vst.msk [vmem:[%s148 + $0x18] sm:$0xff] %vm291, %v381
      %390 = vst.msk [vmem:[%s148 + $0x20] sm:$0xff] %vm291, %v382
      %391 = vst.msk [vmem:[%s148 + $0x28] sm:$0xff] %vm291, %v383
      %392 = vst.msk [vmem:[%s148 + $0x30] sm:$0xff] %vm291, %v384
      %393 = vst.msk [vmem:[%s148 + $0x38] sm:$0xff] %vm291, %v385
      %s394 = smul.u32 8, %s13
      %p395 = scmp.lt.s32.totalorder %s394, 15
      %s396 = scalar_select %p395, %s394, 15
      %s397 = smul.addr %s396, 8
      %s398 = scalar_lea.vmem %s2, %s397
      // Predicated region
      $region29: #{generator_forward.21} parent=27 // pred_check
        %p399 = pneg %p78
      $region30: #{generator_forward.21} parent=27 // pred_check_branch
        %401 = sbr.rel (%p399) target = $region32
      $region31: #{generator_forward.21} parent=27 // pred_region
        %s402 = smul.u32 8, %s13
      $region32: #{generator_forward.21} parent=27 // pred_fallthru
        _
    $region28: #{generator_forward.21} parent=5 // pred_fallthru
      _
    %p403 = scmp.le.s32.totalorder 2, %s8
    // Predicated region
    $region33: #{generator_forward.21} parent=5 // pred_check
      %p404 = pneg %p403
    $region34: #{generator_forward.21} parent=5 // pred_check_branch
      %406 = sbr.rel (%p404) target = $region36
    $region35: #{generator_forward.21} parent=5 // pred_region
      %s407 = ssub.s32 %s8, 2
      // Predicated region
      $region37: #{generator_forward.21} parent=35 // pred_check
        %p408 = pneg %p84
      $region38: #{generator_forward.21} parent=35 // pred_check_branch
        %410 = sbr.rel (%p408) target = $region40
      $region39: #{generator_forward.21} parent=35 // pred_region
        %s411 = smul.u32 8, %s14
        %p412 = scmp.lt.s32.totalorder %s411, 15
        %s413 = scalar_select %p412, %s411, 15
        %s414 = smul.addr %s413, 8
        %s415 = scalar_lea.vmem %s2, %s414
      $region40: #{generator_forward.21} parent=35 // pred_fallthru
        _
    $region36: #{generator_forward.21} parent=5 // pred_fallthru
      _
  $region6: #{generator_forward.21} parent=0 // loop_footer
    %s12 = sadd.s32 1, %s8
  $region7: #{generator_forward.21} parent=0 // loop_footer_branch
    %7 = sbr.rel target = $region3
  $region8: #{generator_forward.21} parent=0 // loop_exit
    _

// kernel: generator_forward.22
$region0: #{generator_forward.22}
  #allocation0 [shape = 'u32[]', space=smem, size = 0x4, offset = 0x4, fixed_abs, tag = 'smem constant byte address 0x4 - core index']
  #allocation1 [shape = 'u32[72,128]{1,0:T(1,128)}', space=vmem, size = 0x9000, scoped, tag = 'internal scratch']
  %s0 = inlined_call_operand.vmem [shape: f32[32,288], index: 0, kind: input, shape index: {}]
  %s1 = inlined_call_operand.vmem [shape: f32[288,64], index: 1, kind: input, shape index: {}]
  %s2 = inlined_call_operand.vmem [shape: f32[32,64], index: 2, kind: output, shape index: {}]
  %s3 = sld [smem:[#allocation0]]
  $region41: #{generator_forward.22} parent=0
    _
  %s5 = ssub.s32 1, %s3
  %s6 = scalar_select 0, %s5, %s3
  loop: start=0, step=1, limit=4
  $region2: #{generator_forward.22} parent=0 // loop_pre_header
    _
  $region3: #{generator_forward.22} parent=0 // loop_header
    %s8 = sphi 0, %s12
    %p9 = scmp.ge.s32.totalorder %s8, 4
    %s18 = sphi 0, %s20
    %s21 = sphi 0, %s18
    %s22 = sphi 0, %s21
    %s38 = sphi 0, %s22
    %s42 = sphi 0, %s42
    %s44 = sphi 0, %s42
    %s45 = sphi 0, %s44
    %s59 = sphi 0, %s45
    %s65 = sphi 0, %s67
    %s68 = sphi 0, %s65
    %s69 = sphi 0, %s68
    %s85 = sphi 0, %s69
  $region4: #{generator_forward.22} parent=0 // loop_header_branch
    %11 = sbr.rel (%p9) target = $region8
  $region5: #{generator_forward.22} parent=0 // loop_body
    %s13 = ssub.s32 %s8, 1
    %s14 = ssub.s32 %s8, 2
    %s15 = sadd.s32 %s8, 1
    %s16 = ssub.s32 %s8, %s15
    %p17 = scmp.eq.s32.totalorder %s16, 0
    %s19 = sadd.s32 %s18, 1
    %s20 = scalar_select %p17, %s18, %s19
    %p23 = pneg %p17
    %p24 = scmp.eq.s32.totalorder %s8, 1
    %p25 = por %p23, %p24
    %p26 = scmp.ne.s32.totalorder %s18, %s21
    %p27 = scmp.eq.s32.totalorder %s8, 0
    %p28 = por %p26, %p27
    %p29 = scmp.ne.s32.totalorder %s18, %s21
    %p30 = scmp.eq.s32.totalorder %s13, 1
    %p31 = por %p29, %p30
    %p32 = scmp.ne.s32.totalorder %s21, %s22
    %p33 = scmp.eq.s32.totalorder %s13, 0
    %p34 = por %p32, %p33
    %p35 = scmp.ne.s32.totalorder %s21, %s22
    %p36 = scmp.eq.s32.totalorder %s14, 1
    %p37 = por %p35, %p36
    %p39 = scmp.ne.s32.totalorder %s22, %s38
    %p40 = scmp.eq.s32.totalorder %s14, 0
    %p41 = por %p39, %p40
    %s43 = sadd.s32 %s42, 1
    %p46 = scmp.eq.s32.totalorder %s8, 1
    %p47 = scmp.ne.s32.totalorder %s42, %s44
    %p48 = scmp.eq.s32.totalorder %s8, 0
    %p49 = por %p47, %p48
    %p50 = scmp.ne.s32.totalorder %s42, %s44
    %p51 = scmp.eq.s32.totalorder %s13, 1
    %p52 = por %p50, %p51
    %p53 = scmp.ne.s32.totalorder %s44, %s45
    %p54 = scmp.eq.s32.totalorder %s13, 0
    %p55 = por %p53, %p54
    %p56 = scmp.ne.s32.totalorder %s44, %s45
    %p57 = scmp.eq.s32.totalorder %s14, 1
    %p58 = por %p56, %p57
    %p60 = scmp.ne.s32.totalorder %s45, %s59
    %p61 = scmp.eq.s32.totalorder %s14, 0
    %p62 = por %p60, %p61
    %s63 = ssub.s32 %s8, %s15
    %p64 = scmp.eq.s32.totalorder %s63, 0
    %s66 = sadd.s32 %s65, 1
    %s67 = scalar_select %p64, %s65, %s66
    %p70 = pneg %p64
    %p71 = scmp.eq.s32.totalorder %s8, 1
    %p72 = por %p70, %p71
    %p73 = scmp.ne.s32.totalorder %s65, %s68
    %p74 = scmp.eq.s32.totalorder %s8, 0
    %p75 = por %p73, %p74
    %p76 = scmp.ne.s32.totalorder %s65, %s68
    %p77 = scmp.eq.s32.totalorder %s13, 1
    %p78 = por %p76, %p77
    %p79 = scmp.ne.s32.totalorder %s68, %s69
    %p80 = scmp.eq.s32.totalorder %s13, 0
    %p81 = por %p79, %p80
    %p82 = scmp.ne.s32.totalorder %s68, %s69
    %p83 = scmp.eq.s32.totalorder %s14, 1
    %p84 = por %p82, %p83
    %p86 = scmp.ne.s32.totalorder %s69, %s85
    %p87 = scmp.eq.s32.totalorder %s14, 0
    %p88 = por %p86, %p87
    %p89 = scmp.le.s32.totalorder 1, %s8
    %p90 = scmp.lt.s32.totalorder %s8, 3
    %p91 = pnand %p89, %p90
    %p92 = pneg %p91
    // Predicated region
    $region9: #{generator_forward.22} parent=5 // pred_check
      _
    $region10: #{generator_forward.22} parent=5 // pred_check_branch
      %94 = sbr.rel (%p91) target = $region12
    $region11: #{generator_forward.22} parent=5 // pred_region
      %s95 = ssub.s32 %s8, 1
      // Predicated region
      $region13: #{generator_forward.22} parent=11 // pred_check
        %p96 = pneg %p55
      $region14: #{generator_forward.22} parent=11 // pred_check_branch
        %98 = sbr.rel (%p96) target = $region16
      $region15: #{generator_forward.22} parent=11 // pred_region
        _
      $region16: #{generator_forward.22} parent=11 // pred_fallthru
        _
    $region12: #{generator_forward.22} parent=5 // pred_fallthru
      _
    %p99 = scmp.lt.s32.totalorder %s8, 2
    // Predicated region
    $region17: #{generator_forward.22} parent=5 // pred_check
      %p100 = pneg %p99
    $region18: #{generator_forward.22} parent=5 // pred_check_branch
      %102 = sbr.rel (%p100) target = $region20
    $region19: #{generator_forward.22} parent=5 // pred_region
      // Predicated region
      $region21: #{generator_forward.22} parent=19 // pred_check
        %p103 = pneg %p28
      $region22: #{generator_forward.22} parent=19 // pred_check_branch
        %105 = sbr.rel (%p103) target = $region24
      $region23: #{generator_forward.22} parent=19 // pred_region
        %s106 = smul.u32 2, %s8
        %p107 = scmp.lt.s32.totalorder %s106, 3
        %s108 = scalar_select %p107, %s106, 3
        %s109 = smul.addr %s108, 3
        %s110 = smul.addr %s109, 8
        %s111 = scalar_lea.vmem %s0, %s110
        %s112 = smul.u32 2, %s8
      $region24: #{generator_forward.22} parent=19 // pred_fallthru
        _
    $region20: #{generator_forward.22} parent=5 // pred_fallthru
      _
    %p113 = scmp.le.s32.totalorder 1, %s8
    %p114 = scmp.lt.s32.totalorder %s8, 3
    %p115 = pnand %p113, %p114
    %p116 = pneg %p115
    // Predicated region
    $region25: #{generator_forward.22} parent=5 // pred_check
      _
    $region26: #{generator_forward.22} parent=5 // pred_check_branch
      %118 = sbr.rel (%p115) target = $region28
    $region27: #{generator_forward.22} parent=5 // pred_region
      %s119 = ssub.s32 %s8, 1
      %s120 = smul.u32 2, %s13
      %p121 = scmp.lt.s32.totalorder %s120, 3
      %s122 = scalar_select %p121, %s120, 3
      %s123 = smul.addr %s122, 3
      %s124 = smul.addr %s123, 8
      %s125 = scalar_lea.vmem %s0, %s124
      %p126 = pneg %p34
      %p127 = pneg %p31
      %p128 = pneg %p55
      %p129 = pneg %p52
      %p130 = pneg %p81
      %p131 = pneg %p78
      %s132 = smul.u32 2, %s13
      %p133 = scmp.lt.s32.totalorder %s132, 3
      %s134 = scalar_select %p133, %s132, 3
      %s135 = smul.addr %s134, 8
      %s136 = scalar_lea.vmem %s2, %s135
      %s137 = smul.u32 2, %s13
      %p138 = scmp.lt.s32.totalorder %s137, 3
      %s139 = scalar_select %p138, %s137, 3
      %s140 = smul.addr %s139, 3
      %s141 = smul.addr %s140, 8
      %s142 = scalar_lea.vmem %s0, %s141
      %s143 = smul.u32 2, %s13
      %s144 = smul.u32 2, %s13
      %p145 = scmp.lt.s32.totalorder %s144, 3
      %s146 = scalar_select %p145, %s144, 3
      %s147 = smul.addr %s146, 8
      %s148 = scalar_lea.vmem %s2, %s147
      %s149 = smul.u32 2, %s13
      %v150 = vld [vmem:[%s142] sm:$0xff]
      %v151 = vld [vmem:[%s142 + $0x8] sm:$0xff]
      %v152 = vld [vmem:[%s142 + $0x10] sm:$0xff]
      %v153 = vld [vmem:[%s142 + $0x18] sm:$0xff]
      %v154 = vld [vmem:[%s142 + $0x20] sm:$0xff]
      %v155 = vld [vmem:[%s142 + $0x28] sm:$0xff]
      %v156 = vld [vmem:[%s1] sm:$0xff]
      %v157 = vld [vmem:[%s1 + $0x8] sm:$0xff]
      %v158 = vld [vmem:[%s1 + $0x10] sm:$0xff]
      %v159 = vld [vmem:[%s1 + $0x18] sm:$0xff]
      %v160 = vld [vmem:[%s1 + $0x20] sm:$0xff]
      %v161 = vld [vmem:[%s1 + $0x28] sm:$0xff]
      %v162 = vld [vmem:[%s1 + $0x30] sm:$0xff]
      %v163 = vld [vmem:[%s1 + $0x38] sm:$0xff]
      %v164 = vld [vmem:[%s1 + $0x40] sm:$0xff]
      %v165 = vld [vmem:[%s1 + $0x48] sm:$0xff]
      %v166 = vld [vmem:[%s1 + $0x50] sm:$0xff]
      %v167 = vld [vmem:[%s1 + $0x58] sm:$0xff]
      %v168 = vld [vmem:[%s1 + $0x60] sm:$0xff]
      %v169 = vld [vmem:[%s1 + $0x68] sm:$0xff]
      %v170 = vld [vmem:[%s1 + $0x70] sm:$0xff]
      %v171 = vld [vmem:[%s1 + $0x78] sm:$0xff]
      %v172 = vld [vmem:[%s1 + $0x80] sm:$0xff]
      %v173 = vld [vmem:[%s1 + $0x88] sm:$0xff]
      %v174 = vld [vmem:[%s1 + $0x90] sm:$0xff]
      %v175 = vld [vmem:[%s1 + $0x98] sm:$0xff]
      %v176 = vld [vmem:[%s1 + $0xa0] sm:$0xff]
      %v177 = vld [vmem:[%s1 + $0xa8] sm:$0xff]
      %v178 = vld [vmem:[%s1 + $0xb0] sm:$0xff]
      %v179 = vld [vmem:[%s1 + $0xb8] sm:$0xff]
      %v180 = vld [vmem:[%s1 + $0xc0] sm:$0xff]
      %v181 = vld [vmem:[%s1 + $0xc8] sm:$0xff]
      %v182 = vld [vmem:[%s1 + $0xd0] sm:$0xff]
      %v183 = vld [vmem:[%s1 + $0xd8] sm:$0xff]
      %v184 = vld [vmem:[%s1 + $0xe0] sm:$0xff]
      %v185 = vld [vmem:[%s1 + $0xe8] sm:$0xff]
      %v186 = vld [vmem:[%s1 + $0xf0] sm:$0xff]
      %v187 = vld [vmem:[%s1 + $0xf8] sm:$0xff]
      %v188 = vld [vmem:[%s1 + $0x100] sm:$0xff]
      %v189 = vld [vmem:[%s1 + $0x108] sm:$0xff]
      %v190 = vld [vmem:[%s1 + $0x110] sm:$0xff]
      %v191 = vld [vmem:[%s1 + $0x118] sm:$0xff]
      %vm192 = vcmask 261120
      %v194 = vsel %vm192, %v152, 0
      %v197 = vsel %vm192, %v155, 0
      %199 = vmatpush.msra.mxu0 %v171
      %200 = vmatpush.msra.mxu0 %v170
      %201 = vmatpush.msra.mxu0 %v169
      %202 = vmatpush.msra.mxu0 %v168
      %203 = vmatpush.msra.mxu0 %v167
      %204 = vmatpush.msra.mxu0 %v166
      %205 = vmatpush.msra.mxu0 %v165
      %206 = vmatpush.msra.mxu0 %v164
      %207 = vmatpush.msra.mxu0 %v163
      %208 = vmatpush.msra.mxu0 %v162
      %209 = vmatpush.msra.mxu0 %v161
      %210 = vmatpush.msra.mxu0 %v160
      %211 = vmatpush.msra.mxu0 %v159
      %212 = vmatpush.msra.mxu0 %v158
      %213 = vmatpush.msra.mxu0 %v157
      %214 = vmatpush.msra.mxu0 %v156
      %215 = vmatmul.f32.gmra.mxu0 %v150
      %v216 = vpop.f32.mrf.mxu0
      %v217 = vadd.f32 0.0, %v216
      %218 = vmatmul.f32.gmra.mxu0 %v153
      %v219 = vpop.f32.mrf.mxu0
      %v220 = vadd.f32 0.0, %v219
      %221 = vdwg.mxu0
      %222 = vmatpush.msra.mxu0 %v187
      %223 = vmatpush.msra.mxu0 %v186
      %224 = vmatpush.msra.mxu0 %v185
      %225 = vmatpush.msra.mxu0 %v184
      %226 = vmatpush.msra.mxu0 %v183
      %227 = vmatpush.msra.mxu0 %v182
      %228 = vmatpush.msra.mxu0 %v181
      %229 = vmatpush.msra.mxu0 %v180
      %230 = vmatpush.msra.mxu0 %v179
      %231 = vmatpush.msra.mxu0 %v178
      %232 = vmatpush.msra.mxu0 %v177
      %233 = vmatpush.msra.mxu0 %v176
      %234 = vmatpush.msra.mxu0 %v175
      %235 = vmatpush.msra.mxu0 %v174
      %236 = vmatpush.msra.mxu0 %v173
      %237 = vmatpush.msra.mxu0 %v172
      %238 = vmatmul.f32.gmra.mxu0 %v151
      %v239 = vpop.f32.mrf.mxu0
      %v240 = vadd.f32 %v217, %v239
      %241 = vmatmul.f32.gmra.mxu0 %v154
      %v242 = vpop.f32.mrf.mxu0
      %v243 = vadd.f32 %v220, %v242
      %244 = vdwg.mxu0
      %245 = vmatpush.msra.mxu0 0.0
      %246 = vmatpush.msra.mxu0 0.0
      %247 = vmatpush.msra.mxu0 0.0
      %248 = vmatpush.msra.mxu0 0.0
      %249 = vmatpush.msra.mxu0 0.0
      %250 = vmatpush.msra.mxu0 0.0
      %251 = vmatpush.msra.mxu0 0.0
      %252 = vmatpush.msra.mxu0 0.0
      %253 = vmatpush.msra.mxu0 0.0
      %254 = vmatpush.msra.mxu0 0.0
      %255 = vmatpush.msra.mxu0 0.0
      %256 = vmatpush.msra.mxu0 0.0
      %257 = vmatpush.msra.mxu0 %v191
      %258 = vmatpush.msra.mxu0 %v190
      %259 = vmatpush.msra.mxu0 %v189
      %260 = vmatpush.msra.mxu0 %v188
      %261 = vmatmul.f32.gmra.mxu0 %v194
      %v262 = vpop.f32.mrf.mxu0
      %v263 = vadd.f32 %v240, %v262
      %264 = vmatmul.f32.gmra.mxu0 %v197
      %v265 = vpop.f32.mrf.mxu0
      %v266 = vadd.f32 %v243, %v265
      %267 = vdwg.mxu0
      %vm268 = vcmask 523264
      %v269 = vsel %vm268, %v263, 0.0
      %v270 = vsel %vm268, %v266, 0.0
      %v271 = vadd.f32 %v269, %v270
      %v272 = vrot.slane %v271, 4
      %v273 = vadd.f32 %v271, %v272
      %v274 = vrot.slane %v273, 2
      %v275 = vadd.f32 %v273, %v274
      %v276 = vrot.slane %v275, 1
      %v277 = vadd.f32 %v275, %v276
      %v278 = vrcp.pop 16.0
      %v279 = vmul.f32 16.0, %v278
      %v280 = vsub.f32 1.0, %v279
      %v281 = vmul.f32 %v278, %v280
      %v282 = vadd.f32 %v278, %v281
      %vm283 = vweird.f32 %v278
      %v284 = vsel %vm283, %v278, %v282
      %v285 = vmul.f32 %v277, %v284
      %v286 = vsub.f32 %v263, %v285
      %v287 = vsub.f32 %v266, %v285
      %v288 = vmul.f32 %v286, %v286
      %v289 = vmul.f32 %v287, %v287
      %v290 = vsel %vm268, %v288, 0.0
      %v291 = vsel %vm268, %v289, 0.0
      %v292 = vadd.f32 %v290, %v291
      %v293 = vrot.slane %v292, 4
      %v294 = vadd.f32 %v292, %v293
      %v295 = vrot.slane %v294, 2
      %v296 = vadd.f32 %v294, %v295
      %v297 = vrot.slane %v296, 1
      %v298 = vadd.f32 %v296, %v297
      %v299 = vmul.f32 %v298, %v284
      %v300 = vadd.f32 %v299, 1e-05
      %v301 = vrsqrt.pop %v300
      %v302 = vmul.f32 %v301, %v300
      %v303 = vmul.f32 %v302, %v301
      %v304 = vmul.f32 0.5, %v303
      %v305 = vsub.f32 1.5, %v304
      %v306 = vmul.f32 %v301, %v305
      %vm307 = vweird.f32 %v300
      %vm308 = vweird.f32 %v301
      %vm309 = vmor %vm307, %vm308
      %v310 = vsel %vm309, %v301, %v306
      %v311 = vmul.f32 %v286, %v310
      %v312 = vmul.f32 %v287, %v310
      %v313 = vmax.f32 %v311, 0.0
      %v314 = vmax.f32 %v312, 0.0
      %315 = vst.msk [vmem:[%s148] sm:$0xff] %vm268, %v313
      %316 = vst.msk [vmem:[%s148 + $0x8] sm:$0xff] %vm268, %v314
      %s317 = smul.u32 2, %s13
      %p318 = scmp.lt.s32.totalorder %s317, 3
      %s319 = scalar_select %p318, %s317, 3
      %s320 = smul.addr %s319, 8
      %s321 = scalar_lea.vmem %s2, %s320
      // Predicated region
      $region29: #{generator_forward.22} parent=27 // pred_check
        %p322 = pneg %p78
      $region30: #{generator_forward.22} parent=27 // pred_check_branch
        %324 = sbr.rel (%p322) target = $region32
      $region31: #{generator_forward.22} parent=27 // pred_region
        %s325 = smul.u32 2, %s13
      $region32: #{generator_forward.22} parent=27 // pred_fallthru
        _
    $region28: #{generator_forward.22} parent=5 // pred_fallthru
      _
    %p326 = scmp.le.s32.totalorder 2, %s8
    // Predicated region
    $region33: #{generator_forward.22} parent=5 // pred_check
      %p327 = pneg %p326
    $region34: #{generator_forward.22} parent=5 // pred_check_branch
      %329 = sbr.rel (%p327) target = $region36
    $region35: #{generator_forward.22} parent=5 // pred_region
      %s330 = ssub.s32 %s8, 2
      // Predicated region
      $region37: #{generator_forward.22} parent=35 // pred_check
        %p331 = pneg %p84
      $region38: #{generator_forward.22} parent=35 // pred_check_branch
        %333 = sbr.rel (%p331) target = $region40
      $region39: #{generator_forward.22} parent=35 // pred_region
        %s334 = smul.u32 2, %s14
        %p335 = scmp.lt.s32.totalorder %s334, 3
        %s336 = scalar_select %p335, %s334, 3
        %s337 = smul.addr %s336, 8
        %s338 = scalar_lea.vmem %s2, %s337
      $region40: #{generator_forward.22} parent=35 // pred_fallthru
        _
    $region36: #{generator_forward.22} parent=5 // pred_fallthru
      _
  $region6: #{generator_forward.22} parent=0 // loop_footer
    %s12 = sadd.s32 1, %s8
  $region7: #{generator_forward.22} parent=0 // loop_footer_branch
    %7 = sbr.rel target = $region3
  $region8: #{generator_forward.22} parent=0 // loop_exit
    _

// kernel: reverse
$region0: #{reverse}
  %s0 = inlined_call_operand.vmem [shape: f32[1,2,7,7], index: 0, kind: input, shape index: {}]
  %s1 = inlined_call_operand.vmem [shape: bf16[1,2,7,7], index: 1, kind: output, shape index: {}]
  %v2 = vlaneseq
  %v3 = vsub.s32 6, %v2
  %4 = vset.pattern.permute.xlu0 %v3
  $region1: #{reverse} parent=0
    #allocation0 [shape = 'u8[28672]{0}', space=vmem, size = 0x7000, scoped, tag = 'operand span for operand 0']
    #allocation1 [shape = 'u8[7168]{0}', space=vmem, size = 0x1c00, scoped, tag = 'packed  for operand 0']
    #allocation2 [shape = 'u8[28672]{0}', space=vmem, size = 0x7000, scoped, tag = 'operand span for operand 1']
    #allocation3 [shape = 'u8[3584]{0}', space=vmem, size = 0x1000, scoped, tag = 'packed  for operand 1']
    // Predicated region
    $region2: #{reverse} parent=1 // pred_check
      _
    $region3: #{reverse} parent=1 // pred_check_branch
      %6 = sbr.rel (0) target = $region5
    $region4: #{reverse} parent=1 // pred_region
      // Predicated region
      $region6: #{reverse} parent=4 // pred_check
        _
      $region7: #{reverse} parent=4 // pred_check_branch
        %8 = sbr.rel target = $region9
      $region8: #{reverse} parent=4 // pred_region
        // Predicated region
        $region21: #{reverse} parent=8 // pred_check
          _
        $region22: #{reverse} parent=8 // pred_check_branch
          %36 = sbr.rel (0) target = $region24
        $region23: #{reverse} parent=8 // pred_region
          loop: start=0, step=1, limit=1
          $region25: #{reverse} parent=23 // loop_pre_header
            _
          $region26: #{reverse} parent=23 // loop_header
            %s38 = sphi 0, %s42
            %p39 = scmp.ge.s32.totalorder %s38, 1
            %s43 = sphi %s0, %s0
            %s44 = sphi [#allocation1], [#allocation1]
          $region27: #{reverse} parent=23 // loop_header_branch
            %41 = sbr.rel (%p39) target = $region31
          $region28: #{reverse} parent=23 // loop_body
            _
          $region29: #{reverse} parent=23 // loop_footer
            %s42 = sadd.s32 1, %s38
          $region30: #{reverse} parent=23 // loop_footer_branch
            %37 = sbr.rel target = $region26
          $region31: #{reverse} parent=23 // loop_exit
            _
          %s46 = ssub.s32 4, 1
          loop: start=0, step=1, limit=1
          $region32: #{reverse} parent=23 // loop_pre_header
            _
          $region33: #{reverse} parent=23 // loop_header
            %s48 = sphi 0, %s52
            %p49 = scmp.ge.s32.totalorder %s48, 1
            %s53 = sphi %s0, %s0
            %s54 = sphi [#allocation1], [#allocation1]
          $region34: #{reverse} parent=23 // loop_header_branch
            %51 = sbr.rel (%p49) target = $region38
          $region35: #{reverse} parent=23 // loop_body
            %v55 = vld [vmem:[%s53] sm:%s46]
            %56 = vst [vmem:[%s54] sm:%s46] %v55
            %v57 = vld [vmem:[%s53 + $0x2] sm:%s46]
            %58 = vst [vmem:[%s54 + $0x2] sm:%s46] %v57
            %v59 = vld [vmem:[%s53 + $0x4] sm:%s46]
            %60 = vst [vmem:[%s54 + $0x4] sm:%s46] %v59
            %v61 = vld [vmem:[%s53 + $0x6] sm:%s46]
            %62 = vst [vmem:[%s54 + $0x6] sm:%s46] %v61
            %v63 = vld [vmem:[%s53 + $0x8] sm:%s46]
            %64 = vst [vmem:[%s54 + $0x8] sm:%s46] %v63
            %v65 = vld [vmem:[%s53 + $0xa] sm:%s46]
            %66 = vst [vmem:[%s54 + $0xa] sm:%s46] %v65
            %v67 = vld [vmem:[%s53 + $0xc] sm:%s46]
            %68 = vst [vmem:[%s54 + $0xc] sm:%s46] %v67
          $region36: #{reverse} parent=23 // loop_footer
            %s52 = sadd.s32 1, %s48
          $region37: #{reverse} parent=23 // loop_footer_branch
            %47 = sbr.rel target = $region33
          $region38: #{reverse} parent=23 // loop_exit
            _
        $region24: #{reverse} parent=8 // pred_fallthru
          _
      $region9: #{reverse} parent=4 // pred_fallthru
        _
      // Predicated region
      $region10: #{reverse} parent=4 // pred_check
        _
      $region11: #{reverse} parent=4 // pred_check_branch
        %10 = sbr.rel (0) target = $region13
      $region12: #{reverse} parent=4 // pred_region
        %s12 = ssub.s32 4, 1
        loop: start=0, step=1, limit=1
        $region14: #{reverse} parent=12 // loop_pre_header
          _
        $region15: #{reverse} parent=12 // loop_header
          %s14 = sphi 0, %s18
          %p15 = scmp.ge.s32.totalorder %s14, 1
          %s19 = sphi %s0, %s0
          %s20 = sphi [#allocation1], [#allocation1]
        $region16: #{reverse} parent=12 // loop_header_branch
          %17 = sbr.rel (%p15) target = $region20
        $region17: #{reverse} parent=12 // loop_body
          %v21 = vld [vmem:[%s19] sm:%s12]
          %22 = vst [vmem:[%s20] sm:%s12] %v21
          %v23 = vld [vmem:[%s19 + $0x2] sm:%s12]
          %24 = vst [vmem:[%s20 + $0x2] sm:%s12] %v23
          %v25 = vld [vmem:[%s19 + $0x4] sm:%s12]
          %26 = vst [vmem:[%s20 + $0x4] sm:%s12] %v25
          %v27 = vld [vmem:[%s19 + $0x6] sm:%s12]
          %28 = vst [vmem:[%s20 + $0x6] sm:%s12] %v27
          %v29 = vld [vmem:[%s19 + $0x8] sm:%s12]
          %30 = vst [vmem:[%s20 + $0x8] sm:%s12] %v29
          %v31 = vld [vmem:[%s19 + $0xa] sm:%s12]
          %32 = vst [vmem:[%s20 + $0xa] sm:%s12] %v31
          %v33 = vld [vmem:[%s19 + $0xc] sm:%s12]
          %34 = vst [vmem:[%s20 + $0xc] sm:%s12] %v33
        $region18: #{reverse} parent=12 // loop_footer
          %s18 = sadd.s32 1, %s14
        $region19: #{reverse} parent=12 // loop_footer_branch
          %13 = sbr.rel target = $region15
        $region20: #{reverse} parent=12 // loop_exit
          _
      $region13: #{reverse} parent=4 // pred_fallthru
        _
    $region5: #{reverse} parent=1 // pred_fallthru
      _
    %69 = vnop
    %s71 = ssub.s32 4, 1
    %s72 = scalar_lea.vmem [#allocation1], 12
    %v73 = vld [vmem:[%s72] sm:%s71]
    %s74 = scalar_lea.vmem [#allocation0], 48
    %75 = vst [vmem:[%s74] sm:%s71] %v73
    %s76 = scalar_lea.vmem [#allocation1], 10
    %v77 = vld [vmem:[%s76] sm:%s71]
    %s78 = scalar_lea.vmem [#allocation0], 40
    %79 = vst [vmem:[%s78] sm:%s71] %v77
    %s80 = scalar_lea.vmem [#allocation1], 8
    %v81 = vld [vmem:[%s80] sm:%s71]
    %s82 = scalar_lea.vmem [#allocation0], 32
    %83 = vst [vmem:[%s82] sm:%s71] %v81
    %s84 = scalar_lea.vmem [#allocation1], 6
    %v85 = vld [vmem:[%s84] sm:%s71]
    %s86 = scalar_lea.vmem [#allocation0], 24
    %87 = vst [vmem:[%s86] sm:%s71] %v85
    %s88 = scalar_lea.vmem [#allocation1], 4
    %v89 = vld [vmem:[%s88] sm:%s71]
    %s90 = scalar_lea.vmem [#allocation0], 16
    %91 = vst [vmem:[%s90] sm:%s71] %v89
    %s92 = scalar_lea.vmem [#allocation1], 2
    %v93 = vld [vmem:[%s92] sm:%s71]
    %s94 = scalar_lea.vmem [#allocation0], 8
    %95 = vst [vmem:[%s94] sm:%s71] %v93
    %v96 = vld [vmem:[#allocation1] sm:%s71]
    %97 = vst [vmem:[#allocation0] sm:%s71] %v96
    %s98 = scalar_lea.vmem [#allocation0], 48
    %v99 = vld [vmem:[%s98] sm:$0xff]
    %100 = vperm.xlu0 %4, %v99
    %v101 = vpop.permute.xlu0 %100
    %102 = vst [vmem:[#allocation2] sm:$0xff] %v101
    %s103 = scalar_lea.vmem [#allocation2], 8
    %s104 = scalar_lea.vmem [#allocation0], 40
    %v105 = vld [vmem:[%s104] sm:$0xff]
    %106 = vperm.xlu0 %4, %v105
    %v107 = vpop.permute.xlu0 %106
    %108 = vst [vmem:[%s103] sm:$0xff] %v107
    %s109 = scalar_lea.vmem [#allocation2], 16
    %s110 = scalar_lea.vmem [#allocation0], 32
    %v111 = vld [vmem:[%s110] sm:$0xff]
    %112 = vperm.xlu0 %4, %v111
    %v113 = vpop.permute.xlu0 %112
    %114 = vst [vmem:[%s109] sm:$0xff] %v113
    %s115 = scalar_lea.vmem [#allocation2], 24
    %s116 = scalar_lea.vmem [#allocation0], 24
    %v117 = vld [vmem:[%s116] sm:$0xff]
    %118 = vperm.xlu0 %4, %v117
    %v119 = vpop.permute.xlu0 %118
    %120 = vst [vmem:[%s115] sm:$0xff] %v119
    %s121 = scalar_lea.vmem [#allocation2], 32
    %s122 = scalar_lea.vmem [#allocation0], 16
    %v123 = vld [vmem:[%s122] sm:$0xff]
    %124 = vperm.xlu0 %4, %v123
    %v125 = vpop.permute.xlu0 %124
    %126 = vst [vmem:[%s121] sm:$0xff] %v125
    %s127 = scalar_lea.vmem [#allocation2], 40
    %s128 = scalar_lea.vmem [#allocation0], 8
    %v129 = vld [vmem:[%s128] sm:$0xff]
    %130 = vperm.xlu0 %4, %v129
    %v131 = vpop.permute.xlu0 %130
    %132 = vst [vmem:[%s127] sm:$0xff] %v131
    %s133 = scalar_lea.vmem [#allocation2], 48
    %v134 = vld [vmem:[#allocation0] sm:$0xff]
    %135 = vperm.xlu0 %4, %v134
    %v136 = vpop.permute.xlu0 %135
    %137 = vst [vmem:[%s133] sm:$0xff] %v136
    %s139 = ssub.s32 4, 1
    %v140 = vld [vmem:[#allocation2] sm:%s139]
    %v141 = vpack.c.bf16 0.0, %v140
    %s143 = ssub.s32 2, 1
    %144 = vst [vmem:[#allocation3] sm:%s143] %v141
    %s145 = scalar_lea.vmem [#allocation2], 8
    %v146 = vld [vmem:[%s145] sm:%s139]
    %v147 = vpack.c.bf16 0.0, %v146
    %s149 = ssub.s32 2, 1
    %s150 = scalar_lea.vmem [#allocation3], 1
    %151 = vst [vmem:[%s150] sm:%s149] %v147
    %s152 = scalar_lea.vmem [#allocation2], 16
    %v153 = vld [vmem:[%s152] sm:%s139]
    %v154 = vpack.c.bf16 0.0, %v153
    %s156 = ssub.s32 2, 1
    %s157 = scalar_lea.vmem [#allocation3], 2
    %158 = vst [vmem:[%s157] sm:%s156] %v154
    %s159 = scalar_lea.vmem [#allocation2], 24
    %v160 = vld [vmem:[%s159] sm:%s139]
    %v161 = vpack.c.bf16 0.0, %v160
    %s163 = ssub.s32 2, 1
    %s164 = scalar_lea.vmem [#allocation3], 3
    %165 = vst [vmem:[%s164] sm:%s163] %v161
    %s166 = scalar_lea.vmem [#allocation2], 32
    %v167 = vld [vmem:[%s166] sm:%s139]
    %v168 = vpack.c.bf16 0.0, %v167
    %s170 = ssub.s32 2, 1
    %s171 = scalar_lea.vmem [#allocation3], 4
    %172 = vst [vmem:[%s171] sm:%s170] %v168
    %s173 = scalar_lea.vmem [#allocation2], 40
    %v174 = vld [vmem:[%s173] sm:%s139]
    %v175 = vpack.c.bf16 0.0, %v174
    %s177 = ssub.s32 2, 1
    %s178 = scalar_lea.vmem [#allocation3], 5
    %179 = vst [vmem:[%s178] sm:%s177] %v175
    %s180 = scalar_lea.vmem [#allocation2], 48
    %v181 = vld [vmem:[%s180] sm:%s139]
    %v182 = vpack.c.bf16 0.0, %v181
    %s184 = ssub.s32 2, 1
    %s185 = scalar_lea.vmem [#allocation3], 6
    %186 = vst [vmem:[%s185] sm:%s184] %v182
    // Predicated region
    $region39: #{reverse} parent=1 // pred_check
      _
    $region40: #{reverse} parent=1 // pred_check_branch
      %188 = sbr.rel (0) target = $region42
    $region41: #{reverse} parent=1 // pred_region
      // Predicated region
      $region43: #{reverse} parent=41 // pred_check
        _
      $region44: #{reverse} parent=41 // pred_check_branch
        %190 = sbr.rel target = $region46
      $region45: #{reverse} parent=41 // pred_region
        // Predicated region
        $region58: #{reverse} parent=45 // pred_check
          _
        $region59: #{reverse} parent=45 // pred_check_branch
          %206 = sbr.rel (0) target = $region61
        $region60: #{reverse} parent=45 // pred_region
          %s208 = ssub.s32 128, 1
          loop: start=0, step=1, limit=1
          $region62: #{reverse} parent=60 // loop_pre_header
            _
          $region63: #{reverse} parent=60 // loop_header
            %s210 = sphi 0, %s214
            %p211 = scmp.ge.s32.totalorder %s210, 1
            %s215 = sphi [#allocation3], [#allocation3]
            %s216 = sphi %s1, %s1
          $region64: #{reverse} parent=60 // loop_header_branch
            %213 = sbr.rel (%p211) target = $region68
          $region65: #{reverse} parent=60 // loop_body
            %v217 = vld [vmem:[%s215] sm:%s208]
            %218 = vst [vmem:[%s216] sm:%s208] %v217
          $region66: #{reverse} parent=60 // loop_footer
            %s214 = sadd.s32 1, %s210
          $region67: #{reverse} parent=60 // loop_footer_branch
            %209 = sbr.rel target = $region63
          $region68: #{reverse} parent=60 // loop_exit
            _
        $region61: #{reverse} parent=45 // pred_fallthru
          _
      $region46: #{reverse} parent=41 // pred_fallthru
        _
      // Predicated region
      $region47: #{reverse} parent=41 // pred_check
        _
      $region48: #{reverse} parent=41 // pred_check_branch
        %192 = sbr.rel (0) target = $region50
      $region49: #{reverse} parent=41 // pred_region
        %s194 = ssub.s32 128, 1
        loop: start=0, step=1, limit=1
        $region51: #{reverse} parent=49 // loop_pre_header
          _
        $region52: #{reverse} parent=49 // loop_header
          %s196 = sphi 0, %s200
          %p197 = scmp.ge.s32.totalorder %s196, 1
          %s201 = sphi [#allocation3], [#allocation3]
          %s202 = sphi %s1, %s1
        $region53: #{reverse} parent=49 // loop_header_branch
          %199 = sbr.rel (%p197) target = $region57
        $region54: #{reverse} parent=49 // loop_body
          %v203 = vld [vmem:[%s201] sm:%s194]
          %204 = vst [vmem:[%s202] sm:%s194] %v203
        $region55: #{reverse} parent=49 // loop_footer
          %s200 = sadd.s32 1, %s196
        $region56: #{reverse} parent=49 // loop_footer_branch
          %195 = sbr.rel target = $region52
        $region57: #{reverse} parent=49 // loop_exit
          _
      $region50: #{reverse} parent=41 // pred_fallthru
        _
    $region42: #{reverse} parent=1 // pred_fallthru
      _
    %219 = vnop

// kernel: generator_forward.23
$region0: #{generator_forward.23}
  #allocation0 [shape = 'u32[]', space=smem, size = 0x4, offset = 0x4, fixed_abs, tag = 'smem constant byte address 0x4 - core index']
  #allocation1 [shape = 'u32[72,128]{1,0:T(1,128)}', space=vmem, size = 0x9000, scoped, tag = 'internal scratch']
  %s0 = inlined_call_operand.vmem [shape: f32[8,576], index: 0, kind: input, shape index: {}]
  %s1 = inlined_call_operand.vmem [shape: f32[576,128], index: 1, kind: input, shape index: {}]
  %s2 = inlined_call_operand.vmem [shape: f32[1,128], index: 2, kind: input, shape index: {}]
  %s3 = inlined_call_operand.vmem [shape: f32[8,128], index: 3, kind: output, shape index: {}]
  %s4 = sld [smem:[#allocation0]]
  $region22: #{generator_forward.23} parent=0
    _
  %s6 = ssub.s32 1, %s4
  %s7 = scalar_select 0, %s6, %s4
  // Predicated region
  $region2: #{generator_forward.23} parent=0 // pred_check
    _
  $region3: #{generator_forward.23} parent=0 // pred_check_branch
    %9 = sbr.rel (0) target = $region5
  $region4: #{generator_forward.23} parent=0 // pred_region
    _
  $region5: #{generator_forward.23} parent=0 // pred_fallthru
    _
  // Predicated region
  $region6: #{generator_forward.23} parent=0 // pred_check
    _
  $region7: #{generator_forward.23} parent=0 // pred_check_branch
    %11 = sbr.rel (0) target = $region9
  $region8: #{generator_forward.23} parent=0 // pred_region
    _
  $region9: #{generator_forward.23} parent=0 // pred_fallthru
    _
  // Predicated region
  $region10: #{generator_forward.23} parent=0 // pred_check
    _
  $region11: #{generator_forward.23} parent=0 // pred_check_branch
    %13 = sbr.rel (0) target = $region13
  $region12: #{generator_forward.23} parent=0 // pred_region
    _
  $region13: #{generator_forward.23} parent=0 // pred_fallthru
    _
  %v14 = vld [vmem:[%s0] sm:$0xff]
  %v15 = vld [vmem:[%s0 + $0x8] sm:$0xff]
  %v16 = vld [vmem:[%s0 + $0x10] sm:$0xff]
  %v17 = vld [vmem:[%s0 + $0x18] sm:$0xff]
  %v18 = vld [vmem:[%s0 + $0x20] sm:$0xff]
  %v19 = vld [vmem:[%s1] sm:$0xff]
  %v20 = vld [vmem:[%s1 + $0x8] sm:$0xff]
  %v21 = vld [vmem:[%s1 + $0x10] sm:$0xff]
  %v22 = vld [vmem:[%s1 + $0x18] sm:$0xff]
  %v23 = vld [vmem:[%s1 + $0x20] sm:$0xff]
  %v24 = vld [vmem:[%s1 + $0x28] sm:$0xff]
  %v25 = vld [vmem:[%s1 + $0x30] sm:$0xff]
  %v26 = vld [vmem:[%s1 + $0x38] sm:$0xff]
  %v27 = vld [vmem:[%s1 + $0x40] sm:$0xff]
  %v28 = vld [vmem:[%s1 + $0x48] sm:$0xff]
  %v29 = vld [vmem:[%s1 + $0x50] sm:$0xff]
  %v30 = vld [vmem:[%s1 + $0x58] sm:$0xff]
  %v31 = vld [vmem:[%s1 + $0x60] sm:$0xff]
  %v32 = vld [vmem:[%s1 + $0x68] sm:$0xff]
  %v33 = vld [vmem:[%s1 + $0x70] sm:$0xff]
  %v34 = vld [vmem:[%s1 + $0x78] sm:$0xff]
  %v35 = vld [vmem:[%s1 + $0x80] sm:$0xff]
  %v36 = vld [vmem:[%s1 + $0x88] sm:$0xff]
  %v37 = vld [vmem:[%s1 + $0x90] sm:$0xff]
  %v38 = vld [vmem:[%s1 + $0x98] sm:$0xff]
  %v39 = vld [vmem:[%s1 + $0xa0] sm:$0xff]
  %v40 = vld [vmem:[%s1 + $0xa8] sm:$0xff]
  %v41 = vld [vmem:[%s1 + $0xb0] sm:$0xff]
  %v42 = vld [vmem:[%s1 + $0xb8] sm:$0xff]
  %v43 = vld [vmem:[%s1 + $0xc0] sm:$0xff]
  %v44 = vld [vmem:[%s1 + $0xc8] sm:$0xff]
  %v45 = vld [vmem:[%s1 + $0xd0] sm:$0xff]
  %v46 = vld [vmem:[%s1 + $0xd8] sm:$0xff]
  %v47 = vld [vmem:[%s1 + $0xe0] sm:$0xff]
  %v48 = vld [vmem:[%s1 + $0xe8] sm:$0xff]
  %v49 = vld [vmem:[%s1 + $0xf0] sm:$0xff]
  %v50 = vld [vmem:[%s1 + $0xf8] sm:$0xff]
  %v51 = vld [vmem:[%s1 + $0x100] sm:$0xff]
  %v52 = vld [vmem:[%s1 + $0x108] sm:$0xff]
  %v53 = vld [vmem:[%s1 + $0x110] sm:$0xff]
  %v54 = vld [vmem:[%s1 + $0x118] sm:$0xff]
  %v55 = vld [vmem:[%s1 + $0x120] sm:$0xff]
  %v56 = vld [vmem:[%s1 + $0x128] sm:$0xff]
  %v57 = vld [vmem:[%s1 + $0x130] sm:$0xff]
  %v58 = vld [vmem:[%s1 + $0x138] sm:$0xff]
  %v59 = vld [vmem:[%s1 + $0x140] sm:$0xff]
  %v60 = vld [vmem:[%s1 + $0x148] sm:$0xff]
  %v61 = vld [vmem:[%s1 + $0x150] sm:$0xff]
  %v62 = vld [vmem:[%s1 + $0x158] sm:$0xff]
  %v63 = vld [vmem:[%s1 + $0x160] sm:$0xff]
  %v64 = vld [vmem:[%s1 + $0x168] sm:$0xff]
  %v65 = vld [vmem:[%s1 + $0x170] sm:$0xff]
  %v66 = vld [vmem:[%s1 + $0x178] sm:$0xff]
  %v67 = vld [vmem:[%s1 + $0x180] sm:$0xff]
  %v68 = vld [vmem:[%s1 + $0x188] sm:$0xff]
  %v69 = vld [vmem:[%s1 + $0x190] sm:$0xff]
  %v70 = vld [vmem:[%s1 + $0x198] sm:$0xff]
  %v71 = vld [vmem:[%s1 + $0x1a0] sm:$0xff]
  %v72 = vld [vmem:[%s1 + $0x1a8] sm:$0xff]
  %v73 = vld [vmem:[%s1 + $0x1b0] sm:$0xff]
  %v74 = vld [vmem:[%s1 + $0x1b8] sm:$0xff]
  %v75 = vld [vmem:[%s1 + $0x1c0] sm:$0xff]
  %v76 = vld [vmem:[%s1 + $0x1c8] sm:$0xff]
  %v77 = vld [vmem:[%s1 + $0x1d0] sm:$0xff]
  %v78 = vld [vmem:[%s1 + $0x1d8] sm:$0xff]
  %v79 = vld [vmem:[%s1 + $0x1e0] sm:$0xff]
  %v80 = vld [vmem:[%s1 + $0x1e8] sm:$0xff]
  %v81 = vld [vmem:[%s1 + $0x1f0] sm:$0xff]
  %v82 = vld [vmem:[%s1 + $0x1f8] sm:$0xff]
  %v83 = vld [vmem:[%s1 + $0x200] sm:$0xff]
  %v84 = vld [vmem:[%s1 + $0x208] sm:$0xff]
  %v85 = vld [vmem:[%s1 + $0x210] sm:$0xff]
  %v86 = vld [vmem:[%s1 + $0x218] sm:$0xff]
  %v87 = vld [vmem:[%s1 + $0x220] sm:$0xff]
  %v88 = vld [vmem:[%s1 + $0x228] sm:$0xff]
  %v89 = vld [vmem:[%s1 + $0x230] sm:$0xff]
  %v90 = vld [vmem:[%s1 + $0x238] sm:$0xff]
  %v91 = vld [vmem:[%s2] sm:$0x1]
  %v93 = vperm.slane %v91, 0
  %vm95 = vcmask 523264
  %v97 = vsel %vm95, %v18, 0
  %99 = vmatpush.msra.mxu0 %v34
  %100 = vmatpush.msra.mxu0 %v33
  %101 = vmatpush.msra.mxu0 %v32
  %102 = vmatpush.msra.mxu0 %v31
  %103 = vmatpush.msra.mxu0 %v30
  %104 = vmatpush.msra.mxu0 %v29
  %105 = vmatpush.msra.mxu0 %v28
  %106 = vmatpush.msra.mxu0 %v27
  %107 = vmatpush.msra.mxu0 %v26
  %108 = vmatpush.msra.mxu0 %v25
  %109 = vmatpush.msra.mxu0 %v24
  %110 = vmatpush.msra.mxu0 %v23
  %111 = vmatpush.msra.mxu0 %v22
  %112 = vmatpush.msra.mxu0 %v21
  %113 = vmatpush.msra.mxu0 %v20
  %114 = vmatpush.msra.mxu0 %v19
  %115 = vmatmul.f32.gmra.mxu0 %v14
  %v116 = vpop.f32.mrf.mxu0
  %v117 = vadd.f32 %v93, %v116
  %118 = vdwg.mxu0
  %119 = vmatpush.msra.mxu0 %v50
  %120 = vmatpush.msra.mxu0 %v49
  %121 = vmatpush.msra.mxu0 %v48
  %122 = vmatpush.msra.mxu0 %v47
  %123 = vmatpush.msra.mxu0 %v46
  %124 = vmatpush.msra.mxu0 %v45
  %125 = vmatpush.msra.mxu0 %v44
  %126 = vmatpush.msra.mxu0 %v43
  %127 = vmatpush.msra.mxu0 %v42
  %128 = vmatpush.msra.mxu0 %v41
  %129 = vmatpush.msra.mxu0 %v40
  %130 = vmatpush.msra.mxu0 %v39
  %131 = vmatpush.msra.mxu0 %v38
  %132 = vmatpush.msra.mxu0 %v37
  %133 = vmatpush.msra.mxu0 %v36
  %134 = vmatpush.msra.mxu0 %v35
  %135 = vmatmul.f32.gmra.mxu0 %v15
  %v136 = vpop.f32.mrf.mxu0
  %v137 = vadd.f32 %v117, %v136
  %138 = vdwg.mxu0
  %139 = vmatpush.msra.mxu0 %v66
  %140 = vmatpush.msra.mxu0 %v65
  %141 = vmatpush.msra.mxu0 %v64
  %142 = vmatpush.msra.mxu0 %v63
  %143 = vmatpush.msra.mxu0 %v62
  %144 = vmatpush.msra.mxu0 %v61
  %145 = vmatpush.msra.mxu0 %v60
  %146 = vmatpush.msra.mxu0 %v59
  %147 = vmatpush.msra.mxu0 %v58
  %148 = vmatpush.msra.mxu0 %v57
  %149 = vmatpush.msra.mxu0 %v56
  %150 = vmatpush.msra.mxu0 %v55
  %151 = vmatpush.msra.mxu0 %v54
  %152 = vmatpush.msra.mxu0 %v53
  %153 = vmatpush.msra.mxu0 %v52
  %154 = vmatpush.msra.mxu0 %v51
  %155 = vmatmul.f32.gmra.mxu0 %v16
  %v156 = vpop.f32.mrf.mxu0
  %v157 = vadd.f32 %v137, %v156
  %158 = vdwg.mxu0
  %159 = vmatpush.msra.mxu0 %v82
  %160 = vmatpush.msra.mxu0 %v81
  %161 = vmatpush.msra.mxu0 %v80
  %162 = vmatpush.msra.mxu0 %v79
  %163 = vmatpush.msra.mxu0 %v78
  %164 = vmatpush.msra.mxu0 %v77
  %165 = vmatpush.msra.mxu0 %v76
  %166 = vmatpush.msra.mxu0 %v75
  %167 = vmatpush.msra.mxu0 %v74
  %168 = vmatpush.msra.mxu0 %v73
  %169 = vmatpush.msra.mxu0 %v72
  %170 = vmatpush.msra.mxu0 %v71
  %171 = vmatpush.msra.mxu0 %v70
  %172 = vmatpush.msra.mxu0 %v69
  %173 = vmatpush.msra.mxu0 %v68
  %174 = vmatpush.msra.mxu0 %v67
  %175 = vmatmul.f32.gmra.mxu0 %v17
  %v176 = vpop.f32.mrf.mxu0
  %v177 = vadd.f32 %v157, %v176
  %178 = vdwg.mxu0
  %179 = vmatpush.msra.mxu0 0.0
  %180 = vmatpush.msra.mxu0 0.0
  %181 = vmatpush.msra.mxu0 0.0
  %182 = vmatpush.msra.mxu0 0.0
  %183 = vmatpush.msra.mxu0 0.0
  %184 = vmatpush.msra.mxu0 0.0
  %185 = vmatpush.msra.mxu0 0.0
  %186 = vmatpush.msra.mxu0 0.0
  %187 = vmatpush.msra.mxu0 %v90
  %188 = vmatpush.msra.mxu0 %v89
  %189 = vmatpush.msra.mxu0 %v88
  %190 = vmatpush.msra.mxu0 %v87
  %191 = vmatpush.msra.mxu0 %v86
  %192 = vmatpush.msra.mxu0 %v85
  %193 = vmatpush.msra.mxu0 %v84
  %194 = vmatpush.msra.mxu0 %v83
  %195 = vmatmul.f32.gmra.mxu0 %v97
  %v196 = vpop.f32.mrf.mxu0
  %v197 = vadd.f32 %v177, %v196
  %198 = vdwg.mxu0
  %199 = vst [vmem:[%s3] sm:$0xff] %v197
  // Predicated region
  $region14: #{generator_forward.23} parent=0 // pred_check
    _
  $region15: #{generator_forward.23} parent=0 // pred_check_branch
    %201 = sbr.rel (0) target = $region17
  $region16: #{generator_forward.23} parent=0 // pred_region
    _
  $region17: #{generator_forward.23} parent=0 // pred_fallthru
    _
  // Predicated region
  $region18: #{generator_forward.23} parent=0 // pred_check
    _
  $region19: #{generator_forward.23} parent=0 // pred_check_branch
    %203 = sbr.rel (0) target = $region21
  $region20: #{generator_forward.23} parent=0 // pred_region
    _
  $region21: #{generator_forward.23} parent=0 // pred_fallthru
    _

// kernel: generator_forward.24
$region0: #{generator_forward.24}
  #allocation0 [shape = 'u32[]', space=smem, size = 0x4, offset = 0x4, fixed_abs, tag = 'smem constant byte address 0x4 - core index']
  #allocation1 [shape = 'u32[72,128]{1,0:T(1,128)}', space=vmem, size = 0x9000, scoped, tag = 'internal scratch']
  %s0 = inlined_call_operand.vmem [shape: f32[2,4,128], index: 0, kind: input, shape index: {}]
  %s1 = inlined_call_operand.vmem [shape: f32[2,4,128], index: 1, kind: output, shape index: {}]
  %s2 = sld [smem:[#allocation0]]
  $region37: #{generator_forward.24} parent=0
    _
  %s4 = ssub.s32 1, %s2
  %s5 = scalar_select 0, %s4, %s2
  loop: start=0, step=1, limit=4
  $region2: #{generator_forward.24} parent=0 // loop_pre_header
    _
  $region3: #{generator_forward.24} parent=0 // loop_header
    %s7 = sphi 0, %s11
    %p8 = scmp.ge.s32.totalorder %s7, 4
    %s17 = sphi 0, %s19
    %s20 = sphi 0, %s17
    %s21 = sphi 0, %s20
    %s37 = sphi 0, %s21
    %s43 = sphi 0, %s45
    %s46 = sphi 0, %s43
    %s47 = sphi 0, %s46
    %s63 = sphi 0, %s47
  $region4: #{generator_forward.24} parent=0 // loop_header_branch
    %10 = sbr.rel (%p8) target = $region8
  $region5: #{generator_forward.24} parent=0 // loop_body
    %s12 = ssub.s32 %s7, 1
    %s13 = ssub.s32 %s7, 2
    %s14 = sadd.s32 %s7, 1
    %s15 = ssub.s32 %s7, %s14
    %p16 = scmp.eq.s32.totalorder %s15, 0
    %s18 = sadd.s32 %s17, 1
    %s19 = scalar_select %p16, %s17, %s18
    %p22 = pneg %p16
    %p23 = scmp.eq.s32.totalorder %s7, 1
    %p24 = por %p22, %p23
    %p25 = scmp.ne.s32.totalorder %s17, %s20
    %p26 = scmp.eq.s32.totalorder %s7, 0
    %p27 = por %p25, %p26
    %p28 = scmp.ne.s32.totalorder %s17, %s20
    %p29 = scmp.eq.s32.totalorder %s12, 1
    %p30 = por %p28, %p29
    %p31 = scmp.ne.s32.totalorder %s20, %s21
    %p32 = scmp.eq.s32.totalorder %s12, 0
    %p33 = por %p31, %p32
    %p34 = scmp.ne.s32.totalorder %s20, %s21
    %p35 = scmp.eq.s32.totalorder %s13, 1
    %p36 = por %p34, %p35
    %p38 = scmp.ne.s32.totalorder %s21, %s37
    %p39 = scmp.eq.s32.totalorder %s13, 0
    %p40 = por %p38, %p39
    %s41 = ssub.s32 %s7, %s14
    %p42 = scmp.eq.s32.totalorder %s41, 0
    %s44 = sadd.s32 %s43, 1
    %s45 = scalar_select %p42, %s43, %s44
    %p48 = pneg %p42
    %p49 = scmp.eq.s32.totalorder %s7, 1
    %p50 = por %p48, %p49
    %p51 = scmp.ne.s32.totalorder %s43, %s46
    %p52 = scmp.eq.s32.totalorder %s7, 0
    %p53 = por %p51, %p52
    %p54 = scmp.ne.s32.totalorder %s43, %s46
    %p55 = scmp.eq.s32.totalorder %s12, 1
    %p56 = por %p54, %p55
    %p57 = scmp.ne.s32.totalorder %s46, %s47
    %p58 = scmp.eq.s32.totalorder %s12, 0
    %p59 = por %p57, %p58
    %p60 = scmp.ne.s32.totalorder %s46, %s47
    %p61 = scmp.eq.s32.totalorder %s13, 1
    %p62 = por %p60, %p61
    %p64 = scmp.ne.s32.totalorder %s47, %s63
    %p65 = scmp.eq.s32.totalorder %s13, 0
    %p66 = por %p64, %p65
    %p67 = scmp.le.s32.totalorder 1, %s7
    %p68 = scmp.lt.s32.totalorder %s7, 3
    %p69 = pnand %p67, %p68
    %p70 = pneg %p69
    // Predicated region
    $region9: #{generator_forward.24} parent=5 // pred_check
      _
    $region10: #{generator_forward.24} parent=5 // pred_check_branch
      %72 = sbr.rel (%p69) target = $region12
    $region11: #{generator_forward.24} parent=5 // pred_region
      %s73 = ssub.s32 %s7, 1
    $region12: #{generator_forward.24} parent=5 // pred_fallthru
      _
    %p74 = scmp.lt.s32.totalorder %s7, 2
    // Predicated region
    $region13: #{generator_forward.24} parent=5 // pred_check
      %p75 = pneg %p74
    $region14: #{generator_forward.24} parent=5 // pred_check_branch
      %77 = sbr.rel (%p75) target = $region16
    $region15: #{generator_forward.24} parent=5 // pred_region
      // Predicated region
      $region17: #{generator_forward.24} parent=15 // pred_check
        %p78 = pneg %p27
      $region18: #{generator_forward.24} parent=15 // pred_check_branch
        %80 = sbr.rel (%p78) target = $region20
      $region19: #{generator_forward.24} parent=15 // pred_region
        %p81 = scmp.lt.s32.totalorder %s7, 1
        %s82 = scalar_select %p81, %s7, 1
        %s83 = smul.addr %s82, 4
        %s84 = scalar_lea.vmem %s0, %s83
      $region20: #{generator_forward.24} parent=15 // pred_fallthru
        _
    $region16: #{generator_forward.24} parent=5 // pred_fallthru
      _
    %p85 = scmp.le.s32.totalorder 1, %s7
    %p86 = scmp.lt.s32.totalorder %s7, 3
    %p87 = pnand %p85, %p86
    %p88 = pneg %p87
    // Predicated region
    $region21: #{generator_forward.24} parent=5 // pred_check
      _
    $region22: #{generator_forward.24} parent=5 // pred_check_branch
      %90 = sbr.rel (%p87) target = $region24
    $region23: #{generator_forward.24} parent=5 // pred_region
      %s91 = ssub.s32 %s7, 1
      %p92 = scmp.lt.s32.totalorder %s12, 1
      %s93 = scalar_select %p92, %s12, 1
      %s94 = smul.addr %s93, 4
      %s95 = scalar_lea.vmem %s0, %s94
      %p96 = pneg %p33
      %p97 = pneg %p30
      %p98 = pneg %p59
      %p99 = pneg %p56
      %p100 = scmp.lt.s32.totalorder %s12, 1
      %s101 = scalar_select %p100, %s12, 1
      %s102 = smul.addr %s101, 4
      %s103 = scalar_lea.vmem %s1, %s102
      %p104 = scmp.lt.s32.totalorder %s12, 1
      %s105 = scalar_select %p104, %s12, 1
      %s106 = smul.addr %s105, 4
      %s107 = scalar_lea.vmem %s0, %s106
      %p108 = scmp.lt.s32.totalorder %s12, 1
      %s109 = scalar_select %p108, %s12, 1
      %s110 = smul.addr %s109, 4
      %s111 = scalar_lea.vmem %s1, %s110
      %v112 = vld [vmem:[%s107] sm:$0xf]
      %vm113 = vcmask 1043456
      %v114 = vsel %vm113, %v112, 0.0
      %v115 = vrot.slane %v114, 4
      %v116 = vadd.f32 %v114, %v115
      %v117 = vrot.slane %v116, 2
      %v118 = vadd.f32 %v116, %v117
      %v119 = vrot.slane %v118, 1
      %v120 = vadd.f32 %v118, %v119
      %v121 = vrcp.pop 4.0
      %v122 = vmul.f32 4.0, %v121
      %v123 = vsub.f32 1.0, %v122
      %v124 = vmul.f32 %v121, %v123
      %v125 = vadd.f32 %v121, %v124
      %vm126 = vweird.f32 %v121
      %v127 = vsel %vm126, %v121, %v125
      %v128 = vmul.f32 %v120, %v127
      %v129 = vsub.f32 %v112, %v128
      %v130 = vmul.f32 %v129, %v129
      %v131 = vsel %vm113, %v130, 0.0
      %v132 = vrot.slane %v131, 4
      %v133 = vadd.f32 %v131, %v132
      %v134 = vrot.slane %v133, 2
      %v135 = vadd.f32 %v133, %v134
      %v136 = vrot.slane %v135, 1
      %v137 = vadd.f32 %v135, %v136
      %v138 = vmul.f32 %v137, %v127
      %v139 = vadd.f32 %v138, 1e-05
      %v140 = vrsqrt.pop %v139
      %v141 = vmul.f32 %v140, %v139
      %v142 = vmul.f32 %v141, %v140
      %v143 = vmul.f32 0.5, %v142
      %v144 = vsub.f32 1.5, %v143
      %v145 = vmul.f32 %v140, %v144
      %vm146 = vweird.f32 %v139
      %vm147 = vweird.f32 %v140
      %vm148 = vmor %vm146, %vm147
      %v149 = vsel %vm148, %v140, %v145
      %v150 = vmul.f32 %v129, %v149
      %v151 = vmax.f32 %v150, 0.0
      %152 = vst [vmem:[%s111] sm:$0xf] %v151
      %p153 = scmp.lt.s32.totalorder %s12, 1
      %s154 = scalar_select %p153, %s12, 1
      %s155 = smul.addr %s154, 4
      %s156 = scalar_lea.vmem %s1, %s155
      // Predicated region
      $region25: #{generator_forward.24} parent=23 // pred_check
        %p157 = pneg %p56
      $region26: #{generator_forward.24} parent=23 // pred_check_branch
        %159 = sbr.rel (%p157) target = $region28
      $region27: #{generator_forward.24} parent=23 // pred_region
        _
      $region28: #{generator_forward.24} parent=23 // pred_fallthru
        _
    $region24: #{generator_forward.24} parent=5 // pred_fallthru
      _
    %p160 = scmp.le.s32.totalorder 2, %s7
    // Predicated region
    $region29: #{generator_forward.24} parent=5 // pred_check
      %p161 = pneg %p160
    $region30: #{generator_forward.24} parent=5 // pred_check_branch
      %163 = sbr.rel (%p161) target = $region32
    $region31: #{generator_forward.24} parent=5 // pred_region
      %s164 = ssub.s32 %s7, 2
      // Predicated region
      $region33: #{generator_forward.24} parent=31 // pred_check
        %p165 = pneg %p62
      $region34: #{generator_forward.24} parent=31 // pred_check_branch
        %167 = sbr.rel (%p165) target = $region36
      $region35: #{generator_forward.24} parent=31 // pred_region
        %p168 = scmp.lt.s32.totalorder %s13, 1
        %s169 = scalar_select %p168, %s13, 1
        %s170 = smul.addr %s169, 4
        %s171 = scalar_lea.vmem %s1, %s170
      $region36: #{generator_forward.24} parent=31 // pred_fallthru
        _
    $region32: #{generator_forward.24} parent=5 // pred_fallthru
      _
  $region6: #{generator_forward.24} parent=0 // loop_footer
    %s11 = sadd.s32 1, %s7
  $region7: #{generator_forward.24} parent=0 // loop_footer_branch
    %6 = sbr.rel target = $region3
  $region8: #{generator_forward.24} parent=0 // loop_exit
    _

// kernel: generator_forward.28
$region0: #{generator_forward.28}
  #allocation0 [shape = 'u32[]', space=smem, size = 0x4, offset = 0x4, fixed_abs, tag = 'smem constant byte address 0x4 - core index']
  #allocation1 [shape = 'u32[72,128]{1,0:T(1,128)}', space=vmem, size = 0x9000, scoped, tag = 'internal scratch']
  %s0 = inlined_call_operand.vmem [shape: f32[2,4,128], index: 0, kind: input, shape index: {}]
  %s1 = inlined_call_operand.vmem [shape: f32[2,4,128], index: 1, kind: output, shape index: {}]
  %s2 = sld [smem:[#allocation0]]
  $region37: #{generator_forward.28} parent=0
    _
  %s4 = ssub.s32 1, %s2
  %s5 = scalar_select 0, %s4, %s2
  loop: start=0, step=1, limit=4
  $region2: #{generator_forward.28} parent=0 // loop_pre_header
    _
  $region3: #{generator_forward.28} parent=0 // loop_header
    %s7 = sphi 0, %s11
    %p8 = scmp.ge.s32.totalorder %s7, 4
    %s17 = sphi 0, %s19
    %s20 = sphi 0, %s17
    %s21 = sphi 0, %s20
    %s37 = sphi 0, %s21
    %s43 = sphi 0, %s45
    %s46 = sphi 0, %s43
    %s47 = sphi 0, %s46
    %s63 = sphi 0, %s47
  $region4: #{generator_forward.28} parent=0 // loop_header_branch
    %10 = sbr.rel (%p8) target = $region8
  $region5: #{generator_forward.28} parent=0 // loop_body
    %s12 = ssub.s32 %s7, 1
    %s13 = ssub.s32 %s7, 2
    %s14 = sadd.s32 %s7, 1
    %s15 = ssub.s32 %s7, %s14
    %p16 = scmp.eq.s32.totalorder %s15, 0
    %s18 = sadd.s32 %s17, 1
    %s19 = scalar_select %p16, %s17, %s18
    %p22 = pneg %p16
    %p23 = scmp.eq.s32.totalorder %s7, 1
    %p24 = por %p22, %p23
    %p25 = scmp.ne.s32.totalorder %s17, %s20
    %p26 = scmp.eq.s32.totalorder %s7, 0
    %p27 = por %p25, %p26
    %p28 = scmp.ne.s32.totalorder %s17, %s20
    %p29 = scmp.eq.s32.totalorder %s12, 1
    %p30 = por %p28, %p29
    %p31 = scmp.ne.s32.totalorder %s20, %s21
    %p32 = scmp.eq.s32.totalorder %s12, 0
    %p33 = por %p31, %p32
    %p34 = scmp.ne.s32.totalorder %s20, %s21
    %p35 = scmp.eq.s32.totalorder %s13, 1
    %p36 = por %p34, %p35
    %p38 = scmp.ne.s32.totalorder %s21, %s37
    %p39 = scmp.eq.s32.totalorder %s13, 0
    %p40 = por %p38, %p39
    %s41 = ssub.s32 %s7, %s14
    %p42 = scmp.eq.s32.totalorder %s41, 0
    %s44 = sadd.s32 %s43, 1
    %s45 = scalar_select %p42, %s43, %s44
    %p48 = pneg %p42
    %p49 = scmp.eq.s32.totalorder %s7, 1
    %p50 = por %p48, %p49
    %p51 = scmp.ne.s32.totalorder %s43, %s46
    %p52 = scmp.eq.s32.totalorder %s7, 0
    %p53 = por %p51, %p52
    %p54 = scmp.ne.s32.totalorder %s43, %s46
    %p55 = scmp.eq.s32.totalorder %s12, 1
    %p56 = por %p54, %p55
    %p57 = scmp.ne.s32.totalorder %s46, %s47
    %p58 = scmp.eq.s32.totalorder %s12, 0
    %p59 = por %p57, %p58
    %p60 = scmp.ne.s32.totalorder %s46, %s47
    %p61 = scmp.eq.s32.totalorder %s13, 1
    %p62 = por %p60, %p61
    %p64 = scmp.ne.s32.totalorder %s47, %s63
    %p65 = scmp.eq.s32.totalorder %s13, 0
    %p66 = por %p64, %p65
    %p67 = scmp.le.s32.totalorder 1, %s7
    %p68 = scmp.lt.s32.totalorder %s7, 3
    %p69 = pnand %p67, %p68
    %p70 = pneg %p69
    // Predicated region
    $region9: #{generator_forward.28} parent=5 // pred_check
      _
    $region10: #{generator_forward.28} parent=5 // pred_check_branch
      %72 = sbr.rel (%p69) target = $region12
    $region11: #{generator_forward.28} parent=5 // pred_region
      %s73 = ssub.s32 %s7, 1
    $region12: #{generator_forward.28} parent=5 // pred_fallthru
      _
    %p74 = scmp.lt.s32.totalorder %s7, 2
    // Predicated region
    $region13: #{generator_forward.28} parent=5 // pred_check
      %p75 = pneg %p74
    $region14: #{generator_forward.28} parent=5 // pred_check_branch
      %77 = sbr.rel (%p75) target = $region16
    $region15: #{generator_forward.28} parent=5 // pred_region
      // Predicated region
      $region17: #{generator_forward.28} parent=15 // pred_check
        %p78 = pneg %p27
      $region18: #{generator_forward.28} parent=15 // pred_check_branch
        %80 = sbr.rel (%p78) target = $region20
      $region19: #{generator_forward.28} parent=15 // pred_region
        %p81 = scmp.lt.s32.totalorder %s7, 1
        %s82 = scalar_select %p81, %s7, 1
        %s83 = smul.addr %s82, 4
        %s84 = scalar_lea.vmem %s0, %s83
      $region20: #{generator_forward.28} parent=15 // pred_fallthru
        _
    $region16: #{generator_forward.28} parent=5 // pred_fallthru
      _
    %p85 = scmp.le.s32.totalorder 1, %s7
    %p86 = scmp.lt.s32.totalorder %s7, 3
    %p87 = pnand %p85, %p86
    %p88 = pneg %p87
    // Predicated region
    $region21: #{generator_forward.28} parent=5 // pred_check
      _
    $region22: #{generator_forward.28} parent=5 // pred_check_branch
      %90 = sbr.rel (%p87) target = $region24
    $region23: #{generator_forward.28} parent=5 // pred_region
      %s91 = ssub.s32 %s7, 1
      %p92 = scmp.lt.s32.totalorder %s12, 1
      %s93 = scalar_select %p92, %s12, 1
      %s94 = smul.addr %s93, 4
      %s95 = scalar_lea.vmem %s0, %s94
      %p96 = pneg %p33
      %p97 = pneg %p30
      %p98 = pneg %p59
      %p99 = pneg %p56
      %p100 = scmp.lt.s32.totalorder %s12, 1
      %s101 = scalar_select %p100, %s12, 1
      %s102 = smul.addr %s101, 4
      %s103 = scalar_lea.vmem %s1, %s102
      %p104 = scmp.lt.s32.totalorder %s12, 1
      %s105 = scalar_select %p104, %s12, 1
      %s106 = smul.addr %s105, 4
      %s107 = scalar_lea.vmem %s0, %s106
      %p108 = scmp.lt.s32.totalorder %s12, 1
      %s109 = scalar_select %p108, %s12, 1
      %s110 = smul.addr %s109, 4
      %s111 = scalar_lea.vmem %s1, %s110
      %v112 = vld [vmem:[%s107] sm:$0xf]
      %vm113 = vcmask 1043456
      %v114 = vsel %vm113, %v112, 0.0
      %v115 = vrot.slane %v114, 4
      %v116 = vadd.f32 %v114, %v115
      %v117 = vrot.slane %v116, 2
      %v118 = vadd.f32 %v116, %v117
      %v119 = vrot.slane %v118, 1
      %v120 = vadd.f32 %v118, %v119
      %v121 = vrcp.pop 4.0
      %v122 = vmul.f32 4.0, %v121
      %v123 = vsub.f32 1.0, %v122
      %v124 = vmul.f32 %v121, %v123
      %v125 = vadd.f32 %v121, %v124
      %vm126 = vweird.f32 %v121
      %v127 = vsel %vm126, %v121, %v125
      %v128 = vmul.f32 %v120, %v127
      %v129 = vsub.f32 %v112, %v128
      %v130 = vmul.f32 %v129, %v129
      %v131 = vsel %vm113, %v130, 0.0
      %v132 = vrot.slane %v131, 4
      %v133 = vadd.f32 %v131, %v132
      %v134 = vrot.slane %v133, 2
      %v135 = vadd.f32 %v133, %v134
      %v136 = vrot.slane %v135, 1
      %v137 = vadd.f32 %v135, %v136
      %v138 = vmul.f32 %v137, %v127
      %v139 = vadd.f32 %v138, 1e-05
      %v140 = vrsqrt.pop %v139
      %v141 = vmul.f32 %v140, %v139
      %v142 = vmul.f32 %v141, %v140
      %v143 = vmul.f32 0.5, %v142
      %v144 = vsub.f32 1.5, %v143
      %v145 = vmul.f32 %v140, %v144
      %vm146 = vweird.f32 %v139
      %vm147 = vweird.f32 %v140
      %vm148 = vmor %vm146, %vm147
      %v149 = vsel %vm148, %v140, %v145
      %v150 = vmul.f32 %v129, %v149
      %151 = vst [vmem:[%s111] sm:$0xf] %v150
      %p152 = scmp.lt.s32.totalorder %s12, 1
      %s153 = scalar_select %p152, %s12, 1
      %s154 = smul.addr %s153, 4
      %s155 = scalar_lea.vmem %s1, %s154
      // Predicated region
      $region25: #{generator_forward.28} parent=23 // pred_check
        %p156 = pneg %p56
      $region26: #{generator_forward.28} parent=23 // pred_check_branch
        %158 = sbr.rel (%p156) target = $region28
      $region27: #{generator_forward.28} parent=23 // pred_region
        _
      $region28: #{generator_forward.28} parent=23 // pred_fallthru
        _
    $region24: #{generator_forward.28} parent=5 // pred_fallthru
      _
    %p159 = scmp.le.s32.totalorder 2, %s7
    // Predicated region
    $region29: #{generator_forward.28} parent=5 // pred_check
      %p160 = pneg %p159
    $region30: #{generator_forward.28} parent=5 // pred_check_branch
      %162 = sbr.rel (%p160) target = $region32
    $region31: #{generator_forward.28} parent=5 // pred_region
      %s163 = ssub.s32 %s7, 2
      // Predicated region
      $region33: #{generator_forward.28} parent=31 // pred_check
        %p164 = pneg %p62
      $region34: #{generator_forward.28} parent=31 // pred_check_branch
        %166 = sbr.rel (%p164) target = $region36
      $region35: #{generator_forward.28} parent=31 // pred_region
        %p167 = scmp.lt.s32.totalorder %s13, 1
        %s168 = scalar_select %p167, %s13, 1
        %s169 = smul.addr %s168, 4
        %s170 = scalar_lea.vmem %s1, %s169
      $region36: #{generator_forward.28} parent=31 // pred_fallthru
        _
    $region32: #{generator_forward.28} parent=5 // pred_fallthru
      _
  $region6: #{generator_forward.28} parent=0 // loop_footer
    %s11 = sadd.s32 1, %s7
  $region7: #{generator_forward.28} parent=0 // loop_footer_branch
    %6 = sbr.rel target = $region3
  $region8: #{generator_forward.28} parent=0 // loop_exit
    _

// kernel: generator_forward.25
$region0: #{generator_forward.25}
  #allocation0 [shape = 'u32[]', space=smem, size = 0x4, offset = 0x4, fixed_abs, tag = 'smem constant byte address 0x4 - core index']
  #allocation1 [shape = 'u32[72,128]{1,0:T(1,128)}', space=vmem, size = 0x9000, scoped, tag = 'internal scratch']
  %s0 = inlined_call_operand.vmem [shape: f32[8,1152], index: 0, kind: input, shape index: {}]
  %s1 = inlined_call_operand.vmem [shape: f32[1152,128], index: 1, kind: input, shape index: {}]
  %s2 = inlined_call_operand.vmem [shape: f32[1,128], index: 2, kind: input, shape index: {}]
  %s3 = inlined_call_operand.vmem [shape: f32[8,128], index: 3, kind: output, shape index: {}]
  %s4 = sld [smem:[#allocation0]]
  $region22: #{generator_forward.25} parent=0
    _
  %s6 = ssub.s32 1, %s4
  %s7 = scalar_select 0, %s6, %s4
  // Predicated region
  $region2: #{generator_forward.25} parent=0 // pred_check
    _
  $region3: #{generator_forward.25} parent=0 // pred_check_branch
    %9 = sbr.rel (0) target = $region5
  $region4: #{generator_forward.25} parent=0 // pred_region
    _
  $region5: #{generator_forward.25} parent=0 // pred_fallthru
    _
  // Predicated region
  $region6: #{generator_forward.25} parent=0 // pred_check
    _
  $region7: #{generator_forward.25} parent=0 // pred_check_branch
    %11 = sbr.rel (0) target = $region9
  $region8: #{generator_forward.25} parent=0 // pred_region
    _
  $region9: #{generator_forward.25} parent=0 // pred_fallthru
    _
  // Predicated region
  $region10: #{generator_forward.25} parent=0 // pred_check
    _
  $region11: #{generator_forward.25} parent=0 // pred_check_branch
    %13 = sbr.rel (0) target = $region13
  $region12: #{generator_forward.25} parent=0 // pred_region
    _
  $region13: #{generator_forward.25} parent=0 // pred_fallthru
    _
  %v14 = vld [vmem:[%s0] sm:$0xff]
  %v15 = vld [vmem:[%s0 + $0x8] sm:$0xff]
  %v16 = vld [vmem:[%s0 + $0x10] sm:$0xff]
  %v17 = vld [vmem:[%s0 + $0x18] sm:$0xff]
  %v18 = vld [vmem:[%s0 + $0x20] sm:$0xff]
  %v19 = vld [vmem:[%s0 + $0x28] sm:$0xff]
  %v20 = vld [vmem:[%s0 + $0x30] sm:$0xff]
  %v21 = vld [vmem:[%s0 + $0x38] sm:$0xff]
  %v22 = vld [vmem:[%s0 + $0x40] sm:$0xff]
  %v23 = vld [vmem:[%s1] sm:$0xff]
  %v24 = vld [vmem:[%s1 + $0x8] sm:$0xff]
  %v25 = vld [vmem:[%s1 + $0x10] sm:$0xff]
  %v26 = vld [vmem:[%s1 + $0x18] sm:$0xff]
  %v27 = vld [vmem:[%s1 + $0x20] sm:$0xff]
  %v28 = vld [vmem:[%s1 + $0x28] sm:$0xff]
  %v29 = vld [vmem:[%s1 + $0x30] sm:$0xff]
  %v30 = vld [vmem:[%s1 + $0x38] sm:$0xff]
  %v31 = vld [vmem:[%s1 + $0x40] sm:$0xff]
  %v32 = vld [vmem:[%s1 + $0x48] sm:$0xff]
  %v33 = vld [vmem:[%s1 + $0x50] sm:$0xff]
  %v34 = vld [vmem:[%s1 + $0x58] sm:$0xff]
  %v35 = vld [vmem:[%s1 + $0x60] sm:$0xff]
  %v36 = vld [vmem:[%s1 + $0x68] sm:$0xff]
  %v37 = vld [vmem:[%s1 + $0x70] sm:$0xff]
  %v38 = vld [vmem:[%s1 + $0x78] sm:$0xff]
  %v39 = vld [vmem:[%s1 + $0x80] sm:$0xff]
  %v40 = vld [vmem:[%s1 + $0x88] sm:$0xff]
  %v41 = vld [vmem:[%s1 + $0x90] sm:$0xff]
  %v42 = vld [vmem:[%s1 + $0x98] sm:$0xff]
  %v43 = vld [vmem:[%s1 + $0xa0] sm:$0xff]
  %v44 = vld [vmem:[%s1 + $0xa8] sm:$0xff]
  %v45 = vld [vmem:[%s1 + $0xb0] sm:$0xff]
  %v46 = vld [vmem:[%s1 + $0xb8] sm:$0xff]
  %v47 = vld [vmem:[%s1 + $0xc0] sm:$0xff]
  %v48 = vld [vmem:[%s1 + $0xc8] sm:$0xff]
  %v49 = vld [vmem:[%s1 + $0xd0] sm:$0xff]
  %v50 = vld [vmem:[%s1 + $0xd8] sm:$0xff]
  %v51 = vld [vmem:[%s1 + $0xe0] sm:$0xff]
  %v52 = vld [vmem:[%s1 + $0xe8] sm:$0xff]
  %v53 = vld [vmem:[%s1 + $0xf0] sm:$0xff]
  %v54 = vld [vmem:[%s1 + $0xf8] sm:$0xff]
  %v55 = vld [vmem:[%s1 + $0x100] sm:$0xff]
  %v56 = vld [vmem:[%s1 + $0x108] sm:$0xff]
  %v57 = vld [vmem:[%s1 + $0x110] sm:$0xff]
  %v58 = vld [vmem:[%s1 + $0x118] sm:$0xff]
  %v59 = vld [vmem:[%s1 + $0x120] sm:$0xff]
  %v60 = vld [vmem:[%s1 + $0x128] sm:$0xff]
  %v61 = vld [vmem:[%s1 + $0x130] sm:$0xff]
  %v62 = vld [vmem:[%s1 + $0x138] sm:$0xff]
  %v63 = vld [vmem:[%s1 + $0x140] sm:$0xff]
  %v64 = vld [vmem:[%s1 + $0x148] sm:$0xff]
  %v65 = vld [vmem:[%s1 + $0x150] sm:$0xff]
  %v66 = vld [vmem:[%s1 + $0x158] sm:$0xff]
  %v67 = vld [vmem:[%s1 + $0x160] sm:$0xff]
  %v68 = vld [vmem:[%s1 + $0x168] sm:$0xff]
  %v69 = vld [vmem:[%s1 + $0x170] sm:$0xff]
  %v70 = vld [vmem:[%s1 + $0x178] sm:$0xff]
  %v71 = vld [vmem:[%s1 + $0x180] sm:$0xff]
  %v72 = vld [vmem:[%s1 + $0x188] sm:$0xff]
  %v73 = vld [vmem:[%s1 + $0x190] sm:$0xff]
  %v74 = vld [vmem:[%s1 + $0x198] sm:$0xff]
  %v75 = vld [vmem:[%s1 + $0x1a0] sm:$0xff]
  %v76 = vld [vmem:[%s1 + $0x1a8] sm:$0xff]
  %v77 = vld [vmem:[%s1 + $0x1b0] sm:$0xff]
  %v78 = vld [vmem:[%s1 + $0x1b8] sm:$0xff]
  %v79 = vld [vmem:[%s1 + $0x1c0] sm:$0xff]
  %v80 = vld [vmem:[%s1 + $0x1c8] sm:$0xff]
  %v81 = vld [vmem:[%s1 + $0x1d0] sm:$0xff]
  %v82 = vld [vmem:[%s1 + $0x1d8] sm:$0xff]
  %v83 = vld [vmem:[%s1 + $0x1e0] sm:$0xff]
  %v84 = vld [vmem:[%s1 + $0x1e8] sm:$0xff]
  %v85 = vld [vmem:[%s1 + $0x1f0] sm:$0xff]
  %v86 = vld [vmem:[%s1 + $0x1f8] sm:$0xff]
  %v87 = vld [vmem:[%s1 + $0x200] sm:$0xff]
  %v88 = vld [vmem:[%s1 + $0x208] sm:$0xff]
  %v89 = vld [vmem:[%s1 + $0x210] sm:$0xff]
  %v90 = vld [vmem:[%s1 + $0x218] sm:$0xff]
  %v91 = vld [vmem:[%s1 + $0x220] sm:$0xff]
  %v92 = vld [vmem:[%s1 + $0x228] sm:$0xff]
  %v93 = vld [vmem:[%s1 + $0x230] sm:$0xff]
  %v94 = vld [vmem:[%s1 + $0x238] sm:$0xff]
  %v95 = vld [vmem:[%s1 + $0x240] sm:$0xff]
  %v96 = vld [vmem:[%s1 + $0x248] sm:$0xff]
  %v97 = vld [vmem:[%s1 + $0x250] sm:$0xff]
  %v98 = vld [vmem:[%s1 + $0x258] sm:$0xff]
  %v99 = vld [vmem:[%s1 + $0x260] sm:$0xff]
  %v100 = vld [vmem:[%s1 + $0x268] sm:$0xff]
  %v101 = vld [vmem:[%s1 + $0x270] sm:$0xff]
  %v102 = vld [vmem:[%s1 + $0x278] sm:$0xff]
  %v103 = vld [vmem:[%s1 + $0x280] sm:$0xff]
  %v104 = vld [vmem:[%s1 + $0x288] sm:$0xff]
  %v105 = vld [vmem:[%s1 + $0x290] sm:$0xff]
  %v106 = vld [vmem:[%s1 + $0x298] sm:$0xff]
  %v107 = vld [vmem:[%s1 + $0x2a0] sm:$0xff]
  %v108 = vld [vmem:[%s1 + $0x2a8] sm:$0xff]
  %v109 = vld [vmem:[%s1 + $0x2b0] sm:$0xff]
  %v110 = vld [vmem:[%s1 + $0x2b8] sm:$0xff]
  %v111 = vld [vmem:[%s1 + $0x2c0] sm:$0xff]
  %v112 = vld [vmem:[%s1 + $0x2c8] sm:$0xff]
  %v113 = vld [vmem:[%s1 + $0x2d0] sm:$0xff]
  %v114 = vld [vmem:[%s1 + $0x2d8] sm:$0xff]
  %v115 = vld [vmem:[%s1 + $0x2e0] sm:$0xff]
  %v116 = vld [vmem:[%s1 + $0x2e8] sm:$0xff]
  %v117 = vld [vmem:[%s1 + $0x2f0] sm:$0xff]
  %v118 = vld [vmem:[%s1 + $0x2f8] sm:$0xff]
  %v119 = vld [vmem:[%s1 + $0x300] sm:$0xff]
  %v120 = vld [vmem:[%s1 + $0x308] sm:$0xff]
  %v121 = vld [vmem:[%s1 + $0x310] sm:$0xff]
  %v122 = vld [vmem:[%s1 + $0x318] sm:$0xff]
  %v123 = vld [vmem:[%s1 + $0x320] sm:$0xff]
  %v124 = vld [vmem:[%s1 + $0x328] sm:$0xff]
  %v125 = vld [vmem:[%s1 + $0x330] sm:$0xff]
  %v126 = vld [vmem:[%s1 + $0x338] sm:$0xff]
  %v127 = vld [vmem:[%s1 + $0x340] sm:$0xff]
  %v128 = vld [vmem:[%s1 + $0x348] sm:$0xff]
  %v129 = vld [vmem:[%s1 + $0x350] sm:$0xff]
  %v130 = vld [vmem:[%s1 + $0x358] sm:$0xff]
  %v131 = vld [vmem:[%s1 + $0x360] sm:$0xff]
  %v132 = vld [vmem:[%s1 + $0x368] sm:$0xff]
  %v133 = vld [vmem:[%s1 + $0x370] sm:$0xff]
  %v134 = vld [vmem:[%s1 + $0x378] sm:$0xff]
  %v135 = vld [vmem:[%s1 + $0x380] sm:$0xff]
  %v136 = vld [vmem:[%s1 + $0x388] sm:$0xff]
  %v137 = vld [vmem:[%s1 + $0x390] sm:$0xff]
  %v138 = vld [vmem:[%s1 + $0x398] sm:$0xff]
  %v139 = vld [vmem:[%s1 + $0x3a0] sm:$0xff]
  %v140 = vld [vmem:[%s1 + $0x3a8] sm:$0xff]
  %v141 = vld [vmem:[%s1 + $0x3b0] sm:$0xff]
  %v142 = vld [vmem:[%s1 + $0x3b8] sm:$0xff]
  %v143 = vld [vmem:[%s1 + $0x3c0] sm:$0xff]
  %v144 = vld [vmem:[%s1 + $0x3c8] sm:$0xff]
  %v145 = vld [vmem:[%s1 + $0x3d0] sm:$0xff]
  %v146 = vld [vmem:[%s1 + $0x3d8] sm:$0xff]
  %v147 = vld [vmem:[%s1 + $0x3e0] sm:$0xff]
  %v148 = vld [vmem:[%s1 + $0x3e8] sm:$0xff]
  %v149 = vld [vmem:[%s1 + $0x3f0] sm:$0xff]
  %v150 = vld [vmem:[%s1 + $0x3f8] sm:$0xff]
  %v151 = vld [vmem:[%s1 + $0x400] sm:$0xff]
  %v152 = vld [vmem:[%s1 + $0x408] sm:$0xff]
  %v153 = vld [vmem:[%s1 + $0x410] sm:$0xff]
  %v154 = vld [vmem:[%s1 + $0x418] sm:$0xff]
  %v155 = vld [vmem:[%s1 + $0x420] sm:$0xff]
  %v156 = vld [vmem:[%s1 + $0x428] sm:$0xff]
  %v157 = vld [vmem:[%s1 + $0x430] sm:$0xff]
  %v158 = vld [vmem:[%s1 + $0x438] sm:$0xff]
  %v159 = vld [vmem:[%s1 + $0x440] sm:$0xff]
  %v160 = vld [vmem:[%s1 + $0x448] sm:$0xff]
  %v161 = vld [vmem:[%s1 + $0x450] sm:$0xff]
  %v162 = vld [vmem:[%s1 + $0x458] sm:$0xff]
  %v163 = vld [vmem:[%s1 + $0x460] sm:$0xff]
  %v164 = vld [vmem:[%s1 + $0x468] sm:$0xff]
  %v165 = vld [vmem:[%s1 + $0x470] sm:$0xff]
  %v166 = vld [vmem:[%s1 + $0x478] sm:$0xff]
  %v167 = vld [vmem:[%s2] sm:$0x1]
  %v169 = vperm.slane %v167, 0
  %171 = vmatpush.msra.mxu0 %v38
  %172 = vmatpush.msra.mxu0 %v37
  %173 = vmatpush.msra.mxu0 %v36
  %174 = vmatpush.msra.mxu0 %v35
  %175 = vmatpush.msra.mxu0 %v34
  %176 = vmatpush.msra.mxu0 %v33
  %177 = vmatpush.msra.mxu0 %v32
  %178 = vmatpush.msra.mxu0 %v31
  %179 = vmatpush.msra.mxu0 %v30
  %180 = vmatpush.msra.mxu0 %v29
  %181 = vmatpush.msra.mxu0 %v28
  %182 = vmatpush.msra.mxu0 %v27
  %183 = vmatpush.msra.mxu0 %v26
  %184 = vmatpush.msra.mxu0 %v25
  %185 = vmatpush.msra.mxu0 %v24
  %186 = vmatpush.msra.mxu0 %v23
  %187 = vmatmul.f32.gmra.mxu0 %v14
  %v188 = vpop.f32.mrf.mxu0
  %v189 = vadd.f32 %v169, %v188
  %190 = vdwg.mxu0
  %191 = vmatpush.msra.mxu0 %v54
  %192 = vmatpush.msra.mxu0 %v53
  %193 = vmatpush.msra.mxu0 %v52
  %194 = vmatpush.msra.mxu0 %v51
  %195 = vmatpush.msra.mxu0 %v50
  %196 = vmatpush.msra.mxu0 %v49
  %197 = vmatpush.msra.mxu0 %v48
  %198 = vmatpush.msra.mxu0 %v47
  %199 = vmatpush.msra.mxu0 %v46
  %200 = vmatpush.msra.mxu0 %v45
  %201 = vmatpush.msra.mxu0 %v44
  %202 = vmatpush.msra.mxu0 %v43
  %203 = vmatpush.msra.mxu0 %v42
  %204 = vmatpush.msra.mxu0 %v41
  %205 = vmatpush.msra.mxu0 %v40
  %206 = vmatpush.msra.mxu0 %v39
  %207 = vmatmul.f32.gmra.mxu0 %v15
  %v208 = vpop.f32.mrf.mxu0
  %v209 = vadd.f32 %v189, %v208
  %210 = vdwg.mxu0
  %211 = vmatpush.msra.mxu0 %v70
  %212 = vmatpush.msra.mxu0 %v69
  %213 = vmatpush.msra.mxu0 %v68
  %214 = vmatpush.msra.mxu0 %v67
  %215 = vmatpush.msra.mxu0 %v66
  %216 = vmatpush.msra.mxu0 %v65
  %217 = vmatpush.msra.mxu0 %v64
  %218 = vmatpush.msra.mxu0 %v63
  %219 = vmatpush.msra.mxu0 %v62
  %220 = vmatpush.msra.mxu0 %v61
  %221 = vmatpush.msra.mxu0 %v60
  %222 = vmatpush.msra.mxu0 %v59
  %223 = vmatpush.msra.mxu0 %v58
  %224 = vmatpush.msra.mxu0 %v57
  %225 = vmatpush.msra.mxu0 %v56
  %226 = vmatpush.msra.mxu0 %v55
  %227 = vmatmul.f32.gmra.mxu0 %v16
  %v228 = vpop.f32.mrf.mxu0
  %v229 = vadd.f32 %v209, %v228
  %230 = vdwg.mxu0
  %231 = vmatpush.msra.mxu0 %v86
  %232 = vmatpush.msra.mxu0 %v85
  %233 = vmatpush.msra.mxu0 %v84
  %234 = vmatpush.msra.mxu0 %v83
  %235 = vmatpush.msra.mxu0 %v82
  %236 = vmatpush.msra.mxu0 %v81
  %237 = vmatpush.msra.mxu0 %v80
  %238 = vmatpush.msra.mxu0 %v79
  %239 = vmatpush.msra.mxu0 %v78
  %240 = vmatpush.msra.mxu0 %v77
  %241 = vmatpush.msra.mxu0 %v76
  %242 = vmatpush.msra.mxu0 %v75
  %243 = vmatpush.msra.mxu0 %v74
  %244 = vmatpush.msra.mxu0 %v73
  %245 = vmatpush.msra.mxu0 %v72
  %246 = vmatpush.msra.mxu0 %v71
  %247 = vmatmul.f32.gmra.mxu0 %v17
  %v248 = vpop.f32.mrf.mxu0
  %v249 = vadd.f32 %v229, %v248
  %250 = vdwg.mxu0
  %251 = vmatpush.msra.mxu0 %v102
  %252 = vmatpush.msra.mxu0 %v101
  %253 = vmatpush.msra.mxu0 %v100
  %254 = vmatpush.msra.mxu0 %v99
  %255 = vmatpush.msra.mxu0 %v98
  %256 = vmatpush.msra.mxu0 %v97
  %257 = vmatpush.msra.mxu0 %v96
  %258 = vmatpush.msra.mxu0 %v95
  %259 = vmatpush.msra.mxu0 %v94
  %260 = vmatpush.msra.mxu0 %v93
  %261 = vmatpush.msra.mxu0 %v92
  %262 = vmatpush.msra.mxu0 %v91
  %263 = vmatpush.msra.mxu0 %v90
  %264 = vmatpush.msra.mxu0 %v89
  %265 = vmatpush.msra.mxu0 %v88
  %266 = vmatpush.msra.mxu0 %v87
  %267 = vmatmul.f32.gmra.mxu0 %v18
  %v268 = vpop.f32.mrf.mxu0
  %v269 = vadd.f32 %v249, %v268
  %270 = vdwg.mxu0
  %271 = vmatpush.msra.mxu0 %v118
  %272 = vmatpush.msra.mxu0 %v117
  %273 = vmatpush.msra.mxu0 %v116
  %274 = vmatpush.msra.mxu0 %v115
  %275 = vmatpush.msra.mxu0 %v114
  %276 = vmatpush.msra.mxu0 %v113
  %277 = vmatpush.msra.mxu0 %v112
  %278 = vmatpush.msra.mxu0 %v111
  %279 = vmatpush.msra.mxu0 %v110
  %280 = vmatpush.msra.mxu0 %v109
  %281 = vmatpush.msra.mxu0 %v108
  %282 = vmatpush.msra.mxu0 %v107
  %283 = vmatpush.msra.mxu0 %v106
  %284 = vmatpush.msra.mxu0 %v105
  %285 = vmatpush.msra.mxu0 %v104
  %286 = vmatpush.msra.mxu0 %v103
  %287 = vmatmul.f32.gmra.mxu0 %v19
  %v288 = vpop.f32.mrf.mxu0
  %v289 = vadd.f32 %v269, %v288
  %290 = vdwg.mxu0
  %291 = vmatpush.msra.mxu0 %v134
  %292 = vmatpush.msra.mxu0 %v133
  %293 = vmatpush.msra.mxu0 %v132
  %294 = vmatpush.msra.mxu0 %v131
  %295 = vmatpush.msra.mxu0 %v130
  %296 = vmatpush.msra.mxu0 %v129
  %297 = vmatpush.msra.mxu0 %v128
  %298 = vmatpush.msra.mxu0 %v127
  %299 = vmatpush.msra.mxu0 %v126
  %300 = vmatpush.msra.mxu0 %v125
  %301 = vmatpush.msra.mxu0 %v124
  %302 = vmatpush.msra.mxu0 %v123
  %303 = vmatpush.msra.mxu0 %v122
  %304 = vmatpush.msra.mxu0 %v121
  %305 = vmatpush.msra.mxu0 %v120
  %306 = vmatpush.msra.mxu0 %v119
  %307 = vmatmul.f32.gmra.mxu0 %v20
  %v308 = vpop.f32.mrf.mxu0
  %v309 = vadd.f32 %v289, %v308
  %310 = vdwg.mxu0
  %311 = vmatpush.msra.mxu0 %v150
  %312 = vmatpush.msra.mxu0 %v149
  %313 = vmatpush.msra.mxu0 %v148
  %314 = vmatpush.msra.mxu0 %v147
  %315 = vmatpush.msra.mxu0 %v146
  %316 = vmatpush.msra.mxu0 %v145
  %317 = vmatpush.msra.mxu0 %v144
  %318 = vmatpush.msra.mxu0 %v143
  %319 = vmatpush.msra.mxu0 %v142
  %320 = vmatpush.msra.mxu0 %v141
  %321 = vmatpush.msra.mxu0 %v140
  %322 = vmatpush.msra.mxu0 %v139
  %323 = vmatpush.msra.mxu0 %v138
  %324 = vmatpush.msra.mxu0 %v137
  %325 = vmatpush.msra.mxu0 %v136
  %326 = vmatpush.msra.mxu0 %v135
  %327 = vmatmul.f32.gmra.mxu0 %v21
  %v328 = vpop.f32.mrf.mxu0
  %v329 = vadd.f32 %v309, %v328
  %330 = vdwg.mxu0
  %331 = vmatpush.msra.mxu0 %v166
  %332 = vmatpush.msra.mxu0 %v165
  %333 = vmatpush.msra.mxu0 %v164
  %334 = vmatpush.msra.mxu0 %v163
  %335 = vmatpush.msra.mxu0 %v162
  %336 = vmatpush.msra.mxu0 %v161
  %337 = vmatpush.msra.mxu0 %v160
  %338 = vmatpush.msra.mxu0 %v159
  %339 = vmatpush.msra.mxu0 %v158
  %340 = vmatpush.msra.mxu0 %v157
  %341 = vmatpush.msra.mxu0 %v156
  %342 = vmatpush.msra.mxu0 %v155
  %343 = vmatpush.msra.mxu0 %v154
  %344 = vmatpush.msra.mxu0 %v153
  %345 = vmatpush.msra.mxu0 %v152
  %346 = vmatpush.msra.mxu0 %v151
  %347 = vmatmul.f32.gmra.mxu0 %v22
  %v348 = vpop.f32.mrf.mxu0
  %v349 = vadd.f32 %v329, %v348
  %350 = vdwg.mxu0
  %351 = vst [vmem:[%s3] sm:$0xff] %v349
  // Predicated region
  $region14: #{generator_forward.25} parent=0 // pred_check
    _
  $region15: #{generator_forward.25} parent=0 // pred_check_branch
    %353 = sbr.rel (0) target = $region17
  $region16: #{generator_forward.25} parent=0 // pred_region
    _
  $region17: #{generator_forward.25} parent=0 // pred_fallthru
    _
  // Predicated region
  $region18: #{generator_forward.25} parent=0 // pred_check
    _
  $region19: #{generator_forward.25} parent=0 // pred_check_branch
    %355 = sbr.rel (0) target = $region21
  $region20: #{generator_forward.25} parent=0 // pred_region
    _
  $region21: #{generator_forward.25} parent=0 // pred_fallthru
    _

// kernel: generator_forward.33
$region0: #{generator_forward.33}
  #allocation0 [shape = 'u32[]', space=smem, size = 0x4, offset = 0x4, fixed_abs, tag = 'smem constant byte address 0x4 - core index']
  #allocation1 [shape = 'u32[72,128]{1,0:T(1,128)}', space=vmem, size = 0x9000, scoped, tag = 'internal scratch']
  %s0 = inlined_call_operand.vmem [shape: f32[8,512], index: 0, kind: input, shape index: {}]
  %s1 = inlined_call_operand.vmem [shape: f32[512,256], index: 1, kind: input, shape index: {}]
  %s2 = inlined_call_operand.vmem [shape: f32[1,256], index: 2, kind: input, shape index: {}]
  %s3 = inlined_call_operand.vmem [shape: f32[8,256], index: 3, kind: output, shape index: {}]
  %s4 = sld [smem:[#allocation0]]
  $region22: #{generator_forward.33} parent=0
    _
  %s6 = ssub.s32 1, %s4
  %s7 = scalar_select 0, %s6, %s4
  // Predicated region
  $region2: #{generator_forward.33} parent=0 // pred_check
    _
  $region3: #{generator_forward.33} parent=0 // pred_check_branch
    %9 = sbr.rel (0) target = $region5
  $region4: #{generator_forward.33} parent=0 // pred_region
    _
  $region5: #{generator_forward.33} parent=0 // pred_fallthru
    _
  // Predicated region
  $region6: #{generator_forward.33} parent=0 // pred_check
    _
  $region7: #{generator_forward.33} parent=0 // pred_check_branch
    %11 = sbr.rel (0) target = $region9
  $region8: #{generator_forward.33} parent=0 // pred_region
    _
  $region9: #{generator_forward.33} parent=0 // pred_fallthru
    _
  // Predicated region
  $region10: #{generator_forward.33} parent=0 // pred_check
    _
  $region11: #{generator_forward.33} parent=0 // pred_check_branch
    %13 = sbr.rel (0) target = $region13
  $region12: #{generator_forward.33} parent=0 // pred_region
    _
  $region13: #{generator_forward.33} parent=0 // pred_fallthru
    _
  %v14 = vld [vmem:[%s0] sm:$0xff]
  %v15 = vld [vmem:[%s0 + $0x8] sm:$0xff]
  %v16 = vld [vmem:[%s0 + $0x10] sm:$0xff]
  %v17 = vld [vmem:[%s0 + $0x18] sm:$0xff]
  %v18 = vld [vmem:[%s1] sm:$0xff]
  %v19 = vld [vmem:[%s1 + $0x8] sm:$0xff]
  %v20 = vld [vmem:[%s1 + $0x10] sm:$0xff]
  %v21 = vld [vmem:[%s1 + $0x18] sm:$0xff]
  %v22 = vld [vmem:[%s1 + $0x20] sm:$0xff]
  %v23 = vld [vmem:[%s1 + $0x28] sm:$0xff]
  %v24 = vld [vmem:[%s1 + $0x30] sm:$0xff]
  %v25 = vld [vmem:[%s1 + $0x38] sm:$0xff]
  %v26 = vld [vmem:[%s1 + $0x40] sm:$0xff]
  %v27 = vld [vmem:[%s1 + $0x48] sm:$0xff]
  %v28 = vld [vmem:[%s1 + $0x50] sm:$0xff]
  %v29 = vld [vmem:[%s1 + $0x58] sm:$0xff]
  %v30 = vld [vmem:[%s1 + $0x60] sm:$0xff]
  %v31 = vld [vmem:[%s1 + $0x68] sm:$0xff]
  %v32 = vld [vmem:[%s1 + $0x70] sm:$0xff]
  %v33 = vld [vmem:[%s1 + $0x78] sm:$0xff]
  %v34 = vld [vmem:[%s1 + $0x80] sm:$0xff]
  %v35 = vld [vmem:[%s1 + $0x88] sm:$0xff]
  %v36 = vld [vmem:[%s1 + $0x90] sm:$0xff]
  %v37 = vld [vmem:[%s1 + $0x98] sm:$0xff]
  %v38 = vld [vmem:[%s1 + $0xa0] sm:$0xff]
  %v39 = vld [vmem:[%s1 + $0xa8] sm:$0xff]
  %v40 = vld [vmem:[%s1 + $0xb0] sm:$0xff]
  %v41 = vld [vmem:[%s1 + $0xb8] sm:$0xff]
  %v42 = vld [vmem:[%s1 + $0xc0] sm:$0xff]
  %v43 = vld [vmem:[%s1 + $0xc8] sm:$0xff]
  %v44 = vld [vmem:[%s1 + $0xd0] sm:$0xff]
  %v45 = vld [vmem:[%s1 + $0xd8] sm:$0xff]
  %v46 = vld [vmem:[%s1 + $0xe0] sm:$0xff]
  %v47 = vld [vmem:[%s1 + $0xe8] sm:$0xff]
  %v48 = vld [vmem:[%s1 + $0xf0] sm:$0xff]
  %v49 = vld [vmem:[%s1 + $0xf8] sm:$0xff]
  %v50 = vld [vmem:[%s1 + $0x100] sm:$0xff]
  %v51 = vld [vmem:[%s1 + $0x108] sm:$0xff]
  %v52 = vld [vmem:[%s1 + $0x110] sm:$0xff]
  %v53 = vld [vmem:[%s1 + $0x118] sm:$0xff]
  %v54 = vld [vmem:[%s1 + $0x120] sm:$0xff]
  %v55 = vld [vmem:[%s1 + $0x128] sm:$0xff]
  %v56 = vld [vmem:[%s1 + $0x130] sm:$0xff]
  %v57 = vld [vmem:[%s1 + $0x138] sm:$0xff]
  %v58 = vld [vmem:[%s1 + $0x140] sm:$0xff]
  %v59 = vld [vmem:[%s1 + $0x148] sm:$0xff]
  %v60 = vld [vmem:[%s1 + $0x150] sm:$0xff]
  %v61 = vld [vmem:[%s1 + $0x158] sm:$0xff]
  %v62 = vld [vmem:[%s1 + $0x160] sm:$0xff]
  %v63 = vld [vmem:[%s1 + $0x168] sm:$0xff]
  %v64 = vld [vmem:[%s1 + $0x170] sm:$0xff]
  %v65 = vld [vmem:[%s1 + $0x178] sm:$0xff]
  %v66 = vld [vmem:[%s1 + $0x180] sm:$0xff]
  %v67 = vld [vmem:[%s1 + $0x188] sm:$0xff]
  %v68 = vld [vmem:[%s1 + $0x190] sm:$0xff]
  %v69 = vld [vmem:[%s1 + $0x198] sm:$0xff]
  %v70 = vld [vmem:[%s1 + $0x1a0] sm:$0xff]
  %v71 = vld [vmem:[%s1 + $0x1a8] sm:$0xff]
  %v72 = vld [vmem:[%s1 + $0x1b0] sm:$0xff]
  %v73 = vld [vmem:[%s1 + $0x1b8] sm:$0xff]
  %v74 = vld [vmem:[%s1 + $0x1c0] sm:$0xff]
  %v75 = vld [vmem:[%s1 + $0x1c8] sm:$0xff]
  %v76 = vld [vmem:[%s1 + $0x1d0] sm:$0xff]
  %v77 = vld [vmem:[%s1 + $0x1d8] sm:$0xff]
  %v78 = vld [vmem:[%s1 + $0x1e0] sm:$0xff]
  %v79 = vld [vmem:[%s1 + $0x1e8] sm:$0xff]
  %v80 = vld [vmem:[%s1 + $0x1f0] sm:$0xff]
  %v81 = vld [vmem:[%s1 + $0x1f8] sm:$0xff]
  %v82 = vld [vmem:[%s1 + $0x200] sm:$0xff]
  %v83 = vld [vmem:[%s1 + $0x208] sm:$0xff]
  %v84 = vld [vmem:[%s1 + $0x210] sm:$0xff]
  %v85 = vld [vmem:[%s1 + $0x218] sm:$0xff]
  %v86 = vld [vmem:[%s1 + $0x220] sm:$0xff]
  %v87 = vld [vmem:[%s1 + $0x228] sm:$0xff]
  %v88 = vld [vmem:[%s1 + $0x230] sm:$0xff]
  %v89 = vld [vmem:[%s1 + $0x238] sm:$0xff]
  %v90 = vld [vmem:[%s1 + $0x240] sm:$0xff]
  %v91 = vld [vmem:[%s1 + $0x248] sm:$0xff]
  %v92 = vld [vmem:[%s1 + $0x250] sm:$0xff]
  %v93 = vld [vmem:[%s1 + $0x258] sm:$0xff]
  %v94 = vld [vmem:[%s1 + $0x260] sm:$0xff]
  %v95 = vld [vmem:[%s1 + $0x268] sm:$0xff]
  %v96 = vld [vmem:[%s1 + $0x270] sm:$0xff]
  %v97 = vld [vmem:[%s1 + $0x278] sm:$0xff]
  %v98 = vld [vmem:[%s1 + $0x280] sm:$0xff]
  %v99 = vld [vmem:[%s1 + $0x288] sm:$0xff]
  %v100 = vld [vmem:[%s1 + $0x290] sm:$0xff]
  %v101 = vld [vmem:[%s1 + $0x298] sm:$0xff]
  %v102 = vld [vmem:[%s1 + $0x2a0] sm:$0xff]
  %v103 = vld [vmem:[%s1 + $0x2a8] sm:$0xff]
  %v104 = vld [vmem:[%s1 + $0x2b0] sm:$0xff]
  %v105 = vld [vmem:[%s1 + $0x2b8] sm:$0xff]
  %v106 = vld [vmem:[%s1 + $0x2c0] sm:$0xff]
  %v107 = vld [vmem:[%s1 + $0x2c8] sm:$0xff]
  %v108 = vld [vmem:[%s1 + $0x2d0] sm:$0xff]
  %v109 = vld [vmem:[%s1 + $0x2d8] sm:$0xff]
  %v110 = vld [vmem:[%s1 + $0x2e0] sm:$0xff]
  %v111 = vld [vmem:[%s1 + $0x2e8] sm:$0xff]
  %v112 = vld [vmem:[%s1 + $0x2f0] sm:$0xff]
  %v113 = vld [vmem:[%s1 + $0x2f8] sm:$0xff]
  %v114 = vld [vmem:[%s1 + $0x300] sm:$0xff]
  %v115 = vld [vmem:[%s1 + $0x308] sm:$0xff]
  %v116 = vld [vmem:[%s1 + $0x310] sm:$0xff]
  %v117 = vld [vmem:[%s1 + $0x318] sm:$0xff]
  %v118 = vld [vmem:[%s1 + $0x320] sm:$0xff]
  %v119 = vld [vmem:[%s1 + $0x328] sm:$0xff]
  %v120 = vld [vmem:[%s1 + $0x330] sm:$0xff]
  %v121 = vld [vmem:[%s1 + $0x338] sm:$0xff]
  %v122 = vld [vmem:[%s1 + $0x340] sm:$0xff]
  %v123 = vld [vmem:[%s1 + $0x348] sm:$0xff]
  %v124 = vld [vmem:[%s1 + $0x350] sm:$0xff]
  %v125 = vld [vmem:[%s1 + $0x358] sm:$0xff]
  %v126 = vld [vmem:[%s1 + $0x360] sm:$0xff]
  %v127 = vld [vmem:[%s1 + $0x368] sm:$0xff]
  %v128 = vld [vmem:[%s1 + $0x370] sm:$0xff]
  %v129 = vld [vmem:[%s1 + $0x378] sm:$0xff]
  %v130 = vld [vmem:[%s1 + $0x380] sm:$0xff]
  %v131 = vld [vmem:[%s1 + $0x388] sm:$0xff]
  %v132 = vld [vmem:[%s1 + $0x390] sm:$0xff]
  %v133 = vld [vmem:[%s1 + $0x398] sm:$0xff]
  %v134 = vld [vmem:[%s1 + $0x3a0] sm:$0xff]
  %v135 = vld [vmem:[%s1 + $0x3a8] sm:$0xff]
  %v136 = vld [vmem:[%s1 + $0x3b0] sm:$0xff]
  %v137 = vld [vmem:[%s1 + $0x3b8] sm:$0xff]
  %v138 = vld [vmem:[%s1 + $0x3c0] sm:$0xff]
  %v139 = vld [vmem:[%s1 + $0x3c8] sm:$0xff]
  %v140 = vld [vmem:[%s1 + $0x3d0] sm:$0xff]
  %v141 = vld [vmem:[%s1 + $0x3d8] sm:$0xff]
  %v142 = vld [vmem:[%s1 + $0x3e0] sm:$0xff]
  %v143 = vld [vmem:[%s1 + $0x3e8] sm:$0xff]
  %v144 = vld [vmem:[%s1 + $0x3f0] sm:$0xff]
  %v145 = vld [vmem:[%s1 + $0x3f8] sm:$0xff]
  %v146 = vld [vmem:[%s2] sm:$0x3]
  %v148 = vperm.slane %v146, 0
  %v149 = vperm.slane %v146, 1
  %152 = vmatpush.msra.mxu0 %v48
  %153 = vmatpush.msra.mxu0 %v46
  %154 = vmatpush.msra.mxu0 %v44
  %155 = vmatpush.msra.mxu0 %v42
  %156 = vmatpush.msra.mxu0 %v40
  %157 = vmatpush.msra.mxu0 %v38
  %158 = vmatpush.msra.mxu0 %v36
  %159 = vmatpush.msra.mxu0 %v34
  %160 = vmatpush.msra.mxu0 %v32
  %161 = vmatpush.msra.mxu0 %v30
  %162 = vmatpush.msra.mxu0 %v28
  %163 = vmatpush.msra.mxu0 %v26
  %164 = vmatpush.msra.mxu0 %v24
  %165 = vmatpush.msra.mxu0 %v22
  %166 = vmatpush.msra.mxu0 %v20
  %167 = vmatpush.msra.mxu0 %v18
  %168 = vmatmul.f32.gmra.mxu0 %v14
  %v169 = vpop.f32.mrf.mxu0
  %v170 = vadd.f32 %v148, %v169
  %171 = vdwg.mxu0
  %172 = vmatpush.msra.mxu0 %v80
  %173 = vmatpush.msra.mxu0 %v78
  %174 = vmatpush.msra.mxu0 %v76
  %175 = vmatpush.msra.mxu0 %v74
  %176 = vmatpush.msra.mxu0 %v72
  %177 = vmatpush.msra.mxu0 %v70
  %178 = vmatpush.msra.mxu0 %v68
  %179 = vmatpush.msra.mxu0 %v66
  %180 = vmatpush.msra.mxu0 %v64
  %181 = vmatpush.msra.mxu0 %v62
  %182 = vmatpush.msra.mxu0 %v60
  %183 = vmatpush.msra.mxu0 %v58
  %184 = vmatpush.msra.mxu0 %v56
  %185 = vmatpush.msra.mxu0 %v54
  %186 = vmatpush.msra.mxu0 %v52
  %187 = vmatpush.msra.mxu0 %v50
  %188 = vmatmul.f32.gmra.mxu0 %v15
  %v189 = vpop.f32.mrf.mxu0
  %v190 = vadd.f32 %v170, %v189
  %191 = vdwg.mxu0
  %192 = vmatpush.msra.mxu0 %v112
  %193 = vmatpush.msra.mxu0 %v110
  %194 = vmatpush.msra.mxu0 %v108
  %195 = vmatpush.msra.mxu0 %v106
  %196 = vmatpush.msra.mxu0 %v104
  %197 = vmatpush.msra.mxu0 %v102
  %198 = vmatpush.msra.mxu0 %v100
  %199 = vmatpush.msra.mxu0 %v98
  %200 = vmatpush.msra.mxu0 %v96
  %201 = vmatpush.msra.mxu0 %v94
  %202 = vmatpush.msra.mxu0 %v92
  %203 = vmatpush.msra.mxu0 %v90
  %204 = vmatpush.msra.mxu0 %v88
  %205 = vmatpush.msra.mxu0 %v86
  %206 = vmatpush.msra.mxu0 %v84
  %207 = vmatpush.msra.mxu0 %v82
  %208 = vmatmul.f32.gmra.mxu0 %v16
  %v209 = vpop.f32.mrf.mxu0
  %v210 = vadd.f32 %v190, %v209
  %211 = vdwg.mxu0
  %212 = vmatpush.msra.mxu0 %v144
  %213 = vmatpush.msra.mxu0 %v142
  %214 = vmatpush.msra.mxu0 %v140
  %215 = vmatpush.msra.mxu0 %v138
  %216 = vmatpush.msra.mxu0 %v136
  %217 = vmatpush.msra.mxu0 %v134
  %218 = vmatpush.msra.mxu0 %v132
  %219 = vmatpush.msra.mxu0 %v130
  %220 = vmatpush.msra.mxu0 %v128
  %221 = vmatpush.msra.mxu0 %v126
  %222 = vmatpush.msra.mxu0 %v124
  %223 = vmatpush.msra.mxu0 %v122
  %224 = vmatpush.msra.mxu0 %v120
  %225 = vmatpush.msra.mxu0 %v118
  %226 = vmatpush.msra.mxu0 %v116
  %227 = vmatpush.msra.mxu0 %v114
  %228 = vmatmul.f32.gmra.mxu0 %v17
  %v229 = vpop.f32.mrf.mxu0
  %v230 = vadd.f32 %v210, %v229
  %231 = vdwg.mxu0
  %232 = vmatpush.msra.mxu0 %v49
  %233 = vmatpush.msra.mxu0 %v47
  %234 = vmatpush.msra.mxu0 %v45
  %235 = vmatpush.msra.mxu0 %v43
  %236 = vmatpush.msra.mxu0 %v41
  %237 = vmatpush.msra.mxu0 %v39
  %238 = vmatpush.msra.mxu0 %v37
  %239 = vmatpush.msra.mxu0 %v35
  %240 = vmatpush.msra.mxu0 %v33
  %241 = vmatpush.msra.mxu0 %v31
  %242 = vmatpush.msra.mxu0 %v29
  %243 = vmatpush.msra.mxu0 %v27
  %244 = vmatpush.msra.mxu0 %v25
  %245 = vmatpush.msra.mxu0 %v23
  %246 = vmatpush.msra.mxu0 %v21
  %247 = vmatpush.msra.mxu0 %v19
  %248 = vmatmul.f32.gmra.mxu0 %v14
  %v249 = vpop.f32.mrf.mxu0
  %v250 = vadd.f32 %v149, %v249
  %251 = vdwg.mxu0
  %252 = vmatpush.msra.mxu0 %v81
  %253 = vmatpush.msra.mxu0 %v79
  %254 = vmatpush.msra.mxu0 %v77
  %255 = vmatpush.msra.mxu0 %v75
  %256 = vmatpush.msra.mxu0 %v73
  %257 = vmatpush.msra.mxu0 %v71
  %258 = vmatpush.msra.mxu0 %v69
  %259 = vmatpush.msra.mxu0 %v67
  %260 = vmatpush.msra.mxu0 %v65
  %261 = vmatpush.msra.mxu0 %v63
  %262 = vmatpush.msra.mxu0 %v61
  %263 = vmatpush.msra.mxu0 %v59
  %264 = vmatpush.msra.mxu0 %v57
  %265 = vmatpush.msra.mxu0 %v55
  %266 = vmatpush.msra.mxu0 %v53
  %267 = vmatpush.msra.mxu0 %v51
  %268 = vmatmul.f32.gmra.mxu0 %v15
  %v269 = vpop.f32.mrf.mxu0
  %v270 = vadd.f32 %v250, %v269
  %271 = vdwg.mxu0
  %272 = vmatpush.msra.mxu0 %v113
  %273 = vmatpush.msra.mxu0 %v111
  %274 = vmatpush.msra.mxu0 %v109
  %275 = vmatpush.msra.mxu0 %v107
  %276 = vmatpush.msra.mxu0 %v105
  %277 = vmatpush.msra.mxu0 %v103
  %278 = vmatpush.msra.mxu0 %v101
  %279 = vmatpush.msra.mxu0 %v99
  %280 = vmatpush.msra.mxu0 %v97
  %281 = vmatpush.msra.mxu0 %v95
  %282 = vmatpush.msra.mxu0 %v93
  %283 = vmatpush.msra.mxu0 %v91
  %284 = vmatpush.msra.mxu0 %v89
  %285 = vmatpush.msra.mxu0 %v87
  %286 = vmatpush.msra.mxu0 %v85
  %287 = vmatpush.msra.mxu0 %v83
  %288 = vmatmul.f32.gmra.mxu0 %v16
  %v289 = vpop.f32.mrf.mxu0
  %v290 = vadd.f32 %v270, %v289
  %291 = vdwg.mxu0
  %292 = vmatpush.msra.mxu0 %v145
  %293 = vmatpush.msra.mxu0 %v143
  %294 = vmatpush.msra.mxu0 %v141
  %295 = vmatpush.msra.mxu0 %v139
  %296 = vmatpush.msra.mxu0 %v137
  %297 = vmatpush.msra.mxu0 %v135
  %298 = vmatpush.msra.mxu0 %v133
  %299 = vmatpush.msra.mxu0 %v131
  %300 = vmatpush.msra.mxu0 %v129
  %301 = vmatpush.msra.mxu0 %v127
  %302 = vmatpush.msra.mxu0 %v125
  %303 = vmatpush.msra.mxu0 %v123
  %304 = vmatpush.msra.mxu0 %v121
  %305 = vmatpush.msra.mxu0 %v119
  %306 = vmatpush.msra.mxu0 %v117
  %307 = vmatpush.msra.mxu0 %v115
  %308 = vmatmul.f32.gmra.mxu0 %v17
  %v309 = vpop.f32.mrf.mxu0
  %v310 = vadd.f32 %v290, %v309
  %311 = vdwg.mxu0
  %312 = vst [vmem:[%s3] sm:$0xff] %v230
  %313 = vst [vmem:[%s3 + $0x8] sm:$0xff] %v310
  // Predicated region
  $region14: #{generator_forward.33} parent=0 // pred_check
    _
  $region15: #{generator_forward.33} parent=0 // pred_check_branch
    %315 = sbr.rel (0) target = $region17
  $region16: #{generator_forward.33} parent=0 // pred_region
    _
  $region17: #{generator_forward.33} parent=0 // pred_fallthru
    _
  // Predicated region
  $region18: #{generator_forward.33} parent=0 // pred_check
    _
  $region19: #{generator_forward.33} parent=0 // pred_check_branch
    %317 = sbr.rel (0) target = $region21
  $region20: #{generator_forward.33} parent=0 // pred_region
    _
  $region21: #{generator_forward.33} parent=0 // pred_fallthru
    _

// kernel: generator_forward.34
$region0: #{generator_forward.34}
  #allocation0 [shape = 'u32[]', space=smem, size = 0x4, offset = 0x4, fixed_abs, tag = 'smem constant byte address 0x4 - core index']
  #allocation1 [shape = 'u32[72,128]{1,0:T(1,128)}', space=vmem, size = 0x9000, scoped, tag = 'internal scratch']
  %s0 = inlined_call_operand.vmem [shape: f32[2,16,64], index: 0, kind: input, shape index: {}]
  %s1 = inlined_call_operand.vmem [shape: f32[2,16,64], index: 1, kind: output, shape index: {}]
  %s2 = sld [smem:[#allocation0]]
  $region37: #{generator_forward.34} parent=0
    _
  %s4 = ssub.s32 1, %s2
  %s5 = scalar_select 0, %s4, %s2
  loop: start=0, step=1, limit=4
  $region2: #{generator_forward.34} parent=0 // loop_pre_header
    _
  $region3: #{generator_forward.34} parent=0 // loop_header
    %s7 = sphi 0, %s11
    %p8 = scmp.ge.s32.totalorder %s7, 4
    %s17 = sphi 0, %s19
    %s20 = sphi 0, %s17
    %s21 = sphi 0, %s20
    %s37 = sphi 0, %s21
    %s43 = sphi 0, %s45
    %s46 = sphi 0, %s43
    %s47 = sphi 0, %s46
    %s63 = sphi 0, %s47
  $region4: #{generator_forward.34} parent=0 // loop_header_branch
    %10 = sbr.rel (%p8) target = $region8
  $region5: #{generator_forward.34} parent=0 // loop_body
    %s12 = ssub.s32 %s7, 1
    %s13 = ssub.s32 %s7, 2
    %s14 = sadd.s32 %s7, 1
    %s15 = ssub.s32 %s7, %s14
    %p16 = scmp.eq.s32.totalorder %s15, 0
    %s18 = sadd.s32 %s17, 1
    %s19 = scalar_select %p16, %s17, %s18
    %p22 = pneg %p16
    %p23 = scmp.eq.s32.totalorder %s7, 1
    %p24 = por %p22, %p23
    %p25 = scmp.ne.s32.totalorder %s17, %s20
    %p26 = scmp.eq.s32.totalorder %s7, 0
    %p27 = por %p25, %p26
    %p28 = scmp.ne.s32.totalorder %s17, %s20
    %p29 = scmp.eq.s32.totalorder %s12, 1
    %p30 = por %p28, %p29
    %p31 = scmp.ne.s32.totalorder %s20, %s21
    %p32 = scmp.eq.s32.totalorder %s12, 0
    %p33 = por %p31, %p32
    %p34 = scmp.ne.s32.totalorder %s20, %s21
    %p35 = scmp.eq.s32.totalorder %s13, 1
    %p36 = por %p34, %p35
    %p38 = scmp.ne.s32.totalorder %s21, %s37
    %p39 = scmp.eq.s32.totalorder %s13, 0
    %p40 = por %p38, %p39
    %s41 = ssub.s32 %s7, %s14
    %p42 = scmp.eq.s32.totalorder %s41, 0
    %s44 = sadd.s32 %s43, 1
    %s45 = scalar_select %p42, %s43, %s44
    %p48 = pneg %p42
    %p49 = scmp.eq.s32.totalorder %s7, 1
    %p50 = por %p48, %p49
    %p51 = scmp.ne.s32.totalorder %s43, %s46
    %p52 = scmp.eq.s32.totalorder %s7, 0
    %p53 = por %p51, %p52
    %p54 = scmp.ne.s32.totalorder %s43, %s46
    %p55 = scmp.eq.s32.totalorder %s12, 1
    %p56 = por %p54, %p55
    %p57 = scmp.ne.s32.totalorder %s46, %s47
    %p58 = scmp.eq.s32.totalorder %s12, 0
    %p59 = por %p57, %p58
    %p60 = scmp.ne.s32.totalorder %s46, %s47
    %p61 = scmp.eq.s32.totalorder %s13, 1
    %p62 = por %p60, %p61
    %p64 = scmp.ne.s32.totalorder %s47, %s63
    %p65 = scmp.eq.s32.totalorder %s13, 0
    %p66 = por %p64, %p65
    %p67 = scmp.le.s32.totalorder 1, %s7
    %p68 = scmp.lt.s32.totalorder %s7, 3
    %p69 = pnand %p67, %p68
    %p70 = pneg %p69
    // Predicated region
    $region9: #{generator_forward.34} parent=5 // pred_check
      _
    $region10: #{generator_forward.34} parent=5 // pred_check_branch
      %72 = sbr.rel (%p69) target = $region12
    $region11: #{generator_forward.34} parent=5 // pred_region
      %s73 = ssub.s32 %s7, 1
    $region12: #{generator_forward.34} parent=5 // pred_fallthru
      _
    %p74 = scmp.lt.s32.totalorder %s7, 2
    // Predicated region
    $region13: #{generator_forward.34} parent=5 // pred_check
      %p75 = pneg %p74
    $region14: #{generator_forward.34} parent=5 // pred_check_branch
      %77 = sbr.rel (%p75) target = $region16
    $region15: #{generator_forward.34} parent=5 // pred_region
      // Predicated region
      $region17: #{generator_forward.34} parent=15 // pred_check
        %p78 = pneg %p27
      $region18: #{generator_forward.34} parent=15 // pred_check_branch
        %80 = sbr.rel (%p78) target = $region20
      $region19: #{generator_forward.34} parent=15 // pred_region
        %p81 = scmp.lt.s32.totalorder %s7, 1
        %s82 = scalar_select %p81, %s7, 1
        %s83 = smul.addr %s82, 2
        %s84 = smul.addr %s83, 8
        %s85 = scalar_lea.vmem %s0, %s84
      $region20: #{generator_forward.34} parent=15 // pred_fallthru
        _
    $region16: #{generator_forward.34} parent=5 // pred_fallthru
      _
    %p86 = scmp.le.s32.totalorder 1, %s7
    %p87 = scmp.lt.s32.totalorder %s7, 3
    %p88 = pnand %p86, %p87
    %p89 = pneg %p88
    // Predicated region
    $region21: #{generator_forward.34} parent=5 // pred_check
      _
    $region22: #{generator_forward.34} parent=5 // pred_check_branch
      %91 = sbr.rel (%p88) target = $region24
    $region23: #{generator_forward.34} parent=5 // pred_region
      %s92 = ssub.s32 %s7, 1
      %p93 = scmp.lt.s32.totalorder %s12, 1
      %s94 = scalar_select %p93, %s12, 1
      %s95 = smul.addr %s94, 2
      %s96 = smul.addr %s95, 8
      %s97 = scalar_lea.vmem %s0, %s96
      %p98 = pneg %p33
      %p99 = pneg %p30
      %p100 = pneg %p59
      %p101 = pneg %p56
      %p102 = scmp.lt.s32.totalorder %s12, 1
      %s103 = scalar_select %p102, %s12, 1
      %s104 = smul.addr %s103, 2
      %s105 = smul.addr %s104, 8
      %s106 = scalar_lea.vmem %s1, %s105
      %p107 = scmp.lt.s32.totalorder %s12, 1
      %s108 = scalar_select %p107, %s12, 1
      %s109 = smul.addr %s108, 2
      %s110 = smul.addr %s109, 8
      %s111 = scalar_lea.vmem %s0, %s110
      %p112 = scmp.lt.s32.totalorder %s12, 1
      %s113 = scalar_select %p112, %s12, 1
      %s114 = smul.addr %s113, 2
      %s115 = smul.addr %s114, 8
      %s116 = scalar_lea.vmem %s1, %s115
      %v117 = vld [vmem:[%s111] sm:$0xff]
      %v118 = vld [vmem:[%s111 + $0x8] sm:$0xff]
      %vm119 = vcmask 523264
      %v120 = vsel %vm119, %v117, 0.0
      %v121 = vsel %vm119, %v118, 0.0
      %v122 = vadd.f32 %v120, %v121
      %v123 = vrot.slane %v122, 4
      %v124 = vadd.f32 %v122, %v123
      %v125 = vrot.slane %v124, 2
      %v126 = vadd.f32 %v124, %v125
      %v127 = vrot.slane %v126, 1
      %v128 = vadd.f32 %v126, %v127
      %v129 = vrcp.pop 16.0
      %v130 = vmul.f32 16.0, %v129
      %v131 = vsub.f32 1.0, %v130
      %v132 = vmul.f32 %v129, %v131
      %v133 = vadd.f32 %v129, %v132
      %vm134 = vweird.f32 %v129
      %v135 = vsel %vm134, %v129, %v133
      %v136 = vmul.f32 %v128, %v135
      %v137 = vsub.f32 %v117, %v136
      %v138 = vsub.f32 %v118, %v136
      %v139 = vmul.f32 %v137, %v137
      %v140 = vmul.f32 %v138, %v138
      %v141 = vsel %vm119, %v139, 0.0
      %v142 = vsel %vm119, %v140, 0.0
      %v143 = vadd.f32 %v141, %v142
      %v144 = vrot.slane %v143, 4
      %v145 = vadd.f32 %v143, %v144
      %v146 = vrot.slane %v145, 2
      %v147 = vadd.f32 %v145, %v146
      %v148 = vrot.slane %v147, 1
      %v149 = vadd.f32 %v147, %v148
      %v150 = vmul.f32 %v149, %v135
      %v151 = vadd.f32 %v150, 1e-05
      %v152 = vrsqrt.pop %v151
      %v153 = vmul.f32 %v152, %v151
      %v154 = vmul.f32 %v153, %v152
      %v155 = vmul.f32 0.5, %v154
      %v156 = vsub.f32 1.5, %v155
      %v157 = vmul.f32 %v152, %v156
      %vm158 = vweird.f32 %v151
      %vm159 = vweird.f32 %v152
      %vm160 = vmor %vm158, %vm159
      %v161 = vsel %vm160, %v152, %v157
      %v162 = vmul.f32 %v137, %v161
      %v163 = vmul.f32 %v138, %v161
      %v164 = vmax.f32 %v162, 0.0
      %v165 = vmax.f32 %v163, 0.0
      %166 = vst.msk [vmem:[%s116] sm:$0xff] %vm119, %v164
      %167 = vst.msk [vmem:[%s116 + $0x8] sm:$0xff] %vm119, %v165
      %p168 = scmp.lt.s32.totalorder %s12, 1
      %s169 = scalar_select %p168, %s12, 1
      %s170 = smul.addr %s169, 2
      %s171 = smul.addr %s170, 8
      %s172 = scalar_lea.vmem %s1, %s171
      // Predicated region
      $region25: #{generator_forward.34} parent=23 // pred_check
        %p173 = pneg %p56
      $region26: #{generator_forward.34} parent=23 // pred_check_branch
        %175 = sbr.rel (%p173) target = $region28
      $region27: #{generator_forward.34} parent=23 // pred_region
        _
      $region28: #{generator_forward.34} parent=23 // pred_fallthru
        _
    $region24: #{generator_forward.34} parent=5 // pred_fallthru
      _
    %p176 = scmp.le.s32.totalorder 2, %s7
    // Predicated region
    $region29: #{generator_forward.34} parent=5 // pred_check
      %p177 = pneg %p176
    $region30: #{generator_forward.34} parent=5 // pred_check_branch
      %179 = sbr.rel (%p177) target = $region32
    $region31: #{generator_forward.34} parent=5 // pred_region
      %s180 = ssub.s32 %s7, 2
      // Predicated region
      $region33: #{generator_forward.34} parent=31 // pred_check
        %p181 = pneg %p62
      $region34: #{generator_forward.34} parent=31 // pred_check_branch
        %183 = sbr.rel (%p181) target = $region36
      $region35: #{generator_forward.34} parent=31 // pred_region
        %p184 = scmp.lt.s32.totalorder %s13, 1
        %s185 = scalar_select %p184, %s13, 1
        %s186 = smul.addr %s185, 2
        %s187 = smul.addr %s186, 8
        %s188 = scalar_lea.vmem %s1, %s187
      $region36: #{generator_forward.34} parent=31 // pred_fallthru
        _
    $region32: #{generator_forward.34} parent=5 // pred_fallthru
      _
  $region6: #{generator_forward.34} parent=0 // loop_footer
    %s11 = sadd.s32 1, %s7
  $region7: #{generator_forward.34} parent=0 // loop_footer_branch
    %6 = sbr.rel target = $region3
  $region8: #{generator_forward.34} parent=0 // loop_exit
    _

// kernel: generator_forward.35
$region0: #{generator_forward.35}
  #allocation0 [shape = 'u32[]', space=smem, size = 0x4, offset = 0x4, fixed_abs, tag = 'smem constant byte address 0x4 - core index']
  #allocation1 [shape = 'u32[72,128]{1,0:T(1,128)}', space=vmem, size = 0x9000, scoped, tag = 'internal scratch']
  %s0 = inlined_call_operand.vmem [shape: f32[32,512], index: 0, kind: input, shape index: {}]
  %s1 = inlined_call_operand.vmem [shape: f32[512,128], index: 1, kind: input, shape index: {}]
  %s2 = inlined_call_operand.vmem [shape: f32[1,128], index: 2, kind: input, shape index: {}]
  %s3 = inlined_call_operand.vmem [shape: f32[32,128], index: 3, kind: output, shape index: {}]
  %s4 = sld [smem:[#allocation0]]
  $region22: #{generator_forward.35} parent=0
    _
  %s6 = ssub.s32 1, %s4
  %s7 = scalar_select 0, %s6, %s4
  // Predicated region
  $region2: #{generator_forward.35} parent=0 // pred_check
    _
  $region3: #{generator_forward.35} parent=0 // pred_check_branch
    %9 = sbr.rel (0) target = $region5
  $region4: #{generator_forward.35} parent=0 // pred_region
    _
  $region5: #{generator_forward.35} parent=0 // pred_fallthru
    _
  // Predicated region
  $region6: #{generator_forward.35} parent=0 // pred_check
    _
  $region7: #{generator_forward.35} parent=0 // pred_check_branch
    %11 = sbr.rel (0) target = $region9
  $region8: #{generator_forward.35} parent=0 // pred_region
    _
  $region9: #{generator_forward.35} parent=0 // pred_fallthru
    _
  // Predicated region
  $region10: #{generator_forward.35} parent=0 // pred_check
    _
  $region11: #{generator_forward.35} parent=0 // pred_check_branch
    %13 = sbr.rel (0) target = $region13
  $region12: #{generator_forward.35} parent=0 // pred_region
    _
  $region13: #{generator_forward.35} parent=0 // pred_fallthru
    _
  %v14 = vld [vmem:[%s0] sm:$0xff]
  %v15 = vld [vmem:[%s0 + $0x8] sm:$0xff]
  %v16 = vld [vmem:[%s0 + $0x10] sm:$0xff]
  %v17 = vld [vmem:[%s0 + $0x18] sm:$0xff]
  %v18 = vld [vmem:[%s0 + $0x20] sm:$0xff]
  %v19 = vld [vmem:[%s0 + $0x28] sm:$0xff]
  %v20 = vld [vmem:[%s0 + $0x30] sm:$0xff]
  %v21 = vld [vmem:[%s0 + $0x38] sm:$0xff]
  %v22 = vld [vmem:[%s0 + $0x40] sm:$0xff]
  %v23 = vld [vmem:[%s0 + $0x48] sm:$0xff]
  %v24 = vld [vmem:[%s0 + $0x50] sm:$0xff]
  %v25 = vld [vmem:[%s0 + $0x58] sm:$0xff]
  %v26 = vld [vmem:[%s0 + $0x60] sm:$0xff]
  %v27 = vld [vmem:[%s0 + $0x68] sm:$0xff]
  %v28 = vld [vmem:[%s0 + $0x70] sm:$0xff]
  %v29 = vld [vmem:[%s0 + $0x78] sm:$0xff]
  %v30 = vld [vmem:[%s1] sm:$0xff]
  %v31 = vld [vmem:[%s1 + $0x8] sm:$0xff]
  %v32 = vld [vmem:[%s1 + $0x10] sm:$0xff]
  %v33 = vld [vmem:[%s1 + $0x18] sm:$0xff]
  %v34 = vld [vmem:[%s1 + $0x20] sm:$0xff]
  %v35 = vld [vmem:[%s1 + $0x28] sm:$0xff]
  %v36 = vld [vmem:[%s1 + $0x30] sm:$0xff]
  %v37 = vld [vmem:[%s1 + $0x38] sm:$0xff]
  %v38 = vld [vmem:[%s1 + $0x40] sm:$0xff]
  %v39 = vld [vmem:[%s1 + $0x48] sm:$0xff]
  %v40 = vld [vmem:[%s1 + $0x50] sm:$0xff]
  %v41 = vld [vmem:[%s1 + $0x58] sm:$0xff]
  %v42 = vld [vmem:[%s1 + $0x60] sm:$0xff]
  %v43 = vld [vmem:[%s1 + $0x68] sm:$0xff]
  %v44 = vld [vmem:[%s1 + $0x70] sm:$0xff]
  %v45 = vld [vmem:[%s1 + $0x78] sm:$0xff]
  %v46 = vld [vmem:[%s1 + $0x80] sm:$0xff]
  %v47 = vld [vmem:[%s1 + $0x88] sm:$0xff]
  %v48 = vld [vmem:[%s1 + $0x90] sm:$0xff]
  %v49 = vld [vmem:[%s1 + $0x98] sm:$0xff]
  %v50 = vld [vmem:[%s1 + $0xa0] sm:$0xff]
  %v51 = vld [vmem:[%s1 + $0xa8] sm:$0xff]
  %v52 = vld [vmem:[%s1 + $0xb0] sm:$0xff]
  %v53 = vld [vmem:[%s1 + $0xb8] sm:$0xff]
  %v54 = vld [vmem:[%s1 + $0xc0] sm:$0xff]
  %v55 = vld [vmem:[%s1 + $0xc8] sm:$0xff]
  %v56 = vld [vmem:[%s1 + $0xd0] sm:$0xff]
  %v57 = vld [vmem:[%s1 + $0xd8] sm:$0xff]
  %v58 = vld [vmem:[%s1 + $0xe0] sm:$0xff]
  %v59 = vld [vmem:[%s1 + $0xe8] sm:$0xff]
  %v60 = vld [vmem:[%s1 + $0xf0] sm:$0xff]
  %v61 = vld [vmem:[%s1 + $0xf8] sm:$0xff]
  %v62 = vld [vmem:[%s1 + $0x100] sm:$0xff]
  %v63 = vld [vmem:[%s1 + $0x108] sm:$0xff]
  %v64 = vld [vmem:[%s1 + $0x110] sm:$0xff]
  %v65 = vld [vmem:[%s1 + $0x118] sm:$0xff]
  %v66 = vld [vmem:[%s1 + $0x120] sm:$0xff]
  %v67 = vld [vmem:[%s1 + $0x128] sm:$0xff]
  %v68 = vld [vmem:[%s1 + $0x130] sm:$0xff]
  %v69 = vld [vmem:[%s1 + $0x138] sm:$0xff]
  %v70 = vld [vmem:[%s1 + $0x140] sm:$0xff]
  %v71 = vld [vmem:[%s1 + $0x148] sm:$0xff]
  %v72 = vld [vmem:[%s1 + $0x150] sm:$0xff]
  %v73 = vld [vmem:[%s1 + $0x158] sm:$0xff]
  %v74 = vld [vmem:[%s1 + $0x160] sm:$0xff]
  %v75 = vld [vmem:[%s1 + $0x168] sm:$0xff]
  %v76 = vld [vmem:[%s1 + $0x170] sm:$0xff]
  %v77 = vld [vmem:[%s1 + $0x178] sm:$0xff]
  %v78 = vld [vmem:[%s1 + $0x180] sm:$0xff]
  %v79 = vld [vmem:[%s1 + $0x188] sm:$0xff]
  %v80 = vld [vmem:[%s1 + $0x190] sm:$0xff]
  %v81 = vld [vmem:[%s1 + $0x198] sm:$0xff]
  %v82 = vld [vmem:[%s1 + $0x1a0] sm:$0xff]
  %v83 = vld [vmem:[%s1 + $0x1a8] sm:$0xff]
  %v84 = vld [vmem:[%s1 + $0x1b0] sm:$0xff]
  %v85 = vld [vmem:[%s1 + $0x1b8] sm:$0xff]
  %v86 = vld [vmem:[%s1 + $0x1c0] sm:$0xff]
  %v87 = vld [vmem:[%s1 + $0x1c8] sm:$0xff]
  %v88 = vld [vmem:[%s1 + $0x1d0] sm:$0xff]
  %v89 = vld [vmem:[%s1 + $0x1d8] sm:$0xff]
  %v90 = vld [vmem:[%s1 + $0x1e0] sm:$0xff]
  %v91 = vld [vmem:[%s1 + $0x1e8] sm:$0xff]
  %v92 = vld [vmem:[%s1 + $0x1f0] sm:$0xff]
  %v93 = vld [vmem:[%s1 + $0x1f8] sm:$0xff]
  %v94 = vld [vmem:[%s2] sm:$0x1]
  %v96 = vperm.slane %v94, 0
  %98 = vmatpush.msra.mxu0 %v45
  %99 = vmatpush.msra.mxu0 %v44
  %100 = vmatpush.msra.mxu0 %v43
  %101 = vmatpush.msra.mxu0 %v42
  %102 = vmatpush.msra.mxu0 %v41
  %103 = vmatpush.msra.mxu0 %v40
  %104 = vmatpush.msra.mxu0 %v39
  %105 = vmatpush.msra.mxu0 %v38
  %106 = vmatpush.msra.mxu0 %v37
  %107 = vmatpush.msra.mxu0 %v36
  %108 = vmatpush.msra.mxu0 %v35
  %109 = vmatpush.msra.mxu0 %v34
  %110 = vmatpush.msra.mxu0 %v33
  %111 = vmatpush.msra.mxu0 %v32
  %112 = vmatpush.msra.mxu0 %v31
  %113 = vmatpush.msra.mxu0 %v30
  %114 = vmatmul.f32.gmra.mxu0 %v14
  %v115 = vpop.f32.mrf.mxu0
  %v116 = vadd.f32 %v96, %v115
  %117 = vmatmul.f32.gmra.mxu0 %v18
  %v118 = vpop.f32.mrf.mxu0
  %v119 = vadd.f32 %v96, %v118
  %120 = vmatmul.f32.gmra.mxu0 %v22
  %v121 = vpop.f32.mrf.mxu0
  %v122 = vadd.f32 %v96, %v121
  %123 = vmatmul.f32.gmra.mxu0 %v26
  %v124 = vpop.f32.mrf.mxu0
  %v125 = vadd.f32 %v96, %v124
  %126 = vdwg.mxu0
  %127 = vmatpush.msra.mxu0 %v61
  %128 = vmatpush.msra.mxu0 %v60
  %129 = vmatpush.msra.mxu0 %v59
  %130 = vmatpush.msra.mxu0 %v58
  %131 = vmatpush.msra.mxu0 %v57
  %132 = vmatpush.msra.mxu0 %v56
  %133 = vmatpush.msra.mxu0 %v55
  %134 = vmatpush.msra.mxu0 %v54
  %135 = vmatpush.msra.mxu0 %v53
  %136 = vmatpush.msra.mxu0 %v52
  %137 = vmatpush.msra.mxu0 %v51
  %138 = vmatpush.msra.mxu0 %v50
  %139 = vmatpush.msra.mxu0 %v49
  %140 = vmatpush.msra.mxu0 %v48
  %141 = vmatpush.msra.mxu0 %v47
  %142 = vmatpush.msra.mxu0 %v46
  %143 = vmatmul.f32.gmra.mxu0 %v15
  %v144 = vpop.f32.mrf.mxu0
  %v145 = vadd.f32 %v116, %v144
  %146 = vmatmul.f32.gmra.mxu0 %v19
  %v147 = vpop.f32.mrf.mxu0
  %v148 = vadd.f32 %v119, %v147
  %149 = vmatmul.f32.gmra.mxu0 %v23
  %v150 = vpop.f32.mrf.mxu0
  %v151 = vadd.f32 %v122, %v150
  %152 = vmatmul.f32.gmra.mxu0 %v27
  %v153 = vpop.f32.mrf.mxu0
  %v154 = vadd.f32 %v125, %v153
  %155 = vdwg.mxu0
  %156 = vmatpush.msra.mxu0 %v77
  %157 = vmatpush.msra.mxu0 %v76
  %158 = vmatpush.msra.mxu0 %v75
  %159 = vmatpush.msra.mxu0 %v74
  %160 = vmatpush.msra.mxu0 %v73
  %161 = vmatpush.msra.mxu0 %v72
  %162 = vmatpush.msra.mxu0 %v71
  %163 = vmatpush.msra.mxu0 %v70
  %164 = vmatpush.msra.mxu0 %v69
  %165 = vmatpush.msra.mxu0 %v68
  %166 = vmatpush.msra.mxu0 %v67
  %167 = vmatpush.msra.mxu0 %v66
  %168 = vmatpush.msra.mxu0 %v65
  %169 = vmatpush.msra.mxu0 %v64
  %170 = vmatpush.msra.mxu0 %v63
  %171 = vmatpush.msra.mxu0 %v62
  %172 = vmatmul.f32.gmra.mxu0 %v16
  %v173 = vpop.f32.mrf.mxu0
  %v174 = vadd.f32 %v145, %v173
  %175 = vmatmul.f32.gmra.mxu0 %v20
  %v176 = vpop.f32.mrf.mxu0
  %v177 = vadd.f32 %v148, %v176
  %178 = vmatmul.f32.gmra.mxu0 %v24
  %v179 = vpop.f32.mrf.mxu0
  %v180 = vadd.f32 %v151, %v179
  %181 = vmatmul.f32.gmra.mxu0 %v28
  %v182 = vpop.f32.mrf.mxu0
  %v183 = vadd.f32 %v154, %v182
  %184 = vdwg.mxu0
  %185 = vmatpush.msra.mxu0 %v93
  %186 = vmatpush.msra.mxu0 %v92
  %187 = vmatpush.msra.mxu0 %v91
  %188 = vmatpush.msra.mxu0 %v90
  %189 = vmatpush.msra.mxu0 %v89
  %190 = vmatpush.msra.mxu0 %v88
  %191 = vmatpush.msra.mxu0 %v87
  %192 = vmatpush.msra.mxu0 %v86
  %193 = vmatpush.msra.mxu0 %v85
  %194 = vmatpush.msra.mxu0 %v84
  %195 = vmatpush.msra.mxu0 %v83
  %196 = vmatpush.msra.mxu0 %v82
  %197 = vmatpush.msra.mxu0 %v81
  %198 = vmatpush.msra.mxu0 %v80
  %199 = vmatpush.msra.mxu0 %v79
  %200 = vmatpush.msra.mxu0 %v78
  %201 = vmatmul.f32.gmra.mxu0 %v17
  %v202 = vpop.f32.mrf.mxu0
  %v203 = vadd.f32 %v174, %v202
  %204 = vmatmul.f32.gmra.mxu0 %v21
  %v205 = vpop.f32.mrf.mxu0
  %v206 = vadd.f32 %v177, %v205
  %207 = vmatmul.f32.gmra.mxu0 %v25
  %v208 = vpop.f32.mrf.mxu0
  %v209 = vadd.f32 %v180, %v208
  %210 = vmatmul.f32.gmra.mxu0 %v29
  %v211 = vpop.f32.mrf.mxu0
  %v212 = vadd.f32 %v183, %v211
  %213 = vdwg.mxu0
  %214 = vst [vmem:[%s3] sm:$0xff] %v203
  %215 = vst [vmem:[%s3 + $0x8] sm:$0xff] %v206
  %216 = vst [vmem:[%s3 + $0x10] sm:$0xff] %v209
  %217 = vst [vmem:[%s3 + $0x18] sm:$0xff] %v212
  // Predicated region
  $region14: #{generator_forward.35} parent=0 // pred_check
    _
  $region15: #{generator_forward.35} parent=0 // pred_check_branch
    %219 = sbr.rel (0) target = $region17
  $region16: #{generator_forward.35} parent=0 // pred_region
    _
  $region17: #{generator_forward.35} parent=0 // pred_fallthru
    _
  // Predicated region
  $region18: #{generator_forward.35} parent=0 // pred_check
    _
  $region19: #{generator_forward.35} parent=0 // pred_check_branch
    %221 = sbr.rel (0) target = $region21
  $region20: #{generator_forward.35} parent=0 // pred_region
    _
  $region21: #{generator_forward.35} parent=0 // pred_fallthru
    _

// kernel: generator_forward.36
$region0: #{generator_forward.36}
  #allocation0 [shape = 'u32[]', space=smem, size = 0x4, offset = 0x4, fixed_abs, tag = 'smem constant byte address 0x4 - core index']
  #allocation1 [shape = 'u32[72,128]{1,0:T(1,128)}', space=vmem, size = 0x9000, scoped, tag = 'internal scratch']
  %s0 = inlined_call_operand.vmem [shape: f32[2,64,32], index: 0, kind: input, shape index: {}]
  %s1 = inlined_call_operand.vmem [shape: f32[2,64,32], index: 1, kind: output, shape index: {}]
  %s2 = sld [smem:[#allocation0]]
  $region37: #{generator_forward.36} parent=0
    _
  %s4 = ssub.s32 1, %s2
  %s5 = scalar_select 0, %s4, %s2
  loop: start=0, step=1, limit=4
  $region2: #{generator_forward.36} parent=0 // loop_pre_header
    _
  $region3: #{generator_forward.36} parent=0 // loop_header
    %s7 = sphi 0, %s11
    %p8 = scmp.ge.s32.totalorder %s7, 4
    %s17 = sphi 0, %s19
    %s20 = sphi 0, %s17
    %s21 = sphi 0, %s20
    %s37 = sphi 0, %s21
    %s43 = sphi 0, %s45
    %s46 = sphi 0, %s43
    %s47 = sphi 0, %s46
    %s63 = sphi 0, %s47
  $region4: #{generator_forward.36} parent=0 // loop_header_branch
    %10 = sbr.rel (%p8) target = $region8
  $region5: #{generator_forward.36} parent=0 // loop_body
    %s12 = ssub.s32 %s7, 1
    %s13 = ssub.s32 %s7, 2
    %s14 = sadd.s32 %s7, 1
    %s15 = ssub.s32 %s7, %s14
    %p16 = scmp.eq.s32.totalorder %s15, 0
    %s18 = sadd.s32 %s17, 1
    %s19 = scalar_select %p16, %s17, %s18
    %p22 = pneg %p16
    %p23 = scmp.eq.s32.totalorder %s7, 1
    %p24 = por %p22, %p23
    %p25 = scmp.ne.s32.totalorder %s17, %s20
    %p26 = scmp.eq.s32.totalorder %s7, 0
    %p27 = por %p25, %p26
    %p28 = scmp.ne.s32.totalorder %s17, %s20
    %p29 = scmp.eq.s32.totalorder %s12, 1
    %p30 = por %p28, %p29
    %p31 = scmp.ne.s32.totalorder %s20, %s21
    %p32 = scmp.eq.s32.totalorder %s12, 0
    %p33 = por %p31, %p32
    %p34 = scmp.ne.s32.totalorder %s20, %s21
    %p35 = scmp.eq.s32.totalorder %s13, 1
    %p36 = por %p34, %p35
    %p38 = scmp.ne.s32.totalorder %s21, %s37
    %p39 = scmp.eq.s32.totalorder %s13, 0
    %p40 = por %p38, %p39
    %s41 = ssub.s32 %s7, %s14
    %p42 = scmp.eq.s32.totalorder %s41, 0
    %s44 = sadd.s32 %s43, 1
    %s45 = scalar_select %p42, %s43, %s44
    %p48 = pneg %p42
    %p49 = scmp.eq.s32.totalorder %s7, 1
    %p50 = por %p48, %p49
    %p51 = scmp.ne.s32.totalorder %s43, %s46
    %p52 = scmp.eq.s32.totalorder %s7, 0
    %p53 = por %p51, %p52
    %p54 = scmp.ne.s32.totalorder %s43, %s46
    %p55 = scmp.eq.s32.totalorder %s12, 1
    %p56 = por %p54, %p55
    %p57 = scmp.ne.s32.totalorder %s46, %s47
    %p58 = scmp.eq.s32.totalorder %s12, 0
    %p59 = por %p57, %p58
    %p60 = scmp.ne.s32.totalorder %s46, %s47
    %p61 = scmp.eq.s32.totalorder %s13, 1
    %p62 = por %p60, %p61
    %p64 = scmp.ne.s32.totalorder %s47, %s63
    %p65 = scmp.eq.s32.totalorder %s13, 0
    %p66 = por %p64, %p65
    %p67 = scmp.le.s32.totalorder 1, %s7
    %p68 = scmp.lt.s32.totalorder %s7, 3
    %p69 = pnand %p67, %p68
    %p70 = pneg %p69
    // Predicated region
    $region9: #{generator_forward.36} parent=5 // pred_check
      _
    $region10: #{generator_forward.36} parent=5 // pred_check_branch
      %72 = sbr.rel (%p69) target = $region12
    $region11: #{generator_forward.36} parent=5 // pred_region
      %s73 = ssub.s32 %s7, 1
    $region12: #{generator_forward.36} parent=5 // pred_fallthru
      _
    %p74 = scmp.lt.s32.totalorder %s7, 2
    // Predicated region
    $region13: #{generator_forward.36} parent=5 // pred_check
      %p75 = pneg %p74
    $region14: #{generator_forward.36} parent=5 // pred_check_branch
      %77 = sbr.rel (%p75) target = $region16
    $region15: #{generator_forward.36} parent=5 // pred_region
      // Predicated region
      $region17: #{generator_forward.36} parent=15 // pred_check
        %p78 = pneg %p27
      $region18: #{generator_forward.36} parent=15 // pred_check_branch
        %80 = sbr.rel (%p78) target = $region20
      $region19: #{generator_forward.36} parent=15 // pred_region
        %p81 = scmp.lt.s32.totalorder %s7, 1
        %s82 = scalar_select %p81, %s7, 1
        %s83 = smul.addr %s82, 8
        %s84 = smul.addr %s83, 8
        %s85 = scalar_lea.vmem %s0, %s84
      $region20: #{generator_forward.36} parent=15 // pred_fallthru
        _
    $region16: #{generator_forward.36} parent=5 // pred_fallthru
      _
    %p86 = scmp.le.s32.totalorder 1, %s7
    %p87 = scmp.lt.s32.totalorder %s7, 3
    %p88 = pnand %p86, %p87
    %p89 = pneg %p88
    // Predicated region
    $region21: #{generator_forward.36} parent=5 // pred_check
      _
    $region22: #{generator_forward.36} parent=5 // pred_check_branch
      %91 = sbr.rel (%p88) target = $region24
    $region23: #{generator_forward.36} parent=5 // pred_region
      %s92 = ssub.s32 %s7, 1
      %p93 = scmp.lt.s32.totalorder %s12, 1
      %s94 = scalar_select %p93, %s12, 1
      %s95 = smul.addr %s94, 8
      %s96 = smul.addr %s95, 8
      %s97 = scalar_lea.vmem %s0, %s96
      %p98 = pneg %p33
      %p99 = pneg %p30
      %p100 = pneg %p59
      %p101 = pneg %p56
      %p102 = scmp.lt.s32.totalorder %s12, 1
      %s103 = scalar_select %p102, %s12, 1
      %s104 = smul.addr %s103, 8
      %s105 = smul.addr %s104, 8
      %s106 = scalar_lea.vmem %s1, %s105
      %p107 = scmp.lt.s32.totalorder %s12, 1
      %s108 = scalar_select %p107, %s12, 1
      %s109 = smul.addr %s108, 8
      %s110 = smul.addr %s109, 8
      %s111 = scalar_lea.vmem %s0, %s110
      %p112 = scmp.lt.s32.totalorder %s12, 1
      %s113 = scalar_select %p112, %s12, 1
      %s114 = smul.addr %s113, 8
      %s115 = smul.addr %s114, 8
      %s116 = scalar_lea.vmem %s1, %s115
      %v117 = vld [vmem:[%s111] sm:$0xff]
      %v118 = vld [vmem:[%s111 + $0x8] sm:$0xff]
      %v119 = vld [vmem:[%s111 + $0x10] sm:$0xff]
      %v120 = vld [vmem:[%s111 + $0x18] sm:$0xff]
      %v121 = vld [vmem:[%s111 + $0x20] sm:$0xff]
      %v122 = vld [vmem:[%s111 + $0x28] sm:$0xff]
      %v123 = vld [vmem:[%s111 + $0x30] sm:$0xff]
      %v124 = vld [vmem:[%s111 + $0x38] sm:$0xff]
      %vm125 = vcmask 261120
      %v126 = vsel %vm125, %v117, 0.0
      %v127 = vsel %vm125, %v118, 0.0
      %v128 = vadd.f32 %v126, %v127
      %v129 = vsel %vm125, %v119, 0.0
      %v130 = vadd.f32 %v128, %v129
      %v131 = vsel %vm125, %v120, 0.0
      %v132 = vadd.f32 %v130, %v131
      %v133 = vsel %vm125, %v121, 0.0
      %v134 = vadd.f32 %v132, %v133
      %v135 = vsel %vm125, %v122, 0.0
      %v136 = vadd.f32 %v134, %v135
      %v137 = vsel %vm125, %v123, 0.0
      %v138 = vadd.f32 %v136, %v137
      %v139 = vsel %vm125, %v124, 0.0
      %v140 = vadd.f32 %v138, %v139
      %v141 = vrot.slane %v140, 4
      %v142 = vadd.f32 %v140, %v141
      %v143 = vrot.slane %v142, 2
      %v144 = vadd.f32 %v142, %v143
      %v145 = vrot.slane %v144, 1
      %v146 = vadd.f32 %v144, %v145
      %v147 = vrcp.pop 64.0
      %v148 = vmul.f32 64.0, %v147
      %v149 = vsub.f32 1.0, %v148
      %v150 = vmul.f32 %v147, %v149
      %v151 = vadd.f32 %v147, %v150
      %vm152 = vweird.f32 %v147
      %v153 = vsel %vm152, %v147, %v151
      %v154 = vmul.f32 %v146, %v153
      %v155 = vsub.f32 %v117, %v154
      %v156 = vsub.f32 %v118, %v154
      %v157 = vsub.f32 %v119, %v154
      %v158 = vsub.f32 %v120, %v154
      %v159 = vsub.f32 %v121, %v154
      %v160 = vsub.f32 %v122, %v154
      %v161 = vsub.f32 %v123, %v154
      %v162 = vsub.f32 %v124, %v154
      %v163 = vmul.f32 %v155, %v155
      %v164 = vmul.f32 %v156, %v156
      %v165 = vmul.f32 %v157, %v157
      %v166 = vmul.f32 %v158, %v158
      %v167 = vmul.f32 %v159, %v159
      %v168 = vmul.f32 %v160, %v160
      %v169 = vmul.f32 %v161, %v161
      %v170 = vmul.f32 %v162, %v162
      %v171 = vsel %vm125, %v163, 0.0
      %v172 = vsel %vm125, %v164, 0.0
      %v173 = vadd.f32 %v171, %v172
      %v174 = vsel %vm125, %v165, 0.0
      %v175 = vadd.f32 %v173, %v174
      %v176 = vsel %vm125, %v166, 0.0
      %v177 = vadd.f32 %v175, %v176
      %v178 = vsel %vm125, %v167, 0.0
      %v179 = vadd.f32 %v177, %v178
      %v180 = vsel %vm125, %v168, 0.0
      %v181 = vadd.f32 %v179, %v180
      %v182 = vsel %vm125, %v169, 0.0
      %v183 = vadd.f32 %v181, %v182
      %v184 = vsel %vm125, %v170, 0.0
      %v185 = vadd.f32 %v183, %v184
      %v186 = vrot.slane %v185, 4
      %v187 = vadd.f32 %v185, %v186
      %v188 = vrot.slane %v187, 2
      %v189 = vadd.f32 %v187, %v188
      %v190 = vrot.slane %v189, 1
      %v191 = vadd.f32 %v189, %v190
      %v192 = vmul.f32 %v191, %v153
      %v193 = vadd.f32 %v192, 1e-05
      %v194 = vrsqrt.pop %v193
      %v195 = vmul.f32 %v194, %v193
      %v196 = vmul.f32 %v195, %v194
      %v197 = vmul.f32 0.5, %v196
      %v198 = vsub.f32 1.5, %v197
      %v199 = vmul.f32 %v194, %v198
      %vm200 = vweird.f32 %v193
      %vm201 = vweird.f32 %v194
      %vm202 = vmor %vm200, %vm201
      %v203 = vsel %vm202, %v194, %v199
      %v204 = vmul.f32 %v155, %v203
      %v205 = vmul.f32 %v156, %v203
      %v206 = vmul.f32 %v157, %v203
      %v207 = vmul.f32 %v158, %v203
      %v208 = vmul.f32 %v159, %v203
      %v209 = vmul.f32 %v160, %v203
      %v210 = vmul.f32 %v161, %v203
      %v211 = vmul.f32 %v162, %v203
      %v212 = vmax.f32 %v204, 0.0
      %v213 = vmax.f32 %v205, 0.0
      %v214 = vmax.f32 %v206, 0.0
      %v215 = vmax.f32 %v207, 0.0
      %v216 = vmax.f32 %v208, 0.0
      %v217 = vmax.f32 %v209, 0.0
      %v218 = vmax.f32 %v210, 0.0
      %v219 = vmax.f32 %v211, 0.0
      %220 = vst.msk [vmem:[%s116] sm:$0xff] %vm125, %v212
      %221 = vst.msk [vmem:[%s116 + $0x8] sm:$0xff] %vm125, %v213
      %222 = vst.msk [vmem:[%s116 + $0x10] sm:$0xff] %vm125, %v214
      %223 = vst.msk [vmem:[%s116 + $0x18] sm:$0xff] %vm125, %v215
      %224 = vst.msk [vmem:[%s116 + $0x20] sm:$0xff] %vm125, %v216
      %225 = vst.msk [vmem:[%s116 + $0x28] sm:$0xff] %vm125, %v217
      %226 = vst.msk [vmem:[%s116 + $0x30] sm:$0xff] %vm125, %v218
      %227 = vst.msk [vmem:[%s116 + $0x38] sm:$0xff] %vm125, %v219
      %p228 = scmp.lt.s32.totalorder %s12, 1
      %s229 = scalar_select %p228, %s12, 1
      %s230 = smul.addr %s229, 8
      %s231 = smul.addr %s230, 8
      %s232 = scalar_lea.vmem %s1, %s231
      // Predicated region
      $region25: #{generator_forward.36} parent=23 // pred_check
        %p233 = pneg %p56
      $region26: #{generator_forward.36} parent=23 // pred_check_branch
        %235 = sbr.rel (%p233) target = $region28
      $region27: #{generator_forward.36} parent=23 // pred_region
        _
      $region28: #{generator_forward.36} parent=23 // pred_fallthru
        _
    $region24: #{generator_forward.36} parent=5 // pred_fallthru
      _
    %p236 = scmp.le.s32.totalorder 2, %s7
    // Predicated region
    $region29: #{generator_forward.36} parent=5 // pred_check
      %p237 = pneg %p236
    $region30: #{generator_forward.36} parent=5 // pred_check_branch
      %239 = sbr.rel (%p237) target = $region32
    $region31: #{generator_forward.36} parent=5 // pred_region
      %s240 = ssub.s32 %s7, 2
      // Predicated region
      $region33: #{generator_forward.36} parent=31 // pred_check
        %p241 = pneg %p62
      $region34: #{generator_forward.36} parent=31 // pred_check_branch
        %243 = sbr.rel (%p241) target = $region36
      $region35: #{generator_forward.36} parent=31 // pred_region
        %p244 = scmp.lt.s32.totalorder %s13, 1
        %s245 = scalar_select %p244, %s13, 1
        %s246 = smul.addr %s245, 8
        %s247 = smul.addr %s246, 8
        %s248 = scalar_lea.vmem %s1, %s247
      $region36: #{generator_forward.36} parent=31 // pred_fallthru
        _
    $region32: #{generator_forward.36} parent=5 // pred_fallthru
      _
  $region6: #{generator_forward.36} parent=0 // loop_footer
    %s11 = sadd.s32 1, %s7
  $region7: #{generator_forward.36} parent=0 // loop_footer_branch
    %6 = sbr.rel target = $region3
  $region8: #{generator_forward.36} parent=0 // loop_exit
    _

// kernel: generator_forward.37
$region0: #{generator_forward.37}
  #allocation0 [shape = 'u32[]', space=smem, size = 0x4, offset = 0x4, fixed_abs, tag = 'smem constant byte address 0x4 - core index']
  #allocation1 [shape = 'u32[72,128]{1,0:T(1,128)}', space=vmem, size = 0x9000, scoped, tag = 'internal scratch']
  %s0 = inlined_call_operand.vmem [shape: f32[128,256], index: 0, kind: input, shape index: {}]
  %s1 = inlined_call_operand.vmem [shape: f32[256,64], index: 1, kind: input, shape index: {}]
  %s2 = inlined_call_operand.vmem [shape: f32[1,64], index: 2, kind: input, shape index: {}]
  %s3 = inlined_call_operand.vmem [shape: f32[128,64], index: 3, kind: output, shape index: {}]
  %s4 = sld [smem:[#allocation0]]
  $region22: #{generator_forward.37} parent=0
    _
  %s6 = ssub.s32 1, %s4
  %s7 = scalar_select 0, %s6, %s4
  // Predicated region
  $region2: #{generator_forward.37} parent=0 // pred_check
    _
  $region3: #{generator_forward.37} parent=0 // pred_check_branch
    %9 = sbr.rel (0) target = $region5
  $region4: #{generator_forward.37} parent=0 // pred_region
    _
  $region5: #{generator_forward.37} parent=0 // pred_fallthru
    _
  // Predicated region
  $region6: #{generator_forward.37} parent=0 // pred_check
    _
  $region7: #{generator_forward.37} parent=0 // pred_check_branch
    %11 = sbr.rel (0) target = $region9
  $region8: #{generator_forward.37} parent=0 // pred_region
    _
  $region9: #{generator_forward.37} parent=0 // pred_fallthru
    _
  // Predicated region
  $region10: #{generator_forward.37} parent=0 // pred_check
    _
  $region11: #{generator_forward.37} parent=0 // pred_check_branch
    %13 = sbr.rel (0) target = $region13
  $region12: #{generator_forward.37} parent=0 // pred_region
    _
  $region13: #{generator_forward.37} parent=0 // pred_fallthru
    _
  %v14 = vld [vmem:[%s0] sm:$0xff]
  %v15 = vld [vmem:[%s0 + $0x8] sm:$0xff]
  %v16 = vld [vmem:[%s0 + $0x10] sm:$0xff]
  %v17 = vld [vmem:[%s0 + $0x18] sm:$0xff]
  %v18 = vld [vmem:[%s0 + $0x20] sm:$0xff]
  %v19 = vld [vmem:[%s0 + $0x28] sm:$0xff]
  %v20 = vld [vmem:[%s0 + $0x30] sm:$0xff]
  %v21 = vld [vmem:[%s0 + $0x38] sm:$0xff]
  %v22 = vld [vmem:[%s0 + $0x40] sm:$0xff]
  %v23 = vld [vmem:[%s0 + $0x48] sm:$0xff]
  %v24 = vld [vmem:[%s0 + $0x50] sm:$0xff]
  %v25 = vld [vmem:[%s0 + $0x58] sm:$0xff]
  %v26 = vld [vmem:[%s0 + $0x60] sm:$0xff]
  %v27 = vld [vmem:[%s0 + $0x68] sm:$0xff]
  %v28 = vld [vmem:[%s0 + $0x70] sm:$0xff]
  %v29 = vld [vmem:[%s0 + $0x78] sm:$0xff]
  %v30 = vld [vmem:[%s0 + $0x80] sm:$0xff]
  %v31 = vld [vmem:[%s0 + $0x88] sm:$0xff]
  %v32 = vld [vmem:[%s0 + $0x90] sm:$0xff]
  %v33 = vld [vmem:[%s0 + $0x98] sm:$0xff]
  %v34 = vld [vmem:[%s0 + $0xa0] sm:$0xff]
  %v35 = vld [vmem:[%s0 + $0xa8] sm:$0xff]
  %v36 = vld [vmem:[%s0 + $0xb0] sm:$0xff]
  %v37 = vld [vmem:[%s0 + $0xb8] sm:$0xff]
  %v38 = vld [vmem:[%s0 + $0xc0] sm:$0xff]
  %v39 = vld [vmem:[%s0 + $0xc8] sm:$0xff]
  %v40 = vld [vmem:[%s0 + $0xd0] sm:$0xff]
  %v41 = vld [vmem:[%s0 + $0xd8] sm:$0xff]
  %v42 = vld [vmem:[%s0 + $0xe0] sm:$0xff]
  %v43 = vld [vmem:[%s0 + $0xe8] sm:$0xff]
  %v44 = vld [vmem:[%s0 + $0xf0] sm:$0xff]
  %v45 = vld [vmem:[%s0 + $0xf8] sm:$0xff]
  %v46 = vld [vmem:[%s1] sm:$0xff]
  %v47 = vld [vmem:[%s1 + $0x8] sm:$0xff]
  %v48 = vld [vmem:[%s1 + $0x10] sm:$0xff]
  %v49 = vld [vmem:[%s1 + $0x18] sm:$0xff]
  %v50 = vld [vmem:[%s1 + $0x20] sm:$0xff]
  %v51 = vld [vmem:[%s1 + $0x28] sm:$0xff]
  %v52 = vld [vmem:[%s1 + $0x30] sm:$0xff]
  %v53 = vld [vmem:[%s1 + $0x38] sm:$0xff]
  %v54 = vld [vmem:[%s1 + $0x40] sm:$0xff]
  %v55 = vld [vmem:[%s1 + $0x48] sm:$0xff]
  %v56 = vld [vmem:[%s1 + $0x50] sm:$0xff]
  %v57 = vld [vmem:[%s1 + $0x58] sm:$0xff]
  %v58 = vld [vmem:[%s1 + $0x60] sm:$0xff]
  %v59 = vld [vmem:[%s1 + $0x68] sm:$0xff]
  %v60 = vld [vmem:[%s1 + $0x70] sm:$0xff]
  %v61 = vld [vmem:[%s1 + $0x78] sm:$0xff]
  %v62 = vld [vmem:[%s1 + $0x80] sm:$0xff]
  %v63 = vld [vmem:[%s1 + $0x88] sm:$0xff]
  %v64 = vld [vmem:[%s1 + $0x90] sm:$0xff]
  %v65 = vld [vmem:[%s1 + $0x98] sm:$0xff]
  %v66 = vld [vmem:[%s1 + $0xa0] sm:$0xff]
  %v67 = vld [vmem:[%s1 + $0xa8] sm:$0xff]
  %v68 = vld [vmem:[%s1 + $0xb0] sm:$0xff]
  %v69 = vld [vmem:[%s1 + $0xb8] sm:$0xff]
  %v70 = vld [vmem:[%s1 + $0xc0] sm:$0xff]
  %v71 = vld [vmem:[%s1 + $0xc8] sm:$0xff]
  %v72 = vld [vmem:[%s1 + $0xd0] sm:$0xff]
  %v73 = vld [vmem:[%s1 + $0xd8] sm:$0xff]
  %v74 = vld [vmem:[%s1 + $0xe0] sm:$0xff]
  %v75 = vld [vmem:[%s1 + $0xe8] sm:$0xff]
  %v76 = vld [vmem:[%s1 + $0xf0] sm:$0xff]
  %v77 = vld [vmem:[%s1 + $0xf8] sm:$0xff]
  %v78 = vld [vmem:[%s2] sm:$0x1]
  %v80 = vperm.slane %v78, 0
  %82 = vmatpush.msra.mxu0 %v61
  %83 = vmatpush.msra.mxu0 %v60
  %84 = vmatpush.msra.mxu0 %v59
  %85 = vmatpush.msra.mxu0 %v58
  %86 = vmatpush.msra.mxu0 %v57
  %87 = vmatpush.msra.mxu0 %v56
  %88 = vmatpush.msra.mxu0 %v55
  %89 = vmatpush.msra.mxu0 %v54
  %90 = vmatpush.msra.mxu0 %v53
  %91 = vmatpush.msra.mxu0 %v52
  %92 = vmatpush.msra.mxu0 %v51
  %93 = vmatpush.msra.mxu0 %v50
  %94 = vmatpush.msra.mxu0 %v49
  %95 = vmatpush.msra.mxu0 %v48
  %96 = vmatpush.msra.mxu0 %v47
  %97 = vmatpush.msra.mxu0 %v46
  %98 = vmatmul.f32.gmra.mxu0 %v14
  %v99 = vpop.f32.mrf.mxu0
  %v100 = vadd.f32 %v80, %v99
  %101 = vmatmul.f32.gmra.mxu0 %v16
  %v102 = vpop.f32.mrf.mxu0
  %v103 = vadd.f32 %v80, %v102
  %104 = vmatmul.f32.gmra.mxu0 %v18
  %v105 = vpop.f32.mrf.mxu0
  %v106 = vadd.f32 %v80, %v105
  %107 = vmatmul.f32.gmra.mxu0 %v20
  %v108 = vpop.f32.mrf.mxu0
  %v109 = vadd.f32 %v80, %v108
  %110 = vmatmul.f32.gmra.mxu0 %v22
  %v111 = vpop.f32.mrf.mxu0
  %v112 = vadd.f32 %v80, %v111
  %113 = vmatmul.f32.gmra.mxu0 %v24
  %v114 = vpop.f32.mrf.mxu0
  %v115 = vadd.f32 %v80, %v114
  %116 = vmatmul.f32.gmra.mxu0 %v26
  %v117 = vpop.f32.mrf.mxu0
  %v118 = vadd.f32 %v80, %v117
  %119 = vmatmul.f32.gmra.mxu0 %v28
  %v120 = vpop.f32.mrf.mxu0
  %v121 = vadd.f32 %v80, %v120
  %122 = vmatmul.f32.gmra.mxu0 %v30
  %v123 = vpop.f32.mrf.mxu0
  %v124 = vadd.f32 %v80, %v123
  %125 = vmatmul.f32.gmra.mxu0 %v32
  %v126 = vpop.f32.mrf.mxu0
  %v127 = vadd.f32 %v80, %v126
  %128 = vmatmul.f32.gmra.mxu0 %v34
  %v129 = vpop.f32.mrf.mxu0
  %v130 = vadd.f32 %v80, %v129
  %131 = vmatmul.f32.gmra.mxu0 %v36
  %v132 = vpop.f32.mrf.mxu0
  %v133 = vadd.f32 %v80, %v132
  %134 = vmatmul.f32.gmra.mxu0 %v38
  %v135 = vpop.f32.mrf.mxu0
  %v136 = vadd.f32 %v80, %v135
  %137 = vmatmul.f32.gmra.mxu0 %v40
  %v138 = vpop.f32.mrf.mxu0
  %v139 = vadd.f32 %v80, %v138
  %140 = vmatmul.f32.gmra.mxu0 %v42
  %v141 = vpop.f32.mrf.mxu0
  %v142 = vadd.f32 %v80, %v141
  %143 = vmatmul.f32.gmra.mxu0 %v44
  %v144 = vpop.f32.mrf.mxu0
  %v145 = vadd.f32 %v80, %v144
  %146 = vdwg.mxu0
  %147 = vmatpush.msra.mxu0 %v77
  %148 = vmatpush.msra.mxu0 %v76
  %149 = vmatpush.msra.mxu0 %v75
  %150 = vmatpush.msra.mxu0 %v74
  %151 = vmatpush.msra.mxu0 %v73
  %152 = vmatpush.msra.mxu0 %v72
  %153 = vmatpush.msra.mxu0 %v71
  %154 = vmatpush.msra.mxu0 %v70
  %155 = vmatpush.msra.mxu0 %v69
  %156 = vmatpush.msra.mxu0 %v68
  %157 = vmatpush.msra.mxu0 %v67
  %158 = vmatpush.msra.mxu0 %v66
  %159 = vmatpush.msra.mxu0 %v65
  %160 = vmatpush.msra.mxu0 %v64
  %161 = vmatpush.msra.mxu0 %v63
  %162 = vmatpush.msra.mxu0 %v62
  %163 = vmatmul.f32.gmra.mxu0 %v15
  %v164 = vpop.f32.mrf.mxu0
  %v165 = vadd.f32 %v100, %v164
  %166 = vmatmul.f32.gmra.mxu0 %v17
  %v167 = vpop.f32.mrf.mxu0
  %v168 = vadd.f32 %v103, %v167
  %169 = vmatmul.f32.gmra.mxu0 %v19
  %v170 = vpop.f32.mrf.mxu0
  %v171 = vadd.f32 %v106, %v170
  %172 = vmatmul.f32.gmra.mxu0 %v21
  %v173 = vpop.f32.mrf.mxu0
  %v174 = vadd.f32 %v109, %v173
  %175 = vmatmul.f32.gmra.mxu0 %v23
  %v176 = vpop.f32.mrf.mxu0
  %v177 = vadd.f32 %v112, %v176
  %178 = vmatmul.f32.gmra.mxu0 %v25
  %v179 = vpop.f32.mrf.mxu0
  %v180 = vadd.f32 %v115, %v179
  %181 = vmatmul.f32.gmra.mxu0 %v27
  %v182 = vpop.f32.mrf.mxu0
  %v183 = vadd.f32 %v118, %v182
  %184 = vmatmul.f32.gmra.mxu0 %v29
  %v185 = vpop.f32.mrf.mxu0
  %v186 = vadd.f32 %v121, %v185
  %187 = vmatmul.f32.gmra.mxu0 %v31
  %v188 = vpop.f32.mrf.mxu0
  %v189 = vadd.f32 %v124, %v188
  %190 = vmatmul.f32.gmra.mxu0 %v33
  %v191 = vpop.f32.mrf.mxu0
  %v192 = vadd.f32 %v127, %v191
  %193 = vmatmul.f32.gmra.mxu0 %v35
  %v194 = vpop.f32.mrf.mxu0
  %v195 = vadd.f32 %v130, %v194
  %196 = vmatmul.f32.gmra.mxu0 %v37
  %v197 = vpop.f32.mrf.mxu0
  %v198 = vadd.f32 %v133, %v197
  %199 = vmatmul.f32.gmra.mxu0 %v39
  %v200 = vpop.f32.mrf.mxu0
  %v201 = vadd.f32 %v136, %v200
  %202 = vmatmul.f32.gmra.mxu0 %v41
  %v203 = vpop.f32.mrf.mxu0
  %v204 = vadd.f32 %v139, %v203
  %205 = vmatmul.f32.gmra.mxu0 %v43
  %v206 = vpop.f32.mrf.mxu0
  %v207 = vadd.f32 %v142, %v206
  %208 = vmatmul.f32.gmra.mxu0 %v45
  %v209 = vpop.f32.mrf.mxu0
  %v210 = vadd.f32 %v145, %v209
  %211 = vdwg.mxu0
  %vm212 = vcmask 523264
  %213 = vst.msk [vmem:[%s3] sm:$0xff] %vm212, %v165
  %214 = vst.msk [vmem:[%s3 + $0x8] sm:$0xff] %vm212, %v168
  %215 = vst.msk [vmem:[%s3 + $0x10] sm:$0xff] %vm212, %v171
  %216 = vst.msk [vmem:[%s3 + $0x18] sm:$0xff] %vm212, %v174
  %217 = vst.msk [vmem:[%s3 + $0x20] sm:$0xff] %vm212, %v177
  %218 = vst.msk [vmem:[%s3 + $0x28] sm:$0xff] %vm212, %v180
  %219 = vst.msk [vmem:[%s3 + $0x30] sm:$0xff] %vm212, %v183
  %220 = vst.msk [vmem:[%s3 + $0x38] sm:$0xff] %vm212, %v186
  %221 = vst.msk [vmem:[%s3 + $0x40] sm:$0xff] %vm212, %v189
  %222 = vst.msk [vmem:[%s3 + $0x48] sm:$0xff] %vm212, %v192
  %223 = vst.msk [vmem:[%s3 + $0x50] sm:$0xff] %vm212, %v195
  %224 = vst.msk [vmem:[%s3 + $0x58] sm:$0xff] %vm212, %v198
  %225 = vst.msk [vmem:[%s3 + $0x60] sm:$0xff] %vm212, %v201
  %226 = vst.msk [vmem:[%s3 + $0x68] sm:$0xff] %vm212, %v204
  %227 = vst.msk [vmem:[%s3 + $0x70] sm:$0xff] %vm212, %v207
  %228 = vst.msk [vmem:[%s3 + $0x78] sm:$0xff] %vm212, %v210
  // Predicated region
  $region14: #{generator_forward.37} parent=0 // pred_check
    _
  $region15: #{generator_forward.37} parent=0 // pred_check_branch
    %230 = sbr.rel (0) target = $region17
  $region16: #{generator_forward.37} parent=0 // pred_region
    _
  $region17: #{generator_forward.37} parent=0 // pred_fallthru
    _
  // Predicated region
  $region18: #{generator_forward.37} parent=0 // pred_check
    _
  $region19: #{generator_forward.37} parent=0 // pred_check_branch
    %232 = sbr.rel (0) target = $region21
  $region20: #{generator_forward.37} parent=0 // pred_region
    _
  $region21: #{generator_forward.37} parent=0 // pred_fallthru
    _

// kernel: mul.26
$region0: #{mul.26}
  #allocation0 [shape = 's32[1]{0}', space=sflag, size = 0x4, scoped, tag = 'scoped memory for mul.26']
  %s0 = inlined_call_operand.vmem [shape: f32[2,16], index: 0, kind: input, shape index: {}]
  %s1 = inlined_call_operand.vmem [shape: f32[2,16,16,16], index: 1, kind: output, shape index: {}]
  // Predicated region
  $region2: #{mul.26} parent=0 // pred_check
    _
  $region3: #{mul.26} parent=0 // pred_check_branch
    %3 = sbr.rel (0) target = $region5
  $region4: #{mul.26} parent=0 // pred_region
    _
  $region5: #{mul.26} parent=0 // pred_fallthru
    _
  %v4 = vld [vmem:[%s0] ss:$0 sm:$0xff]
  %5 = vst [vmem:[%s1] sm:$0xff] %v4
  %s6 = scalar_lea.vmem %s0, 1
  %v7 = vld [vmem:[%s6] ss:$0 sm:$0xff]
  %s8 = scalar_lea.vmem %s1, 256
  %9 = vst [vmem:[%s8] sm:$0xff] %v7
  %s10 = scalar_lea.vmem %s1, 16
  %11 = vst [vmem:[%s10] sm:$0xff] %v4
  %s12 = scalar_lea.vmem %s1, 272
  %13 = vst [vmem:[%s12] sm:$0xff] %v7
  %s14 = scalar_lea.vmem %s1, 32
  %15 = vst [vmem:[%s14] sm:$0xff] %v4
  %s16 = scalar_lea.vmem %s1, 288
  %17 = vst [vmem:[%s16] sm:$0xff] %v7
  %s18 = scalar_lea.vmem %s1, 48
  %19 = vst [vmem:[%s18] sm:$0xff] %v4
  %s20 = scalar_lea.vmem %s1, 304
  %21 = vst [vmem:[%s20] sm:$0xff] %v7
  %s22 = scalar_lea.vmem %s1, 64
  %23 = vst [vmem:[%s22] sm:$0xff] %v4
  %s24 = scalar_lea.vmem %s1, 320
  %25 = vst [vmem:[%s24] sm:$0xff] %v7
  %s26 = scalar_lea.vmem %s1, 80
  %27 = vst [vmem:[%s26] sm:$0xff] %v4
  %s28 = scalar_lea.vmem %s1, 336
  %29 = vst [vmem:[%s28] sm:$0xff] %v7
  %s30 = scalar_lea.vmem %s1, 96
  %31 = vst [vmem:[%s30] sm:$0xff] %v4
  %s32 = scalar_lea.vmem %s1, 352
  %33 = vst [vmem:[%s32] sm:$0xff] %v7
  %s34 = scalar_lea.vmem %s1, 112
  %35 = vst [vmem:[%s34] sm:$0xff] %v4
  %s36 = scalar_lea.vmem %s1, 368
  %37 = vst [vmem:[%s36] sm:$0xff] %v7
  %s38 = scalar_lea.vmem %s1, 128
  %39 = vst [vmem:[%s38] sm:$0xff] %v4
  %s40 = scalar_lea.vmem %s1, 384
  %41 = vst [vmem:[%s40] sm:$0xff] %v7
  %s42 = scalar_lea.vmem %s1, 144
  %43 = vst [vmem:[%s42] sm:$0xff] %v4
  %s44 = scalar_lea.vmem %s1, 400
  %45 = vst [vmem:[%s44] sm:$0xff] %v7
  %s46 = scalar_lea.vmem %s1, 160
  %47 = vst [vmem:[%s46] sm:$0xff] %v4
  %s48 = scalar_lea.vmem %s1, 416
  %49 = vst [vmem:[%s48] sm:$0xff] %v7
  %s50 = scalar_lea.vmem %s1, 176
  %51 = vst [vmem:[%s50] sm:$0xff] %v4
  %s52 = scalar_lea.vmem %s1, 432
  %53 = vst [vmem:[%s52] sm:$0xff] %v7
  %s54 = scalar_lea.vmem %s1, 192
  %55 = vst [vmem:[%s54] sm:$0xff] %v4
  %s56 = scalar_lea.vmem %s1, 448
  %57 = vst [vmem:[%s56] sm:$0xff] %v7
  %s58 = scalar_lea.vmem %s1, 208
  %59 = vst [vmem:[%s58] sm:$0xff] %v4
  %s60 = scalar_lea.vmem %s1, 464
  %61 = vst [vmem:[%s60] sm:$0xff] %v7
  %s62 = scalar_lea.vmem %s1, 224
  %63 = vst [vmem:[%s62] sm:$0xff] %v4
  %s64 = scalar_lea.vmem %s1, 480
  %65 = vst [vmem:[%s64] sm:$0xff] %v7
  %s66 = scalar_lea.vmem %s1, 240
  %67 = vst [vmem:[%s66] sm:$0xff] %v4
  %s68 = scalar_lea.vmem %s1, 496
  %69 = vst [vmem:[%s68] sm:$0xff] %v7
  %s70 = scalar_lea.vmem %s1, 8
  %71 = vst [vmem:[%s70] sm:$0xff] %v4
  %s72 = scalar_lea.vmem %s1, 264
  %73 = vst [vmem:[%s72] sm:$0xff] %v7
  %s74 = scalar_lea.vmem %s1, 24
  %75 = vst [vmem:[%s74] sm:$0xff] %v4
  %s76 = scalar_lea.vmem %s1, 280
  %77 = vst [vmem:[%s76] sm:$0xff] %v7
  %s78 = scalar_lea.vmem %s1, 40
  %79 = vst [vmem:[%s78] sm:$0xff] %v4
  %s80 = scalar_lea.vmem %s1, 296
  %81 = vst [vmem:[%s80] sm:$0xff] %v7
  %s82 = scalar_lea.vmem %s1, 56
  %83 = vst [vmem:[%s82] sm:$0xff] %v4
  %s84 = scalar_lea.vmem %s1, 312
  %85 = vst [vmem:[%s84] sm:$0xff] %v7
  %s86 = scalar_lea.vmem %s1, 72
  %87 = vst [vmem:[%s86] sm:$0xff] %v4
  %s88 = scalar_lea.vmem %s1, 328
  %89 = vst [vmem:[%s88] sm:$0xff] %v7
  %s90 = scalar_lea.vmem %s1, 88
  %91 = vst [vmem:[%s90] sm:$0xff] %v4
  %s92 = scalar_lea.vmem %s1, 344
  %93 = vst [vmem:[%s92] sm:$0xff] %v7
  %s94 = scalar_lea.vmem %s1, 104
  %95 = vst [vmem:[%s94] sm:$0xff] %v4
  %s96 = scalar_lea.vmem %s1, 360
  %97 = vst [vmem:[%s96] sm:$0xff] %v7
  %s98 = scalar_lea.vmem %s1, 120
  %99 = vst [vmem:[%s98] sm:$0xff] %v4
  %s100 = scalar_lea.vmem %s1, 376
  %101 = vst [vmem:[%s100] sm:$0xff] %v7
  %s102 = scalar_lea.vmem %s1, 136
  %103 = vst [vmem:[%s102] sm:$0xff] %v4
  %s104 = scalar_lea.vmem %s1, 392
  %105 = vst [vmem:[%s104] sm:$0xff] %v7
  %s106 = scalar_lea.vmem %s1, 152
  %107 = vst [vmem:[%s106] sm:$0xff] %v4
  %s108 = scalar_lea.vmem %s1, 408
  %109 = vst [vmem:[%s108] sm:$0xff] %v7
  %s110 = scalar_lea.vmem %s1, 168
  %111 = vst [vmem:[%s110] sm:$0xff] %v4
  %s112 = scalar_lea.vmem %s1, 424
  %113 = vst [vmem:[%s112] sm:$0xff] %v7
  %s114 = scalar_lea.vmem %s1, 184
  %115 = vst [vmem:[%s114] sm:$0xff] %v4
  %s116 = scalar_lea.vmem %s1, 440
  %117 = vst [vmem:[%s116] sm:$0xff] %v7
  %s118 = scalar_lea.vmem %s1, 200
  %119 = vst [vmem:[%s118] sm:$0xff] %v4
  %s120 = scalar_lea.vmem %s1, 456
  %121 = vst [vmem:[%s120] sm:$0xff] %v7
  %s122 = scalar_lea.vmem %s1, 216
  %123 = vst [vmem:[%s122] sm:$0xff] %v4
  %s124 = scalar_lea.vmem %s1, 472
  %125 = vst [vmem:[%s124] sm:$0xff] %v7
  %s126 = scalar_lea.vmem %s1, 232
  %127 = vst [vmem:[%s126] sm:$0xff] %v4
  %s128 = scalar_lea.vmem %s1, 488
  %129 = vst [vmem:[%s128] sm:$0xff] %v7
  %s130 = scalar_lea.vmem %s1, 248
  %131 = vst [vmem:[%s130] sm:$0xff] %v4
  %s132 = scalar_lea.vmem %s1, 504
  %133 = vst [vmem:[%s132] sm:$0xff] %v7

// kernel: generator_forward.38
$region0: #{generator_forward.38}
  #allocation0 [shape = 'u32[]', space=smem, size = 0x4, offset = 0x4, fixed_abs, tag = 'smem constant byte address 0x4 - core index']
  #allocation1 [shape = 'u32[72,128]{1,0:T(1,128)}', space=vmem, size = 0x9000, scoped, tag = 'internal scratch']
  %s0 = inlined_call_operand.vmem [shape: f32[2,256,16], index: 0, kind: input, shape index: {}]
  %s1 = inlined_call_operand.vmem [shape: f32[2,256,16], index: 1, kind: output, shape index: {}]
  %s2 = sld [smem:[#allocation0]]
  $region37: #{generator_forward.38} parent=0
    _
  %s4 = ssub.s32 1, %s2
  %s5 = scalar_select 0, %s4, %s2
  loop: start=0, step=1, limit=4
  $region2: #{generator_forward.38} parent=0 // loop_pre_header
    _
  $region3: #{generator_forward.38} parent=0 // loop_header
    %s7 = sphi 0, %s11
    %p8 = scmp.ge.s32.totalorder %s7, 4
    %s17 = sphi 0, %s19
    %s20 = sphi 0, %s17
    %s21 = sphi 0, %s20
    %s37 = sphi 0, %s21
    %s43 = sphi 0, %s45
    %s46 = sphi 0, %s43
    %s47 = sphi 0, %s46
    %s63 = sphi 0, %s47
  $region4: #{generator_forward.38} parent=0 // loop_header_branch
    %10 = sbr.rel (%p8) target = $region8
  $region5: #{generator_forward.38} parent=0 // loop_body
    %s12 = ssub.s32 %s7, 1
    %s13 = ssub.s32 %s7, 2
    %s14 = sadd.s32 %s7, 1
    %s15 = ssub.s32 %s7, %s14
    %p16 = scmp.eq.s32.totalorder %s15, 0
    %s18 = sadd.s32 %s17, 1
    %s19 = scalar_select %p16, %s17, %s18
    %p22 = pneg %p16
    %p23 = scmp.eq.s32.totalorder %s7, 1
    %p24 = por %p22, %p23
    %p25 = scmp.ne.s32.totalorder %s17, %s20
    %p26 = scmp.eq.s32.totalorder %s7, 0
    %p27 = por %p25, %p26
    %p28 = scmp.ne.s32.totalorder %s17, %s20
    %p29 = scmp.eq.s32.totalorder %s12, 1
    %p30 = por %p28, %p29
    %p31 = scmp.ne.s32.totalorder %s20, %s21
    %p32 = scmp.eq.s32.totalorder %s12, 0
    %p33 = por %p31, %p32
    %p34 = scmp.ne.s32.totalorder %s20, %s21
    %p35 = scmp.eq.s32.totalorder %s13, 1
    %p36 = por %p34, %p35
    %p38 = scmp.ne.s32.totalorder %s21, %s37
    %p39 = scmp.eq.s32.totalorder %s13, 0
    %p40 = por %p38, %p39
    %s41 = ssub.s32 %s7, %s14
    %p42 = scmp.eq.s32.totalorder %s41, 0
    %s44 = sadd.s32 %s43, 1
    %s45 = scalar_select %p42, %s43, %s44
    %p48 = pneg %p42
    %p49 = scmp.eq.s32.totalorder %s7, 1
    %p50 = por %p48, %p49
    %p51 = scmp.ne.s32.totalorder %s43, %s46
    %p52 = scmp.eq.s32.totalorder %s7, 0
    %p53 = por %p51, %p52
    %p54 = scmp.ne.s32.totalorder %s43, %s46
    %p55 = scmp.eq.s32.totalorder %s12, 1
    %p56 = por %p54, %p55
    %p57 = scmp.ne.s32.totalorder %s46, %s47
    %p58 = scmp.eq.s32.totalorder %s12, 0
    %p59 = por %p57, %p58
    %p60 = scmp.ne.s32.totalorder %s46, %s47
    %p61 = scmp.eq.s32.totalorder %s13, 1
    %p62 = por %p60, %p61
    %p64 = scmp.ne.s32.totalorder %s47, %s63
    %p65 = scmp.eq.s32.totalorder %s13, 0
    %p66 = por %p64, %p65
    %p67 = scmp.le.s32.totalorder 1, %s7
    %p68 = scmp.lt.s32.totalorder %s7, 3
    %p69 = pnand %p67, %p68
    %p70 = pneg %p69
    // Predicated region
    $region9: #{generator_forward.38} parent=5 // pred_check
      _
    $region10: #{generator_forward.38} parent=5 // pred_check_branch
      %72 = sbr.rel (%p69) target = $region12
    $region11: #{generator_forward.38} parent=5 // pred_region
      %s73 = ssub.s32 %s7, 1
    $region12: #{generator_forward.38} parent=5 // pred_fallthru
      _
    %p74 = scmp.lt.s32.totalorder %s7, 2
    // Predicated region
    $region13: #{generator_forward.38} parent=5 // pred_check
      %p75 = pneg %p74
    $region14: #{generator_forward.38} parent=5 // pred_check_branch
      %77 = sbr.rel (%p75) target = $region16
    $region15: #{generator_forward.38} parent=5 // pred_region
      // Predicated region
      $region17: #{generator_forward.38} parent=15 // pred_check
        %p78 = pneg %p27
      $region18: #{generator_forward.38} parent=15 // pred_check_branch
        %80 = sbr.rel (%p78) target = $region20
      $region19: #{generator_forward.38} parent=15 // pred_region
        %p81 = scmp.lt.s32.totalorder %s7, 1
        %s82 = scalar_select %p81, %s7, 1
        %s83 = smul.addr %s82, 32
        %s84 = smul.addr %s83, 8
        %s85 = scalar_lea.vmem %s0, %s84
      $region20: #{generator_forward.38} parent=15 // pred_fallthru
        _
    $region16: #{generator_forward.38} parent=5 // pred_fallthru
      _
    %p86 = scmp.le.s32.totalorder 1, %s7
    %p87 = scmp.lt.s32.totalorder %s7, 3
    %p88 = pnand %p86, %p87
    %p89 = pneg %p88
    // Predicated region
    $region21: #{generator_forward.38} parent=5 // pred_check
      _
    $region22: #{generator_forward.38} parent=5 // pred_check_branch
      %91 = sbr.rel (%p88) target = $region24
    $region23: #{generator_forward.38} parent=5 // pred_region
      %s92 = ssub.s32 %s7, 1
      %p93 = scmp.lt.s32.totalorder %s12, 1
      %s94 = scalar_select %p93, %s12, 1
      %s95 = smul.addr %s94, 32
      %s96 = smul.addr %s95, 8
      %s97 = scalar_lea.vmem %s0, %s96
      %p98 = pneg %p33
      %p99 = pneg %p30
      %p100 = pneg %p59
      %p101 = pneg %p56
      %p102 = scmp.lt.s32.totalorder %s12, 1
      %s103 = scalar_select %p102, %s12, 1
      %s104 = smul.addr %s103, 32
      %s105 = smul.addr %s104, 8
      %s106 = scalar_lea.vmem %s1, %s105
      %p107 = scmp.lt.s32.totalorder %s12, 1
      %s108 = scalar_select %p107, %s12, 1
      %s109 = smul.addr %s108, 32
      %s110 = smul.addr %s109, 8
      %s111 = scalar_lea.vmem %s0, %s110
      %p112 = scmp.lt.s32.totalorder %s12, 1
      %s113 = scalar_select %p112, %s12, 1
      %s114 = smul.addr %s113, 32
      %s115 = smul.addr %s114, 8
      %s116 = scalar_lea.vmem %s1, %s115
      %v117 = vld [vmem:[%s111] sm:$0xff]
      %v118 = vld [vmem:[%s111 + $0x8] sm:$0xff]
      %v119 = vld [vmem:[%s111 + $0x10] sm:$0xff]
      %v120 = vld [vmem:[%s111 + $0x18] sm:$0xff]
      %v121 = vld [vmem:[%s111 + $0x20] sm:$0xff]
      %v122 = vld [vmem:[%s111 + $0x28] sm:$0xff]
      %v123 = vld [vmem:[%s111 + $0x30] sm:$0xff]
      %v124 = vld [vmem:[%s111 + $0x38] sm:$0xff]
      %v125 = vld [vmem:[%s111 + $0x40] sm:$0xff]
      %v126 = vld [vmem:[%s111 + $0x48] sm:$0xff]
      %v127 = vld [vmem:[%s111 + $0x50] sm:$0xff]
      %v128 = vld [vmem:[%s111 + $0x58] sm:$0xff]
      %v129 = vld [vmem:[%s111 + $0x60] sm:$0xff]
      %v130 = vld [vmem:[%s111 + $0x68] sm:$0xff]
      %v131 = vld [vmem:[%s111 + $0x70] sm:$0xff]
      %v132 = vld [vmem:[%s111 + $0x78] sm:$0xff]
      %v133 = vld [vmem:[%s111 + $0x80] sm:$0xff]
      %v134 = vld [vmem:[%s111 + $0x88] sm:$0xff]
      %v135 = vld [vmem:[%s111 + $0x90] sm:$0xff]
      %v136 = vld [vmem:[%s111 + $0x98] sm:$0xff]
      %v137 = vld [vmem:[%s111 + $0xa0] sm:$0xff]
      %v138 = vld [vmem:[%s111 + $0xa8] sm:$0xff]
      %v139 = vld [vmem:[%s111 + $0xb0] sm:$0xff]
      %v140 = vld [vmem:[%s111 + $0xb8] sm:$0xff]
      %v141 = vld [vmem:[%s111 + $0xc0] sm:$0xff]
      %v142 = vld [vmem:[%s111 + $0xc8] sm:$0xff]
      %v143 = vld [vmem:[%s111 + $0xd0] sm:$0xff]
      %v144 = vld [vmem:[%s111 + $0xd8] sm:$0xff]
      %v145 = vld [vmem:[%s111 + $0xe0] sm:$0xff]
      %v146 = vld [vmem:[%s111 + $0xe8] sm:$0xff]
      %v147 = vld [vmem:[%s111 + $0xf0] sm:$0xff]
      %v148 = vld [vmem:[%s111 + $0xf8] sm:$0xff]
      %vm149 = vcmask 130048
      %v150 = vsel %vm149, %v117, 0.0
      %v151 = vsel %vm149, %v118, 0.0
      %v152 = vadd.f32 %v150, %v151
      %v153 = vsel %vm149, %v119, 0.0
      %v154 = vadd.f32 %v152, %v153
      %v155 = vsel %vm149, %v120, 0.0
      %v156 = vadd.f32 %v154, %v155
      %v157 = vsel %vm149, %v121, 0.0
      %v158 = vadd.f32 %v156, %v157
      %v159 = vsel %vm149, %v122, 0.0
      %v160 = vadd.f32 %v158, %v159
      %v161 = vsel %vm149, %v123, 0.0
      %v162 = vadd.f32 %v160, %v161
      %v163 = vsel %vm149, %v124, 0.0
      %v164 = vadd.f32 %v162, %v163
      %v165 = vsel %vm149, %v125, 0.0
      %v166 = vadd.f32 %v164, %v165
      %v167 = vsel %vm149, %v126, 0.0
      %v168 = vadd.f32 %v166, %v167
      %v169 = vsel %vm149, %v127, 0.0
      %v170 = vadd.f32 %v168, %v169
      %v171 = vsel %vm149, %v128, 0.0
      %v172 = vadd.f32 %v170, %v171
      %v173 = vsel %vm149, %v129, 0.0
      %v174 = vadd.f32 %v172, %v173
      %v175 = vsel %vm149, %v130, 0.0
      %v176 = vadd.f32 %v174, %v175
      %v177 = vsel %vm149, %v131, 0.0
      %v178 = vadd.f32 %v176, %v177
      %v179 = vsel %vm149, %v132, 0.0
      %v180 = vadd.f32 %v178, %v179
      %v181 = vsel %vm149, %v133, 0.0
      %v182 = vadd.f32 %v180, %v181
      %v183 = vsel %vm149, %v134, 0.0
      %v184 = vadd.f32 %v182, %v183
      %v185 = vsel %vm149, %v135, 0.0
      %v186 = vadd.f32 %v184, %v185
      %v187 = vsel %vm149, %v136, 0.0
      %v188 = vadd.f32 %v186, %v187
      %v189 = vsel %vm149, %v137, 0.0
      %v190 = vadd.f32 %v188, %v189
      %v191 = vsel %vm149, %v138, 0.0
      %v192 = vadd.f32 %v190, %v191
      %v193 = vsel %vm149, %v139, 0.0
      %v194 = vadd.f32 %v192, %v193
      %v195 = vsel %vm149, %v140, 0.0
      %v196 = vadd.f32 %v194, %v195
      %v197 = vsel %vm149, %v141, 0.0
      %v198 = vadd.f32 %v196, %v197
      %v199 = vsel %vm149, %v142, 0.0
      %v200 = vadd.f32 %v198, %v199
      %v201 = vsel %vm149, %v143, 0.0
      %v202 = vadd.f32 %v200, %v201
      %v203 = vsel %vm149, %v144, 0.0
      %v204 = vadd.f32 %v202, %v203
      %v205 = vsel %vm149, %v145, 0.0
      %v206 = vadd.f32 %v204, %v205
      %v207 = vsel %vm149, %v146, 0.0
      %v208 = vadd.f32 %v206, %v207
      %v209 = vsel %vm149, %v147, 0.0
      %v210 = vadd.f32 %v208, %v209
      %v211 = vsel %vm149, %v148, 0.0
      %v212 = vadd.f32 %v210, %v211
      %v213 = vrot.slane %v212, 4
      %v214 = vadd.f32 %v212, %v213
      %v215 = vrot.slane %v214, 2
      %v216 = vadd.f32 %v214, %v215
      %v217 = vrot.slane %v216, 1
      %v218 = vadd.f32 %v216, %v217
      %v219 = vrcp.pop 256.0
      %v220 = vmul.f32 256.0, %v219
      %v221 = vsub.f32 1.0, %v220
      %v222 = vmul.f32 %v219, %v221
      %v223 = vadd.f32 %v219, %v222
      %vm224 = vweird.f32 %v219
      %v225 = vsel %vm224, %v219, %v223
      %v226 = vmul.f32 %v218, %v225
      %v227 = vsub.f32 %v117, %v226
      %v228 = vsub.f32 %v118, %v226
      %v229 = vsub.f32 %v119, %v226
      %v230 = vsub.f32 %v120, %v226
      %v231 = vsub.f32 %v121, %v226
      %v232 = vsub.f32 %v122, %v226
      %v233 = vsub.f32 %v123, %v226
      %v234 = vsub.f32 %v124, %v226
      %v235 = vsub.f32 %v125, %v226
      %v236 = vsub.f32 %v126, %v226
      %v237 = vsub.f32 %v127, %v226
      %v238 = vsub.f32 %v128, %v226
      %v239 = vsub.f32 %v129, %v226
      %v240 = vsub.f32 %v130, %v226
      %v241 = vsub.f32 %v131, %v226
      %v242 = vsub.f32 %v132, %v226
      %v243 = vsub.f32 %v133, %v226
      %v244 = vsub.f32 %v134, %v226
      %v245 = vsub.f32 %v135, %v226
      %v246 = vsub.f32 %v136, %v226
      %v247 = vsub.f32 %v137, %v226
      %v248 = vsub.f32 %v138, %v226
      %v249 = vsub.f32 %v139, %v226
      %v250 = vsub.f32 %v140, %v226
      %v251 = vsub.f32 %v141, %v226
      %v252 = vsub.f32 %v142, %v226
      %v253 = vsub.f32 %v143, %v226
      %v254 = vsub.f32 %v144, %v226
      %v255 = vsub.f32 %v145, %v226
      %v256 = vsub.f32 %v146, %v226
      %v257 = vsub.f32 %v147, %v226
      %v258 = vsub.f32 %v148, %v226
      %v259 = vmul.f32 %v227, %v227
      %v260 = vmul.f32 %v228, %v228
      %v261 = vmul.f32 %v229, %v229
      %v262 = vmul.f32 %v230, %v230
      %v263 = vmul.f32 %v231, %v231
      %v264 = vmul.f32 %v232, %v232
      %v265 = vmul.f32 %v233, %v233
      %v266 = vmul.f32 %v234, %v234
      %v267 = vmul.f32 %v235, %v235
      %v268 = vmul.f32 %v236, %v236
      %v269 = vmul.f32 %v237, %v237
      %v270 = vmul.f32 %v238, %v238
      %v271 = vmul.f32 %v239, %v239
      %v272 = vmul.f32 %v240, %v240
      %v273 = vmul.f32 %v241, %v241
      %v274 = vmul.f32 %v242, %v242
      %v275 = vmul.f32 %v243, %v243
      %v276 = vmul.f32 %v244, %v244
      %v277 = vmul.f32 %v245, %v245
      %v278 = vmul.f32 %v246, %v246
      %v279 = vmul.f32 %v247, %v247
      %v280 = vmul.f32 %v248, %v248
      %v281 = vmul.f32 %v249, %v249
      %v282 = vmul.f32 %v250, %v250
      %v283 = vmul.f32 %v251, %v251
      %v284 = vmul.f32 %v252, %v252
      %v285 = vmul.f32 %v253, %v253
      %v286 = vmul.f32 %v254, %v254
      %v287 = vmul.f32 %v255, %v255
      %v288 = vmul.f32 %v256, %v256
      %v289 = vmul.f32 %v257, %v257
      %v290 = vmul.f32 %v258, %v258
      %v291 = vsel %vm149, %v259, 0.0
      %v292 = vsel %vm149, %v260, 0.0
      %v293 = vadd.f32 %v291, %v292
      %v294 = vsel %vm149, %v261, 0.0
      %v295 = vadd.f32 %v293, %v294
      %v296 = vsel %vm149, %v262, 0.0
      %v297 = vadd.f32 %v295, %v296
      %v298 = vsel %vm149, %v263, 0.0
      %v299 = vadd.f32 %v297, %v298
      %v300 = vsel %vm149, %v264, 0.0
      %v301 = vadd.f32 %v299, %v300
      %v302 = vsel %vm149, %v265, 0.0
      %v303 = vadd.f32 %v301, %v302
      %v304 = vsel %vm149, %v266, 0.0
      %v305 = vadd.f32 %v303, %v304
      %v306 = vsel %vm149, %v267, 0.0
      %v307 = vadd.f32 %v305, %v306
      %v308 = vsel %vm149, %v268, 0.0
      %v309 = vadd.f32 %v307, %v308
      %v310 = vsel %vm149, %v269, 0.0
      %v311 = vadd.f32 %v309, %v310
      %v312 = vsel %vm149, %v270, 0.0
      %v313 = vadd.f32 %v311, %v312
      %v314 = vsel %vm149, %v271, 0.0
      %v315 = vadd.f32 %v313, %v314
      %v316 = vsel %vm149, %v272, 0.0
      %v317 = vadd.f32 %v315, %v316
      %v318 = vsel %vm149, %v273, 0.0
      %v319 = vadd.f32 %v317, %v318
      %v320 = vsel %vm149, %v274, 0.0
      %v321 = vadd.f32 %v319, %v320
      %v322 = vsel %vm149, %v275, 0.0
      %v323 = vadd.f32 %v321, %v322
      %v324 = vsel %vm149, %v276, 0.0
      %v325 = vadd.f32 %v323, %v324
      %v326 = vsel %vm149, %v277, 0.0
      %v327 = vadd.f32 %v325, %v326
      %v328 = vsel %vm149, %v278, 0.0
      %v329 = vadd.f32 %v327, %v328
      %v330 = vsel %vm149, %v279, 0.0
      %v331 = vadd.f32 %v329, %v330
      %v332 = vsel %vm149, %v280, 0.0
      %v333 = vadd.f32 %v331, %v332
      %v334 = vsel %vm149, %v281, 0.0
      %v335 = vadd.f32 %v333, %v334
      %v336 = vsel %vm149, %v282, 0.0
      %v337 = vadd.f32 %v335, %v336
      %v338 = vsel %vm149, %v283, 0.0
      %v339 = vadd.f32 %v337, %v338
      %v340 = vsel %vm149, %v284, 0.0
      %v341 = vadd.f32 %v339, %v340
      %v342 = vsel %vm149, %v285, 0.0
      %v343 = vadd.f32 %v341, %v342
      %v344 = vsel %vm149, %v286, 0.0
      %v345 = vadd.f32 %v343, %v344
      %v346 = vsel %vm149, %v287, 0.0
      %v347 = vadd.f32 %v345, %v346
      %v348 = vsel %vm149, %v288, 0.0
      %v349 = vadd.f32 %v347, %v348
      %v350 = vsel %vm149, %v289, 0.0
      %v351 = vadd.f32 %v349, %v350
      %v352 = vsel %vm149, %v290, 0.0
      %v353 = vadd.f32 %v351, %v352
      %v354 = vrot.slane %v353, 4
      %v355 = vadd.f32 %v353, %v354
      %v356 = vrot.slane %v355, 2
      %v357 = vadd.f32 %v355, %v356
      %v358 = vrot.slane %v357, 1
      %v359 = vadd.f32 %v357, %v358
      %v360 = vmul.f32 %v359, %v225
      %v361 = vadd.f32 %v360, 1e-05
      %v362 = vrsqrt.pop %v361
      %v363 = vmul.f32 %v362, %v361
      %v364 = vmul.f32 %v363, %v362
      %v365 = vmul.f32 0.5, %v364
      %v366 = vsub.f32 1.5, %v365
      %v367 = vmul.f32 %v362, %v366
      %vm368 = vweird.f32 %v361
      %vm369 = vweird.f32 %v362
      %vm370 = vmor %vm368, %vm369
      %v371 = vsel %vm370, %v362, %v367
      %v372 = vmul.f32 %v227, %v371
      %v373 = vmul.f32 %v228, %v371
      %v374 = vmul.f32 %v229, %v371
      %v375 = vmul.f32 %v230, %v371
      %v376 = vmul.f32 %v231, %v371
      %v377 = vmul.f32 %v232, %v371
      %v378 = vmul.f32 %v233, %v371
      %v379 = vmul.f32 %v234, %v371
      %v380 = vmul.f32 %v235, %v371
      %v381 = vmul.f32 %v236, %v371
      %v382 = vmul.f32 %v237, %v371
      %v383 = vmul.f32 %v238, %v371
      %v384 = vmul.f32 %v239, %v371
      %v385 = vmul.f32 %v240, %v371
      %v386 = vmul.f32 %v241, %v371
      %v387 = vmul.f32 %v242, %v371
      %v388 = vmul.f32 %v243, %v371
      %v389 = vmul.f32 %v244, %v371
      %v390 = vmul.f32 %v245, %v371
      %v391 = vmul.f32 %v246, %v371
      %v392 = vmul.f32 %v247, %v371
      %v393 = vmul.f32 %v248, %v371
      %v394 = vmul.f32 %v249, %v371
      %v395 = vmul.f32 %v250, %v371
      %v396 = vmul.f32 %v251, %v371
      %v397 = vmul.f32 %v252, %v371
      %v398 = vmul.f32 %v253, %v371
      %v399 = vmul.f32 %v254, %v371
      %v400 = vmul.f32 %v255, %v371
      %v401 = vmul.f32 %v256, %v371
      %v402 = vmul.f32 %v257, %v371
      %v403 = vmul.f32 %v258, %v371
      %v404 = vmax.f32 %v372, 0.0
      %v405 = vmax.f32 %v373, 0.0
      %v406 = vmax.f32 %v374, 0.0
      %v407 = vmax.f32 %v375, 0.0
      %v408 = vmax.f32 %v376, 0.0
      %v409 = vmax.f32 %v377, 0.0
      %v410 = vmax.f32 %v378, 0.0
      %v411 = vmax.f32 %v379, 0.0
      %v412 = vmax.f32 %v380, 0.0
      %v413 = vmax.f32 %v381, 0.0
      %v414 = vmax.f32 %v382, 0.0
      %v415 = vmax.f32 %v383, 0.0
      %v416 = vmax.f32 %v384, 0.0
      %v417 = vmax.f32 %v385, 0.0
      %v418 = vmax.f32 %v386, 0.0
      %v419 = vmax.f32 %v387, 0.0
      %v420 = vmax.f32 %v388, 0.0
      %v421 = vmax.f32 %v389, 0.0
      %v422 = vmax.f32 %v390, 0.0
      %v423 = vmax.f32 %v391, 0.0
      %v424 = vmax.f32 %v392, 0.0
      %v425 = vmax.f32 %v393, 0.0
      %v426 = vmax.f32 %v394, 0.0
      %v427 = vmax.f32 %v395, 0.0
      %v428 = vmax.f32 %v396, 0.0
      %v429 = vmax.f32 %v397, 0.0
      %v430 = vmax.f32 %v398, 0.0
      %v431 = vmax.f32 %v399, 0.0
      %v432 = vmax.f32 %v400, 0.0
      %v433 = vmax.f32 %v401, 0.0
      %v434 = vmax.f32 %v402, 0.0
      %v435 = vmax.f32 %v403, 0.0
      %436 = vst.msk [vmem:[%s116] sm:$0xff] %vm149, %v404
      %437 = vst.msk [vmem:[%s116 + $0x8] sm:$0xff] %vm149, %v405
      %438 = vst.msk [vmem:[%s116 + $0x10] sm:$0xff] %vm149, %v406
      %439 = vst.msk [vmem:[%s116 + $0x18] sm:$0xff] %vm149, %v407
      %440 = vst.msk [vmem:[%s116 + $0x20] sm:$0xff] %vm149, %v408
      %441 = vst.msk [vmem:[%s116 + $0x28] sm:$0xff] %vm149, %v409
      %442 = vst.msk [vmem:[%s116 + $0x30] sm:$0xff] %vm149, %v410
      %443 = vst.msk [vmem:[%s116 + $0x38] sm:$0xff] %vm149, %v411
      %444 = vst.msk [vmem:[%s116 + $0x40] sm:$0xff] %vm149, %v412
      %445 = vst.msk [vmem:[%s116 + $0x48] sm:$0xff] %vm149, %v413
      %446 = vst.msk [vmem:[%s116 + $0x50] sm:$0xff] %vm149, %v414
      %447 = vst.msk [vmem:[%s116 + $0x58] sm:$0xff] %vm149, %v415
      %448 = vst.msk [vmem:[%s116 + $0x60] sm:$0xff] %vm149, %v416
      %449 = vst.msk [vmem:[%s116 + $0x68] sm:$0xff] %vm149, %v417
      %450 = vst.msk [vmem:[%s116 + $0x70] sm:$0xff] %vm149, %v418
      %451 = vst.msk [vmem:[%s116 + $0x78] sm:$0xff] %vm149, %v419
      %452 = vst.msk [vmem:[%s116 + $0x80] sm:$0xff] %vm149, %v420
      %453 = vst.msk [vmem:[%s116 + $0x88] sm:$0xff] %vm149, %v421
      %454 = vst.msk [vmem:[%s116 + $0x90] sm:$0xff] %vm149, %v422
      %455 = vst.msk [vmem:[%s116 + $0x98] sm:$0xff] %vm149, %v423
      %456 = vst.msk [vmem:[%s116 + $0xa0] sm:$0xff] %vm149, %v424
      %457 = vst.msk [vmem:[%s116 + $0xa8] sm:$0xff] %vm149, %v425
      %458 = vst.msk [vmem:[%s116 + $0xb0] sm:$0xff] %vm149, %v426
      %459 = vst.msk [vmem:[%s116 + $0xb8] sm:$0xff] %vm149, %v427
      %460 = vst.msk [vmem:[%s116 + $0xc0] sm:$0xff] %vm149, %v428
      %461 = vst.msk [vmem:[%s116 + $0xc8] sm:$0xff] %vm149, %v429
      %462 = vst.msk [vmem:[%s116 + $0xd0] sm:$0xff] %vm149, %v430
      %463 = vst.msk [vmem:[%s116 + $0xd8] sm:$0xff] %vm149, %v431
      %464 = vst.msk [vmem:[%s116 + $0xe0] sm:$0xff] %vm149, %v432
      %465 = vst.msk [vmem:[%s116 + $0xe8] sm:$0xff] %vm149, %v433
      %466 = vst.msk [vmem:[%s116 + $0xf0] sm:$0xff] %vm149, %v434
      %467 = vst.msk [vmem:[%s116 + $0xf8] sm:$0xff] %vm149, %v435
      %p468 = scmp.lt.s32.totalorder %s12, 1
      %s469 = scalar_select %p468, %s12, 1
      %s470 = smul.addr %s469, 32
      %s471 = smul.addr %s470, 8
      %s472 = scalar_lea.vmem %s1, %s471
      // Predicated region
      $region25: #{generator_forward.38} parent=23 // pred_check
        %p473 = pneg %p56
      $region26: #{generator_forward.38} parent=23 // pred_check_branch
        %475 = sbr.rel (%p473) target = $region28
      $region27: #{generator_forward.38} parent=23 // pred_region
        _
      $region28: #{generator_forward.38} parent=23 // pred_fallthru
        _
    $region24: #{generator_forward.38} parent=5 // pred_fallthru
      _
    %p476 = scmp.le.s32.totalorder 2, %s7
    // Predicated region
    $region29: #{generator_forward.38} parent=5 // pred_check
      %p477 = pneg %p476
    $region30: #{generator_forward.38} parent=5 // pred_check_branch
      %479 = sbr.rel (%p477) target = $region32
    $region31: #{generator_forward.38} parent=5 // pred_region
      %s480 = ssub.s32 %s7, 2
      // Predicated region
      $region33: #{generator_forward.38} parent=31 // pred_check
        %p481 = pneg %p62
      $region34: #{generator_forward.38} parent=31 // pred_check_branch
        %483 = sbr.rel (%p481) target = $region36
      $region35: #{generator_forward.38} parent=31 // pred_region
        %p484 = scmp.lt.s32.totalorder %s13, 1
        %s485 = scalar_select %p484, %s13, 1
        %s486 = smul.addr %s485, 32
        %s487 = smul.addr %s486, 8
        %s488 = scalar_lea.vmem %s1, %s487
      $region36: #{generator_forward.38} parent=31 // pred_fallthru
        _
    $region32: #{generator_forward.38} parent=5 // pred_fallthru
      _
  $region6: #{generator_forward.38} parent=0 // loop_footer
    %s11 = sadd.s32 1, %s7
  $region7: #{generator_forward.38} parent=0 // loop_footer_branch
    %6 = sbr.rel target = $region3
  $region8: #{generator_forward.38} parent=0 // loop_exit
    _

// kernel: generator_forward.39
$region0: #{generator_forward.39}
  #allocation0 [shape = 'u32[]', space=smem, size = 0x4, offset = 0x4, fixed_abs, tag = 'smem constant byte address 0x4 - core index']
  #allocation1 [shape = 'u32[72,128]{1,0:T(1,128)}', space=vmem, size = 0x9000, scoped, tag = 'internal scratch']
  %s0 = inlined_call_operand.vmem [shape: f32[512,1568], index: 0, kind: input, shape index: {}]
  %s1 = inlined_call_operand.vmem [shape: f32[1568,3], index: 1, kind: input, shape index: {}]
  %s2 = inlined_call_operand.vmem [shape: f32[1,3], index: 2, kind: input, shape index: {}]
  %s3 = inlined_call_operand.vmem [shape: f32[512,3], index: 3, kind: output, shape index: {}]
  %s4 = sld [smem:[#allocation0]]
  $region45: #{generator_forward.39} parent=0
    _
  %s6 = ssub.s32 1, %s4
  %s7 = scalar_select 0, %s6, %s4
  loop: start=0, step=1, limit=4
  $region2: #{generator_forward.39} parent=0 // loop_pre_header
    _
  $region3: #{generator_forward.39} parent=0 // loop_header
    %s9 = sphi 0, %s13
    %p10 = scmp.ge.s32.totalorder %s9, 4
    %s19 = sphi 0, %s21
    %s22 = sphi 0, %s19
    %s23 = sphi 0, %s22
    %s39 = sphi 0, %s23
    %s43 = sphi 0, %s43
    %s45 = sphi 0, %s43
    %s46 = sphi 0, %s45
    %s60 = sphi 0, %s46
    %s64 = sphi 0, %s64
    %s66 = sphi 0, %s64
    %s67 = sphi 0, %s66
    %s81 = sphi 0, %s67
    %s87 = sphi 0, %s89
    %s90 = sphi 0, %s87
    %s91 = sphi 0, %s90
    %s107 = sphi 0, %s91
  $region4: #{generator_forward.39} parent=0 // loop_header_branch
    %12 = sbr.rel (%p10) target = $region8
  $region5: #{generator_forward.39} parent=0 // loop_body
    %s14 = ssub.s32 %s9, 1
    %s15 = ssub.s32 %s9, 2
    %s16 = sadd.s32 %s9, 1
    %s17 = ssub.s32 %s9, %s16
    %p18 = scmp.eq.s32.totalorder %s17, 0
    %s20 = sadd.s32 %s19, 1
    %s21 = scalar_select %p18, %s19, %s20
    %p24 = pneg %p18
    %p25 = scmp.eq.s32.totalorder %s9, 1
    %p26 = por %p24, %p25
    %p27 = scmp.ne.s32.totalorder %s19, %s22
    %p28 = scmp.eq.s32.totalorder %s9, 0
    %p29 = por %p27, %p28
    %p30 = scmp.ne.s32.totalorder %s19, %s22
    %p31 = scmp.eq.s32.totalorder %s14, 1
    %p32 = por %p30, %p31
    %p33 = scmp.ne.s32.totalorder %s22, %s23
    %p34 = scmp.eq.s32.totalorder %s14, 0
    %p35 = por %p33, %p34
    %p36 = scmp.ne.s32.totalorder %s22, %s23
    %p37 = scmp.eq.s32.totalorder %s15, 1
    %p38 = por %p36, %p37
    %p40 = scmp.ne.s32.totalorder %s23, %s39
    %p41 = scmp.eq.s32.totalorder %s15, 0
    %p42 = por %p40, %p41
    %s44 = sadd.s32 %s43, 1
    %p47 = scmp.eq.s32.totalorder %s9, 1
    %p48 = scmp.ne.s32.totalorder %s43, %s45
    %p49 = scmp.eq.s32.totalorder %s9, 0
    %p50 = por %p48, %p49
    %p51 = scmp.ne.s32.totalorder %s43, %s45
    %p52 = scmp.eq.s32.totalorder %s14, 1
    %p53 = por %p51, %p52
    %p54 = scmp.ne.s32.totalorder %s45, %s46
    %p55 = scmp.eq.s32.totalorder %s14, 0
    %p56 = por %p54, %p55
    %p57 = scmp.ne.s32.totalorder %s45, %s46
    %p58 = scmp.eq.s32.totalorder %s15, 1
    %p59 = por %p57, %p58
    %p61 = scmp.ne.s32.totalorder %s46, %s60
    %p62 = scmp.eq.s32.totalorder %s15, 0
    %p63 = por %p61, %p62
    %s65 = sadd.s32 %s64, 1
    %p68 = scmp.eq.s32.totalorder %s9, 1
    %p69 = scmp.ne.s32.totalorder %s64, %s66
    %p70 = scmp.eq.s32.totalorder %s9, 0
    %p71 = por %p69, %p70
    %p72 = scmp.ne.s32.totalorder %s64, %s66
    %p73 = scmp.eq.s32.totalorder %s14, 1
    %p74 = por %p72, %p73
    %p75 = scmp.ne.s32.totalorder %s66, %s67
    %p76 = scmp.eq.s32.totalorder %s14, 0
    %p77 = por %p75, %p76
    %p78 = scmp.ne.s32.totalorder %s66, %s67
    %p79 = scmp.eq.s32.totalorder %s15, 1
    %p80 = por %p78, %p79
    %p82 = scmp.ne.s32.totalorder %s67, %s81
    %p83 = scmp.eq.s32.totalorder %s15, 0
    %p84 = por %p82, %p83
    %s85 = ssub.s32 %s9, %s16
    %p86 = scmp.eq.s32.totalorder %s85, 0
    %s88 = sadd.s32 %s87, 1
    %s89 = scalar_select %p86, %s87, %s88
    %p92 = pneg %p86
    %p93 = scmp.eq.s32.totalorder %s9, 1
    %p94 = por %p92, %p93
    %p95 = scmp.ne.s32.totalorder %s87, %s90
    %p96 = scmp.eq.s32.totalorder %s9, 0
    %p97 = por %p95, %p96
    %p98 = scmp.ne.s32.totalorder %s87, %s90
    %p99 = scmp.eq.s32.totalorder %s14, 1
    %p100 = por %p98, %p99
    %p101 = scmp.ne.s32.totalorder %s90, %s91
    %p102 = scmp.eq.s32.totalorder %s14, 0
    %p103 = por %p101, %p102
    %p104 = scmp.ne.s32.totalorder %s90, %s91
    %p105 = scmp.eq.s32.totalorder %s15, 1
    %p106 = por %p104, %p105
    %p108 = scmp.ne.s32.totalorder %s91, %s107
    %p109 = scmp.eq.s32.totalorder %s15, 0
    %p110 = por %p108, %p109
    %p111 = scmp.le.s32.totalorder 1, %s9
    %p112 = scmp.lt.s32.totalorder %s9, 3
    %p113 = pnand %p111, %p112
    %p114 = pneg %p113
    // Predicated region
    $region9: #{generator_forward.39} parent=5 // pred_check
      _
    $region10: #{generator_forward.39} parent=5 // pred_check_branch
      %116 = sbr.rel (%p113) target = $region12
    $region11: #{generator_forward.39} parent=5 // pred_region
      %s117 = ssub.s32 %s9, 1
      // Predicated region
      $region13: #{generator_forward.39} parent=11 // pred_check
        %p118 = pneg %p56
      $region14: #{generator_forward.39} parent=11 // pred_check_branch
        %120 = sbr.rel (%p118) target = $region16
      $region15: #{generator_forward.39} parent=11 // pred_region
        _
      $region16: #{generator_forward.39} parent=11 // pred_fallthru
        _
      // Predicated region
      $region17: #{generator_forward.39} parent=11 // pred_check
        %p121 = pneg %p77
      $region18: #{generator_forward.39} parent=11 // pred_check_branch
        %123 = sbr.rel (%p121) target = $region20
      $region19: #{generator_forward.39} parent=11 // pred_region
        _
      $region20: #{generator_forward.39} parent=11 // pred_fallthru
        _
    $region12: #{generator_forward.39} parent=5 // pred_fallthru
      _
    %p124 = scmp.lt.s32.totalorder %s9, 2
    // Predicated region
    $region21: #{generator_forward.39} parent=5 // pred_check
      %p125 = pneg %p124
    $region22: #{generator_forward.39} parent=5 // pred_check_branch
      %127 = sbr.rel (%p125) target = $region24
    $region23: #{generator_forward.39} parent=5 // pred_region
      // Predicated region
      $region25: #{generator_forward.39} parent=23 // pred_check
        %p128 = pneg %p29
      $region26: #{generator_forward.39} parent=23 // pred_check_branch
        %130 = sbr.rel (%p128) target = $region28
      $region27: #{generator_forward.39} parent=23 // pred_region
        %s131 = smul.u32 32, %s9
        %p132 = scmp.lt.s32.totalorder %s131, 63
        %s133 = scalar_select %p132, %s131, 63
        %s134 = smul.addr %s133, 13
        %s135 = smul.addr %s134, 8
        %s136 = scalar_lea.vmem %s0, %s135
        %s137 = smul.u32 32, %s9
      $region28: #{generator_forward.39} parent=23 // pred_fallthru
        _
    $region24: #{generator_forward.39} parent=5 // pred_fallthru
      _
    %p138 = scmp.le.s32.totalorder 1, %s9
    %p139 = scmp.lt.s32.totalorder %s9, 3
    %p140 = pnand %p138, %p139
    %p141 = pneg %p140
    // Predicated region
    $region29: #{generator_forward.39} parent=5 // pred_check
      _
    $region30: #{generator_forward.39} parent=5 // pred_check_branch
      %143 = sbr.rel (%p140) target = $region32
    $region31: #{generator_forward.39} parent=5 // pred_region
      %s144 = ssub.s32 %s9, 1
      %s145 = smul.u32 32, %s14
      %p146 = scmp.lt.s32.totalorder %s145, 63
      %s147 = scalar_select %p146, %s145, 63
      %s148 = smul.addr %s147, 13
      %s149 = smul.addr %s148, 8
      %s150 = scalar_lea.vmem %s0, %s149
      %p151 = pneg %p35
      %p152 = pneg %p32
      %p153 = pneg %p56
      %p154 = pneg %p53
      %p155 = pneg %p77
      %p156 = pneg %p74
      %p157 = pneg %p103
      %p158 = pneg %p100
      %s159 = smul.u32 32, %s14
      %p160 = scmp.lt.s32.totalorder %s159, 63
      %s161 = scalar_select %p160, %s159, 63
      %s162 = smul.addr %s161, 8
      %s163 = scalar_lea.vmem %s3, %s162
      %s164 = smul.u32 32, %s14
      %p165 = scmp.lt.s32.totalorder %s164, 63
      %s166 = scalar_select %p165, %s164, 63
      %s167 = smul.addr %s166, 13
      %s168 = smul.addr %s167, 8
      %s169 = scalar_lea.vmem %s0, %s168
      %s170 = smul.u32 32, %s14
      %s171 = smul.u32 32, %s14
      %p172 = scmp.lt.s32.totalorder %s171, 63
      %s173 = scalar_select %p172, %s171, 63
      %s174 = smul.addr %s173, 8
      %s175 = scalar_lea.vmem %s3, %s174
      %s176 = smul.u32 32, %s14
      %v177 = vld [vmem:[%s169] sm:$0xff]
      %v178 = vld [vmem:[%s169 + $0x8] sm:$0xff]
      %v179 = vld [vmem:[%s169 + $0x10] sm:$0xff]
      %v180 = vld [vmem:[%s169 + $0x18] sm:$0xff]
      %v181 = vld [vmem:[%s169 + $0x20] sm:$0xff]
      %v182 = vld [vmem:[%s169 + $0x28] sm:$0xff]
      %v183 = vld [vmem:[%s169 + $0x30] sm:$0xff]
      %v184 = vld [vmem:[%s169 + $0x38] sm:$0xff]
      %v185 = vld [vmem:[%s169 + $0x40] sm:$0xff]
      %v186 = vld [vmem:[%s169 + $0x48] sm:$0xff]
      %v187 = vld [vmem:[%s169 + $0x50] sm:$0xff]
      %v188 = vld [vmem:[%s169 + $0x58] sm:$0xff]
      %v189 = vld [vmem:[%s169 + $0x60] sm:$0xff]
      %v190 = vld [vmem:[%s169 + $0x68] sm:$0xff]
      %v191 = vld [vmem:[%s169 + $0x70] sm:$0xff]
      %v192 = vld [vmem:[%s169 + $0x78] sm:$0xff]
      %v193 = vld [vmem:[%s169 + $0x80] sm:$0xff]
      %v194 = vld [vmem:[%s169 + $0x88] sm:$0xff]
      %v195 = vld [vmem:[%s169 + $0x90] sm:$0xff]
      %v196 = vld [vmem:[%s169 + $0x98] sm:$0xff]
      %v197 = vld [vmem:[%s169 + $0xa0] sm:$0xff]
      %v198 = vld [vmem:[%s169 + $0xa8] sm:$0xff]
      %v199 = vld [vmem:[%s169 + $0xb0] sm:$0xff]
      %v200 = vld [vmem:[%s169 + $0xb8] sm:$0xff]
      %v201 = vld [vmem:[%s169 + $0xc0] sm:$0xff]
      %v202 = vld [vmem:[%s169 + $0xc8] sm:$0xff]
      %v203 = vld [vmem:[%s169 + $0xd0] sm:$0xff]
      %v204 = vld [vmem:[%s169 + $0xd8] sm:$0xff]
      %v205 = vld [vmem:[%s169 + $0xe0] sm:$0xff]
      %v206 = vld [vmem:[%s169 + $0xe8] sm:$0xff]
      %v207 = vld [vmem:[%s169 + $0xf0] sm:$0xff]
      %v208 = vld [vmem:[%s169 + $0xf8] sm:$0xff]
      %v209 = vld [vmem:[%s169 + $0x100] sm:$0xff]
      %v210 = vld [vmem:[%s169 + $0x108] sm:$0xff]
      %v211 = vld [vmem:[%s169 + $0x110] sm:$0xff]
      %v212 = vld [vmem:[%s169 + $0x118] sm:$0xff]
      %v213 = vld [vmem:[%s169 + $0x120] sm:$0xff]
      %v214 = vld [vmem:[%s169 + $0x128] sm:$0xff]
      %v215 = vld [vmem:[%s169 + $0x130] sm:$0xff]
      %v216 = vld [vmem:[%s169 + $0x138] sm:$0xff]
      %v217 = vld [vmem:[%s169 + $0x140] sm:$0xff]
      %v218 = vld [vmem:[%s169 + $0x148] sm:$0xff]
      %v219 = vld [vmem:[%s169 + $0x150] sm:$0xff]
      %v220 = vld [vmem:[%s169 + $0x158] sm:$0xff]
      %v221 = vld [vmem:[%s169 + $0x160] sm:$0xff]
      %v222 = vld [vmem:[%s169 + $0x168] sm:$0xff]
      %v223 = vld [vmem:[%s169 + $0x170] sm:$0xff]
      %v224 = vld [vmem:[%s169 + $0x178] sm:$0xff]
      %v225 = vld [vmem:[%s169 + $0x180] sm:$0xff]
      %v226 = vld [vmem:[%s169 + $0x188] sm:$0xff]
      %v227 = vld [vmem:[%s169 + $0x190] sm:$0xff]
      %v228 = vld [vmem:[%s169 + $0x198] sm:$0xff]
      %v229 = vld [vmem:[%s169 + $0x1a0] sm:$0xff]
      %v230 = vld [vmem:[%s169 + $0x1a8] sm:$0xff]
      %v231 = vld [vmem:[%s169 + $0x1b0] sm:$0xff]
      %v232 = vld [vmem:[%s169 + $0x1b8] sm:$0xff]
      %v233 = vld [vmem:[%s169 + $0x1c0] sm:$0xff]
      %v234 = vld [vmem:[%s169 + $0x1c8] sm:$0xff]
      %v235 = vld [vmem:[%s169 + $0x1d0] sm:$0xff]
      %v236 = vld [vmem:[%s169 + $0x1d8] sm:$0xff]
      %v237 = vld [vmem:[%s169 + $0x1e0] sm:$0xff]
      %v238 = vld [vmem:[%s169 + $0x1e8] sm:$0xff]
      %v239 = vld [vmem:[%s169 + $0x1f0] sm:$0xff]
      %v240 = vld [vmem:[%s169 + $0x1f8] sm:$0xff]
      %v241 = vld [vmem:[%s169 + $0x200] sm:$0xff]
      %v242 = vld [vmem:[%s169 + $0x208] sm:$0xff]
      %v243 = vld [vmem:[%s169 + $0x210] sm:$0xff]
      %v244 = vld [vmem:[%s169 + $0x218] sm:$0xff]
      %v245 = vld [vmem:[%s169 + $0x220] sm:$0xff]
      %v246 = vld [vmem:[%s169 + $0x228] sm:$0xff]
      %v247 = vld [vmem:[%s169 + $0x230] sm:$0xff]
      %v248 = vld [vmem:[%s169 + $0x238] sm:$0xff]
      %v249 = vld [vmem:[%s169 + $0x240] sm:$0xff]
      %v250 = vld [vmem:[%s169 + $0x248] sm:$0xff]
      %v251 = vld [vmem:[%s169 + $0x250] sm:$0xff]
      %v252 = vld [vmem:[%s169 + $0x258] sm:$0xff]
      %v253 = vld [vmem:[%s169 + $0x260] sm:$0xff]
      %v254 = vld [vmem:[%s169 + $0x268] sm:$0xff]
      %v255 = vld [vmem:[%s169 + $0x270] sm:$0xff]
      %v256 = vld [vmem:[%s169 + $0x278] sm:$0xff]
      %v257 = vld [vmem:[%s169 + $0x280] sm:$0xff]
      %v258 = vld [vmem:[%s169 + $0x288] sm:$0xff]
      %v259 = vld [vmem:[%s169 + $0x290] sm:$0xff]
      %v260 = vld [vmem:[%s169 + $0x298] sm:$0xff]
      %v261 = vld [vmem:[%s169 + $0x2a0] sm:$0xff]
      %v262 = vld [vmem:[%s169 + $0x2a8] sm:$0xff]
      %v263 = vld [vmem:[%s169 + $0x2b0] sm:$0xff]
      %v264 = vld [vmem:[%s169 + $0x2b8] sm:$0xff]
      %v265 = vld [vmem:[%s169 + $0x2c0] sm:$0xff]
      %v266 = vld [vmem:[%s169 + $0x2c8] sm:$0xff]
      %v267 = vld [vmem:[%s169 + $0x2d0] sm:$0xff]
      %v268 = vld [vmem:[%s169 + $0x2d8] sm:$0xff]
      %v269 = vld [vmem:[%s169 + $0x2e0] sm:$0xff]
      %v270 = vld [vmem:[%s169 + $0x2e8] sm:$0xff]
      %v271 = vld [vmem:[%s169 + $0x2f0] sm:$0xff]
      %v272 = vld [vmem:[%s169 + $0x2f8] sm:$0xff]
      %v273 = vld [vmem:[%s169 + $0x300] sm:$0xff]
      %v274 = vld [vmem:[%s169 + $0x308] sm:$0xff]
      %v275 = vld [vmem:[%s169 + $0x310] sm:$0xff]
      %v276 = vld [vmem:[%s169 + $0x318] sm:$0xff]
      %v277 = vld [vmem:[%s169 + $0x320] sm:$0xff]
      %v278 = vld [vmem:[%s169 + $0x328] sm:$0xff]
      %v279 = vld [vmem:[%s169 + $0x330] sm:$0xff]
      %v280 = vld [vmem:[%s169 + $0x338] sm:$0xff]
      %v281 = vld [vmem:[%s169 + $0x340] sm:$0xff]
      %v282 = vld [vmem:[%s169 + $0x348] sm:$0xff]
      %v283 = vld [vmem:[%s169 + $0x350] sm:$0xff]
      %v284 = vld [vmem:[%s169 + $0x358] sm:$0xff]
      %v285 = vld [vmem:[%s169 + $0x360] sm:$0xff]
      %v286 = vld [vmem:[%s169 + $0x368] sm:$0xff]
      %v287 = vld [vmem:[%s169 + $0x370] sm:$0xff]
      %v288 = vld [vmem:[%s169 + $0x378] sm:$0xff]
      %v289 = vld [vmem:[%s169 + $0x380] sm:$0xff]
      %v290 = vld [vmem:[%s169 + $0x388] sm:$0xff]
      %v291 = vld [vmem:[%s169 + $0x390] sm:$0xff]
      %v292 = vld [vmem:[%s169 + $0x398] sm:$0xff]
      %v293 = vld [vmem:[%s169 + $0x3a0] sm:$0xff]
      %v294 = vld [vmem:[%s169 + $0x3a8] sm:$0xff]
      %v295 = vld [vmem:[%s169 + $0x3b0] sm:$0xff]
      %v296 = vld [vmem:[%s169 + $0x3b8] sm:$0xff]
      %v297 = vld [vmem:[%s169 + $0x3c0] sm:$0xff]
      %v298 = vld [vmem:[%s169 + $0x3c8] sm:$0xff]
      %v299 = vld [vmem:[%s169 + $0x3d0] sm:$0xff]
      %v300 = vld [vmem:[%s169 + $0x3d8] sm:$0xff]
      %v301 = vld [vmem:[%s169 + $0x3e0] sm:$0xff]
      %v302 = vld [vmem:[%s169 + $0x3e8] sm:$0xff]
      %v303 = vld [vmem:[%s169 + $0x3f0] sm:$0xff]
      %v304 = vld [vmem:[%s169 + $0x3f8] sm:$0xff]
      %v305 = vld [vmem:[%s169 + $0x400] sm:$0xff]
      %v306 = vld [vmem:[%s169 + $0x408] sm:$0xff]
      %v307 = vld [vmem:[%s169 + $0x410] sm:$0xff]
      %v308 = vld [vmem:[%s169 + $0x418] sm:$0xff]
      %v309 = vld [vmem:[%s169 + $0x420] sm:$0xff]
      %v310 = vld [vmem:[%s169 + $0x428] sm:$0xff]
      %v311 = vld [vmem:[%s169 + $0x430] sm:$0xff]
      %v312 = vld [vmem:[%s169 + $0x438] sm:$0xff]
      %v313 = vld [vmem:[%s169 + $0x440] sm:$0xff]
      %v314 = vld [vmem:[%s169 + $0x448] sm:$0xff]
      %v315 = vld [vmem:[%s169 + $0x450] sm:$0xff]
      %v316 = vld [vmem:[%s169 + $0x458] sm:$0xff]
      %v317 = vld [vmem:[%s169 + $0x460] sm:$0xff]
      %v318 = vld [vmem:[%s169 + $0x468] sm:$0xff]
      %v319 = vld [vmem:[%s169 + $0x470] sm:$0xff]
      %v320 = vld [vmem:[%s169 + $0x478] sm:$0xff]
      %v321 = vld [vmem:[%s169 + $0x480] sm:$0xff]
      %v322 = vld [vmem:[%s169 + $0x488] sm:$0xff]
      %v323 = vld [vmem:[%s169 + $0x490] sm:$0xff]
      %v324 = vld [vmem:[%s169 + $0x498] sm:$0xff]
      %v325 = vld [vmem:[%s169 + $0x4a0] sm:$0xff]
      %v326 = vld [vmem:[%s169 + $0x4a8] sm:$0xff]
      %v327 = vld [vmem:[%s169 + $0x4b0] sm:$0xff]
      %v328 = vld [vmem:[%s169 + $0x4b8] sm:$0xff]
      %v329 = vld [vmem:[%s169 + $0x4c0] sm:$0xff]
      %v330 = vld [vmem:[%s169 + $0x4c8] sm:$0xff]
      %v331 = vld [vmem:[%s169 + $0x4d0] sm:$0xff]
      %v332 = vld [vmem:[%s169 + $0x4d8] sm:$0xff]
      %v333 = vld [vmem:[%s169 + $0x4e0] sm:$0xff]
      %v334 = vld [vmem:[%s169 + $0x4e8] sm:$0xff]
      %v335 = vld [vmem:[%s169 + $0x4f0] sm:$0xff]
      %v336 = vld [vmem:[%s169 + $0x4f8] sm:$0xff]
      %v337 = vld [vmem:[%s169 + $0x500] sm:$0xff]
      %v338 = vld [vmem:[%s169 + $0x508] sm:$0xff]
      %v339 = vld [vmem:[%s169 + $0x510] sm:$0xff]
      %v340 = vld [vmem:[%s169 + $0x518] sm:$0xff]
      %v341 = vld [vmem:[%s169 + $0x520] sm:$0xff]
      %v342 = vld [vmem:[%s169 + $0x528] sm:$0xff]
      %v343 = vld [vmem:[%s169 + $0x530] sm:$0xff]
      %v344 = vld [vmem:[%s169 + $0x538] sm:$0xff]
      %v345 = vld [vmem:[%s169 + $0x540] sm:$0xff]
      %v346 = vld [vmem:[%s169 + $0x548] sm:$0xff]
      %v347 = vld [vmem:[%s169 + $0x550] sm:$0xff]
      %v348 = vld [vmem:[%s169 + $0x558] sm:$0xff]
      %v349 = vld [vmem:[%s169 + $0x560] sm:$0xff]
      %v350 = vld [vmem:[%s169 + $0x568] sm:$0xff]
      %v351 = vld [vmem:[%s169 + $0x570] sm:$0xff]
      %v352 = vld [vmem:[%s169 + $0x578] sm:$0xff]
      %v353 = vld [vmem:[%s169 + $0x580] sm:$0xff]
      %v354 = vld [vmem:[%s169 + $0x588] sm:$0xff]
      %v355 = vld [vmem:[%s169 + $0x590] sm:$0xff]
      %v356 = vld [vmem:[%s169 + $0x598] sm:$0xff]
      %v357 = vld [vmem:[%s169 + $0x5a0] sm:$0xff]
      %v358 = vld [vmem:[%s169 + $0x5a8] sm:$0xff]
      %v359 = vld [vmem:[%s169 + $0x5b0] sm:$0xff]
      %v360 = vld [vmem:[%s169 + $0x5b8] sm:$0xff]
      %v361 = vld [vmem:[%s169 + $0x5c0] sm:$0xff]
      %v362 = vld [vmem:[%s169 + $0x5c8] sm:$0xff]
      %v363 = vld [vmem:[%s169 + $0x5d0] sm:$0xff]
      %v364 = vld [vmem:[%s169 + $0x5d8] sm:$0xff]
      %v365 = vld [vmem:[%s169 + $0x5e0] sm:$0xff]
      %v366 = vld [vmem:[%s169 + $0x5e8] sm:$0xff]
      %v367 = vld [vmem:[%s169 + $0x5f0] sm:$0xff]
      %v368 = vld [vmem:[%s169 + $0x5f8] sm:$0xff]
      %v369 = vld [vmem:[%s169 + $0x600] sm:$0xff]
      %v370 = vld [vmem:[%s169 + $0x608] sm:$0xff]
      %v371 = vld [vmem:[%s169 + $0x610] sm:$0xff]
      %v372 = vld [vmem:[%s169 + $0x618] sm:$0xff]
      %v373 = vld [vmem:[%s169 + $0x620] sm:$0xff]
      %v374 = vld [vmem:[%s169 + $0x628] sm:$0xff]
      %v375 = vld [vmem:[%s169 + $0x630] sm:$0xff]
      %v376 = vld [vmem:[%s169 + $0x638] sm:$0xff]
      %v377 = vld [vmem:[%s169 + $0x640] sm:$0xff]
      %v378 = vld [vmem:[%s169 + $0x648] sm:$0xff]
      %v379 = vld [vmem:[%s169 + $0x650] sm:$0xff]
      %v380 = vld [vmem:[%s169 + $0x658] sm:$0xff]
      %v381 = vld [vmem:[%s169 + $0x660] sm:$0xff]
      %v382 = vld [vmem:[%s169 + $0x668] sm:$0xff]
      %v383 = vld [vmem:[%s169 + $0x670] sm:$0xff]
      %v384 = vld [vmem:[%s169 + $0x678] sm:$0xff]
      %v385 = vld [vmem:[%s169 + $0x680] sm:$0xff]
      %v386 = vld [vmem:[%s169 + $0x688] sm:$0xff]
      %v387 = vld [vmem:[%s169 + $0x690] sm:$0xff]
      %v388 = vld [vmem:[%s169 + $0x698] sm:$0xff]
      %v389 = vld [vmem:[%s169 + $0x6a0] sm:$0xff]
      %v390 = vld [vmem:[%s169 + $0x6a8] sm:$0xff]
      %v391 = vld [vmem:[%s169 + $0x6b0] sm:$0xff]
      %v392 = vld [vmem:[%s169 + $0x6b8] sm:$0xff]
      %v393 = vld [vmem:[%s169 + $0x6c0] sm:$0xff]
      %v394 = vld [vmem:[%s169 + $0x6c8] sm:$0xff]
      %v395 = vld [vmem:[%s169 + $0x6d0] sm:$0xff]
      %v396 = vld [vmem:[%s169 + $0x6d8] sm:$0xff]
      %v397 = vld [vmem:[%s169 + $0x6e0] sm:$0xff]
      %v398 = vld [vmem:[%s169 + $0x6e8] sm:$0xff]
      %v399 = vld [vmem:[%s169 + $0x6f0] sm:$0xff]
      %v400 = vld [vmem:[%s169 + $0x6f8] sm:$0xff]
      %v401 = vld [vmem:[%s169 + $0x700] sm:$0xff]
      %v402 = vld [vmem:[%s169 + $0x708] sm:$0xff]
      %v403 = vld [vmem:[%s169 + $0x710] sm:$0xff]
      %v404 = vld [vmem:[%s169 + $0x718] sm:$0xff]
      %v405 = vld [vmem:[%s169 + $0x720] sm:$0xff]
      %v406 = vld [vmem:[%s169 + $0x728] sm:$0xff]
      %v407 = vld [vmem:[%s169 + $0x730] sm:$0xff]
      %v408 = vld [vmem:[%s169 + $0x738] sm:$0xff]
      %v409 = vld [vmem:[%s169 + $0x740] sm:$0xff]
      %v410 = vld [vmem:[%s169 + $0x748] sm:$0xff]
      %v411 = vld [vmem:[%s169 + $0x750] sm:$0xff]
      %v412 = vld [vmem:[%s169 + $0x758] sm:$0xff]
      %v413 = vld [vmem:[%s169 + $0x760] sm:$0xff]
      %v414 = vld [vmem:[%s169 + $0x768] sm:$0xff]
      %v415 = vld [vmem:[%s169 + $0x770] sm:$0xff]
      %v416 = vld [vmem:[%s169 + $0x778] sm:$0xff]
      %v417 = vld [vmem:[%s169 + $0x780] sm:$0xff]
      %v418 = vld [vmem:[%s169 + $0x788] sm:$0xff]
      %v419 = vld [vmem:[%s169 + $0x790] sm:$0xff]
      %v420 = vld [vmem:[%s169 + $0x798] sm:$0xff]
      %v421 = vld [vmem:[%s169 + $0x7a0] sm:$0xff]
      %v422 = vld [vmem:[%s169 + $0x7a8] sm:$0xff]
      %v423 = vld [vmem:[%s169 + $0x7b0] sm:$0xff]
      %v424 = vld [vmem:[%s169 + $0x7b8] sm:$0xff]
      %v425 = vld [vmem:[%s169 + $0x7c0] sm:$0xff]
      %v426 = vld [vmem:[%s169 + $0x7c8] sm:$0xff]
      %v427 = vld [vmem:[%s169 + $0x7d0] sm:$0xff]
      %v428 = vld [vmem:[%s169 + $0x7d8] sm:$0xff]
      %v429 = vld [vmem:[%s169 + $0x7e0] sm:$0xff]
      %v430 = vld [vmem:[%s169 + $0x7e8] sm:$0xff]
      %v431 = vld [vmem:[%s169 + $0x7f0] sm:$0xff]
      %v432 = vld [vmem:[%s169 + $0x7f8] sm:$0xff]
      %v433 = vld [vmem:[%s169 + $0x800] sm:$0xff]
      %v434 = vld [vmem:[%s169 + $0x808] sm:$0xff]
      %v435 = vld [vmem:[%s169 + $0x810] sm:$0xff]
      %v436 = vld [vmem:[%s169 + $0x818] sm:$0xff]
      %v437 = vld [vmem:[%s169 + $0x820] sm:$0xff]
      %v438 = vld [vmem:[%s169 + $0x828] sm:$0xff]
      %v439 = vld [vmem:[%s169 + $0x830] sm:$0xff]
      %v440 = vld [vmem:[%s169 + $0x838] sm:$0xff]
      %v441 = vld [vmem:[%s169 + $0x840] sm:$0xff]
      %v442 = vld [vmem:[%s169 + $0x848] sm:$0xff]
      %v443 = vld [vmem:[%s169 + $0x850] sm:$0xff]
      %v444 = vld [vmem:[%s169 + $0x858] sm:$0xff]
      %v445 = vld [vmem:[%s169 + $0x860] sm:$0xff]
      %v446 = vld [vmem:[%s169 + $0x868] sm:$0xff]
      %v447 = vld [vmem:[%s169 + $0x870] sm:$0xff]
      %v448 = vld [vmem:[%s169 + $0x878] sm:$0xff]
      %v449 = vld [vmem:[%s169 + $0x880] sm:$0xff]
      %v450 = vld [vmem:[%s169 + $0x888] sm:$0xff]
      %v451 = vld [vmem:[%s169 + $0x890] sm:$0xff]
      %v452 = vld [vmem:[%s169 + $0x898] sm:$0xff]
      %v453 = vld [vmem:[%s169 + $0x8a0] sm:$0xff]
      %v454 = vld [vmem:[%s169 + $0x8a8] sm:$0xff]
      %v455 = vld [vmem:[%s169 + $0x8b0] sm:$0xff]
      %v456 = vld [vmem:[%s169 + $0x8b8] sm:$0xff]
      %v457 = vld [vmem:[%s169 + $0x8c0] sm:$0xff]
      %v458 = vld [vmem:[%s169 + $0x8c8] sm:$0xff]
      %v459 = vld [vmem:[%s169 + $0x8d0] sm:$0xff]
      %v460 = vld [vmem:[%s169 + $0x8d8] sm:$0xff]
      %v461 = vld [vmem:[%s169 + $0x8e0] sm:$0xff]
      %v462 = vld [vmem:[%s169 + $0x8e8] sm:$0xff]
      %v463 = vld [vmem:[%s169 + $0x8f0] sm:$0xff]
      %v464 = vld [vmem:[%s169 + $0x8f8] sm:$0xff]
      %v465 = vld [vmem:[%s169 + $0x900] sm:$0xff]
      %v466 = vld [vmem:[%s169 + $0x908] sm:$0xff]
      %v467 = vld [vmem:[%s169 + $0x910] sm:$0xff]
      %v468 = vld [vmem:[%s169 + $0x918] sm:$0xff]
      %v469 = vld [vmem:[%s169 + $0x920] sm:$0xff]
      %v470 = vld [vmem:[%s169 + $0x928] sm:$0xff]
      %v471 = vld [vmem:[%s169 + $0x930] sm:$0xff]
      %v472 = vld [vmem:[%s169 + $0x938] sm:$0xff]
      %v473 = vld [vmem:[%s169 + $0x940] sm:$0xff]
      %v474 = vld [vmem:[%s169 + $0x948] sm:$0xff]
      %v475 = vld [vmem:[%s169 + $0x950] sm:$0xff]
      %v476 = vld [vmem:[%s169 + $0x958] sm:$0xff]
      %v477 = vld [vmem:[%s169 + $0x960] sm:$0xff]
      %v478 = vld [vmem:[%s169 + $0x968] sm:$0xff]
      %v479 = vld [vmem:[%s169 + $0x970] sm:$0xff]
      %v480 = vld [vmem:[%s169 + $0x978] sm:$0xff]
      %v481 = vld [vmem:[%s169 + $0x980] sm:$0xff]
      %v482 = vld [vmem:[%s169 + $0x988] sm:$0xff]
      %v483 = vld [vmem:[%s169 + $0x990] sm:$0xff]
      %v484 = vld [vmem:[%s169 + $0x998] sm:$0xff]
      %v485 = vld [vmem:[%s169 + $0x9a0] sm:$0xff]
      %v486 = vld [vmem:[%s169 + $0x9a8] sm:$0xff]
      %v487 = vld [vmem:[%s169 + $0x9b0] sm:$0xff]
      %v488 = vld [vmem:[%s169 + $0x9b8] sm:$0xff]
      %v489 = vld [vmem:[%s169 + $0x9c0] sm:$0xff]
      %v490 = vld [vmem:[%s169 + $0x9c8] sm:$0xff]
      %v491 = vld [vmem:[%s169 + $0x9d0] sm:$0xff]
      %v492 = vld [vmem:[%s169 + $0x9d8] sm:$0xff]
      %v493 = vld [vmem:[%s169 + $0x9e0] sm:$0xff]
      %v494 = vld [vmem:[%s169 + $0x9e8] sm:$0xff]
      %v495 = vld [vmem:[%s169 + $0x9f0] sm:$0xff]
      %v496 = vld [vmem:[%s169 + $0x9f8] sm:$0xff]
      %v497 = vld [vmem:[%s169 + $0xa00] sm:$0xff]
      %v498 = vld [vmem:[%s169 + $0xa08] sm:$0xff]
      %v499 = vld [vmem:[%s169 + $0xa10] sm:$0xff]
      %v500 = vld [vmem:[%s169 + $0xa18] sm:$0xff]
      %v501 = vld [vmem:[%s169 + $0xa20] sm:$0xff]
      %v502 = vld [vmem:[%s169 + $0xa28] sm:$0xff]
      %v503 = vld [vmem:[%s169 + $0xa30] sm:$0xff]
      %v504 = vld [vmem:[%s169 + $0xa38] sm:$0xff]
      %v505 = vld [vmem:[%s169 + $0xa40] sm:$0xff]
      %v506 = vld [vmem:[%s169 + $0xa48] sm:$0xff]
      %v507 = vld [vmem:[%s169 + $0xa50] sm:$0xff]
      %v508 = vld [vmem:[%s169 + $0xa58] sm:$0xff]
      %v509 = vld [vmem:[%s169 + $0xa60] sm:$0xff]
      %v510 = vld [vmem:[%s169 + $0xa68] sm:$0xff]
      %v511 = vld [vmem:[%s169 + $0xa70] sm:$0xff]
      %v512 = vld [vmem:[%s169 + $0xa78] sm:$0xff]
      %v513 = vld [vmem:[%s169 + $0xa80] sm:$0xff]
      %v514 = vld [vmem:[%s169 + $0xa88] sm:$0xff]
      %v515 = vld [vmem:[%s169 + $0xa90] sm:$0xff]
      %v516 = vld [vmem:[%s169 + $0xa98] sm:$0xff]
      %v517 = vld [vmem:[%s169 + $0xaa0] sm:$0xff]
      %v518 = vld [vmem:[%s169 + $0xaa8] sm:$0xff]
      %v519 = vld [vmem:[%s169 + $0xab0] sm:$0xff]
      %v520 = vld [vmem:[%s169 + $0xab8] sm:$0xff]
      %v521 = vld [vmem:[%s169 + $0xac0] sm:$0xff]
      %v522 = vld [vmem:[%s169 + $0xac8] sm:$0xff]
      %v523 = vld [vmem:[%s169 + $0xad0] sm:$0xff]
      %v524 = vld [vmem:[%s169 + $0xad8] sm:$0xff]
      %v525 = vld [vmem:[%s169 + $0xae0] sm:$0xff]
      %v526 = vld [vmem:[%s169 + $0xae8] sm:$0xff]
      %v527 = vld [vmem:[%s169 + $0xaf0] sm:$0xff]
      %v528 = vld [vmem:[%s169 + $0xaf8] sm:$0xff]
      %v529 = vld [vmem:[%s169 + $0xb00] sm:$0xff]
      %v530 = vld [vmem:[%s169 + $0xb08] sm:$0xff]
      %v531 = vld [vmem:[%s169 + $0xb10] sm:$0xff]
      %v532 = vld [vmem:[%s169 + $0xb18] sm:$0xff]
      %v533 = vld [vmem:[%s169 + $0xb20] sm:$0xff]
      %v534 = vld [vmem:[%s169 + $0xb28] sm:$0xff]
      %v535 = vld [vmem:[%s169 + $0xb30] sm:$0xff]
      %v536 = vld [vmem:[%s169 + $0xb38] sm:$0xff]
      %v537 = vld [vmem:[%s169 + $0xb40] sm:$0xff]
      %v538 = vld [vmem:[%s169 + $0xb48] sm:$0xff]
      %v539 = vld [vmem:[%s169 + $0xb50] sm:$0xff]
      %v540 = vld [vmem:[%s169 + $0xb58] sm:$0xff]
      %v541 = vld [vmem:[%s169 + $0xb60] sm:$0xff]
      %v542 = vld [vmem:[%s169 + $0xb68] sm:$0xff]
      %v543 = vld [vmem:[%s169 + $0xb70] sm:$0xff]
      %v544 = vld [vmem:[%s169 + $0xb78] sm:$0xff]
      %v545 = vld [vmem:[%s169 + $0xb80] sm:$0xff]
      %v546 = vld [vmem:[%s169 + $0xb88] sm:$0xff]
      %v547 = vld [vmem:[%s169 + $0xb90] sm:$0xff]
      %v548 = vld [vmem:[%s169 + $0xb98] sm:$0xff]
      %v549 = vld [vmem:[%s169 + $0xba0] sm:$0xff]
      %v550 = vld [vmem:[%s169 + $0xba8] sm:$0xff]
      %v551 = vld [vmem:[%s169 + $0xbb0] sm:$0xff]
      %v552 = vld [vmem:[%s169 + $0xbb8] sm:$0xff]
      %v553 = vld [vmem:[%s169 + $0xbc0] sm:$0xff]
      %v554 = vld [vmem:[%s169 + $0xbc8] sm:$0xff]
      %v555 = vld [vmem:[%s169 + $0xbd0] sm:$0xff]
      %v556 = vld [vmem:[%s169 + $0xbd8] sm:$0xff]
      %v557 = vld [vmem:[%s169 + $0xbe0] sm:$0xff]
      %v558 = vld [vmem:[%s169 + $0xbe8] sm:$0xff]
      %v559 = vld [vmem:[%s169 + $0xbf0] sm:$0xff]
      %v560 = vld [vmem:[%s169 + $0xbf8] sm:$0xff]
      %v561 = vld [vmem:[%s169 + $0xc00] sm:$0xff]
      %v562 = vld [vmem:[%s169 + $0xc08] sm:$0xff]
      %v563 = vld [vmem:[%s169 + $0xc10] sm:$0xff]
      %v564 = vld [vmem:[%s169 + $0xc18] sm:$0xff]
      %v565 = vld [vmem:[%s169 + $0xc20] sm:$0xff]
      %v566 = vld [vmem:[%s169 + $0xc28] sm:$0xff]
      %v567 = vld [vmem:[%s169 + $0xc30] sm:$0xff]
      %v568 = vld [vmem:[%s169 + $0xc38] sm:$0xff]
      %v569 = vld [vmem:[%s169 + $0xc40] sm:$0xff]
      %v570 = vld [vmem:[%s169 + $0xc48] sm:$0xff]
      %v571 = vld [vmem:[%s169 + $0xc50] sm:$0xff]
      %v572 = vld [vmem:[%s169 + $0xc58] sm:$0xff]
      %v573 = vld [vmem:[%s169 + $0xc60] sm:$0xff]
      %v574 = vld [vmem:[%s169 + $0xc68] sm:$0xff]
      %v575 = vld [vmem:[%s169 + $0xc70] sm:$0xff]
      %v576 = vld [vmem:[%s169 + $0xc78] sm:$0xff]
      %v577 = vld [vmem:[%s169 + $0xc80] sm:$0xff]
      %v578 = vld [vmem:[%s169 + $0xc88] sm:$0xff]
      %v579 = vld [vmem:[%s169 + $0xc90] sm:$0xff]
      %v580 = vld [vmem:[%s169 + $0xc98] sm:$0xff]
      %v581 = vld [vmem:[%s169 + $0xca0] sm:$0xff]
      %v582 = vld [vmem:[%s169 + $0xca8] sm:$0xff]
      %v583 = vld [vmem:[%s169 + $0xcb0] sm:$0xff]
      %v584 = vld [vmem:[%s169 + $0xcb8] sm:$0xff]
      %v585 = vld [vmem:[%s169 + $0xcc0] sm:$0xff]
      %v586 = vld [vmem:[%s169 + $0xcc8] sm:$0xff]
      %v587 = vld [vmem:[%s169 + $0xcd0] sm:$0xff]
      %v588 = vld [vmem:[%s169 + $0xcd8] sm:$0xff]
      %v589 = vld [vmem:[%s169 + $0xce0] sm:$0xff]
      %v590 = vld [vmem:[%s169 + $0xce8] sm:$0xff]
      %v591 = vld [vmem:[%s169 + $0xcf0] sm:$0xff]
      %v592 = vld [vmem:[%s169 + $0xcf8] sm:$0xff]
      %v593 = vld [vmem:[%s1] sm:$0xff]
      %v594 = vld [vmem:[%s1 + $0x8] sm:$0xff]
      %v595 = vld [vmem:[%s1 + $0x10] sm:$0xff]
      %v596 = vld [vmem:[%s1 + $0x18] sm:$0xff]
      %v597 = vld [vmem:[%s1 + $0x20] sm:$0xff]
      %v598 = vld [vmem:[%s1 + $0x28] sm:$0xff]
      %v599 = vld [vmem:[%s1 + $0x30] sm:$0xff]
      %v600 = vld [vmem:[%s1 + $0x38] sm:$0xff]
      %v601 = vld [vmem:[%s1 + $0x40] sm:$0xff]
      %v602 = vld [vmem:[%s1 + $0x48] sm:$0xff]
      %v603 = vld [vmem:[%s1 + $0x50] sm:$0xff]
      %v604 = vld [vmem:[%s1 + $0x58] sm:$0xff]
      %v605 = vld [vmem:[%s1 + $0x60] sm:$0xff]
      %v606 = vld [vmem:[%s1 + $0x68] sm:$0xff]
      %v607 = vld [vmem:[%s1 + $0x70] sm:$0xff]
      %v608 = vld [vmem:[%s1 + $0x78] sm:$0xff]
      %v609 = vld [vmem:[%s1 + $0x80] sm:$0xff]
      %v610 = vld [vmem:[%s1 + $0x88] sm:$0xff]
      %v611 = vld [vmem:[%s1 + $0x90] sm:$0xff]
      %v612 = vld [vmem:[%s1 + $0x98] sm:$0xff]
      %v613 = vld [vmem:[%s1 + $0xa0] sm:$0xff]
      %v614 = vld [vmem:[%s1 + $0xa8] sm:$0xff]
      %v615 = vld [vmem:[%s1 + $0xb0] sm:$0xff]
      %v616 = vld [vmem:[%s1 + $0xb8] sm:$0xff]
      %v617 = vld [vmem:[%s1 + $0xc0] sm:$0xff]
      %v618 = vld [vmem:[%s1 + $0xc8] sm:$0xff]
      %v619 = vld [vmem:[%s1 + $0xd0] sm:$0xff]
      %v620 = vld [vmem:[%s1 + $0xd8] sm:$0xff]
      %v621 = vld [vmem:[%s1 + $0xe0] sm:$0xff]
      %v622 = vld [vmem:[%s1 + $0xe8] sm:$0xff]
      %v623 = vld [vmem:[%s1 + $0xf0] sm:$0xff]
      %v624 = vld [vmem:[%s1 + $0xf8] sm:$0xff]
      %v625 = vld [vmem:[%s1 + $0x100] sm:$0xff]
      %v626 = vld [vmem:[%s1 + $0x108] sm:$0xff]
      %v627 = vld [vmem:[%s1 + $0x110] sm:$0xff]
      %v628 = vld [vmem:[%s1 + $0x118] sm:$0xff]
      %v629 = vld [vmem:[%s1 + $0x120] sm:$0xff]
      %v630 = vld [vmem:[%s1 + $0x128] sm:$0xff]
      %v631 = vld [vmem:[%s1 + $0x130] sm:$0xff]
      %v632 = vld [vmem:[%s1 + $0x138] sm:$0xff]
      %v633 = vld [vmem:[%s1 + $0x140] sm:$0xff]
      %v634 = vld [vmem:[%s1 + $0x148] sm:$0xff]
      %v635 = vld [vmem:[%s1 + $0x150] sm:$0xff]
      %v636 = vld [vmem:[%s1 + $0x158] sm:$0xff]
      %v637 = vld [vmem:[%s1 + $0x160] sm:$0xff]
      %v638 = vld [vmem:[%s1 + $0x168] sm:$0xff]
      %v639 = vld [vmem:[%s1 + $0x170] sm:$0xff]
      %v640 = vld [vmem:[%s1 + $0x178] sm:$0xff]
      %v641 = vld [vmem:[%s1 + $0x180] sm:$0xff]
      %v642 = vld [vmem:[%s1 + $0x188] sm:$0xff]
      %v643 = vld [vmem:[%s1 + $0x190] sm:$0xff]
      %v644 = vld [vmem:[%s1 + $0x198] sm:$0xff]
      %v645 = vld [vmem:[%s1 + $0x1a0] sm:$0xff]
      %v646 = vld [vmem:[%s1 + $0x1a8] sm:$0xff]
      %v647 = vld [vmem:[%s1 + $0x1b0] sm:$0xff]
      %v648 = vld [vmem:[%s1 + $0x1b8] sm:$0xff]
      %v649 = vld [vmem:[%s1 + $0x1c0] sm:$0xff]
      %v650 = vld [vmem:[%s1 + $0x1c8] sm:$0xff]
      %v651 = vld [vmem:[%s1 + $0x1d0] sm:$0xff]
      %v652 = vld [vmem:[%s1 + $0x1d8] sm:$0xff]
      %v653 = vld [vmem:[%s1 + $0x1e0] sm:$0xff]
      %v654 = vld [vmem:[%s1 + $0x1e8] sm:$0xff]
      %v655 = vld [vmem:[%s1 + $0x1f0] sm:$0xff]
      %v656 = vld [vmem:[%s1 + $0x1f8] sm:$0xff]
      %v657 = vld [vmem:[%s1 + $0x200] sm:$0xff]
      %v658 = vld [vmem:[%s1 + $0x208] sm:$0xff]
      %v659 = vld [vmem:[%s1 + $0x210] sm:$0xff]
      %v660 = vld [vmem:[%s1 + $0x218] sm:$0xff]
      %v661 = vld [vmem:[%s1 + $0x220] sm:$0xff]
      %v662 = vld [vmem:[%s1 + $0x228] sm:$0xff]
      %v663 = vld [vmem:[%s1 + $0x230] sm:$0xff]
      %v664 = vld [vmem:[%s1 + $0x238] sm:$0xff]
      %v665 = vld [vmem:[%s1 + $0x240] sm:$0xff]
      %v666 = vld [vmem:[%s1 + $0x248] sm:$0xff]
      %v667 = vld [vmem:[%s1 + $0x250] sm:$0xff]
      %v668 = vld [vmem:[%s1 + $0x258] sm:$0xff]
      %v669 = vld [vmem:[%s1 + $0x260] sm:$0xff]
      %v670 = vld [vmem:[%s1 + $0x268] sm:$0xff]
      %v671 = vld [vmem:[%s1 + $0x270] sm:$0xff]
      %v672 = vld [vmem:[%s1 + $0x278] sm:$0xff]
      %v673 = vld [vmem:[%s1 + $0x280] sm:$0xff]
      %v674 = vld [vmem:[%s1 + $0x288] sm:$0xff]
      %v675 = vld [vmem:[%s1 + $0x290] sm:$0xff]
      %v676 = vld [vmem:[%s1 + $0x298] sm:$0xff]
      %v677 = vld [vmem:[%s1 + $0x2a0] sm:$0xff]
      %v678 = vld [vmem:[%s1 + $0x2a8] sm:$0xff]
      %v679 = vld [vmem:[%s1 + $0x2b0] sm:$0xff]
      %v680 = vld [vmem:[%s1 + $0x2b8] sm:$0xff]
      %v681 = vld [vmem:[%s1 + $0x2c0] sm:$0xff]
      %v682 = vld [vmem:[%s1 + $0x2c8] sm:$0xff]
      %v683 = vld [vmem:[%s1 + $0x2d0] sm:$0xff]
      %v684 = vld [vmem:[%s1 + $0x2d8] sm:$0xff]
      %v685 = vld [vmem:[%s1 + $0x2e0] sm:$0xff]
      %v686 = vld [vmem:[%s1 + $0x2e8] sm:$0xff]
      %v687 = vld [vmem:[%s1 + $0x2f0] sm:$0xff]
      %v688 = vld [vmem:[%s1 + $0x2f8] sm:$0xff]
      %v689 = vld [vmem:[%s1 + $0x300] sm:$0xff]
      %v690 = vld [vmem:[%s1 + $0x308] sm:$0xff]
      %v691 = vld [vmem:[%s1 + $0x310] sm:$0xff]
      %v692 = vld [vmem:[%s1 + $0x318] sm:$0xff]
      %v693 = vld [vmem:[%s1 + $0x320] sm:$0xff]
      %v694 = vld [vmem:[%s1 + $0x328] sm:$0xff]
      %v695 = vld [vmem:[%s1 + $0x330] sm:$0xff]
      %v696 = vld [vmem:[%s1 + $0x338] sm:$0xff]
      %v697 = vld [vmem:[%s1 + $0x340] sm:$0xff]
      %v698 = vld [vmem:[%s1 + $0x348] sm:$0xff]
      %v699 = vld [vmem:[%s1 + $0x350] sm:$0xff]
      %v700 = vld [vmem:[%s1 + $0x358] sm:$0xff]
      %v701 = vld [vmem:[%s1 + $0x360] sm:$0xff]
      %v702 = vld [vmem:[%s1 + $0x368] sm:$0xff]
      %v703 = vld [vmem:[%s1 + $0x370] sm:$0xff]
      %v704 = vld [vmem:[%s1 + $0x378] sm:$0xff]
      %v705 = vld [vmem:[%s1 + $0x380] sm:$0xff]
      %v706 = vld [vmem:[%s1 + $0x388] sm:$0xff]
      %v707 = vld [vmem:[%s1 + $0x390] sm:$0xff]
      %v708 = vld [vmem:[%s1 + $0x398] sm:$0xff]
      %v709 = vld [vmem:[%s1 + $0x3a0] sm:$0xff]
      %v710 = vld [vmem:[%s1 + $0x3a8] sm:$0xff]
      %v711 = vld [vmem:[%s1 + $0x3b0] sm:$0xff]
      %v712 = vld [vmem:[%s1 + $0x3b8] sm:$0xff]
      %v713 = vld [vmem:[%s1 + $0x3c0] sm:$0xff]
      %v714 = vld [vmem:[%s1 + $0x3c8] sm:$0xff]
      %v715 = vld [vmem:[%s1 + $0x3d0] sm:$0xff]
      %v716 = vld [vmem:[%s1 + $0x3d8] sm:$0xff]
      %v717 = vld [vmem:[%s1 + $0x3e0] sm:$0xff]
      %v718 = vld [vmem:[%s1 + $0x3e8] sm:$0xff]
      %v719 = vld [vmem:[%s1 + $0x3f0] sm:$0xff]
      %v720 = vld [vmem:[%s1 + $0x3f8] sm:$0xff]
      %v721 = vld [vmem:[%s1 + $0x400] sm:$0xff]
      %v722 = vld [vmem:[%s1 + $0x408] sm:$0xff]
      %v723 = vld [vmem:[%s1 + $0x410] sm:$0xff]
      %v724 = vld [vmem:[%s1 + $0x418] sm:$0xff]
      %v725 = vld [vmem:[%s1 + $0x420] sm:$0xff]
      %v726 = vld [vmem:[%s1 + $0x428] sm:$0xff]
      %v727 = vld [vmem:[%s1 + $0x430] sm:$0xff]
      %v728 = vld [vmem:[%s1 + $0x438] sm:$0xff]
      %v729 = vld [vmem:[%s1 + $0x440] sm:$0xff]
      %v730 = vld [vmem:[%s1 + $0x448] sm:$0xff]
      %v731 = vld [vmem:[%s1 + $0x450] sm:$0xff]
      %v732 = vld [vmem:[%s1 + $0x458] sm:$0xff]
      %v733 = vld [vmem:[%s1 + $0x460] sm:$0xff]
      %v734 = vld [vmem:[%s1 + $0x468] sm:$0xff]
      %v735 = vld [vmem:[%s1 + $0x470] sm:$0xff]
      %v736 = vld [vmem:[%s1 + $0x478] sm:$0xff]
      %v737 = vld [vmem:[%s1 + $0x480] sm:$0xff]
      %v738 = vld [vmem:[%s1 + $0x488] sm:$0xff]
      %v739 = vld [vmem:[%s1 + $0x490] sm:$0xff]
      %v740 = vld [vmem:[%s1 + $0x498] sm:$0xff]
      %v741 = vld [vmem:[%s1 + $0x4a0] sm:$0xff]
      %v742 = vld [vmem:[%s1 + $0x4a8] sm:$0xff]
      %v743 = vld [vmem:[%s1 + $0x4b0] sm:$0xff]
      %v744 = vld [vmem:[%s1 + $0x4b8] sm:$0xff]
      %v745 = vld [vmem:[%s1 + $0x4c0] sm:$0xff]
      %v746 = vld [vmem:[%s1 + $0x4c8] sm:$0xff]
      %v747 = vld [vmem:[%s1 + $0x4d0] sm:$0xff]
      %v748 = vld [vmem:[%s1 + $0x4d8] sm:$0xff]
      %v749 = vld [vmem:[%s1 + $0x4e0] sm:$0xff]
      %v750 = vld [vmem:[%s1 + $0x4e8] sm:$0xff]
      %v751 = vld [vmem:[%s1 + $0x4f0] sm:$0xff]
      %v752 = vld [vmem:[%s1 + $0x4f8] sm:$0xff]
      %v753 = vld [vmem:[%s1 + $0x500] sm:$0xff]
      %v754 = vld [vmem:[%s1 + $0x508] sm:$0xff]
      %v755 = vld [vmem:[%s1 + $0x510] sm:$0xff]
      %v756 = vld [vmem:[%s1 + $0x518] sm:$0xff]
      %v757 = vld [vmem:[%s1 + $0x520] sm:$0xff]
      %v758 = vld [vmem:[%s1 + $0x528] sm:$0xff]
      %v759 = vld [vmem:[%s1 + $0x530] sm:$0xff]
      %v760 = vld [vmem:[%s1 + $0x538] sm:$0xff]
      %v761 = vld [vmem:[%s1 + $0x540] sm:$0xff]
      %v762 = vld [vmem:[%s1 + $0x548] sm:$0xff]
      %v763 = vld [vmem:[%s1 + $0x550] sm:$0xff]
      %v764 = vld [vmem:[%s1 + $0x558] sm:$0xff]
      %v765 = vld [vmem:[%s1 + $0x560] sm:$0xff]
      %v766 = vld [vmem:[%s1 + $0x568] sm:$0xff]
      %v767 = vld [vmem:[%s1 + $0x570] sm:$0xff]
      %v768 = vld [vmem:[%s1 + $0x578] sm:$0xff]
      %v769 = vld [vmem:[%s1 + $0x580] sm:$0xff]
      %v770 = vld [vmem:[%s1 + $0x588] sm:$0xff]
      %v771 = vld [vmem:[%s1 + $0x590] sm:$0xff]
      %v772 = vld [vmem:[%s1 + $0x598] sm:$0xff]
      %v773 = vld [vmem:[%s1 + $0x5a0] sm:$0xff]
      %v774 = vld [vmem:[%s1 + $0x5a8] sm:$0xff]
      %v775 = vld [vmem:[%s1 + $0x5b0] sm:$0xff]
      %v776 = vld [vmem:[%s1 + $0x5b8] sm:$0xff]
      %v777 = vld [vmem:[%s1 + $0x5c0] sm:$0xff]
      %v778 = vld [vmem:[%s1 + $0x5c8] sm:$0xff]
      %v779 = vld [vmem:[%s1 + $0x5d0] sm:$0xff]
      %v780 = vld [vmem:[%s1 + $0x5d8] sm:$0xff]
      %v781 = vld [vmem:[%s1 + $0x5e0] sm:$0xff]
      %v782 = vld [vmem:[%s1 + $0x5e8] sm:$0xff]
      %v783 = vld [vmem:[%s1 + $0x5f0] sm:$0xff]
      %v784 = vld [vmem:[%s1 + $0x5f8] sm:$0xff]
      %v785 = vld [vmem:[%s1 + $0x600] sm:$0xff]
      %v786 = vld [vmem:[%s1 + $0x608] sm:$0xff]
      %v787 = vld [vmem:[%s1 + $0x610] sm:$0xff]
      %v788 = vld [vmem:[%s1 + $0x618] sm:$0xff]
      %v789 = vld [vmem:[%s2] sm:$0x1]
      %v791 = vperm.slane %v789, 0
      %vm793 = vcmask 261120
      %v795 = vsel %vm793, %v189, 0
      %v798 = vsel %vm793, %v202, 0
      %v801 = vsel %vm793, %v215, 0
      %v804 = vsel %vm793, %v228, 0
      %v807 = vsel %vm793, %v241, 0
      %v810 = vsel %vm793, %v254, 0
      %v813 = vsel %vm793, %v267, 0
      %v816 = vsel %vm793, %v280, 0
      %v819 = vsel %vm793, %v293, 0
      %v822 = vsel %vm793, %v306, 0
      %v825 = vsel %vm793, %v319, 0
      %v828 = vsel %vm793, %v332, 0
      %v831 = vsel %vm793, %v345, 0
      %v834 = vsel %vm793, %v358, 0
      %v837 = vsel %vm793, %v371, 0
      %v840 = vsel %vm793, %v384, 0
      %v843 = vsel %vm793, %v397, 0
      %v846 = vsel %vm793, %v410, 0
      %v849 = vsel %vm793, %v423, 0
      %v852 = vsel %vm793, %v436, 0
      %v855 = vsel %vm793, %v449, 0
      %v858 = vsel %vm793, %v462, 0
      %v861 = vsel %vm793, %v475, 0
      %v864 = vsel %vm793, %v488, 0
      %v867 = vsel %vm793, %v501, 0
      %v870 = vsel %vm793, %v514, 0
      %v873 = vsel %vm793, %v527, 0
      %v876 = vsel %vm793, %v540, 0
      %v879 = vsel %vm793, %v553, 0
      %v882 = vsel %vm793, %v566, 0
      %v885 = vsel %vm793, %v579, 0
      %v888 = vsel %vm793, %v592, 0
      %890 = vmatpush.msra.mxu0 %v608
      %891 = vmatpush.msra.mxu0 %v607
      %892 = vmatpush.msra.mxu0 %v606
      %893 = vmatpush.msra.mxu0 %v605
      %894 = vmatpush.msra.mxu0 %v604
      %895 = vmatpush.msra.mxu0 %v603
      %896 = vmatpush.msra.mxu0 %v602
      %897 = vmatpush.msra.mxu0 %v601
      %898 = vmatpush.msra.mxu0 %v600
      %899 = vmatpush.msra.mxu0 %v599
      %900 = vmatpush.msra.mxu0 %v598
      %901 = vmatpush.msra.mxu0 %v597
      %902 = vmatpush.msra.mxu0 %v596
      %903 = vmatpush.msra.mxu0 %v595
      %904 = vmatpush.msra.mxu0 %v594
      %905 = vmatpush.msra.mxu0 %v593
      %906 = vmatmul.f32.gmra.mxu0 %v177
      %v907 = vpop.f32.mrf.mxu0
      %v908 = vadd.f32 %v791, %v907
      %909 = vmatmul.f32.gmra.mxu0 %v190
      %v910 = vpop.f32.mrf.mxu0
      %v911 = vadd.f32 %v791, %v910
      %912 = vmatmul.f32.gmra.mxu0 %v203
      %v913 = vpop.f32.mrf.mxu0
      %v914 = vadd.f32 %v791, %v913
      %915 = vmatmul.f32.gmra.mxu0 %v216
      %v916 = vpop.f32.mrf.mxu0
      %v917 = vadd.f32 %v791, %v916
      %918 = vmatmul.f32.gmra.mxu0 %v229
      %v919 = vpop.f32.mrf.mxu0
      %v920 = vadd.f32 %v791, %v919
      %921 = vmatmul.f32.gmra.mxu0 %v242
      %v922 = vpop.f32.mrf.mxu0
      %v923 = vadd.f32 %v791, %v922
      %924 = vmatmul.f32.gmra.mxu0 %v255
      %v925 = vpop.f32.mrf.mxu0
      %v926 = vadd.f32 %v791, %v925
      %927 = vmatmul.f32.gmra.mxu0 %v268
      %v928 = vpop.f32.mrf.mxu0
      %v929 = vadd.f32 %v791, %v928
      %930 = vmatmul.f32.gmra.mxu0 %v281
      %v931 = vpop.f32.mrf.mxu0
      %v932 = vadd.f32 %v791, %v931
      %933 = vmatmul.f32.gmra.mxu0 %v294
      %v934 = vpop.f32.mrf.mxu0
      %v935 = vadd.f32 %v791, %v934
      %936 = vmatmul.f32.gmra.mxu0 %v307
      %v937 = vpop.f32.mrf.mxu0
      %v938 = vadd.f32 %v791, %v937
      %939 = vmatmul.f32.gmra.mxu0 %v320
      %v940 = vpop.f32.mrf.mxu0
      %v941 = vadd.f32 %v791, %v940
      %942 = vmatmul.f32.gmra.mxu0 %v333
      %v943 = vpop.f32.mrf.mxu0
      %v944 = vadd.f32 %v791, %v943
      %945 = vmatmul.f32.gmra.mxu0 %v346
      %v946 = vpop.f32.mrf.mxu0
      %v947 = vadd.f32 %v791, %v946
      %948 = vmatmul.f32.gmra.mxu0 %v359
      %v949 = vpop.f32.mrf.mxu0
      %v950 = vadd.f32 %v791, %v949
      %951 = vmatmul.f32.gmra.mxu0 %v372
      %v952 = vpop.f32.mrf.mxu0
      %v953 = vadd.f32 %v791, %v952
      %954 = vmatmul.f32.gmra.mxu0 %v385
      %v955 = vpop.f32.mrf.mxu0
      %v956 = vadd.f32 %v791, %v955
      %957 = vmatmul.f32.gmra.mxu0 %v398
      %v958 = vpop.f32.mrf.mxu0
      %v959 = vadd.f32 %v791, %v958
      %960 = vmatmul.f32.gmra.mxu0 %v411
      %v961 = vpop.f32.mrf.mxu0
      %v962 = vadd.f32 %v791, %v961
      %963 = vmatmul.f32.gmra.mxu0 %v424
      %v964 = vpop.f32.mrf.mxu0
      %v965 = vadd.f32 %v791, %v964
      %966 = vmatmul.f32.gmra.mxu0 %v437
      %v967 = vpop.f32.mrf.mxu0
      %v968 = vadd.f32 %v791, %v967
      %969 = vmatmul.f32.gmra.mxu0 %v450
      %v970 = vpop.f32.mrf.mxu0
      %v971 = vadd.f32 %v791, %v970
      %972 = vmatmul.f32.gmra.mxu0 %v463
      %v973 = vpop.f32.mrf.mxu0
      %v974 = vadd.f32 %v791, %v973
      %975 = vmatmul.f32.gmra.mxu0 %v476
      %v976 = vpop.f32.mrf.mxu0
      %v977 = vadd.f32 %v791, %v976
      %978 = vmatmul.f32.gmra.mxu0 %v489
      %v979 = vpop.f32.mrf.mxu0
      %v980 = vadd.f32 %v791, %v979
      %981 = vmatmul.f32.gmra.mxu0 %v502
      %v982 = vpop.f32.mrf.mxu0
      %v983 = vadd.f32 %v791, %v982
      %984 = vmatmul.f32.gmra.mxu0 %v515
      %v985 = vpop.f32.mrf.mxu0
      %v986 = vadd.f32 %v791, %v985
      %987 = vmatmul.f32.gmra.mxu0 %v528
      %v988 = vpop.f32.mrf.mxu0
      %v989 = vadd.f32 %v791, %v988
      %990 = vmatmul.f32.gmra.mxu0 %v541
      %v991 = vpop.f32.mrf.mxu0
      %v992 = vadd.f32 %v791, %v991
      %993 = vmatmul.f32.gmra.mxu0 %v554
      %v994 = vpop.f32.mrf.mxu0
      %v995 = vadd.f32 %v791, %v994
      %996 = vmatmul.f32.gmra.mxu0 %v567
      %v997 = vpop.f32.mrf.mxu0
      %v998 = vadd.f32 %v791, %v997
      %999 = vmatmul.f32.gmra.mxu0 %v580
      %v1000 = vpop.f32.mrf.mxu0
      %v1001 = vadd.f32 %v791, %v1000
      %1002 = vdwg.mxu0
      %1003 = vmatpush.msra.mxu0 %v624
      %1004 = vmatpush.msra.mxu0 %v623
      %1005 = vmatpush.msra.mxu0 %v622
      %1006 = vmatpush.msra.mxu0 %v621
      %1007 = vmatpush.msra.mxu0 %v620
      %1008 = vmatpush.msra.mxu0 %v619
      %1009 = vmatpush.msra.mxu0 %v618
      %1010 = vmatpush.msra.mxu0 %v617
      %1011 = vmatpush.msra.mxu0 %v616
      %1012 = vmatpush.msra.mxu0 %v615
      %1013 = vmatpush.msra.mxu0 %v614
      %1014 = vmatpush.msra.mxu0 %v613
      %1015 = vmatpush.msra.mxu0 %v612
      %1016 = vmatpush.msra.mxu0 %v611
      %1017 = vmatpush.msra.mxu0 %v610
      %1018 = vmatpush.msra.mxu0 %v609
      %1019 = vmatmul.f32.gmra.mxu0 %v178
      %v1020 = vpop.f32.mrf.mxu0
      %v1021 = vadd.f32 %v908, %v1020
      %1022 = vmatmul.f32.gmra.mxu0 %v191
      %v1023 = vpop.f32.mrf.mxu0
      %v1024 = vadd.f32 %v911, %v1023
      %1025 = vmatmul.f32.gmra.mxu0 %v204
      %v1026 = vpop.f32.mrf.mxu0
      %v1027 = vadd.f32 %v914, %v1026
      %1028 = vmatmul.f32.gmra.mxu0 %v217
      %v1029 = vpop.f32.mrf.mxu0
      %v1030 = vadd.f32 %v917, %v1029
      %1031 = vmatmul.f32.gmra.mxu0 %v230
      %v1032 = vpop.f32.mrf.mxu0
      %v1033 = vadd.f32 %v920, %v1032
      %1034 = vmatmul.f32.gmra.mxu0 %v243
      %v1035 = vpop.f32.mrf.mxu0
      %v1036 = vadd.f32 %v923, %v1035
      %1037 = vmatmul.f32.gmra.mxu0 %v256
      %v1038 = vpop.f32.mrf.mxu0
      %v1039 = vadd.f32 %v926, %v1038
      %1040 = vmatmul.f32.gmra.mxu0 %v269
      %v1041 = vpop.f32.mrf.mxu0
      %v1042 = vadd.f32 %v929, %v1041
      %1043 = vmatmul.f32.gmra.mxu0 %v282
      %v1044 = vpop.f32.mrf.mxu0
      %v1045 = vadd.f32 %v932, %v1044
      %1046 = vmatmul.f32.gmra.mxu0 %v295
      %v1047 = vpop.f32.mrf.mxu0
      %v1048 = vadd.f32 %v935, %v1047
      %1049 = vmatmul.f32.gmra.mxu0 %v308
      %v1050 = vpop.f32.mrf.mxu0
      %v1051 = vadd.f32 %v938, %v1050
      %1052 = vmatmul.f32.gmra.mxu0 %v321
      %v1053 = vpop.f32.mrf.mxu0
      %v1054 = vadd.f32 %v941, %v1053
      %1055 = vmatmul.f32.gmra.mxu0 %v334
      %v1056 = vpop.f32.mrf.mxu0
      %v1057 = vadd.f32 %v944, %v1056
      %1058 = vmatmul.f32.gmra.mxu0 %v347
      %v1059 = vpop.f32.mrf.mxu0
      %v1060 = vadd.f32 %v947, %v1059
      %1061 = vmatmul.f32.gmra.mxu0 %v360
      %v1062 = vpop.f32.mrf.mxu0
      %v1063 = vadd.f32 %v950, %v1062
      %1064 = vmatmul.f32.gmra.mxu0 %v373
      %v1065 = vpop.f32.mrf.mxu0
      %v1066 = vadd.f32 %v953, %v1065
      %1067 = vmatmul.f32.gmra.mxu0 %v386
      %v1068 = vpop.f32.mrf.mxu0
      %v1069 = vadd.f32 %v956, %v1068
      %1070 = vmatmul.f32.gmra.mxu0 %v399
      %v1071 = vpop.f32.mrf.mxu0
      %v1072 = vadd.f32 %v959, %v1071
      %1073 = vmatmul.f32.gmra.mxu0 %v412
      %v1074 = vpop.f32.mrf.mxu0
      %v1075 = vadd.f32 %v962, %v1074
      %1076 = vmatmul.f32.gmra.mxu0 %v425
      %v1077 = vpop.f32.mrf.mxu0
      %v1078 = vadd.f32 %v965, %v1077
      %1079 = vmatmul.f32.gmra.mxu0 %v438
      %v1080 = vpop.f32.mrf.mxu0
      %v1081 = vadd.f32 %v968, %v1080
      %1082 = vmatmul.f32.gmra.mxu0 %v451
      %v1083 = vpop.f32.mrf.mxu0
      %v1084 = vadd.f32 %v971, %v1083
      %1085 = vmatmul.f32.gmra.mxu0 %v464
      %v1086 = vpop.f32.mrf.mxu0
      %v1087 = vadd.f32 %v974, %v1086
      %1088 = vmatmul.f32.gmra.mxu0 %v477
      %v1089 = vpop.f32.mrf.mxu0
      %v1090 = vadd.f32 %v977, %v1089
      %1091 = vmatmul.f32.gmra.mxu0 %v490
      %v1092 = vpop.f32.mrf.mxu0
      %v1093 = vadd.f32 %v980, %v1092
      %1094 = vmatmul.f32.gmra.mxu0 %v503
      %v1095 = vpop.f32.mrf.mxu0
      %v1096 = vadd.f32 %v983, %v1095
      %1097 = vmatmul.f32.gmra.mxu0 %v516
      %v1098 = vpop.f32.mrf.mxu0
      %v1099 = vadd.f32 %v986, %v1098
      %1100 = vmatmul.f32.gmra.mxu0 %v529
      %v1101 = vpop.f32.mrf.mxu0
      %v1102 = vadd.f32 %v989, %v1101
      %1103 = vmatmul.f32.gmra.mxu0 %v542
      %v1104 = vpop.f32.mrf.mxu0
      %v1105 = vadd.f32 %v992, %v1104
      %1106 = vmatmul.f32.gmra.mxu0 %v555
      %v1107 = vpop.f32.mrf.mxu0
      %v1108 = vadd.f32 %v995, %v1107
      %1109 = vmatmul.f32.gmra.mxu0 %v568
      %v1110 = vpop.f32.mrf.mxu0
      %v1111 = vadd.f32 %v998, %v1110
      %1112 = vmatmul.f32.gmra.mxu0 %v581
      %v1113 = vpop.f32.mrf.mxu0
      %v1114 = vadd.f32 %v1001, %v1113
      %1115 = vdwg.mxu0
      %1116 = vmatpush.msra.mxu0 %v640
      %1117 = vmatpush.msra.mxu0 %v639
      %1118 = vmatpush.msra.mxu0 %v638
      %1119 = vmatpush.msra.mxu0 %v637
      %1120 = vmatpush.msra.mxu0 %v636
      %1121 = vmatpush.msra.mxu0 %v635
      %1122 = vmatpush.msra.mxu0 %v634
      %1123 = vmatpush.msra.mxu0 %v633
      %1124 = vmatpush.msra.mxu0 %v632
      %1125 = vmatpush.msra.mxu0 %v631
      %1126 = vmatpush.msra.mxu0 %v630
      %1127 = vmatpush.msra.mxu0 %v629
      %1128 = vmatpush.msra.mxu0 %v628
      %1129 = vmatpush.msra.mxu0 %v627
      %1130 = vmatpush.msra.mxu0 %v626
      %1131 = vmatpush.msra.mxu0 %v625
      %1132 = vmatmul.f32.gmra.mxu0 %v179
      %v1133 = vpop.f32.mrf.mxu0
      %v1134 = vadd.f32 %v1021, %v1133
      %1135 = vmatmul.f32.gmra.mxu0 %v192
      %v1136 = vpop.f32.mrf.mxu0
      %v1137 = vadd.f32 %v1024, %v1136
      %1138 = vmatmul.f32.gmra.mxu0 %v205
      %v1139 = vpop.f32.mrf.mxu0
      %v1140 = vadd.f32 %v1027, %v1139
      %1141 = vmatmul.f32.gmra.mxu0 %v218
      %v1142 = vpop.f32.mrf.mxu0
      %v1143 = vadd.f32 %v1030, %v1142
      %1144 = vmatmul.f32.gmra.mxu0 %v231
      %v1145 = vpop.f32.mrf.mxu0
      %v1146 = vadd.f32 %v1033, %v1145
      %1147 = vmatmul.f32.gmra.mxu0 %v244
      %v1148 = vpop.f32.mrf.mxu0
      %v1149 = vadd.f32 %v1036, %v1148
      %1150 = vmatmul.f32.gmra.mxu0 %v257
      %v1151 = vpop.f32.mrf.mxu0
      %v1152 = vadd.f32 %v1039, %v1151
      %1153 = vmatmul.f32.gmra.mxu0 %v270
      %v1154 = vpop.f32.mrf.mxu0
      %v1155 = vadd.f32 %v1042, %v1154
      %1156 = vmatmul.f32.gmra.mxu0 %v283
      %v1157 = vpop.f32.mrf.mxu0
      %v1158 = vadd.f32 %v1045, %v1157
      %1159 = vmatmul.f32.gmra.mxu0 %v296
      %v1160 = vpop.f32.mrf.mxu0
      %v1161 = vadd.f32 %v1048, %v1160
      %1162 = vmatmul.f32.gmra.mxu0 %v309
      %v1163 = vpop.f32.mrf.mxu0
      %v1164 = vadd.f32 %v1051, %v1163
      %1165 = vmatmul.f32.gmra.mxu0 %v322
      %v1166 = vpop.f32.mrf.mxu0
      %v1167 = vadd.f32 %v1054, %v1166
      %1168 = vmatmul.f32.gmra.mxu0 %v335
      %v1169 = vpop.f32.mrf.mxu0
      %v1170 = vadd.f32 %v1057, %v1169
      %1171 = vmatmul.f32.gmra.mxu0 %v348
      %v1172 = vpop.f32.mrf.mxu0
      %v1173 = vadd.f32 %v1060, %v1172
      %1174 = vmatmul.f32.gmra.mxu0 %v361
      %v1175 = vpop.f32.mrf.mxu0
      %v1176 = vadd.f32 %v1063, %v1175
      %1177 = vmatmul.f32.gmra.mxu0 %v374
      %v1178 = vpop.f32.mrf.mxu0
      %v1179 = vadd.f32 %v1066, %v1178
      %1180 = vmatmul.f32.gmra.mxu0 %v387
      %v1181 = vpop.f32.mrf.mxu0
      %v1182 = vadd.f32 %v1069, %v1181
      %1183 = vmatmul.f32.gmra.mxu0 %v400
      %v1184 = vpop.f32.mrf.mxu0
      %v1185 = vadd.f32 %v1072, %v1184
      %1186 = vmatmul.f32.gmra.mxu0 %v413
      %v1187 = vpop.f32.mrf.mxu0
      %v1188 = vadd.f32 %v1075, %v1187
      %1189 = vmatmul.f32.gmra.mxu0 %v426
      %v1190 = vpop.f32.mrf.mxu0
      %v1191 = vadd.f32 %v1078, %v1190
      %1192 = vmatmul.f32.gmra.mxu0 %v439
      %v1193 = vpop.f32.mrf.mxu0
      %v1194 = vadd.f32 %v1081, %v1193
      %1195 = vmatmul.f32.gmra.mxu0 %v452
      %v1196 = vpop.f32.mrf.mxu0
      %v1197 = vadd.f32 %v1084, %v1196
      %1198 = vmatmul.f32.gmra.mxu0 %v465
      %v1199 = vpop.f32.mrf.mxu0
      %v1200 = vadd.f32 %v1087, %v1199
      %1201 = vmatmul.f32.gmra.mxu0 %v478
      %v1202 = vpop.f32.mrf.mxu0
      %v1203 = vadd.f32 %v1090, %v1202
      %1204 = vmatmul.f32.gmra.mxu0 %v491
      %v1205 = vpop.f32.mrf.mxu0
      %v1206 = vadd.f32 %v1093, %v1205
      %1207 = vmatmul.f32.gmra.mxu0 %v504
      %v1208 = vpop.f32.mrf.mxu0
      %v1209 = vadd.f32 %v1096, %v1208
      %1210 = vmatmul.f32.gmra.mxu0 %v517
      %v1211 = vpop.f32.mrf.mxu0
      %v1212 = vadd.f32 %v1099, %v1211
      %1213 = vmatmul.f32.gmra.mxu0 %v530
      %v1214 = vpop.f32.mrf.mxu0
      %v1215 = vadd.f32 %v1102, %v1214
      %1216 = vmatmul.f32.gmra.mxu0 %v543
      %v1217 = vpop.f32.mrf.mxu0
      %v1218 = vadd.f32 %v1105, %v1217
      %1219 = vmatmul.f32.gmra.mxu0 %v556
      %v1220 = vpop.f32.mrf.mxu0
      %v1221 = vadd.f32 %v1108, %v1220
      %1222 = vmatmul.f32.gmra.mxu0 %v569
      %v1223 = vpop.f32.mrf.mxu0
      %v1224 = vadd.f32 %v1111, %v1223
      %1225 = vmatmul.f32.gmra.mxu0 %v582
      %v1226 = vpop.f32.mrf.mxu0
      %v1227 = vadd.f32 %v1114, %v1226
      %1228 = vdwg.mxu0
      %1229 = vmatpush.msra.mxu0 %v656
      %1230 = vmatpush.msra.mxu0 %v655
      %1231 = vmatpush.msra.mxu0 %v654
      %1232 = vmatpush.msra.mxu0 %v653
      %1233 = vmatpush.msra.mxu0 %v652
      %1234 = vmatpush.msra.mxu0 %v651
      %1235 = vmatpush.msra.mxu0 %v650
      %1236 = vmatpush.msra.mxu0 %v649
      %1237 = vmatpush.msra.mxu0 %v648
      %1238 = vmatpush.msra.mxu0 %v647
      %1239 = vmatpush.msra.mxu0 %v646
      %1240 = vmatpush.msra.mxu0 %v645
      %1241 = vmatpush.msra.mxu0 %v644
      %1242 = vmatpush.msra.mxu0 %v643
      %1243 = vmatpush.msra.mxu0 %v642
      %1244 = vmatpush.msra.mxu0 %v641
      %1245 = vmatmul.f32.gmra.mxu0 %v180
      %v1246 = vpop.f32.mrf.mxu0
      %v1247 = vadd.f32 %v1134, %v1246
      %1248 = vmatmul.f32.gmra.mxu0 %v193
      %v1249 = vpop.f32.mrf.mxu0
      %v1250 = vadd.f32 %v1137, %v1249
      %1251 = vmatmul.f32.gmra.mxu0 %v206
      %v1252 = vpop.f32.mrf.mxu0
      %v1253 = vadd.f32 %v1140, %v1252
      %1254 = vmatmul.f32.gmra.mxu0 %v219
      %v1255 = vpop.f32.mrf.mxu0
      %v1256 = vadd.f32 %v1143, %v1255
      %1257 = vmatmul.f32.gmra.mxu0 %v232
      %v1258 = vpop.f32.mrf.mxu0
      %v1259 = vadd.f32 %v1146, %v1258
      %1260 = vmatmul.f32.gmra.mxu0 %v245
      %v1261 = vpop.f32.mrf.mxu0
      %v1262 = vadd.f32 %v1149, %v1261
      %1263 = vmatmul.f32.gmra.mxu0 %v258
      %v1264 = vpop.f32.mrf.mxu0
      %v1265 = vadd.f32 %v1152, %v1264
      %1266 = vmatmul.f32.gmra.mxu0 %v271
      %v1267 = vpop.f32.mrf.mxu0
      %v1268 = vadd.f32 %v1155, %v1267
      %1269 = vmatmul.f32.gmra.mxu0 %v284
      %v1270 = vpop.f32.mrf.mxu0
      %v1271 = vadd.f32 %v1158, %v1270
      %1272 = vmatmul.f32.gmra.mxu0 %v297
      %v1273 = vpop.f32.mrf.mxu0
      %v1274 = vadd.f32 %v1161, %v1273
      %1275 = vmatmul.f32.gmra.mxu0 %v310
      %v1276 = vpop.f32.mrf.mxu0
      %v1277 = vadd.f32 %v1164, %v1276
      %1278 = vmatmul.f32.gmra.mxu0 %v323
      %v1279 = vpop.f32.mrf.mxu0
      %v1280 = vadd.f32 %v1167, %v1279
      %1281 = vmatmul.f32.gmra.mxu0 %v336
      %v1282 = vpop.f32.mrf.mxu0
      %v1283 = vadd.f32 %v1170, %v1282
      %1284 = vmatmul.f32.gmra.mxu0 %v349
      %v1285 = vpop.f32.mrf.mxu0
      %v1286 = vadd.f32 %v1173, %v1285
      %1287 = vmatmul.f32.gmra.mxu0 %v362
      %v1288 = vpop.f32.mrf.mxu0
      %v1289 = vadd.f32 %v1176, %v1288
      %1290 = vmatmul.f32.gmra.mxu0 %v375
      %v1291 = vpop.f32.mrf.mxu0
      %v1292 = vadd.f32 %v1179, %v1291
      %1293 = vmatmul.f32.gmra.mxu0 %v388
      %v1294 = vpop.f32.mrf.mxu0
      %v1295 = vadd.f32 %v1182, %v1294
      %1296 = vmatmul.f32.gmra.mxu0 %v401
      %v1297 = vpop.f32.mrf.mxu0
      %v1298 = vadd.f32 %v1185, %v1297
      %1299 = vmatmul.f32.gmra.mxu0 %v414
      %v1300 = vpop.f32.mrf.mxu0
      %v1301 = vadd.f32 %v1188, %v1300
      %1302 = vmatmul.f32.gmra.mxu0 %v427
      %v1303 = vpop.f32.mrf.mxu0
      %v1304 = vadd.f32 %v1191, %v1303
      %1305 = vmatmul.f32.gmra.mxu0 %v440
      %v1306 = vpop.f32.mrf.mxu0
      %v1307 = vadd.f32 %v1194, %v1306
      %1308 = vmatmul.f32.gmra.mxu0 %v453
      %v1309 = vpop.f32.mrf.mxu0
      %v1310 = vadd.f32 %v1197, %v1309
      %1311 = vmatmul.f32.gmra.mxu0 %v466
      %v1312 = vpop.f32.mrf.mxu0
      %v1313 = vadd.f32 %v1200, %v1312
      %1314 = vmatmul.f32.gmra.mxu0 %v479
      %v1315 = vpop.f32.mrf.mxu0
      %v1316 = vadd.f32 %v1203, %v1315
      %1317 = vmatmul.f32.gmra.mxu0 %v492
      %v1318 = vpop.f32.mrf.mxu0
      %v1319 = vadd.f32 %v1206, %v1318
      %1320 = vmatmul.f32.gmra.mxu0 %v505
      %v1321 = vpop.f32.mrf.mxu0
      %v1322 = vadd.f32 %v1209, %v1321
      %1323 = vmatmul.f32.gmra.mxu0 %v518
      %v1324 = vpop.f32.mrf.mxu0
      %v1325 = vadd.f32 %v1212, %v1324
      %1326 = vmatmul.f32.gmra.mxu0 %v531
      %v1327 = vpop.f32.mrf.mxu0
      %v1328 = vadd.f32 %v1215, %v1327
      %1329 = vmatmul.f32.gmra.mxu0 %v544
      %v1330 = vpop.f32.mrf.mxu0
      %v1331 = vadd.f32 %v1218, %v1330
      %1332 = vmatmul.f32.gmra.mxu0 %v557
      %v1333 = vpop.f32.mrf.mxu0
      %v1334 = vadd.f32 %v1221, %v1333
      %1335 = vmatmul.f32.gmra.mxu0 %v570
      %v1336 = vpop.f32.mrf.mxu0
      %v1337 = vadd.f32 %v1224, %v1336
      %1338 = vmatmul.f32.gmra.mxu0 %v583
      %v1339 = vpop.f32.mrf.mxu0
      %v1340 = vadd.f32 %v1227, %v1339
      %1341 = vdwg.mxu0
      %1342 = vmatpush.msra.mxu0 %v672
      %1343 = vmatpush.msra.mxu0 %v671
      %1344 = vmatpush.msra.mxu0 %v670
      %1345 = vmatpush.msra.mxu0 %v669
      %1346 = vmatpush.msra.mxu0 %v668
      %1347 = vmatpush.msra.mxu0 %v667
      %1348 = vmatpush.msra.mxu0 %v666
      %1349 = vmatpush.msra.mxu0 %v665
      %1350 = vmatpush.msra.mxu0 %v664
      %1351 = vmatpush.msra.mxu0 %v663
      %1352 = vmatpush.msra.mxu0 %v662
      %1353 = vmatpush.msra.mxu0 %v661
      %1354 = vmatpush.msra.mxu0 %v660
      %1355 = vmatpush.msra.mxu0 %v659
      %1356 = vmatpush.msra.mxu0 %v658
      %1357 = vmatpush.msra.mxu0 %v657
      %1358 = vmatmul.f32.gmra.mxu0 %v181
      %v1359 = vpop.f32.mrf.mxu0
      %v1360 = vadd.f32 %v1247, %v1359
      %1361 = vmatmul.f32.gmra.mxu0 %v194
      %v1362 = vpop.f32.mrf.mxu0
      %v1363 = vadd.f32 %v1250, %v1362
      %1364 = vmatmul.f32.gmra.mxu0 %v207
      %v1365 = vpop.f32.mrf.mxu0
      %v1366 = vadd.f32 %v1253, %v1365
      %1367 = vmatmul.f32.gmra.mxu0 %v220
      %v1368 = vpop.f32.mrf.mxu0
      %v1369 = vadd.f32 %v1256, %v1368
      %1370 = vmatmul.f32.gmra.mxu0 %v233
      %v1371 = vpop.f32.mrf.mxu0
      %v1372 = vadd.f32 %v1259, %v1371
      %1373 = vmatmul.f32.gmra.mxu0 %v246
      %v1374 = vpop.f32.mrf.mxu0
      %v1375 = vadd.f32 %v1262, %v1374
      %1376 = vmatmul.f32.gmra.mxu0 %v259
      %v1377 = vpop.f32.mrf.mxu0
      %v1378 = vadd.f32 %v1265, %v1377
      %1379 = vmatmul.f32.gmra.mxu0 %v272
      %v1380 = vpop.f32.mrf.mxu0
      %v1381 = vadd.f32 %v1268, %v1380
      %1382 = vmatmul.f32.gmra.mxu0 %v285
      %v1383 = vpop.f32.mrf.mxu0
      %v1384 = vadd.f32 %v1271, %v1383
      %1385 = vmatmul.f32.gmra.mxu0 %v298
      %v1386 = vpop.f32.mrf.mxu0
      %v1387 = vadd.f32 %v1274, %v1386
      %1388 = vmatmul.f32.gmra.mxu0 %v311
      %v1389 = vpop.f32.mrf.mxu0
      %v1390 = vadd.f32 %v1277, %v1389
      %1391 = vmatmul.f32.gmra.mxu0 %v324
      %v1392 = vpop.f32.mrf.mxu0
      %v1393 = vadd.f32 %v1280, %v1392
      %1394 = vmatmul.f32.gmra.mxu0 %v337
      %v1395 = vpop.f32.mrf.mxu0
      %v1396 = vadd.f32 %v1283, %v1395
      %1397 = vmatmul.f32.gmra.mxu0 %v350
      %v1398 = vpop.f32.mrf.mxu0
      %v1399 = vadd.f32 %v1286, %v1398
      %1400 = vmatmul.f32.gmra.mxu0 %v363
      %v1401 = vpop.f32.mrf.mxu0
      %v1402 = vadd.f32 %v1289, %v1401
      %1403 = vmatmul.f32.gmra.mxu0 %v376
      %v1404 = vpop.f32.mrf.mxu0
      %v1405 = vadd.f32 %v1292, %v1404
      %1406 = vmatmul.f32.gmra.mxu0 %v389
      %v1407 = vpop.f32.mrf.mxu0
      %v1408 = vadd.f32 %v1295, %v1407
      %1409 = vmatmul.f32.gmra.mxu0 %v402
      %v1410 = vpop.f32.mrf.mxu0
      %v1411 = vadd.f32 %v1298, %v1410
      %1412 = vmatmul.f32.gmra.mxu0 %v415
      %v1413 = vpop.f32.mrf.mxu0
      %v1414 = vadd.f32 %v1301, %v1413
      %1415 = vmatmul.f32.gmra.mxu0 %v428
      %v1416 = vpop.f32.mrf.mxu0
      %v1417 = vadd.f32 %v1304, %v1416
      %1418 = vmatmul.f32.gmra.mxu0 %v441
      %v1419 = vpop.f32.mrf.mxu0
      %v1420 = vadd.f32 %v1307, %v1419
      %1421 = vmatmul.f32.gmra.mxu0 %v454
      %v1422 = vpop.f32.mrf.mxu0
      %v1423 = vadd.f32 %v1310, %v1422
      %1424 = vmatmul.f32.gmra.mxu0 %v467
      %v1425 = vpop.f32.mrf.mxu0
      %v1426 = vadd.f32 %v1313, %v1425
      %1427 = vmatmul.f32.gmra.mxu0 %v480
      %v1428 = vpop.f32.mrf.mxu0
      %v1429 = vadd.f32 %v1316, %v1428
      %1430 = vmatmul.f32.gmra.mxu0 %v493
      %v1431 = vpop.f32.mrf.mxu0
      %v1432 = vadd.f32 %v1319, %v1431
      %1433 = vmatmul.f32.gmra.mxu0 %v506
      %v1434 = vpop.f32.mrf.mxu0
      %v1435 = vadd.f32 %v1322, %v1434
      %1436 = vmatmul.f32.gmra.mxu0 %v519
      %v1437 = vpop.f32.mrf.mxu0
      %v1438 = vadd.f32 %v1325, %v1437
      %1439 = vmatmul.f32.gmra.mxu0 %v532
      %v1440 = vpop.f32.mrf.mxu0
      %v1441 = vadd.f32 %v1328, %v1440
      %1442 = vmatmul.f32.gmra.mxu0 %v545
      %v1443 = vpop.f32.mrf.mxu0
      %v1444 = vadd.f32 %v1331, %v1443
      %1445 = vmatmul.f32.gmra.mxu0 %v558
      %v1446 = vpop.f32.mrf.mxu0
      %v1447 = vadd.f32 %v1334, %v1446
      %1448 = vmatmul.f32.gmra.mxu0 %v571
      %v1449 = vpop.f32.mrf.mxu0
      %v1450 = vadd.f32 %v1337, %v1449
      %1451 = vmatmul.f32.gmra.mxu0 %v584
      %v1452 = vpop.f32.mrf.mxu0
      %v1453 = vadd.f32 %v1340, %v1452
      %1454 = vdwg.mxu0
      %1455 = vmatpush.msra.mxu0 %v688
      %1456 = vmatpush.msra.mxu0 %v687
      %1457 = vmatpush.msra.mxu0 %v686
      %1458 = vmatpush.msra.mxu0 %v685
      %1459 = vmatpush.msra.mxu0 %v684
      %1460 = vmatpush.msra.mxu0 %v683
      %1461 = vmatpush.msra.mxu0 %v682
      %1462 = vmatpush.msra.mxu0 %v681
      %1463 = vmatpush.msra.mxu0 %v680
      %1464 = vmatpush.msra.mxu0 %v679
      %1465 = vmatpush.msra.mxu0 %v678
      %1466 = vmatpush.msra.mxu0 %v677
      %1467 = vmatpush.msra.mxu0 %v676
      %1468 = vmatpush.msra.mxu0 %v675
      %1469 = vmatpush.msra.mxu0 %v674
      %1470 = vmatpush.msra.mxu0 %v673
      %1471 = vmatmul.f32.gmra.mxu0 %v182
      %v1472 = vpop.f32.mrf.mxu0
      %v1473 = vadd.f32 %v1360, %v1472
      %1474 = vmatmul.f32.gmra.mxu0 %v195
      %v1475 = vpop.f32.mrf.mxu0
      %v1476 = vadd.f32 %v1363, %v1475
      %1477 = vmatmul.f32.gmra.mxu0 %v208
      %v1478 = vpop.f32.mrf.mxu0
      %v1479 = vadd.f32 %v1366, %v1478
      %1480 = vmatmul.f32.gmra.mxu0 %v221
      %v1481 = vpop.f32.mrf.mxu0
      %v1482 = vadd.f32 %v1369, %v1481
      %1483 = vmatmul.f32.gmra.mxu0 %v234
      %v1484 = vpop.f32.mrf.mxu0
      %v1485 = vadd.f32 %v1372, %v1484
      %1486 = vmatmul.f32.gmra.mxu0 %v247
      %v1487 = vpop.f32.mrf.mxu0
      %v1488 = vadd.f32 %v1375, %v1487
      %1489 = vmatmul.f32.gmra.mxu0 %v260
      %v1490 = vpop.f32.mrf.mxu0
      %v1491 = vadd.f32 %v1378, %v1490
      %1492 = vmatmul.f32.gmra.mxu0 %v273
      %v1493 = vpop.f32.mrf.mxu0
      %v1494 = vadd.f32 %v1381, %v1493
      %1495 = vmatmul.f32.gmra.mxu0 %v286
      %v1496 = vpop.f32.mrf.mxu0
      %v1497 = vadd.f32 %v1384, %v1496
      %1498 = vmatmul.f32.gmra.mxu0 %v299
      %v1499 = vpop.f32.mrf.mxu0
      %v1500 = vadd.f32 %v1387, %v1499
      %1501 = vmatmul.f32.gmra.mxu0 %v312
      %v1502 = vpop.f32.mrf.mxu0
      %v1503 = vadd.f32 %v1390, %v1502
      %1504 = vmatmul.f32.gmra.mxu0 %v325
      %v1505 = vpop.f32.mrf.mxu0
      %v1506 = vadd.f32 %v1393, %v1505
      %1507 = vmatmul.f32.gmra.mxu0 %v338
      %v1508 = vpop.f32.mrf.mxu0
      %v1509 = vadd.f32 %v1396, %v1508
      %1510 = vmatmul.f32.gmra.mxu0 %v351
      %v1511 = vpop.f32.mrf.mxu0
      %v1512 = vadd.f32 %v1399, %v1511
      %1513 = vmatmul.f32.gmra.mxu0 %v364
      %v1514 = vpop.f32.mrf.mxu0
      %v1515 = vadd.f32 %v1402, %v1514
      %1516 = vmatmul.f32.gmra.mxu0 %v377
      %v1517 = vpop.f32.mrf.mxu0
      %v1518 = vadd.f32 %v1405, %v1517
      %1519 = vmatmul.f32.gmra.mxu0 %v390
      %v1520 = vpop.f32.mrf.mxu0
      %v1521 = vadd.f32 %v1408, %v1520
      %1522 = vmatmul.f32.gmra.mxu0 %v403
      %v1523 = vpop.f32.mrf.mxu0
      %v1524 = vadd.f32 %v1411, %v1523
      %1525 = vmatmul.f32.gmra.mxu0 %v416
      %v1526 = vpop.f32.mrf.mxu0
      %v1527 = vadd.f32 %v1414, %v1526
      %1528 = vmatmul.f32.gmra.mxu0 %v429
      %v1529 = vpop.f32.mrf.mxu0
      %v1530 = vadd.f32 %v1417, %v1529
      %1531 = vmatmul.f32.gmra.mxu0 %v442
      %v1532 = vpop.f32.mrf.mxu0
      %v1533 = vadd.f32 %v1420, %v1532
      %1534 = vmatmul.f32.gmra.mxu0 %v455
      %v1535 = vpop.f32.mrf.mxu0
      %v1536 = vadd.f32 %v1423, %v1535
      %1537 = vmatmul.f32.gmra.mxu0 %v468
      %v1538 = vpop.f32.mrf.mxu0
      %v1539 = vadd.f32 %v1426, %v1538
      %1540 = vmatmul.f32.gmra.mxu0 %v481
      %v1541 = vpop.f32.mrf.mxu0
      %v1542 = vadd.f32 %v1429, %v1541
      %1543 = vmatmul.f32.gmra.mxu0 %v494
      %v1544 = vpop.f32.mrf.mxu0
      %v1545 = vadd.f32 %v1432, %v1544
      %1546 = vmatmul.f32.gmra.mxu0 %v507
      %v1547 = vpop.f32.mrf.mxu0
      %v1548 = vadd.f32 %v1435, %v1547
      %1549 = vmatmul.f32.gmra.mxu0 %v520
      %v1550 = vpop.f32.mrf.mxu0
      %v1551 = vadd.f32 %v1438, %v1550
      %1552 = vmatmul.f32.gmra.mxu0 %v533
      %v1553 = vpop.f32.mrf.mxu0
      %v1554 = vadd.f32 %v1441, %v1553
      %1555 = vmatmul.f32.gmra.mxu0 %v546
      %v1556 = vpop.f32.mrf.mxu0
      %v1557 = vadd.f32 %v1444, %v1556
      %1558 = vmatmul.f32.gmra.mxu0 %v559
      %v1559 = vpop.f32.mrf.mxu0
      %v1560 = vadd.f32 %v1447, %v1559
      %1561 = vmatmul.f32.gmra.mxu0 %v572
      %v1562 = vpop.f32.mrf.mxu0
      %v1563 = vadd.f32 %v1450, %v1562
      %1564 = vmatmul.f32.gmra.mxu0 %v585
      %v1565 = vpop.f32.mrf.mxu0
      %v1566 = vadd.f32 %v1453, %v1565
      %1567 = vdwg.mxu0
      %1568 = vmatpush.msra.mxu0 %v704
      %1569 = vmatpush.msra.mxu0 %v703
      %1570 = vmatpush.msra.mxu0 %v702
      %1571 = vmatpush.msra.mxu0 %v701
      %1572 = vmatpush.msra.mxu0 %v700
      %1573 = vmatpush.msra.mxu0 %v699
      %1574 = vmatpush.msra.mxu0 %v698
      %1575 = vmatpush.msra.mxu0 %v697
      %1576 = vmatpush.msra.mxu0 %v696
      %1577 = vmatpush.msra.mxu0 %v695
      %1578 = vmatpush.msra.mxu0 %v694
      %1579 = vmatpush.msra.mxu0 %v693
      %1580 = vmatpush.msra.mxu0 %v692
      %1581 = vmatpush.msra.mxu0 %v691
      %1582 = vmatpush.msra.mxu0 %v690
      %1583 = vmatpush.msra.mxu0 %v689
      %1584 = vmatmul.f32.gmra.mxu0 %v183
      %v1585 = vpop.f32.mrf.mxu0
      %v1586 = vadd.f32 %v1473, %v1585
      %1587 = vmatmul.f32.gmra.mxu0 %v196
      %v1588 = vpop.f32.mrf.mxu0
      %v1589 = vadd.f32 %v1476, %v1588
      %1590 = vmatmul.f32.gmra.mxu0 %v209
      %v1591 = vpop.f32.mrf.mxu0
      %v1592 = vadd.f32 %v1479, %v1591
      %1593 = vmatmul.f32.gmra.mxu0 %v222
      %v1594 = vpop.f32.mrf.mxu0
      %v1595 = vadd.f32 %v1482, %v1594
      %1596 = vmatmul.f32.gmra.mxu0 %v235
      %v1597 = vpop.f32.mrf.mxu0
      %v1598 = vadd.f32 %v1485, %v1597
      %1599 = vmatmul.f32.gmra.mxu0 %v248
      %v1600 = vpop.f32.mrf.mxu0
      %v1601 = vadd.f32 %v1488, %v1600
      %1602 = vmatmul.f32.gmra.mxu0 %v261
      %v1603 = vpop.f32.mrf.mxu0
      %v1604 = vadd.f32 %v1491, %v1603
      %1605 = vmatmul.f32.gmra.mxu0 %v274
      %v1606 = vpop.f32.mrf.mxu0
      %v1607 = vadd.f32 %v1494, %v1606
      %1608 = vmatmul.f32.gmra.mxu0 %v287
      %v1609 = vpop.f32.mrf.mxu0
      %v1610 = vadd.f32 %v1497, %v1609
      %1611 = vmatmul.f32.gmra.mxu0 %v300
      %v1612 = vpop.f32.mrf.mxu0
      %v1613 = vadd.f32 %v1500, %v1612
      %1614 = vmatmul.f32.gmra.mxu0 %v313
      %v1615 = vpop.f32.mrf.mxu0
      %v1616 = vadd.f32 %v1503, %v1615
      %1617 = vmatmul.f32.gmra.mxu0 %v326
      %v1618 = vpop.f32.mrf.mxu0
      %v1619 = vadd.f32 %v1506, %v1618
      %1620 = vmatmul.f32.gmra.mxu0 %v339
      %v1621 = vpop.f32.mrf.mxu0
      %v1622 = vadd.f32 %v1509, %v1621
      %1623 = vmatmul.f32.gmra.mxu0 %v352
      %v1624 = vpop.f32.mrf.mxu0
      %v1625 = vadd.f32 %v1512, %v1624
      %1626 = vmatmul.f32.gmra.mxu0 %v365
      %v1627 = vpop.f32.mrf.mxu0
      %v1628 = vadd.f32 %v1515, %v1627
      %1629 = vmatmul.f32.gmra.mxu0 %v378
      %v1630 = vpop.f32.mrf.mxu0
      %v1631 = vadd.f32 %v1518, %v1630
      %1632 = vmatmul.f32.gmra.mxu0 %v391
      %v1633 = vpop.f32.mrf.mxu0
      %v1634 = vadd.f32 %v1521, %v1633
      %1635 = vmatmul.f32.gmra.mxu0 %v404
      %v1636 = vpop.f32.mrf.mxu0
      %v1637 = vadd.f32 %v1524, %v1636
      %1638 = vmatmul.f32.gmra.mxu0 %v417
      %v1639 = vpop.f32.mrf.mxu0
      %v1640 = vadd.f32 %v1527, %v1639
      %1641 = vmatmul.f32.gmra.mxu0 %v430
      %v1642 = vpop.f32.mrf.mxu0
      %v1643 = vadd.f32 %v1530, %v1642
      %1644 = vmatmul.f32.gmra.mxu0 %v443
      %v1645 = vpop.f32.mrf.mxu0
      %v1646 = vadd.f32 %v1533, %v1645
      %1647 = vmatmul.f32.gmra.mxu0 %v456
      %v1648 = vpop.f32.mrf.mxu0
      %v1649 = vadd.f32 %v1536, %v1648
      %1650 = vmatmul.f32.gmra.mxu0 %v469
      %v1651 = vpop.f32.mrf.mxu0
      %v1652 = vadd.f32 %v1539, %v1651
      %1653 = vmatmul.f32.gmra.mxu0 %v482
      %v1654 = vpop.f32.mrf.mxu0
      %v1655 = vadd.f32 %v1542, %v1654
      %1656 = vmatmul.f32.gmra.mxu0 %v495
      %v1657 = vpop.f32.mrf.mxu0
      %v1658 = vadd.f32 %v1545, %v1657
      %1659 = vmatmul.f32.gmra.mxu0 %v508
      %v1660 = vpop.f32.mrf.mxu0
      %v1661 = vadd.f32 %v1548, %v1660
      %1662 = vmatmul.f32.gmra.mxu0 %v521
      %v1663 = vpop.f32.mrf.mxu0
      %v1664 = vadd.f32 %v1551, %v1663
      %1665 = vmatmul.f32.gmra.mxu0 %v534
      %v1666 = vpop.f32.mrf.mxu0
      %v1667 = vadd.f32 %v1554, %v1666
      %1668 = vmatmul.f32.gmra.mxu0 %v547
      %v1669 = vpop.f32.mrf.mxu0
      %v1670 = vadd.f32 %v1557, %v1669
      %1671 = vmatmul.f32.gmra.mxu0 %v560
      %v1672 = vpop.f32.mrf.mxu0
      %v1673 = vadd.f32 %v1560, %v1672
      %1674 = vmatmul.f32.gmra.mxu0 %v573
      %v1675 = vpop.f32.mrf.mxu0
      %v1676 = vadd.f32 %v1563, %v1675
      %1677 = vmatmul.f32.gmra.mxu0 %v586
      %v1678 = vpop.f32.mrf.mxu0
      %v1679 = vadd.f32 %v1566, %v1678
      %1680 = vdwg.mxu0
      %1681 = vmatpush.msra.mxu0 %v720
      %1682 = vmatpush.msra.mxu0 %v719
      %1683 = vmatpush.msra.mxu0 %v718
      %1684 = vmatpush.msra.mxu0 %v717
      %1685 = vmatpush.msra.mxu0 %v716
      %1686 = vmatpush.msra.mxu0 %v715
      %1687 = vmatpush.msra.mxu0 %v714
      %1688 = vmatpush.msra.mxu0 %v713
      %1689 = vmatpush.msra.mxu0 %v712
      %1690 = vmatpush.msra.mxu0 %v711
      %1691 = vmatpush.msra.mxu0 %v710
      %1692 = vmatpush.msra.mxu0 %v709
      %1693 = vmatpush.msra.mxu0 %v708
      %1694 = vmatpush.msra.mxu0 %v707
      %1695 = vmatpush.msra.mxu0 %v706
      %1696 = vmatpush.msra.mxu0 %v705
      %1697 = vmatmul.f32.gmra.mxu0 %v184
      %v1698 = vpop.f32.mrf.mxu0
      %v1699 = vadd.f32 %v1586, %v1698
      %1700 = vmatmul.f32.gmra.mxu0 %v197
      %v1701 = vpop.f32.mrf.mxu0
      %v1702 = vadd.f32 %v1589, %v1701
      %1703 = vmatmul.f32.gmra.mxu0 %v210
      %v1704 = vpop.f32.mrf.mxu0
      %v1705 = vadd.f32 %v1592, %v1704
      %1706 = vmatmul.f32.gmra.mxu0 %v223
      %v1707 = vpop.f32.mrf.mxu0
      %v1708 = vadd.f32 %v1595, %v1707
      %1709 = vmatmul.f32.gmra.mxu0 %v236
      %v1710 = vpop.f32.mrf.mxu0
      %v1711 = vadd.f32 %v1598, %v1710
      %1712 = vmatmul.f32.gmra.mxu0 %v249
      %v1713 = vpop.f32.mrf.mxu0
      %v1714 = vadd.f32 %v1601, %v1713
      %1715 = vmatmul.f32.gmra.mxu0 %v262
      %v1716 = vpop.f32.mrf.mxu0
      %v1717 = vadd.f32 %v1604, %v1716
      %1718 = vmatmul.f32.gmra.mxu0 %v275
      %v1719 = vpop.f32.mrf.mxu0
      %v1720 = vadd.f32 %v1607, %v1719
      %1721 = vmatmul.f32.gmra.mxu0 %v288
      %v1722 = vpop.f32.mrf.mxu0
      %v1723 = vadd.f32 %v1610, %v1722
      %1724 = vmatmul.f32.gmra.mxu0 %v301
      %v1725 = vpop.f32.mrf.mxu0
      %v1726 = vadd.f32 %v1613, %v1725
      %1727 = vmatmul.f32.gmra.mxu0 %v314
      %v1728 = vpop.f32.mrf.mxu0
      %v1729 = vadd.f32 %v1616, %v1728
      %1730 = vmatmul.f32.gmra.mxu0 %v327
      %v1731 = vpop.f32.mrf.mxu0
      %v1732 = vadd.f32 %v1619, %v1731
      %1733 = vmatmul.f32.gmra.mxu0 %v340
      %v1734 = vpop.f32.mrf.mxu0
      %v1735 = vadd.f32 %v1622, %v1734
      %1736 = vmatmul.f32.gmra.mxu0 %v353
      %v1737 = vpop.f32.mrf.mxu0
      %v1738 = vadd.f32 %v1625, %v1737
      %1739 = vmatmul.f32.gmra.mxu0 %v366
      %v1740 = vpop.f32.mrf.mxu0
      %v1741 = vadd.f32 %v1628, %v1740
      %1742 = vmatmul.f32.gmra.mxu0 %v379
      %v1743 = vpop.f32.mrf.mxu0
      %v1744 = vadd.f32 %v1631, %v1743
      %1745 = vmatmul.f32.gmra.mxu0 %v392
      %v1746 = vpop.f32.mrf.mxu0
      %v1747 = vadd.f32 %v1634, %v1746
      %1748 = vmatmul.f32.gmra.mxu0 %v405
      %v1749 = vpop.f32.mrf.mxu0
      %v1750 = vadd.f32 %v1637, %v1749
      %1751 = vmatmul.f32.gmra.mxu0 %v418
      %v1752 = vpop.f32.mrf.mxu0
      %v1753 = vadd.f32 %v1640, %v1752
      %1754 = vmatmul.f32.gmra.mxu0 %v431
      %v1755 = vpop.f32.mrf.mxu0
      %v1756 = vadd.f32 %v1643, %v1755
      %1757 = vmatmul.f32.gmra.mxu0 %v444
      %v1758 = vpop.f32.mrf.mxu0
      %v1759 = vadd.f32 %v1646, %v1758
      %1760 = vmatmul.f32.gmra.mxu0 %v457
      %v1761 = vpop.f32.mrf.mxu0
      %v1762 = vadd.f32 %v1649, %v1761
      %1763 = vmatmul.f32.gmra.mxu0 %v470
      %v1764 = vpop.f32.mrf.mxu0
      %v1765 = vadd.f32 %v1652, %v1764
      %1766 = vmatmul.f32.gmra.mxu0 %v483
      %v1767 = vpop.f32.mrf.mxu0
      %v1768 = vadd.f32 %v1655, %v1767
      %1769 = vmatmul.f32.gmra.mxu0 %v496
      %v1770 = vpop.f32.mrf.mxu0
      %v1771 = vadd.f32 %v1658, %v1770
      %1772 = vmatmul.f32.gmra.mxu0 %v509
      %v1773 = vpop.f32.mrf.mxu0
      %v1774 = vadd.f32 %v1661, %v1773
      %1775 = vmatmul.f32.gmra.mxu0 %v522
      %v1776 = vpop.f32.mrf.mxu0
      %v1777 = vadd.f32 %v1664, %v1776
      %1778 = vmatmul.f32.gmra.mxu0 %v535
      %v1779 = vpop.f32.mrf.mxu0
      %v1780 = vadd.f32 %v1667, %v1779
      %1781 = vmatmul.f32.gmra.mxu0 %v548
      %v1782 = vpop.f32.mrf.mxu0
      %v1783 = vadd.f32 %v1670, %v1782
      %1784 = vmatmul.f32.gmra.mxu0 %v561
      %v1785 = vpop.f32.mrf.mxu0
      %v1786 = vadd.f32 %v1673, %v1785
      %1787 = vmatmul.f32.gmra.mxu0 %v574
      %v1788 = vpop.f32.mrf.mxu0
      %v1789 = vadd.f32 %v1676, %v1788
      %1790 = vmatmul.f32.gmra.mxu0 %v587
      %v1791 = vpop.f32.mrf.mxu0
      %v1792 = vadd.f32 %v1679, %v1791
      %1793 = vdwg.mxu0
      %1794 = vmatpush.msra.mxu0 %v736
      %1795 = vmatpush.msra.mxu0 %v735
      %1796 = vmatpush.msra.mxu0 %v734
      %1797 = vmatpush.msra.mxu0 %v733
      %1798 = vmatpush.msra.mxu0 %v732
      %1799 = vmatpush.msra.mxu0 %v731
      %1800 = vmatpush.msra.mxu0 %v730
      %1801 = vmatpush.msra.mxu0 %v729
      %1802 = vmatpush.msra.mxu0 %v728
      %1803 = vmatpush.msra.mxu0 %v727
      %1804 = vmatpush.msra.mxu0 %v726
      %1805 = vmatpush.msra.mxu0 %v725
      %1806 = vmatpush.msra.mxu0 %v724
      %1807 = vmatpush.msra.mxu0 %v723
      %1808 = vmatpush.msra.mxu0 %v722
      %1809 = vmatpush.msra.mxu0 %v721
      %1810 = vmatmul.f32.gmra.mxu0 %v185
      %v1811 = vpop.f32.mrf.mxu0
      %v1812 = vadd.f32 %v1699, %v1811
      %1813 = vmatmul.f32.gmra.mxu0 %v198
      %v1814 = vpop.f32.mrf.mxu0
      %v1815 = vadd.f32 %v1702, %v1814
      %1816 = vmatmul.f32.gmra.mxu0 %v211
      %v1817 = vpop.f32.mrf.mxu0
      %v1818 = vadd.f32 %v1705, %v1817
      %1819 = vmatmul.f32.gmra.mxu0 %v224
      %v1820 = vpop.f32.mrf.mxu0
      %v1821 = vadd.f32 %v1708, %v1820
      %1822 = vmatmul.f32.gmra.mxu0 %v237
      %v1823 = vpop.f32.mrf.mxu0
      %v1824 = vadd.f32 %v1711, %v1823
      %1825 = vmatmul.f32.gmra.mxu0 %v250
      %v1826 = vpop.f32.mrf.mxu0
      %v1827 = vadd.f32 %v1714, %v1826
      %1828 = vmatmul.f32.gmra.mxu0 %v263
      %v1829 = vpop.f32.mrf.mxu0
      %v1830 = vadd.f32 %v1717, %v1829
      %1831 = vmatmul.f32.gmra.mxu0 %v276
      %v1832 = vpop.f32.mrf.mxu0
      %v1833 = vadd.f32 %v1720, %v1832
      %1834 = vmatmul.f32.gmra.mxu0 %v289
      %v1835 = vpop.f32.mrf.mxu0
      %v1836 = vadd.f32 %v1723, %v1835
      %1837 = vmatmul.f32.gmra.mxu0 %v302
      %v1838 = vpop.f32.mrf.mxu0
      %v1839 = vadd.f32 %v1726, %v1838
      %1840 = vmatmul.f32.gmra.mxu0 %v315
      %v1841 = vpop.f32.mrf.mxu0
      %v1842 = vadd.f32 %v1729, %v1841
      %1843 = vmatmul.f32.gmra.mxu0 %v328
      %v1844 = vpop.f32.mrf.mxu0
      %v1845 = vadd.f32 %v1732, %v1844
      %1846 = vmatmul.f32.gmra.mxu0 %v341
      %v1847 = vpop.f32.mrf.mxu0
      %v1848 = vadd.f32 %v1735, %v1847
      %1849 = vmatmul.f32.gmra.mxu0 %v354
      %v1850 = vpop.f32.mrf.mxu0
      %v1851 = vadd.f32 %v1738, %v1850
      %1852 = vmatmul.f32.gmra.mxu0 %v367
      %v1853 = vpop.f32.mrf.mxu0
      %v1854 = vadd.f32 %v1741, %v1853
      %1855 = vmatmul.f32.gmra.mxu0 %v380
      %v1856 = vpop.f32.mrf.mxu0
      %v1857 = vadd.f32 %v1744, %v1856
      %1858 = vmatmul.f32.gmra.mxu0 %v393
      %v1859 = vpop.f32.mrf.mxu0
      %v1860 = vadd.f32 %v1747, %v1859
      %1861 = vmatmul.f32.gmra.mxu0 %v406
      %v1862 = vpop.f32.mrf.mxu0
      %v1863 = vadd.f32 %v1750, %v1862
      %1864 = vmatmul.f32.gmra.mxu0 %v419
      %v1865 = vpop.f32.mrf.mxu0
      %v1866 = vadd.f32 %v1753, %v1865
      %1867 = vmatmul.f32.gmra.mxu0 %v432
      %v1868 = vpop.f32.mrf.mxu0
      %v1869 = vadd.f32 %v1756, %v1868
      %1870 = vmatmul.f32.gmra.mxu0 %v445
      %v1871 = vpop.f32.mrf.mxu0
      %v1872 = vadd.f32 %v1759, %v1871
      %1873 = vmatmul.f32.gmra.mxu0 %v458
      %v1874 = vpop.f32.mrf.mxu0
      %v1875 = vadd.f32 %v1762, %v1874
      %1876 = vmatmul.f32.gmra.mxu0 %v471
      %v1877 = vpop.f32.mrf.mxu0
      %v1878 = vadd.f32 %v1765, %v1877
      %1879 = vmatmul.f32.gmra.mxu0 %v484
      %v1880 = vpop.f32.mrf.mxu0
      %v1881 = vadd.f32 %v1768, %v1880
      %1882 = vmatmul.f32.gmra.mxu0 %v497
      %v1883 = vpop.f32.mrf.mxu0
      %v1884 = vadd.f32 %v1771, %v1883
      %1885 = vmatmul.f32.gmra.mxu0 %v510
      %v1886 = vpop.f32.mrf.mxu0
      %v1887 = vadd.f32 %v1774, %v1886
      %1888 = vmatmul.f32.gmra.mxu0 %v523
      %v1889 = vpop.f32.mrf.mxu0
      %v1890 = vadd.f32 %v1777, %v1889
      %1891 = vmatmul.f32.gmra.mxu0 %v536
      %v1892 = vpop.f32.mrf.mxu0
      %v1893 = vadd.f32 %v1780, %v1892
      %1894 = vmatmul.f32.gmra.mxu0 %v549
      %v1895 = vpop.f32.mrf.mxu0
      %v1896 = vadd.f32 %v1783, %v1895
      %1897 = vmatmul.f32.gmra.mxu0 %v562
      %v1898 = vpop.f32.mrf.mxu0
      %v1899 = vadd.f32 %v1786, %v1898
      %1900 = vmatmul.f32.gmra.mxu0 %v575
      %v1901 = vpop.f32.mrf.mxu0
      %v1902 = vadd.f32 %v1789, %v1901
      %1903 = vmatmul.f32.gmra.mxu0 %v588
      %v1904 = vpop.f32.mrf.mxu0
      %v1905 = vadd.f32 %v1792, %v1904
      %1906 = vdwg.mxu0
      %1907 = vmatpush.msra.mxu0 %v752
      %1908 = vmatpush.msra.mxu0 %v751
      %1909 = vmatpush.msra.mxu0 %v750
      %1910 = vmatpush.msra.mxu0 %v749
      %1911 = vmatpush.msra.mxu0 %v748
      %1912 = vmatpush.msra.mxu0 %v747
      %1913 = vmatpush.msra.mxu0 %v746
      %1914 = vmatpush.msra.mxu0 %v745
      %1915 = vmatpush.msra.mxu0 %v744
      %1916 = vmatpush.msra.mxu0 %v743
      %1917 = vmatpush.msra.mxu0 %v742
      %1918 = vmatpush.msra.mxu0 %v741
      %1919 = vmatpush.msra.mxu0 %v740
      %1920 = vmatpush.msra.mxu0 %v739
      %1921 = vmatpush.msra.mxu0 %v738
      %1922 = vmatpush.msra.mxu0 %v737
      %1923 = vmatmul.f32.gmra.mxu0 %v186
      %v1924 = vpop.f32.mrf.mxu0
      %v1925 = vadd.f32 %v1812, %v1924
      %1926 = vmatmul.f32.gmra.mxu0 %v199
      %v1927 = vpop.f32.mrf.mxu0
      %v1928 = vadd.f32 %v1815, %v1927
      %1929 = vmatmul.f32.gmra.mxu0 %v212
      %v1930 = vpop.f32.mrf.mxu0
      %v1931 = vadd.f32 %v1818, %v1930
      %1932 = vmatmul.f32.gmra.mxu0 %v225
      %v1933 = vpop.f32.mrf.mxu0
      %v1934 = vadd.f32 %v1821, %v1933
      %1935 = vmatmul.f32.gmra.mxu0 %v238
      %v1936 = vpop.f32.mrf.mxu0
      %v1937 = vadd.f32 %v1824, %v1936
      %1938 = vmatmul.f32.gmra.mxu0 %v251
      %v1939 = vpop.f32.mrf.mxu0
      %v1940 = vadd.f32 %v1827, %v1939
      %1941 = vmatmul.f32.gmra.mxu0 %v264
      %v1942 = vpop.f32.mrf.mxu0
      %v1943 = vadd.f32 %v1830, %v1942
      %1944 = vmatmul.f32.gmra.mxu0 %v277
      %v1945 = vpop.f32.mrf.mxu0
      %v1946 = vadd.f32 %v1833, %v1945
      %1947 = vmatmul.f32.gmra.mxu0 %v290
      %v1948 = vpop.f32.mrf.mxu0
      %v1949 = vadd.f32 %v1836, %v1948
      %1950 = vmatmul.f32.gmra.mxu0 %v303
      %v1951 = vpop.f32.mrf.mxu0
      %v1952 = vadd.f32 %v1839, %v1951
      %1953 = vmatmul.f32.gmra.mxu0 %v316
      %v1954 = vpop.f32.mrf.mxu0
      %v1955 = vadd.f32 %v1842, %v1954
      %1956 = vmatmul.f32.gmra.mxu0 %v329
      %v1957 = vpop.f32.mrf.mxu0
      %v1958 = vadd.f32 %v1845, %v1957
      %1959 = vmatmul.f32.gmra.mxu0 %v342
      %v1960 = vpop.f32.mrf.mxu0
      %v1961 = vadd.f32 %v1848, %v1960
      %1962 = vmatmul.f32.gmra.mxu0 %v355
      %v1963 = vpop.f32.mrf.mxu0
      %v1964 = vadd.f32 %v1851, %v1963
      %1965 = vmatmul.f32.gmra.mxu0 %v368
      %v1966 = vpop.f32.mrf.mxu0
      %v1967 = vadd.f32 %v1854, %v1966
      %1968 = vmatmul.f32.gmra.mxu0 %v381
      %v1969 = vpop.f32.mrf.mxu0
      %v1970 = vadd.f32 %v1857, %v1969
      %1971 = vmatmul.f32.gmra.mxu0 %v394
      %v1972 = vpop.f32.mrf.mxu0
      %v1973 = vadd.f32 %v1860, %v1972
      %1974 = vmatmul.f32.gmra.mxu0 %v407
      %v1975 = vpop.f32.mrf.mxu0
      %v1976 = vadd.f32 %v1863, %v1975
      %1977 = vmatmul.f32.gmra.mxu0 %v420
      %v1978 = vpop.f32.mrf.mxu0
      %v1979 = vadd.f32 %v1866, %v1978
      %1980 = vmatmul.f32.gmra.mxu0 %v433
      %v1981 = vpop.f32.mrf.mxu0
      %v1982 = vadd.f32 %v1869, %v1981
      %1983 = vmatmul.f32.gmra.mxu0 %v446
      %v1984 = vpop.f32.mrf.mxu0
      %v1985 = vadd.f32 %v1872, %v1984
      %1986 = vmatmul.f32.gmra.mxu0 %v459
      %v1987 = vpop.f32.mrf.mxu0
      %v1988 = vadd.f32 %v1875, %v1987
      %1989 = vmatmul.f32.gmra.mxu0 %v472
      %v1990 = vpop.f32.mrf.mxu0
      %v1991 = vadd.f32 %v1878, %v1990
      %1992 = vmatmul.f32.gmra.mxu0 %v485
      %v1993 = vpop.f32.mrf.mxu0
      %v1994 = vadd.f32 %v1881, %v1993
      %1995 = vmatmul.f32.gmra.mxu0 %v498
      %v1996 = vpop.f32.mrf.mxu0
      %v1997 = vadd.f32 %v1884, %v1996
      %1998 = vmatmul.f32.gmra.mxu0 %v511
      %v1999 = vpop.f32.mrf.mxu0
      %v2000 = vadd.f32 %v1887, %v1999
      %2001 = vmatmul.f32.gmra.mxu0 %v524
      %v2002 = vpop.f32.mrf.mxu0
      %v2003 = vadd.f32 %v1890, %v2002
      %2004 = vmatmul.f32.gmra.mxu0 %v537
      %v2005 = vpop.f32.mrf.mxu0
      %v2006 = vadd.f32 %v1893, %v2005
      %2007 = vmatmul.f32.gmra.mxu0 %v550
      %v2008 = vpop.f32.mrf.mxu0
      %v2009 = vadd.f32 %v1896, %v2008
      %2010 = vmatmul.f32.gmra.mxu0 %v563
      %v2011 = vpop.f32.mrf.mxu0
      %v2012 = vadd.f32 %v1899, %v2011
      %2013 = vmatmul.f32.gmra.mxu0 %v576
      %v2014 = vpop.f32.mrf.mxu0
      %v2015 = vadd.f32 %v1902, %v2014
      %2016 = vmatmul.f32.gmra.mxu0 %v589
      %v2017 = vpop.f32.mrf.mxu0
      %v2018 = vadd.f32 %v1905, %v2017
      %2019 = vdwg.mxu0
      %2020 = vmatpush.msra.mxu0 %v768
      %2021 = vmatpush.msra.mxu0 %v767
      %2022 = vmatpush.msra.mxu0 %v766
      %2023 = vmatpush.msra.mxu0 %v765
      %2024 = vmatpush.msra.mxu0 %v764
      %2025 = vmatpush.msra.mxu0 %v763
      %2026 = vmatpush.msra.mxu0 %v762
      %2027 = vmatpush.msra.mxu0 %v761
      %2028 = vmatpush.msra.mxu0 %v760
      %2029 = vmatpush.msra.mxu0 %v759
      %2030 = vmatpush.msra.mxu0 %v758
      %2031 = vmatpush.msra.mxu0 %v757
      %2032 = vmatpush.msra.mxu0 %v756
      %2033 = vmatpush.msra.mxu0 %v755
      %2034 = vmatpush.msra.mxu0 %v754
      %2035 = vmatpush.msra.mxu0 %v753
      %2036 = vmatmul.f32.gmra.mxu0 %v187
      %v2037 = vpop.f32.mrf.mxu0
      %v2038 = vadd.f32 %v1925, %v2037
      %2039 = vmatmul.f32.gmra.mxu0 %v200
      %v2040 = vpop.f32.mrf.mxu0
      %v2041 = vadd.f32 %v1928, %v2040
      %2042 = vmatmul.f32.gmra.mxu0 %v213
      %v2043 = vpop.f32.mrf.mxu0
      %v2044 = vadd.f32 %v1931, %v2043
      %2045 = vmatmul.f32.gmra.mxu0 %v226
      %v2046 = vpop.f32.mrf.mxu0
      %v2047 = vadd.f32 %v1934, %v2046
      %2048 = vmatmul.f32.gmra.mxu0 %v239
      %v2049 = vpop.f32.mrf.mxu0
      %v2050 = vadd.f32 %v1937, %v2049
      %2051 = vmatmul.f32.gmra.mxu0 %v252
      %v2052 = vpop.f32.mrf.mxu0
      %v2053 = vadd.f32 %v1940, %v2052
      %2054 = vmatmul.f32.gmra.mxu0 %v265
      %v2055 = vpop.f32.mrf.mxu0
      %v2056 = vadd.f32 %v1943, %v2055
      %2057 = vmatmul.f32.gmra.mxu0 %v278
      %v2058 = vpop.f32.mrf.mxu0
      %v2059 = vadd.f32 %v1946, %v2058
      %2060 = vmatmul.f32.gmra.mxu0 %v291
      %v2061 = vpop.f32.mrf.mxu0
      %v2062 = vadd.f32 %v1949, %v2061
      %2063 = vmatmul.f32.gmra.mxu0 %v304
      %v2064 = vpop.f32.mrf.mxu0
      %v2065 = vadd.f32 %v1952, %v2064
      %2066 = vmatmul.f32.gmra.mxu0 %v317
      %v2067 = vpop.f32.mrf.mxu0
      %v2068 = vadd.f32 %v1955, %v2067
      %2069 = vmatmul.f32.gmra.mxu0 %v330
      %v2070 = vpop.f32.mrf.mxu0
      %v2071 = vadd.f32 %v1958, %v2070
      %2072 = vmatmul.f32.gmra.mxu0 %v343
      %v2073 = vpop.f32.mrf.mxu0
      %v2074 = vadd.f32 %v1961, %v2073
      %2075 = vmatmul.f32.gmra.mxu0 %v356
      %v2076 = vpop.f32.mrf.mxu0
      %v2077 = vadd.f32 %v1964, %v2076
      %2078 = vmatmul.f32.gmra.mxu0 %v369
      %v2079 = vpop.f32.mrf.mxu0
      %v2080 = vadd.f32 %v1967, %v2079
      %2081 = vmatmul.f32.gmra.mxu0 %v382
      %v2082 = vpop.f32.mrf.mxu0
      %v2083 = vadd.f32 %v1970, %v2082
      %2084 = vmatmul.f32.gmra.mxu0 %v395
      %v2085 = vpop.f32.mrf.mxu0
      %v2086 = vadd.f32 %v1973, %v2085
      %2087 = vmatmul.f32.gmra.mxu0 %v408
      %v2088 = vpop.f32.mrf.mxu0
      %v2089 = vadd.f32 %v1976, %v2088
      %2090 = vmatmul.f32.gmra.mxu0 %v421
      %v2091 = vpop.f32.mrf.mxu0
      %v2092 = vadd.f32 %v1979, %v2091
      %2093 = vmatmul.f32.gmra.mxu0 %v434
      %v2094 = vpop.f32.mrf.mxu0
      %v2095 = vadd.f32 %v1982, %v2094
      %2096 = vmatmul.f32.gmra.mxu0 %v447
      %v2097 = vpop.f32.mrf.mxu0
      %v2098 = vadd.f32 %v1985, %v2097
      %2099 = vmatmul.f32.gmra.mxu0 %v460
      %v2100 = vpop.f32.mrf.mxu0
      %v2101 = vadd.f32 %v1988, %v2100
      %2102 = vmatmul.f32.gmra.mxu0 %v473
      %v2103 = vpop.f32.mrf.mxu0
      %v2104 = vadd.f32 %v1991, %v2103
      %2105 = vmatmul.f32.gmra.mxu0 %v486
      %v2106 = vpop.f32.mrf.mxu0
      %v2107 = vadd.f32 %v1994, %v2106
      %2108 = vmatmul.f32.gmra.mxu0 %v499
      %v2109 = vpop.f32.mrf.mxu0
      %v2110 = vadd.f32 %v1997, %v2109
      %2111 = vmatmul.f32.gmra.mxu0 %v512
      %v2112 = vpop.f32.mrf.mxu0
      %v2113 = vadd.f32 %v2000, %v2112
      %2114 = vmatmul.f32.gmra.mxu0 %v525
      %v2115 = vpop.f32.mrf.mxu0
      %v2116 = vadd.f32 %v2003, %v2115
      %2117 = vmatmul.f32.gmra.mxu0 %v538
      %v2118 = vpop.f32.mrf.mxu0
      %v2119 = vadd.f32 %v2006, %v2118
      %2120 = vmatmul.f32.gmra.mxu0 %v551
      %v2121 = vpop.f32.mrf.mxu0
      %v2122 = vadd.f32 %v2009, %v2121
      %2123 = vmatmul.f32.gmra.mxu0 %v564
      %v2124 = vpop.f32.mrf.mxu0
      %v2125 = vadd.f32 %v2012, %v2124
      %2126 = vmatmul.f32.gmra.mxu0 %v577
      %v2127 = vpop.f32.mrf.mxu0
      %v2128 = vadd.f32 %v2015, %v2127
      %2129 = vmatmul.f32.gmra.mxu0 %v590
      %v2130 = vpop.f32.mrf.mxu0
      %v2131 = vadd.f32 %v2018, %v2130
      %2132 = vdwg.mxu0
      %2133 = vmatpush.msra.mxu0 %v784
      %2134 = vmatpush.msra.mxu0 %v783
      %2135 = vmatpush.msra.mxu0 %v782
      %2136 = vmatpush.msra.mxu0 %v781
      %2137 = vmatpush.msra.mxu0 %v780
      %2138 = vmatpush.msra.mxu0 %v779
      %2139 = vmatpush.msra.mxu0 %v778
      %2140 = vmatpush.msra.mxu0 %v777
      %2141 = vmatpush.msra.mxu0 %v776
      %2142 = vmatpush.msra.mxu0 %v775
      %2143 = vmatpush.msra.mxu0 %v774
      %2144 = vmatpush.msra.mxu0 %v773
      %2145 = vmatpush.msra.mxu0 %v772
      %2146 = vmatpush.msra.mxu0 %v771
      %2147 = vmatpush.msra.mxu0 %v770
      %2148 = vmatpush.msra.mxu0 %v769
      %2149 = vmatmul.f32.gmra.mxu0 %v188
      %v2150 = vpop.f32.mrf.mxu0
      %v2151 = vadd.f32 %v2038, %v2150
      %2152 = vmatmul.f32.gmra.mxu0 %v201
      %v2153 = vpop.f32.mrf.mxu0
      %v2154 = vadd.f32 %v2041, %v2153
      %2155 = vmatmul.f32.gmra.mxu0 %v214
      %v2156 = vpop.f32.mrf.mxu0
      %v2157 = vadd.f32 %v2044, %v2156
      %2158 = vmatmul.f32.gmra.mxu0 %v227
      %v2159 = vpop.f32.mrf.mxu0
      %v2160 = vadd.f32 %v2047, %v2159
      %2161 = vmatmul.f32.gmra.mxu0 %v240
      %v2162 = vpop.f32.mrf.mxu0
      %v2163 = vadd.f32 %v2050, %v2162
      %2164 = vmatmul.f32.gmra.mxu0 %v253
      %v2165 = vpop.f32.mrf.mxu0
      %v2166 = vadd.f32 %v2053, %v2165
      %2167 = vmatmul.f32.gmra.mxu0 %v266
      %v2168 = vpop.f32.mrf.mxu0
      %v2169 = vadd.f32 %v2056, %v2168
      %2170 = vmatmul.f32.gmra.mxu0 %v279
      %v2171 = vpop.f32.mrf.mxu0
      %v2172 = vadd.f32 %v2059, %v2171
      %2173 = vmatmul.f32.gmra.mxu0 %v292
      %v2174 = vpop.f32.mrf.mxu0
      %v2175 = vadd.f32 %v2062, %v2174
      %2176 = vmatmul.f32.gmra.mxu0 %v305
      %v2177 = vpop.f32.mrf.mxu0
      %v2178 = vadd.f32 %v2065, %v2177
      %2179 = vmatmul.f32.gmra.mxu0 %v318
      %v2180 = vpop.f32.mrf.mxu0
      %v2181 = vadd.f32 %v2068, %v2180
      %2182 = vmatmul.f32.gmra.mxu0 %v331
      %v2183 = vpop.f32.mrf.mxu0
      %v2184 = vadd.f32 %v2071, %v2183
      %2185 = vmatmul.f32.gmra.mxu0 %v344
      %v2186 = vpop.f32.mrf.mxu0
      %v2187 = vadd.f32 %v2074, %v2186
      %2188 = vmatmul.f32.gmra.mxu0 %v357
      %v2189 = vpop.f32.mrf.mxu0
      %v2190 = vadd.f32 %v2077, %v2189
      %2191 = vmatmul.f32.gmra.mxu0 %v370
      %v2192 = vpop.f32.mrf.mxu0
      %v2193 = vadd.f32 %v2080, %v2192
      %2194 = vmatmul.f32.gmra.mxu0 %v383
      %v2195 = vpop.f32.mrf.mxu0
      %v2196 = vadd.f32 %v2083, %v2195
      %2197 = vmatmul.f32.gmra.mxu0 %v396
      %v2198 = vpop.f32.mrf.mxu0
      %v2199 = vadd.f32 %v2086, %v2198
      %2200 = vmatmul.f32.gmra.mxu0 %v409
      %v2201 = vpop.f32.mrf.mxu0
      %v2202 = vadd.f32 %v2089, %v2201
      %2203 = vmatmul.f32.gmra.mxu0 %v422
      %v2204 = vpop.f32.mrf.mxu0
      %v2205 = vadd.f32 %v2092, %v2204
      %2206 = vmatmul.f32.gmra.mxu0 %v435
      %v2207 = vpop.f32.mrf.mxu0
      %v2208 = vadd.f32 %v2095, %v2207
      %2209 = vmatmul.f32.gmra.mxu0 %v448
      %v2210 = vpop.f32.mrf.mxu0
      %v2211 = vadd.f32 %v2098, %v2210
      %2212 = vmatmul.f32.gmra.mxu0 %v461
      %v2213 = vpop.f32.mrf.mxu0
      %v2214 = vadd.f32 %v2101, %v2213
      %2215 = vmatmul.f32.gmra.mxu0 %v474
      %v2216 = vpop.f32.mrf.mxu0
      %v2217 = vadd.f32 %v2104, %v2216
      %2218 = vmatmul.f32.gmra.mxu0 %v487
      %v2219 = vpop.f32.mrf.mxu0
      %v2220 = vadd.f32 %v2107, %v2219
      %2221 = vmatmul.f32.gmra.mxu0 %v500
      %v2222 = vpop.f32.mrf.mxu0
      %v2223 = vadd.f32 %v2110, %v2222
      %2224 = vmatmul.f32.gmra.mxu0 %v513
      %v2225 = vpop.f32.mrf.mxu0
      %v2226 = vadd.f32 %v2113, %v2225
      %2227 = vmatmul.f32.gmra.mxu0 %v526
      %v2228 = vpop.f32.mrf.mxu0
      %v2229 = vadd.f32 %v2116, %v2228
      %2230 = vmatmul.f32.gmra.mxu0 %v539
      %v2231 = vpop.f32.mrf.mxu0
      %v2232 = vadd.f32 %v2119, %v2231
      %2233 = vmatmul.f32.gmra.mxu0 %v552
      %v2234 = vpop.f32.mrf.mxu0
      %v2235 = vadd.f32 %v2122, %v2234
      %2236 = vmatmul.f32.gmra.mxu0 %v565
      %v2237 = vpop.f32.mrf.mxu0
      %v2238 = vadd.f32 %v2125, %v2237
      %2239 = vmatmul.f32.gmra.mxu0 %v578
      %v2240 = vpop.f32.mrf.mxu0
      %v2241 = vadd.f32 %v2128, %v2240
      %2242 = vmatmul.f32.gmra.mxu0 %v591
      %v2243 = vpop.f32.mrf.mxu0
      %v2244 = vadd.f32 %v2131, %v2243
      %2245 = vdwg.mxu0
      %2246 = vmatpush.msra.mxu0 0.0
      %2247 = vmatpush.msra.mxu0 0.0
      %2248 = vmatpush.msra.mxu0 0.0
      %2249 = vmatpush.msra.mxu0 0.0
      %2250 = vmatpush.msra.mxu0 0.0
      %2251 = vmatpush.msra.mxu0 0.0
      %2252 = vmatpush.msra.mxu0 0.0
      %2253 = vmatpush.msra.mxu0 0.0
      %2254 = vmatpush.msra.mxu0 0.0
      %2255 = vmatpush.msra.mxu0 0.0
      %2256 = vmatpush.msra.mxu0 0.0
      %2257 = vmatpush.msra.mxu0 0.0
      %2258 = vmatpush.msra.mxu0 %v788
      %2259 = vmatpush.msra.mxu0 %v787
      %2260 = vmatpush.msra.mxu0 %v786
      %2261 = vmatpush.msra.mxu0 %v785
      %2262 = vmatmul.f32.gmra.mxu0 %v795
      %v2263 = vpop.f32.mrf.mxu0
      %v2264 = vadd.f32 %v2151, %v2263
      %2265 = vmatmul.f32.gmra.mxu0 %v798
      %v2266 = vpop.f32.mrf.mxu0
      %v2267 = vadd.f32 %v2154, %v2266
      %2268 = vmatmul.f32.gmra.mxu0 %v801
      %v2269 = vpop.f32.mrf.mxu0
      %v2270 = vadd.f32 %v2157, %v2269
      %2271 = vmatmul.f32.gmra.mxu0 %v804
      %v2272 = vpop.f32.mrf.mxu0
      %v2273 = vadd.f32 %v2160, %v2272
      %2274 = vmatmul.f32.gmra.mxu0 %v807
      %v2275 = vpop.f32.mrf.mxu0
      %v2276 = vadd.f32 %v2163, %v2275
      %2277 = vmatmul.f32.gmra.mxu0 %v810
      %v2278 = vpop.f32.mrf.mxu0
      %v2279 = vadd.f32 %v2166, %v2278
      %2280 = vmatmul.f32.gmra.mxu0 %v813
      %v2281 = vpop.f32.mrf.mxu0
      %v2282 = vadd.f32 %v2169, %v2281
      %2283 = vmatmul.f32.gmra.mxu0 %v816
      %v2284 = vpop.f32.mrf.mxu0
      %v2285 = vadd.f32 %v2172, %v2284
      %2286 = vmatmul.f32.gmra.mxu0 %v819
      %v2287 = vpop.f32.mrf.mxu0
      %v2288 = vadd.f32 %v2175, %v2287
      %2289 = vmatmul.f32.gmra.mxu0 %v822
      %v2290 = vpop.f32.mrf.mxu0
      %v2291 = vadd.f32 %v2178, %v2290
      %2292 = vmatmul.f32.gmra.mxu0 %v825
      %v2293 = vpop.f32.mrf.mxu0
      %v2294 = vadd.f32 %v2181, %v2293
      %2295 = vmatmul.f32.gmra.mxu0 %v828
      %v2296 = vpop.f32.mrf.mxu0
      %v2297 = vadd.f32 %v2184, %v2296
      %2298 = vmatmul.f32.gmra.mxu0 %v831
      %v2299 = vpop.f32.mrf.mxu0
      %v2300 = vadd.f32 %v2187, %v2299
      %2301 = vmatmul.f32.gmra.mxu0 %v834
      %v2302 = vpop.f32.mrf.mxu0
      %v2303 = vadd.f32 %v2190, %v2302
      %2304 = vmatmul.f32.gmra.mxu0 %v837
      %v2305 = vpop.f32.mrf.mxu0
      %v2306 = vadd.f32 %v2193, %v2305
      %2307 = vmatmul.f32.gmra.mxu0 %v840
      %v2308 = vpop.f32.mrf.mxu0
      %v2309 = vadd.f32 %v2196, %v2308
      %2310 = vmatmul.f32.gmra.mxu0 %v843
      %v2311 = vpop.f32.mrf.mxu0
      %v2312 = vadd.f32 %v2199, %v2311
      %2313 = vmatmul.f32.gmra.mxu0 %v846
      %v2314 = vpop.f32.mrf.mxu0
      %v2315 = vadd.f32 %v2202, %v2314
      %2316 = vmatmul.f32.gmra.mxu0 %v849
      %v2317 = vpop.f32.mrf.mxu0
      %v2318 = vadd.f32 %v2205, %v2317
      %2319 = vmatmul.f32.gmra.mxu0 %v852
      %v2320 = vpop.f32.mrf.mxu0
      %v2321 = vadd.f32 %v2208, %v2320
      %2322 = vmatmul.f32.gmra.mxu0 %v855
      %v2323 = vpop.f32.mrf.mxu0
      %v2324 = vadd.f32 %v2211, %v2323
      %2325 = vmatmul.f32.gmra.mxu0 %v858
      %v2326 = vpop.f32.mrf.mxu0
      %v2327 = vadd.f32 %v2214, %v2326
      %2328 = vmatmul.f32.gmra.mxu0 %v861
      %v2329 = vpop.f32.mrf.mxu0
      %v2330 = vadd.f32 %v2217, %v2329
      %2331 = vmatmul.f32.gmra.mxu0 %v864
      %v2332 = vpop.f32.mrf.mxu0
      %v2333 = vadd.f32 %v2220, %v2332
      %2334 = vmatmul.f32.gmra.mxu0 %v867
      %v2335 = vpop.f32.mrf.mxu0
      %v2336 = vadd.f32 %v2223, %v2335
      %2337 = vmatmul.f32.gmra.mxu0 %v870
      %v2338 = vpop.f32.mrf.mxu0
      %v2339 = vadd.f32 %v2226, %v2338
      %2340 = vmatmul.f32.gmra.mxu0 %v873
      %v2341 = vpop.f32.mrf.mxu0
      %v2342 = vadd.f32 %v2229, %v2341
      %2343 = vmatmul.f32.gmra.mxu0 %v876
      %v2344 = vpop.f32.mrf.mxu0
      %v2345 = vadd.f32 %v2232, %v2344
      %2346 = vmatmul.f32.gmra.mxu0 %v879
      %v2347 = vpop.f32.mrf.mxu0
      %v2348 = vadd.f32 %v2235, %v2347
      %2349 = vmatmul.f32.gmra.mxu0 %v882
      %v2350 = vpop.f32.mrf.mxu0
      %v2351 = vadd.f32 %v2238, %v2350
      %2352 = vmatmul.f32.gmra.mxu0 %v885
      %v2353 = vpop.f32.mrf.mxu0
      %v2354 = vadd.f32 %v2241, %v2353
      %2355 = vmatmul.f32.gmra.mxu0 %v888
      %v2356 = vpop.f32.mrf.mxu0
      %v2357 = vadd.f32 %v2244, %v2356
      %2358 = vdwg.mxu0
      %v2359 = vtanh.pop %v2264
      %v2360 = vtanh.pop %v2267
      %v2361 = vtanh.pop %v2270
      %v2362 = vtanh.pop %v2273
      %v2363 = vtanh.pop %v2276
      %v2364 = vtanh.pop %v2279
      %v2365 = vtanh.pop %v2282
      %v2366 = vtanh.pop %v2285
      %v2367 = vtanh.pop %v2288
      %v2368 = vtanh.pop %v2291
      %v2369 = vtanh.pop %v2294
      %v2370 = vtanh.pop %v2297
      %v2371 = vtanh.pop %v2300
      %v2372 = vtanh.pop %v2303
      %v2373 = vtanh.pop %v2306
      %v2374 = vtanh.pop %v2309
      %v2375 = vtanh.pop %v2312
      %v2376 = vtanh.pop %v2315
      %v2377 = vtanh.pop %v2318
      %v2378 = vtanh.pop %v2321
      %v2379 = vtanh.pop %v2324
      %v2380 = vtanh.pop %v2327
      %v2381 = vtanh.pop %v2330
      %v2382 = vtanh.pop %v2333
      %v2383 = vtanh.pop %v2336
      %v2384 = vtanh.pop %v2339
      %v2385 = vtanh.pop %v2342
      %v2386 = vtanh.pop %v2345
      %v2387 = vtanh.pop %v2348
      %v2388 = vtanh.pop %v2351
      %v2389 = vtanh.pop %v2354
      %v2390 = vtanh.pop %v2357
      %vm2391 = vcmask 23552
      %2392 = vst.msk [vmem:[%s175] sm:$0xff] %vm2391, %v2359
      %2393 = vst.msk [vmem:[%s175 + $0x8] sm:$0xff] %vm2391, %v2360
      %2394 = vst.msk [vmem:[%s175 + $0x10] sm:$0xff] %vm2391, %v2361
      %2395 = vst.msk [vmem:[%s175 + $0x18] sm:$0xff] %vm2391, %v2362
      %2396 = vst.msk [vmem:[%s175 + $0x20] sm:$0xff] %vm2391, %v2363
      %2397 = vst.msk [vmem:[%s175 + $0x28] sm:$0xff] %vm2391, %v2364
      %2398 = vst.msk [vmem:[%s175 + $0x30] sm:$0xff] %vm2391, %v2365
      %2399 = vst.msk [vmem:[%s175 + $0x38] sm:$0xff] %vm2391, %v2366
      %2400 = vst.msk [vmem:[%s175 + $0x40] sm:$0xff] %vm2391, %v2367
      %2401 = vst.msk [vmem:[%s175 + $0x48] sm:$0xff] %vm2391, %v2368
      %2402 = vst.msk [vmem:[%s175 + $0x50] sm:$0xff] %vm2391, %v2369
      %2403 = vst.msk [vmem:[%s175 + $0x58] sm:$0xff] %vm2391, %v2370
      %2404 = vst.msk [vmem:[%s175 + $0x60] sm:$0xff] %vm2391, %v2371
      %2405 = vst.msk [vmem:[%s175 + $0x68] sm:$0xff] %vm2391, %v2372
      %2406 = vst.msk [vmem:[%s175 + $0x70] sm:$0xff] %vm2391, %v2373
      %2407 = vst.msk [vmem:[%s175 + $0x78] sm:$0xff] %vm2391, %v2374
      %2408 = vst.msk [vmem:[%s175 + $0x80] sm:$0xff] %vm2391, %v2375
      %2409 = vst.msk [vmem:[%s175 + $0x88] sm:$0xff] %vm2391, %v2376
      %2410 = vst.msk [vmem:[%s175 + $0x90] sm:$0xff] %vm2391, %v2377
      %2411 = vst.msk [vmem:[%s175 + $0x98] sm:$0xff] %vm2391, %v2378
      %2412 = vst.msk [vmem:[%s175 + $0xa0] sm:$0xff] %vm2391, %v2379
      %2413 = vst.msk [vmem:[%s175 + $0xa8] sm:$0xff] %vm2391, %v2380
      %2414 = vst.msk [vmem:[%s175 + $0xb0] sm:$0xff] %vm2391, %v2381
      %2415 = vst.msk [vmem:[%s175 + $0xb8] sm:$0xff] %vm2391, %v2382
      %2416 = vst.msk [vmem:[%s175 + $0xc0] sm:$0xff] %vm2391, %v2383
      %2417 = vst.msk [vmem:[%s175 + $0xc8] sm:$0xff] %vm2391, %v2384
      %2418 = vst.msk [vmem:[%s175 + $0xd0] sm:$0xff] %vm2391, %v2385
      %2419 = vst.msk [vmem:[%s175 + $0xd8] sm:$0xff] %vm2391, %v2386
      %2420 = vst.msk [vmem:[%s175 + $0xe0] sm:$0xff] %vm2391, %v2387
      %2421 = vst.msk [vmem:[%s175 + $0xe8] sm:$0xff] %vm2391, %v2388
      %2422 = vst.msk [vmem:[%s175 + $0xf0] sm:$0xff] %vm2391, %v2389
      %2423 = vst.msk [vmem:[%s175 + $0xf8] sm:$0xff] %vm2391, %v2390
      %s2424 = smul.u32 32, %s14
      %p2425 = scmp.lt.s32.totalorder %s2424, 63
      %s2426 = scalar_select %p2425, %s2424, 63
      %s2427 = smul.addr %s2426, 8
      %s2428 = scalar_lea.vmem %s3, %s2427
      // Predicated region
      $region33: #{generator_forward.39} parent=31 // pred_check
        %p2429 = pneg %p100
      $region34: #{generator_forward.39} parent=31 // pred_check_branch
        %2431 = sbr.rel (%p2429) target = $region36
      $region35: #{generator_forward.39} parent=31 // pred_region
        %s2432 = smul.u32 32, %s14
      $region36: #{generator_forward.39} parent=31 // pred_fallthru
        _
    $region32: #{generator_forward.39} parent=5 // pred_fallthru
      _
    %p2433 = scmp.le.s32.totalorder 2, %s9
    // Predicated region
    $region37: #{generator_forward.39} parent=5 // pred_check
      %p2434 = pneg %p2433
    $region38: #{generator_forward.39} parent=5 // pred_check_branch
      %2436 = sbr.rel (%p2434) target = $region40
    $region39: #{generator_forward.39} parent=5 // pred_region
      %s2437 = ssub.s32 %s9, 2
      // Predicated region
      $region41: #{generator_forward.39} parent=39 // pred_check
        %p2438 = pneg %p106
      $region42: #{generator_forward.39} parent=39 // pred_check_branch
        %2440 = sbr.rel (%p2438) target = $region44
      $region43: #{generator_forward.39} parent=39 // pred_region
        %s2441 = smul.u32 32, %s15
        %p2442 = scmp.lt.s32.totalorder %s2441, 63
        %s2443 = scalar_select %p2442, %s2441, 63
        %s2444 = smul.addr %s2443, 8
        %s2445 = scalar_lea.vmem %s3, %s2444
      $region44: #{generator_forward.39} parent=39 // pred_fallthru
        _
    $region40: #{generator_forward.39} parent=5 // pred_fallthru
      _
  $region6: #{generator_forward.39} parent=0 // loop_footer
    %s13 = sadd.s32 1, %s9
  $region7: #{generator_forward.39} parent=0 // loop_footer_branch
    %8 = sbr.rel target = $region3
  $region8: #{generator_forward.39} parent=0 // loop_exit
    _

</llo_original>
